<compile_context>
chip_gen: v7x
topology: tpu7x:2x2x1
jax: 0.10.0
libtpu: 0.0.40
codegen_flags: <defaults>
</compile_context>

<pallas_src>
import functools

import jax
import jax.numpy as jnp
from jax.experimental import pallas as pl
from jax.experimental.pallas import tpu as pltpu

_COMPUTE_DTYPE = jnp.bfloat16   # MXU operand dtype; accumulation stays f32
_LANE = 128


def _round_up(a, b):
    return (a + b - 1) // b * b


def _pad_dim(a, size, axis):
    pad = size - a.shape[axis]
    if pad == 0:
        return a
    widths = [(0, 0)] * a.ndim
    widths[axis] = (0, pad)
    return jnp.pad(a, widths)


def _pick_tile_h(H, target=8):
    for t in (target, 4, 2):
        if t <= H and H % t == 0:
            return t
    return H


# ----------------------------- Pallas kernels ------------------------------ #

def _conv3x3_tile(i, x_top_ref, x_mid_ref, x_bot_ref, w_ref, b_ref, pad_ref,
                  xp_scr, *, tile_h, W):
    """3x3 "same" conv on one (tile_h, W) spatial row-tile of one image.

    x_top_ref/x_bot_ref : (1, 1, W, Cin)     neighbour halo rows (clamped fetch)
    x_mid_ref           : (1, tile_h, W, Cin) interior rows
    w_ref               : (9, Cin, Cout)     tap-major weights (bf16), t = kh*3+kw
    b_ref               : (1, Cout)          bias (f32)
    pad_ref             : (1, Cin)           halo fill value (mean for the folded
                                             backbone conv, zeros for the decoder)
    xp_scr              : (rows_alloc, Cin)  flat 2D bf16 halo buffer; row-major
                                             over (padded_row, padded_col)

    Returns the post-bias+ReLU activation for tile_h*(W+2) "extended" output rows
    as an f32 value; the 2 garbage columns per image row are dropped by the caller.
    """
    Wp = W + 2
    Cout = w_ref.shape[-1]
    m_ext = tile_h * Wp
    cdt = xp_scr.dtype

    # Halo ring / overflow fill (single cheap bf16 broadcast store).  A
    # first-step-only guard would be unsafe: with a parallel grid each TensorCore
    # owns its own scratch, and there is no portable "first step on this core".
    xp_scr[...] = jnp.broadcast_to(pad_ref[...].astype(cdt), xp_scr.shape)

    # Interior + neighbour halo rows: contiguous row-range stores only
    # (no strided 3-D slices anywhere in this kernel).
    @pl.when(i > 0)
    def _():
        xp_scr[1:1 + W, :] = x_top_ref[0, 0].astype(cdt)

    for r in range(tile_h):
        base = (r + 1) * Wp + 1
        xp_scr[base:base + W, :] = x_mid_ref[0, r].astype(cdt)

    @pl.when(i < pl.num_programs(1) - 1)
    def _():
        base = (tile_h + 1) * Wp + 1
        xp_scr[base:base + W, :] = x_bot_ref[0, 0].astype(cdt)

    # Nine taps = nine contiguous row-offset views of the flat buffer -> K=Cin
    # matmuls straight off VMEM (with 128-padded hidden channels K=128).
    # TODO(synk): packing all 9 taps into one K=9*Cin matmul would fill the MXU
    # even better at the price of rebuilding a patch buffer per step.
    acc = jnp.zeros((m_ext, Cout), jnp.float32)
    for t in range(9):
        kh, kw = divmod(t, 3)
        off = kh * Wp + kw
        acc = acc + jnp.dot(xp_scr[off:off + m_ext, :], w_ref[t],
                            preferred_element_type=jnp.float32)
    acc = acc + b_ref[...]            # f32 bias epilogue (v5e-safe)
    return jnp.maximum(acc, 0.0)      # both convs are followed by ReLU


def _store_rows(o_ref, act_ext, *, tile_h, W):
    """Drop the 2 garbage columns per row and store lane-dense output rows."""
    Wp = W + 2
    for r in range(tile_h):
        o_ref[0, r] = act_ext[r * Wp:r * Wp + W, :].astype(o_ref.dtype)


def _conv3x3_relu_kernel(x_top, x_mid, x_bot, w, b, pad, o_ref, xp_scr,
                         *, tile_h, W):
    i = pl.program_id(1)
    act = _conv3x3_tile(i, x_top, x_mid, x_bot, w, b, pad, xp_scr,
                        tile_h=tile_h, W=W)
    _store_rows(o_ref, act, tile_h=tile_h, W=W)


def _conv3x3_relu_head_kernel(x_top, x_mid, x_bot, w, b, pad,
                              wp, bp, wc, bc, o_ref, xp_scr, *, tile_h, W):
    """Decoder 3x3 conv + ReLU with the fused 1x1 head applied in the epilogue
    (projector + bias + ReLU -> classifier + bias) -> no h2 HBM round trip."""
    i = pl.program_id(1)
    act = _conv3x3_tile(i, x_top, x_mid, x_bot, w, b, pad, xp_scr,
                        tile_h=tile_h, W=W)
    hid = jnp.dot(act.astype(_COMPUTE_DTYPE), wp[...],
                  preferred_element_type=jnp.float32) + bp[...]
    hid = jnp.maximum(hid, 0.0)
    logits = jnp.dot(hid.astype(_COMPUTE_DTYPE), wc[...],
                     preferred_element_type=jnp.float32) + bc[...]
    _store_rows(o_ref, logits, tile_h=tile_h, W=W)


# ------------------------------ call wrappers ------------------------------- #

def _conv3x3_pallas(x, w_taps, b, pad_val, head=None, *, out_dtype, tile_h=8):
    """x: (N,H,W,Cin) -> (N,H,W,Cout) (or (N,H,W,NCpad) if `head` is fused).

    Grid = (image, row-tile), both parallel; weights/biases pinned in VMEM.
    Halos come from two extra BlockSpec inputs on the same array with clamped
    index_maps, so the whole thing stays on the auto-pipelined BlockSpec path.
    """
    N, H, W, Cin = x.shape
    Cout = w_taps.shape[-1]
    tH = _pick_tile_h(H, tile_h)
    n_tiles = H // tH
    Wp = W + 2
    # +2 rows cover the tap-offset overflow of the garbage columns; round to 8.
    rows_alloc = _round_up((tH + 2) * Wp + 2, 8)

    x_top = pl.BlockSpec((1, 1, W, Cin),
                         lambda n, i: (n, jnp.maximum(i * tH - 1, 0), 0, 0))
    x_mid = pl.BlockSpec((1, tH, W, Cin), lambda n, i: (n, i, 0, 0))
    x_bot = pl.BlockSpec((1, 1, W, Cin),
                         lambda n, i: (n, jnp.minimum(i * tH + tH, H - 1), 0, 0))

    def pinned(shape):
        return pl.BlockSpec(shape, lambda n, i, _s=shape: (0,) * len(_s))

    in_specs = [x_top, x_mid, x_bot,
                pinned((9, Cin, Cout)), pinned((1, Cout)), pinned((1, Cin))]
    inputs = [x, x, x, w_taps, b, pad_val]

    flops = 2 * N * H * W * 9 * Cin * Cout
    out_ch = Cout
    if head is None:
        kernel = functools.partial(_conv3x3_relu_kernel, tile_h=tH, W=W)
    else:
        wp, bp, wc, bc = head
        out_ch = wc.shape[-1]
        in_specs += [pinned(wp.shape), pinned(bp.shape),
                     pinned(wc.shape), pinned(bc.shape)]
        inputs += [wp, bp, wc, bc]
        flops += 2 * N * H * W * (Cout * wp.shape[-1] + wp.shape[-1] * out_ch)
        kernel = functools.partial(_conv3x3_relu_head_kernel, tile_h=tH, W=W)

    bytes_accessed = int(
        x.size * x.dtype.itemsize
        + sum(int(a.size) * a.dtype.itemsize for a in inputs[3:])
        + N * H * W * out_ch * jnp.dtype(out_dtype).itemsize)

    return pl.pallas_call(
        kernel,
        out_shape=jax.ShapeDtypeStruct((N, H, W, out_ch), out_dtype),
        grid=(N, n_tiles),
        in_specs=in_specs,
        out_specs=pl.BlockSpec((1, tH, W, out_ch), lambda n, i: (n, i, 0, 0)),
        scratch_shapes=[pltpu.VMEM((rows_alloc, Cin), _COMPUTE_DTYPE)],
        compiler_params=pltpu.CompilerParams(
            dimension_semantics=("parallel", "parallel"),
            # Tiles are small (row-tiled); keep well under v7x's 64 MiB/TC.
            vmem_limit_bytes=32 * 1024 * 1024,
        ),
        cost_estimate=pl.CostEstimate(flops=int(flops), transcendentals=0,
                                      bytes_accessed=bytes_accessed),
    )(*inputs)


# ------------------------------- JAX glue ---------------------------------- #

def conv3x3_weight_to_taps(w_oihw):
    """PyTorch conv weight (Cout, Cin, 3, 3) -> (9, Cin, Cout), tap t = kh*3+kw."""
    cout, cin = w_oihw.shape[0], w_oihw.shape[1]
    return jnp.transpose(w_oihw, (2, 3, 1, 0)).reshape(9, cin, cout)


def conv1x1_weight_to_mat(w_oihw):
    """(Cout, Cin, 1, 1) -> (Cin, Cout)."""
    return jnp.transpose(w_oihw[:, :, 0, 0], (1, 0))


def init_params(key, in_ch, hidden, num_classes):
    ks = jax.random.split(key, 8)
    def conv_w(k, cout, cin, kh, kw):
        fan_in = cin * kh * kw
        return (jax.random.normal(k, (cout, cin, kh, kw), jnp.float32)
                * (1.0 / jnp.sqrt(fan_in)))
    return {
        "backbone_w":  conv_w(ks[0], hidden, in_ch, 3, 3),
        "backbone_b":  jax.random.normal(ks[1], (1, hidden), jnp.float32) * 0.01,
        "decoder_w":   conv_w(ks[2], hidden, hidden, 3, 3),
        "decoder_b":   jax.random.normal(ks[3], (1, hidden), jnp.float32) * 0.01,
        "projector_w": conv_w(ks[4], hidden, hidden, 1, 1),
        "projector_b": jax.random.normal(ks[5], (1, hidden), jnp.float32) * 0.01,
        "cls_w":       conv_w(ks[6], num_classes, hidden, 1, 1),
        "cls_b":       jax.random.normal(ks[7], (1, num_classes), jnp.float32) * 0.01,
    }


# TODO(synk): forward_train / compute_unbiased_grad / compute_indicator_grad paths
# (autograd, BackPACK per-sample grads, EMA teacher update, torch.distributed
# all_gather, kornia-style random augmentations) have no clean Pallas equivalent
# and are not part of the default-mode forward pass.
# TODO(synk): at very large resolutions the Cin=3 backbone conv would benefit
# from a K=27 in-VMEM im2col (or falling back to XLA) instead of this
# channels-last path; at test/typical sizes its cost is negligible.
def mean_teacher_forward_test(image_nchw, params):
    """Equivalent of MeanTeacherLearner.forward(input) with mode=0."""
    N, C, H, W = image_nchw.shape
    hidden = params["backbone_w"].shape[0]
    NC = params["cls_w"].shape[0]
    Cpad = _round_up(hidden, _LANE)
    NCpad = _round_up(NC, _LANE)
    cdt = _COMPUTE_DTYPE

    x = jnp.transpose(image_nchw, (0, 2, 3, 1)).astype(jnp.float32)   # NHWC

    mean = jnp.array([0.485, 0.456, 0.406], jnp.float32)
    std = jnp.array([0.229, 0.224, 0.225], jnp.float32)

    # --- fold normalization into the backbone conv (exact algebraic fusion) ---
    # w' = w / std (per cin); b' = b - sum_{tap,cin} w'[tap,cin,:] * mean[cin];
    # the halo is filled with `mean`, i.e. the raw value whose normalization is 0,
    # so results match conv(zero-padded normalized image) exactly (incl. borders).
    w_bb = conv3x3_weight_to_taps(params["backbone_w"]) / std[None, :, None]
    b_bb = params["backbone_b"] - jnp.einsum("tco,c->o", w_bb, mean)[None, :]
    w_bb = _pad_dim(w_bb, Cpad, axis=2)                    # (9, 3, Cpad)
    b_bb = _pad_dim(b_bb, Cpad, axis=1)                    # (1, Cpad)
    pad_bb = mean[None, :]                                 # (1, 3)

    # --- decoder / head weights with channels zero-padded to 128 lanes ---
    w_dec = _pad_dim(_pad_dim(conv3x3_weight_to_taps(params["decoder_w"]),
                              Cpad, axis=1), Cpad, axis=2)  # (9, Cpad, Cpad)
    b_dec = _pad_dim(params["decoder_b"], Cpad, axis=1)
    pad_dec = jnp.zeros((1, Cpad), jnp.float32)

    wp = _pad_dim(_pad_dim(conv1x1_weight_to_mat(params["projector_w"]),
                           Cpad, axis=0), Cpad, axis=1)     # (Cpad, Cpad)
    bp = _pad_dim(params["projector_b"], Cpad, axis=1)
    wc = _pad_dim(_pad_dim(conv1x1_weight_to_mat(params["cls_w"]),
                           Cpad, axis=0), NCpad, axis=1)    # (Cpad, NCpad)
    bc = _pad_dim(params["cls_b"], NCpad, axis=1)

    # kernel 1: backbone conv3x3 (+ folded normalize) + ReLU -> h1 bf16 (lane-dense)
    h1 = _conv3x3_pallas(x, w_bb.astype(cdt), b_bb, pad_bb, out_dtype=cdt)

    # kernel 2: decoder conv3x3 + ReLU with fused projector(1x1)+ReLU -> classifier(1x1)
    logits = _conv3x3_pallas(h1, w_dec.astype(cdt), b_dec, pad_dec,
                             head=(wp.astype(cdt), bp, wc.astype(cdt), bc),
                             out_dtype=jnp.float32)

    pred = jnp.transpose(logits[..., :NC], (0, 3, 1, 2))
    return pred  # NCHW logits, matching PyTorch convention


# --------------------------- pure-JAX reference ----------------------------- #

def _ref_forward(image_nchw, params):
    N, C, H, W = image_nchw.shape
    x = jnp.transpose(image_nchw, (0, 2, 3, 1)).astype(jnp.float32)
    mean = jnp.array([0.485, 0.456, 0.406], jnp.float32)
    std = jnp.array([0.229, 0.224, 0.225], jnp.float32)
    x = (x - mean) / std

    def conv3(xin, w_oihw, b):
        Hh, Ww = xin.shape[1], xin.shape[2]
        xp = jnp.pad(xin, ((0, 0), (1, 1), (1, 1), (0, 0)))
        wt = jnp.transpose(w_oihw, (2, 3, 1, 0))          # (3,3,Cin,Cout)
        out = jnp.zeros(xin.shape[:3] + (w_oihw.shape[0],), jnp.float32)
        for kh in range(3):
            for kw in range(3):
                out = out + jnp.einsum("nhwc,co->nhwo",
                                       xp[:, kh:kh + Hh, kw:kw + Ww, :], wt[kh, kw])
        return out + b.reshape(1, 1, 1, -1)

    h = jnp.maximum(conv3(x, params["backbone_w"], params["backbone_b"]), 0.0)
    h = jnp.maximum(conv3(h, params["decoder_w"], params["decoder_b"]), 0.0)
    h = jnp.maximum(jnp.einsum("nhwc,co->nhwo", h,
                               conv1x1_weight_to_mat(params["projector_w"]))
                    + params["projector_b"].reshape(1, 1, 1, -1), 0.0)
    logits = (jnp.einsum("nhwc,co->nhwo", h, conv1x1_weight_to_mat(params["cls_w"]))
              + params["cls_b"].reshape(1, 1, 1, -1))
    return jnp.transpose(logits, (0, 3, 1, 2))


if __name__ == "__main__":
    key = jax.random.PRNGKey(0)
    k_img, k_par = jax.random.split(key)

    N, C, H, W = 2, 3, 16, 16       # RGB images (normalize uses 3-channel mean/std)
    hidden, num_classes = 32, 4

    image = jax.random.uniform(k_img, (N, C, H, W), jnp.float32)   # values in [0, 1]
    params = init_params(k_par, C, hidden, num_classes)

    fwd = jax.jit(mean_teacher_forward_test)
    pred = jax.block_until_ready(fwd(image, params))

    assert pred.shape == (N, num_classes, H, W), pred.shape
    assert jnp.all(jnp.isfinite(pred))

    ref = _ref_forward(image, params)
    err = float(jnp.max(jnp.abs(pred - ref)))
    scale = float(jnp.max(jnp.abs(ref)))
    assert err <= 0.1 * scale + 0.1, (err, scale)   # bf16 operands, f32 accumulation

    print("KERNEL_OK")
</pallas_src>

<mosaic_0001>
module attributes {stable_mosaic.version = 11 : i64} {
  func.func @_conv3x3_relu_kernel(%arg0: i32, %arg1: i32, %arg2: memref<1x1x16x3xf32, #tpu.memory_space<vmem>>, %arg3: memref<1x8x16x3xf32, #tpu.memory_space<vmem>>, %arg4: memref<1x1x16x3xf32, #tpu.memory_space<vmem>>, %arg5: memref<9x3x128xbf16, #tpu.memory_space<vmem>>, %arg6: memref<1x128xf32, #tpu.memory_space<vmem>>, %arg7: memref<1x3xf32, #tpu.memory_space<vmem>>, %arg8: memref<1x8x16x128xbf16, #tpu.memory_space<vmem>>, %arg9: memref<184x3xbf16, #tpu.memory_space<vmem>>) attributes {dimension_semantics = [#tpu.dimension_semantics<parallel>, #tpu.dimension_semantics<parallel>], iteration_bounds = array<i64: 2, 2>, scalar_prefetch = 0 : i64, scratch_operands = 1 : i64, tpu.core_type = #tpu.core_type<tc>, window_params = [{transform_indices = @transform_0, window_bounds = array<i64: 1, 1, 16, 3>}, {transform_indices = @transform_1, window_bounds = array<i64: 1, 8, 16, 3>}, {transform_indices = @transform_2, window_bounds = array<i64: 1, 1, 16, 3>}, {pipeline_mode = #tpu.pipeline_mode<synchronous>, transform_indices = @transform_3, window_bounds = array<i64: 9, 3, 128>}, {pipeline_mode = #tpu.pipeline_mode<synchronous>, transform_indices = @transform_4, window_bounds = array<i64: 1, 128>}, {pipeline_mode = #tpu.pipeline_mode<synchronous>, transform_indices = @transform_5, window_bounds = array<i64: 1, 3>}, {transform_indices = @transform_6, window_bounds = array<i64: 1, 8, 16, 128>}]} {
    %c0 = arith.constant 0 : index
    %c0_0 = arith.constant 0 : index
    %0 = vector.load %arg7[%c0, %c0_0] : memref<1x3xf32, #tpu.memory_space<vmem>>, vector<1x3xf32>
    %1 = arith.truncf %0 : vector<1x3xf32> to vector<1x3xbf16>
    %2 = vector.shape_cast %1 : vector<1x3xbf16> to vector<1x3xbf16>
    %3 = vector.broadcast %2 : vector<1x3xbf16> to vector<184x3xbf16>
    %c0_1 = arith.constant 0 : index
    %c0_2 = arith.constant 0 : index
    %4 = vector.load %arg9[%c0_1, %c0_2] : memref<184x3xbf16, #tpu.memory_space<vmem>>, vector<184x3xbf16>
    tpu.vector_store %arg9[%c0_1, %c0_2], %3 {strides = array<i32>} : memref<184x3xbf16, #tpu.memory_space<vmem>>, vector<184x3xbf16>,
    %c0_i32 = arith.constant 0 : i32
    %5 = arith.cmpi sgt, %arg1, %c0_i32 : i32
    %6 = arith.extui %5 : i1 to i32
    %c0_i32_3 = arith.constant 0 : i32
    %7 = arith.cmpi ne, %6, %c0_i32_3 : i32
    scf.if %7 {
      %c0_122 = arith.constant 0 : index
      %c0_123 = arith.constant 0 : index
      %c0_124 = arith.constant 0 : index
      %c0_125 = arith.constant 0 : index
      %134 = vector.load %arg2[%c0_122, %c0_123, %c0_124, %c0_125] : memref<1x1x16x3xf32, #tpu.memory_space<vmem>>, vector<1x1x16x3xf32>
      %135 = vector.shape_cast %134 : vector<1x1x16x3xf32> to vector<16x3xf32>
      %136 = arith.truncf %135 : vector<16x3xf32> to vector<16x3xbf16>
      %c1_126 = arith.constant 1 : index
      %c0_127 = arith.constant 0 : index
      %137 = vector.load %arg9[%c1_126, %c0_127] : memref<184x3xbf16, #tpu.memory_space<vmem>>, vector<16x3xbf16>
      tpu.vector_store %arg9[%c1_126, %c0_127], %136 {strides = array<i32>} : memref<184x3xbf16, #tpu.memory_space<vmem>>, vector<16x3xbf16>,
    } else {
    }
    %c0_4 = arith.constant 0 : index
    %c0_5 = arith.constant 0 : index
    %c0_6 = arith.constant 0 : index
    %c0_7 = arith.constant 0 : index
    %8 = vector.load %arg3[%c0_4, %c0_5, %c0_6, %c0_7] : memref<1x8x16x3xf32, #tpu.memory_space<vmem>>, vector<1x1x16x3xf32>
    %9 = vector.shape_cast %8 : vector<1x1x16x3xf32> to vector<16x3xf32>
    %10 = arith.truncf %9 : vector<16x3xf32> to vector<16x3xbf16>
    %c19 = arith.constant 19 : index
    %c0_8 = arith.constant 0 : index
    %11 = vector.load %arg9[%c19, %c0_8] : memref<184x3xbf16, #tpu.memory_space<vmem>>, vector<16x3xbf16>
    tpu.vector_store %arg9[%c19, %c0_8], %10 {strides = array<i32>} : memref<184x3xbf16, #tpu.memory_space<vmem>>, vector<16x3xbf16>,
    %c0_9 = arith.constant 0 : index
    %c1 = arith.constant 1 : index
    %c0_10 = arith.constant 0 : index
    %c0_11 = arith.constant 0 : index
    %12 = vector.load %arg3[%c0_9, %c1, %c0_10, %c0_11] : memref<1x8x16x3xf32, #tpu.memory_space<vmem>>, vector<1x1x16x3xf32>
    %13 = vector.shape_cast %12 : vector<1x1x16x3xf32> to vector<16x3xf32>
    %14 = arith.truncf %13 : vector<16x3xf32> to vector<16x3xbf16>
    %c37 = arith.constant 37 : index
    %c0_12 = arith.constant 0 : index
    %15 = vector.load %arg9[%c37, %c0_12] : memref<184x3xbf16, #tpu.memory_space<vmem>>, vector<16x3xbf16>
    tpu.vector_store %arg9[%c37, %c0_12], %14 {strides = array<i32>} : memref<184x3xbf16, #tpu.memory_space<vmem>>, vector<16x3xbf16>,
    %c0_13 = arith.constant 0 : index
    %c2 = arith.constant 2 : index
    %c0_14 = arith.constant 0 : index
    %c0_15 = arith.constant 0 : index
    %16 = vector.load %arg3[%c0_13, %c2, %c0_14, %c0_15] : memref<1x8x16x3xf32, #tpu.memory_space<vmem>>, vector<1x1x16x3xf32>
    %17 = vector.shape_cast %16 : vector<1x1x16x3xf32> to vector<16x3xf32>
    %18 = arith.truncf %17 : vector<16x3xf32> to vector<16x3xbf16>
    %c55 = arith.constant 55 : index
    %c0_16 = arith.constant 0 : index
    %19 = vector.load %arg9[%c55, %c0_16] : memref<184x3xbf16, #tpu.memory_space<vmem>>, vector<16x3xbf16>
    tpu.vector_store %arg9[%c55, %c0_16], %18 {strides = array<i32>} : memref<184x3xbf16, #tpu.memory_space<vmem>>, vector<16x3xbf16>,
    %c0_17 = arith.constant 0 : index
    %c3 = arith.constant 3 : index
    %c0_18 = arith.constant 0 : index
    %c0_19 = arith.constant 0 : index
    %20 = vector.load %arg3[%c0_17, %c3, %c0_18, %c0_19] : memref<1x8x16x3xf32, #tpu.memory_space<vmem>>, vector<1x1x16x3xf32>
    %21 = vector.shape_cast %20 : vector<1x1x16x3xf32> to vector<16x3xf32>
    %22 = arith.truncf %21 : vector<16x3xf32> to vector<16x3xbf16>
    %c73 = arith.constant 73 : index
    %c0_20 = arith.constant 0 : index
    %23 = vector.load %arg9[%c73, %c0_20] : memref<184x3xbf16, #tpu.memory_space<vmem>>, vector<16x3xbf16>
    tpu.vector_store %arg9[%c73, %c0_20], %22 {strides = array<i32>} : memref<184x3xbf16, #tpu.memory_space<vmem>>, vector<16x3xbf16>,
    %c0_21 = arith.constant 0 : index
    %c4 = arith.constant 4 : index
    %c0_22 = arith.constant 0 : index
    %c0_23 = arith.constant 0 : index
    %24 = vector.load %arg3[%c0_21, %c4, %c0_22, %c0_23] : memref<1x8x16x3xf32, #tpu.memory_space<vmem>>, vector<1x1x16x3xf32>
    %25 = vector.shape_cast %24 : vector<1x1x16x3xf32> to vector<16x3xf32>
    %26 = arith.truncf %25 : vector<16x3xf32> to vector<16x3xbf16>
    %c91 = arith.constant 91 : index
    %c0_24 = arith.constant 0 : index
    %27 = vector.load %arg9[%c91, %c0_24] : memref<184x3xbf16, #tpu.memory_space<vmem>>, vector<16x3xbf16>
    tpu.vector_store %arg9[%c91, %c0_24], %26 {strides = array<i32>} : memref<184x3xbf16, #tpu.memory_space<vmem>>, vector<16x3xbf16>,
    %c0_25 = arith.constant 0 : index
    %c5 = arith.constant 5 : index
    %c0_26 = arith.constant 0 : index
    %c0_27 = arith.constant 0 : index
    %28 = vector.load %arg3[%c0_25, %c5, %c0_26, %c0_27] : memref<1x8x16x3xf32, #tpu.memory_space<vmem>>, vector<1x1x16x3xf32>
    %29 = vector.shape_cast %28 : vector<1x1x16x3xf32> to vector<16x3xf32>
    %30 = arith.truncf %29 : vector<16x3xf32> to vector<16x3xbf16>
    %c109 = arith.constant 109 : index
    %c0_28 = arith.constant 0 : index
    %31 = vector.load %arg9[%c109, %c0_28] : memref<184x3xbf16, #tpu.memory_space<vmem>>, vector<16x3xbf16>
    tpu.vector_store %arg9[%c109, %c0_28], %30 {strides = array<i32>} : memref<184x3xbf16, #tpu.memory_space<vmem>>, vector<16x3xbf16>,
    %c0_29 = arith.constant 0 : index
    %c6 = arith.constant 6 : index
    %c0_30 = arith.constant 0 : index
    %c0_31 = arith.constant 0 : index
    %32 = vector.load %arg3[%c0_29, %c6, %c0_30, %c0_31] : memref<1x8x16x3xf32, #tpu.memory_space<vmem>>, vector<1x1x16x3xf32>
    %33 = vector.shape_cast %32 : vector<1x1x16x3xf32> to vector<16x3xf32>
    %34 = arith.truncf %33 : vector<16x3xf32> to vector<16x3xbf16>
    %c127 = arith.constant 127 : index
    %c0_32 = arith.constant 0 : index
    %35 = vector.load %arg9[%c127, %c0_32] : memref<184x3xbf16, #tpu.memory_space<vmem>>, vector<16x3xbf16>
    tpu.vector_store %arg9[%c127, %c0_32], %34 {strides = array<i32>} : memref<184x3xbf16, #tpu.memory_space<vmem>>, vector<16x3xbf16>,
    %c0_33 = arith.constant 0 : index
    %c7 = arith.constant 7 : index
    %c0_34 = arith.constant 0 : index
    %c0_35 = arith.constant 0 : index
    %36 = vector.load %arg3[%c0_33, %c7, %c0_34, %c0_35] : memref<1x8x16x3xf32, #tpu.memory_space<vmem>>, vector<1x1x16x3xf32>
    %37 = vector.shape_cast %36 : vector<1x1x16x3xf32> to vector<16x3xf32>
    %38 = arith.truncf %37 : vector<16x3xf32> to vector<16x3xbf16>
    %c145 = arith.constant 145 : index
    %c0_36 = arith.constant 0 : index
    %39 = vector.load %arg9[%c145, %c0_36] : memref<184x3xbf16, #tpu.memory_space<vmem>>, vector<16x3xbf16>
    tpu.vector_store %arg9[%c145, %c0_36], %38 {strides = array<i32>} : memref<184x3xbf16, #tpu.memory_space<vmem>>, vector<16x3xbf16>,
    %c1_i32 = arith.constant 1 : i32
    %40 = arith.cmpi slt, %arg1, %c1_i32 : i32
    %41 = arith.extui %40 : i1 to i32
    %c0_i32_37 = arith.constant 0 : i32
    %42 = arith.cmpi ne, %41, %c0_i32_37 : i32
    scf.if %42 {
      %c0_122 = arith.constant 0 : index
      %c0_123 = arith.constant 0 : index
      %c0_124 = arith.constant 0 : index
      %c0_125 = arith.constant 0 : index
      %134 = vector.load %arg4[%c0_122, %c0_123, %c0_124, %c0_125] : memref<1x1x16x3xf32, #tpu.memory_space<vmem>>, vector<1x1x16x3xf32>
      %135 = vector.shape_cast %134 : vector<1x1x16x3xf32> to vector<16x3xf32>
      %136 = arith.truncf %135 : vector<16x3xf32> to vector<16x3xbf16>
      %c163 = arith.constant 163 : index
      %c0_126 = arith.constant 0 : index
      %137 = vector.load %arg9[%c163, %c0_126] : memref<184x3xbf16, #tpu.memory_space<vmem>>, vector<16x3xbf16>
      tpu.vector_store %arg9[%c163, %c0_126], %136 {strides = array<i32>} : memref<184x3xbf16, #tpu.memory_space<vmem>>, vector<16x3xbf16>,
    } else {
    }
    %cst = arith.constant 0.000000e+00 : f32
    %43 = vector.broadcast %cst : f32 to vector<144x128xf32>
    %c0_38 = arith.constant 0 : index
    %c0_39 = arith.constant 0 : index
    %44 = vector.load %arg9[%c0_38, %c0_39] : memref<184x3xbf16, #tpu.memory_space<vmem>>, vector<144x3xbf16>
    %c0_40 = arith.constant 0 : index
    %c0_41 = arith.constant 0 : index
    %c0_42 = arith.constant 0 : index
    %45 = vector.load %arg5[%c0_40, %c0_41, %c0_42] : memref<9x3x128xbf16, #tpu.memory_space<vmem>>, vector<1x3x128xbf16>
    %46 = vector.shape_cast %45 : vector<1x3x128xbf16> to vector<3x128xbf16>
    %cst_43 = arith.constant dense<0.000000e+00> : vector<144x128xf32>
    %47 = tpu.matmul %44, %46, %cst_43 {dimension_numbers = #tpu.dot_dimension_numbers<[1], [0], [0], [1], [0, 0, 1, 1], [], []>} : vector<144x3xbf16>, vector<3x128xbf16>, vector<144x128xf32> -> vector<144x128xf32>
    %48 = arith.addf %43, %47 : vector<144x128xf32>
    %c1_44 = arith.constant 1 : index
    %c0_45 = arith.constant 0 : index
    %49 = vector.load %arg9[%c1_44, %c0_45] : memref<184x3xbf16, #tpu.memory_space<vmem>>, vector<144x3xbf16>
    %c1_46 = arith.constant 1 : index
    %c0_47 = arith.constant 0 : index
    %c0_48 = arith.constant 0 : index
    %50 = vector.load %arg5[%c1_46, %c0_47, %c0_48] : memref<9x3x128xbf16, #tpu.memory_space<vmem>>, vector<1x3x128xbf16>
    %51 = vector.shape_cast %50 : vector<1x3x128xbf16> to vector<3x128xbf16>
    %cst_49 = arith.constant dense<0.000000e+00> : vector<144x128xf32>
    %52 = tpu.matmul %49, %51, %cst_49 {dimension_numbers = #tpu.dot_dimension_numbers<[1], [0], [0], [1], [0, 0, 1, 1], [], []>} : vector<144x3xbf16>, vector<3x128xbf16>, vector<144x128xf32> -> vector<144x128xf32>
    %53 = arith.addf %48, %52 : vector<144x128xf32>
    %c2_50 = arith.constant 2 : index
    %c0_51 = arith.constant 0 : index
    %54 = vector.load %arg9[%c2_50, %c0_51] : memref<184x3xbf16, #tpu.memory_space<vmem>>, vector<144x3xbf16>
    %c2_52 = arith.constant 2 : index
    %c0_53 = arith.constant 0 : index
    %c0_54 = arith.constant 0 : index
    %55 = vector.load %arg5[%c2_52, %c0_53, %c0_54] : memref<9x3x128xbf16, #tpu.memory_space<vmem>>, vector<1x3x128xbf16>
    %56 = vector.shape_cast %55 : vector<1x3x128xbf16> to vector<3x128xbf16>
    %cst_55 = arith.constant dense<0.000000e+00> : vector<144x128xf32>
    %57 = tpu.matmul %54, %56, %cst_55 {dimension_numbers = #tpu.dot_dimension_numbers<[1], [0], [0], [1], [0, 0, 1, 1], [], []>} : vector<144x3xbf16>, vector<3x128xbf16>, vector<144x128xf32> -> vector<144x128xf32>
    %58 = arith.addf %53, %57 : vector<144x128xf32>
    %c18 = arith.constant 18 : index
    %c0_56 = arith.constant 0 : index
    %59 = vector.load %arg9[%c18, %c0_56] : memref<184x3xbf16, #tpu.memory_space<vmem>>, vector<144x3xbf16>
    %c3_57 = arith.constant 3 : index
    %c0_58 = arith.constant 0 : index
    %c0_59 = arith.constant 0 : index
    %60 = vector.load %arg5[%c3_57, %c0_58, %c0_59] : memref<9x3x128xbf16, #tpu.memory_space<vmem>>, vector<1x3x128xbf16>
    %61 = vector.shape_cast %60 : vector<1x3x128xbf16> to vector<3x128xbf16>
    %cst_60 = arith.constant dense<0.000000e+00> : vector<144x128xf32>
    %62 = tpu.matmul %59, %61, %cst_60 {dimension_numbers = #tpu.dot_dimension_numbers<[1], [0], [0], [1], [0, 0, 1, 1], [], []>} : vector<144x3xbf16>, vector<3x128xbf16>, vector<144x128xf32> -> vector<144x128xf32>
    %63 = arith.addf %58, %62 : vector<144x128xf32>
    %c19_61 = arith.constant 19 : index
    %c0_62 = arith.constant 0 : index
    %64 = vector.load %arg9[%c19_61, %c0_62] : memref<184x3xbf16, #tpu.memory_space<vmem>>, vector<144x3xbf16>
    %c4_63 = arith.constant 4 : index
    %c0_64 = arith.constant 0 : index
    %c0_65 = arith.constant 0 : index
    %65 = vector.load %arg5[%c4_63, %c0_64, %c0_65] : memref<9x3x128xbf16, #tpu.memory_space<vmem>>, vector<1x3x128xbf16>
    %66 = vector.shape_cast %65 : vector<1x3x128xbf16> to vector<3x128xbf16>
    %cst_66 = arith.constant dense<0.000000e+00> : vector<144x128xf32>
    %67 = tpu.matmul %64, %66, %cst_66 {dimension_numbers = #tpu.dot_dimension_numbers<[1], [0], [0], [1], [0, 0, 1, 1], [], []>} : vector<144x3xbf16>, vector<3x128xbf16>, vector<144x128xf32> -> vector<144x128xf32>
    %68 = arith.addf %63, %67 : vector<144x128xf32>
    %c20 = arith.constant 20 : index
    %c0_67 = arith.constant 0 : index
    %69 = vector.load %arg9[%c20, %c0_67] : memref<184x3xbf16, #tpu.memory_space<vmem>>, vector<144x3xbf16>
    %c5_68 = arith.constant 5 : index
    %c0_69 = arith.constant 0 : index
    %c0_70 = arith.constant 0 : index
    %70 = vector.load %arg5[%c5_68, %c0_69, %c0_70] : memref<9x3x128xbf16, #tpu.memory_space<vmem>>, vector<1x3x128xbf16>
    %71 = vector.shape_cast %70 : vector<1x3x128xbf16> to vector<3x128xbf16>
    %cst_71 = arith.constant dense<0.000000e+00> : vector<144x128xf32>
    %72 = tpu.matmul %69, %71, %cst_71 {dimension_numbers = #tpu.dot_dimension_numbers<[1], [0], [0], [1], [0, 0, 1, 1], [], []>} : vector<144x3xbf16>, vector<3x128xbf16>, vector<144x128xf32> -> vector<144x128xf32>
    %73 = arith.addf %68, %72 : vector<144x128xf32>
    %c36 = arith.constant 36 : index
    %c0_72 = arith.constant 0 : index
    %74 = vector.load %arg9[%c36, %c0_72] : memref<184x3xbf16, #tpu.memory_space<vmem>>, vector<144x3xbf16>
    %c6_73 = arith.constant 6 : index
    %c0_74 = arith.constant 0 : index
    %c0_75 = arith.constant 0 : index
    %75 = vector.load %arg5[%c6_73, %c0_74, %c0_75] : memref<9x3x128xbf16, #tpu.memory_space<vmem>>, vector<1x3x128xbf16>
    %76 = vector.shape_cast %75 : vector<1x3x128xbf16> to vector<3x128xbf16>
    %cst_76 = arith.constant dense<0.000000e+00> : vector<144x128xf32>
    %77 = tpu.matmul %74, %76, %cst_76 {dimension_numbers = #tpu.dot_dimension_numbers<[1], [0], [0], [1], [0, 0, 1, 1], [], []>} : vector<144x3xbf16>, vector<3x128xbf16>, vector<144x128xf32> -> vector<144x128xf32>
    %78 = arith.addf %73, %77 : vector<144x128xf32>
    %c37_77 = arith.constant 37 : index
    %c0_78 = arith.constant 0 : index
    %79 = vector.load %arg9[%c37_77, %c0_78] : memref<184x3xbf16, #tpu.memory_space<vmem>>, vector<144x3xbf16>
    %c7_79 = arith.constant 7 : index
    %c0_80 = arith.constant 0 : index
    %c0_81 = arith.constant 0 : index
    %80 = vector.load %arg5[%c7_79, %c0_80, %c0_81] : memref<9x3x128xbf16, #tpu.memory_space<vmem>>, vector<1x3x128xbf16>
    %81 = vector.shape_cast %80 : vector<1x3x128xbf16> to vector<3x128xbf16>
    %cst_82 = arith.constant dense<0.000000e+00> : vector<144x128xf32>
    %82 = tpu.matmul %79, %81, %cst_82 {dimension_numbers = #tpu.dot_dimension_numbers<[1], [0], [0], [1], [0, 0, 1, 1], [], []>} : vector<144x3xbf16>, vector<3x128xbf16>, vector<144x128xf32> -> vector<144x128xf32>
    %83 = arith.addf %78, %82 : vector<144x128xf32>
    %c38 = arith.constant 38 : index
    %c0_83 = arith.constant 0 : index
    %84 = vector.load %arg9[%c38, %c0_83] : memref<184x3xbf16, #tpu.memory_space<vmem>>, vector<144x3xbf16>
    %c8 = arith.constant 8 : index
    %c0_84 = arith.constant 0 : index
    %c0_85 = arith.constant 0 : index
    %85 = vector.load %arg5[%c8, %c0_84, %c0_85] : memref<9x3x128xbf16, #tpu.memory_space<vmem>>, vector<1x3x128xbf16>
    %86 = vector.shape_cast %85 : vector<1x3x128xbf16> to vector<3x128xbf16>
    %cst_86 = arith.constant dense<0.000000e+00> : vector<144x128xf32>
    %87 = tpu.matmul %84, %86, %cst_86 {dimension_numbers = #tpu.dot_dimension_numbers<[1], [0], [0], [1], [0, 0, 1, 1], [], []>} : vector<144x3xbf16>, vector<3x128xbf16>, vector<144x128xf32> -> vector<144x128xf32>
    %88 = arith.addf %83, %87 : vector<144x128xf32>
    %c0_87 = arith.constant 0 : index
    %c0_88 = arith.constant 0 : index
    %89 = vector.load %arg6[%c0_87, %c0_88] : memref<1x128xf32, #tpu.memory_space<vmem>>, vector<1x128xf32>
    %90 = vector.broadcast %89 : vector<1x128xf32> to vector<144x128xf32>
    %91 = arith.addf %88, %90 : vector<144x128xf32>
    %cst_89 = arith.constant 0.000000e+00 : f32
    %92 = vector.broadcast %cst_89 : f32 to vector<144x128xf32>
    %93 = arith.maximumf %91, %92 : vector<144x128xf32>
    %94 = vector.extract_strided_slice %93 {offsets = [0, 0], sizes = [16, 128], strides = [1, 1]} : vector<144x128xf32> to vector<16x128xf32>
    %95 = arith.truncf %94 : vector<16x128xf32> to vector<16x128xbf16>
    %c0_90 = arith.constant 0 : index
    %c0_91 = arith.constant 0 : index
    %c0_92 = arith.constant 0 : index
    %c0_93 = arith.constant 0 : index
    %96 = vector.load %arg8[%c0_90, %c0_91, %c0_92, %c0_93] : memref<1x8x16x128xbf16, #tpu.memory_space<vmem>>, vector<1x1x16x128xbf16>
    %97 = vector.shape_cast %96 : vector<1x1x16x128xbf16> to vector<16x128xbf16>
    %98 = vector.shape_cast %95 : vector<16x128xbf16> to vector<1x1x16x128xbf16>
    tpu.vector_store %arg8[%c0_90, %c0_91, %c0_92, %c0_93], %98 {strides = array<i32>} : memref<1x8x16x128xbf16, #tpu.memory_space<vmem>>, vector<1x1x16x128xbf16>,
    %99 = vector.extract_strided_slice %93 {offsets = [18, 0], sizes = [16, 128], strides = [1, 1]} : vector<144x128xf32> to vector<16x128xf32>
    %100 = arith.truncf %99 : vector<16x128xf32> to vector<16x128xbf16>
    %c0_94 = arith.constant 0 : index
    %c1_95 = arith.constant 1 : index
    %c0_96 = arith.constant 0 : index
    %c0_97 = arith.constant 0 : index
    %101 = vector.load %arg8[%c0_94, %c1_95, %c0_96, %c0_97] : memref<1x8x16x128xbf16, #tpu.memory_space<vmem>>, vector<1x1x16x128xbf16>
    %102 = vector.shape_cast %101 : vector<1x1x16x128xbf16> to vector<16x128xbf16>
    %103 = vector.shape_cast %100 : vector<16x128xbf16> to vector<1x1x16x128xbf16>
    tpu.vector_store %arg8[%c0_94, %c1_95, %c0_96, %c0_97], %103 {strides = array<i32>} : memref<1x8x16x128xbf16, #tpu.memory_space<vmem>>, vector<1x1x16x128xbf16>,
    %104 = vector.extract_strided_slice %93 {offsets = [36, 0], sizes = [16, 128], strides = [1, 1]} : vector<144x128xf32> to vector<16x128xf32>
    %105 = arith.truncf %104 : vector<16x128xf32> to vector<16x128xbf16>
    %c0_98 = arith.constant 0 : index
    %c2_99 = arith.constant 2 : index
    %c0_100 = arith.constant 0 : index
    %c0_101 = arith.constant 0 : index
    %106 = vector.load %arg8[%c0_98, %c2_99, %c0_100, %c0_101] : memref<1x8x16x128xbf16, #tpu.memory_space<vmem>>, vector<1x1x16x128xbf16>
    %107 = vector.shape_cast %106 : vector<1x1x16x128xbf16> to vector<16x128xbf16>
    %108 = vector.shape_cast %105 : vector<16x128xbf16> to vector<1x1x16x128xbf16>
    tpu.vector_store %arg8[%c0_98, %c2_99, %c0_100, %c0_101], %108 {strides = array<i32>} : memref<1x8x16x128xbf16, #tpu.memory_space<vmem>>, vector<1x1x16x128xbf16>,
    %109 = vector.extract_strided_slice %93 {offsets = [54, 0], sizes = [16, 128], strides = [1, 1]} : vector<144x128xf32> to vector<16x128xf32>
    %110 = arith.truncf %109 : vector<16x128xf32> to vector<16x128xbf16>
    %c0_102 = arith.constant 0 : index
    %c3_103 = arith.constant 3 : index
    %c0_104 = arith.constant 0 : index
    %c0_105 = arith.constant 0 : index
    %111 = vector.load %arg8[%c0_102, %c3_103, %c0_104, %c0_105] : memref<1x8x16x128xbf16, #tpu.memory_space<vmem>>, vector<1x1x16x128xbf16>
    %112 = vector.shape_cast %111 : vector<1x1x16x128xbf16> to vector<16x128xbf16>
    %113 = vector.shape_cast %110 : vector<16x128xbf16> to vector<1x1x16x128xbf16>
    tpu.vector_store %arg8[%c0_102, %c3_103, %c0_104, %c0_105], %113 {strides = array<i32>} : memref<1x8x16x128xbf16, #tpu.memory_space<vmem>>, vector<1x1x16x128xbf16>,
    %114 = vector.extract_strided_slice %93 {offsets = [72, 0], sizes = [16, 128], strides = [1, 1]} : vector<144x128xf32> to vector<16x128xf32>
    %115 = arith.truncf %114 : vector<16x128xf32> to vector<16x128xbf16>
    %c0_106 = arith.constant 0 : index
    %c4_107 = arith.constant 4 : index
    %c0_108 = arith.constant 0 : index
    %c0_109 = arith.constant 0 : index
    %116 = vector.load %arg8[%c0_106, %c4_107, %c0_108, %c0_109] : memref<1x8x16x128xbf16, #tpu.memory_space<vmem>>, vector<1x1x16x128xbf16>
    %117 = vector.shape_cast %116 : vector<1x1x16x128xbf16> to vector<16x128xbf16>
    %118 = vector.shape_cast %115 : vector<16x128xbf16> to vector<1x1x16x128xbf16>
    tpu.vector_store %arg8[%c0_106, %c4_107, %c0_108, %c0_109], %118 {strides = array<i32>} : memref<1x8x16x128xbf16, #tpu.memory_space<vmem>>, vector<1x1x16x128xbf16>,
    %119 = vector.extract_strided_slice %93 {offsets = [90, 0], sizes = [16, 128], strides = [1, 1]} : vector<144x128xf32> to vector<16x128xf32>
    %120 = arith.truncf %119 : vector<16x128xf32> to vector<16x128xbf16>
    %c0_110 = arith.constant 0 : index
    %c5_111 = arith.constant 5 : index
    %c0_112 = arith.constant 0 : index
    %c0_113 = arith.constant 0 : index
    %121 = vector.load %arg8[%c0_110, %c5_111, %c0_112, %c0_113] : memref<1x8x16x128xbf16, #tpu.memory_space<vmem>>, vector<1x1x16x128xbf16>
    %122 = vector.shape_cast %121 : vector<1x1x16x128xbf16> to vector<16x128xbf16>
    %123 = vector.shape_cast %120 : vector<16x128xbf16> to vector<1x1x16x128xbf16>
    tpu.vector_store %arg8[%c0_110, %c5_111, %c0_112, %c0_113], %123 {strides = array<i32>} : memref<1x8x16x128xbf16, #tpu.memory_space<vmem>>, vector<1x1x16x128xbf16>,
    %124 = vector.extract_strided_slice %93 {offsets = [108, 0], sizes = [16, 128], strides = [1, 1]} : vector<144x128xf32> to vector<16x128xf32>
    %125 = arith.truncf %124 : vector<16x128xf32> to vector<16x128xbf16>
    %c0_114 = arith.constant 0 : index
    %c6_115 = arith.constant 6 : index
    %c0_116 = arith.constant 0 : index
    %c0_117 = arith.constant 0 : index
    %126 = vector.load %arg8[%c0_114, %c6_115, %c0_116, %c0_117] : memref<1x8x16x128xbf16, #tpu.memory_space<vmem>>, vector<1x1x16x128xbf16>
    %127 = vector.shape_cast %126 : vector<1x1x16x128xbf16> to vector<16x128xbf16>
    %128 = vector.shape_cast %125 : vector<16x128xbf16> to vector<1x1x16x128xbf16>
    tpu.vector_store %arg8[%c0_114, %c6_115, %c0_116, %c0_117], %128 {strides = array<i32>} : memref<1x8x16x128xbf16, #tpu.memory_space<vmem>>, vector<1x1x16x128xbf16>,
    %129 = vector.extract_strided_slice %93 {offsets = [126, 0], sizes = [16, 128], strides = [1, 1]} : vector<144x128xf32> to vector<16x128xf32>
    %130 = arith.truncf %129 : vector<16x128xf32> to vector<16x128xbf16>
    %c0_118 = arith.constant 0 : index
    %c7_119 = arith.constant 7 : index
    %c0_120 = arith.constant 0 : index
    %c0_121 = arith.constant 0 : index
    %131 = vector.load %arg8[%c0_118, %c7_119, %c0_120, %c0_121] : memref<1x8x16x128xbf16, #tpu.memory_space<vmem>>, vector<1x1x16x128xbf16>
    %132 = vector.shape_cast %131 : vector<1x1x16x128xbf16> to vector<16x128xbf16>
    %133 = vector.shape_cast %130 : vector<16x128xbf16> to vector<1x1x16x128xbf16>
    tpu.vector_store %arg8[%c0_118, %c7_119, %c0_120, %c0_121], %133 {strides = array<i32>} : memref<1x8x16x128xbf16, #tpu.memory_space<vmem>>, vector<1x1x16x128xbf16>,
    return
  }
  func.func @transform_0(%arg0: i32, %arg1: i32) -> (i32, i32, i32, i32) {
    %c8_i32 = arith.constant 8 : i32
    %0 = arith.muli %arg1, %c8_i32 : i32
    %c1_i32 = arith.constant 1 : i32
    %1 = arith.subi %0, %c1_i32 : i32
    %c0_i32 = arith.constant 0 : i32
    %2 = arith.maxsi %1, %c0_i32 : i32
    %c0_i32_0 = arith.constant 0 : i32
    %c0_i32_1 = arith.constant 0 : i32
    %c0_i32_2 = arith.constant 0 : i32
    return %arg0, %2, %c0_i32_0, %c0_i32_1 : i32, i32, i32, i32
  }
  func.func @transform_1(%arg0: i32, %arg1: i32) -> (i32, i32, i32, i32) {
    %c0_i32 = arith.constant 0 : i32
    %c0_i32_0 = arith.constant 0 : i32
    %c0_i32_1 = arith.constant 0 : i32
    return %arg0, %arg1, %c0_i32, %c0_i32_0 : i32, i32, i32, i32
  }
  func.func @transform_2(%arg0: i32, %arg1: i32) -> (i32, i32, i32, i32) {
    %c8_i32 = arith.constant 8 : i32
    %0 = arith.muli %arg1, %c8_i32 : i32
    %c8_i32_0 = arith.constant 8 : i32
    %1 = arith.addi %0, %c8_i32_0 : i32
    %c15_i32 = arith.constant 15 : i32
    %2 = arith.minsi %1, %c15_i32 : i32
    %c0_i32 = arith.constant 0 : i32
    %c0_i32_1 = arith.constant 0 : i32
    %c0_i32_2 = arith.constant 0 : i32
    return %arg0, %2, %c0_i32, %c0_i32_1 : i32, i32, i32, i32
  }
  func.func @transform_3(%arg0: i32, %arg1: i32) -> (i32, i32, i32) {
    %c0_i32 = arith.constant 0 : i32
    %c0_i32_0 = arith.constant 0 : i32
    %c0_i32_1 = arith.constant 0 : i32
    %c0_i32_2 = arith.constant 0 : i32
    return %c0_i32, %c0_i32_0, %c0_i32_1 : i32, i32, i32
  }
  func.func @transform_4(%arg0: i32, %arg1: i32) -> (i32, i32) {
    %c0_i32 = arith.constant 0 : i32
    %c0_i32_0 = arith.constant 0 : i32
    %c0_i32_1 = arith.constant 0 : i32
    return %c0_i32, %c0_i32_0 : i32, i32
  }
  func.func @transform_5(%arg0: i32, %arg1: i32) -> (i32, i32) {
    %c0_i32 = arith.constant 0 : i32
    %c0_i32_0 = arith.constant 0 : i32
    %c0_i32_1 = arith.constant 0 : i32
    return %c0_i32, %c0_i32_0 : i32, i32
  }
  func.func @transform_6(%arg0: i32, %arg1: i32) -> (i32, i32, i32, i32) {
    %c0_i32 = arith.constant 0 : i32
    %c0_i32_0 = arith.constant 0 : i32
    %c0_i32_1 = arith.constant 0 : i32
    return %arg0, %arg1, %c0_i32, %c0_i32_0 : i32, i32, i32, i32
  }
}

module attributes {stable_mosaic.version = 11 : i64} {
  func.func @_conv3x3_relu_head_kernel(%arg0: i32, %arg1: i32, %arg2: memref<1x1x16x128xbf16, #tpu.memory_space<vmem>>, %arg3: memref<1x8x16x128xbf16, #tpu.memory_space<vmem>>, %arg4: memref<1x1x16x128xbf16, #tpu.memory_space<vmem>>, %arg5: memref<9x128x128xbf16, #tpu.memory_space<vmem>>, %arg6: memref<1x128xf32, #tpu.memory_space<vmem>>, %arg7: memref<1x128xf32, #tpu.memory_space<vmem>>, %arg8: memref<128x128xbf16, #tpu.memory_space<vmem>>, %arg9: memref<1x128xf32, #tpu.memory_space<vmem>>, %arg10: memref<128x128xbf16, #tpu.memory_space<vmem>>, %arg11: memref<1x128xf32, #tpu.memory_space<vmem>>, %arg12: memref<1x8x16x128xf32, #tpu.memory_space<vmem>>, %arg13: memref<184x128xbf16, #tpu.memory_space<vmem>>) attributes {dimension_semantics = [#tpu.dimension_semantics<parallel>, #tpu.dimension_semantics<parallel>], iteration_bounds = array<i64: 2, 2>, scalar_prefetch = 0 : i64, scratch_operands = 1 : i64, tpu.core_type = #tpu.core_type<tc>, window_params = [{transform_indices = @transform_0, window_bounds = array<i64: 1, 1, 16, 128>}, {transform_indices = @transform_1, window_bounds = array<i64: 1, 8, 16, 128>}, {transform_indices = @transform_2, window_bounds = array<i64: 1, 1, 16, 128>}, {pipeline_mode = #tpu.pipeline_mode<synchronous>, transform_indices = @transform_3, window_bounds = array<i64: 9, 128, 128>}, {pipeline_mode = #tpu.pipeline_mode<synchronous>, transform_indices = @transform_4, window_bounds = array<i64: 1, 128>}, {pipeline_mode = #tpu.pipeline_mode<synchronous>, transform_indices = @transform_5, window_bounds = array<i64: 1, 128>}, {pipeline_mode = #tpu.pipeline_mode<synchronous>, transform_indices = @transform_6, window_bounds = array<i64: 128, 128>}, {pipeline_mode = #tpu.pipeline_mode<synchronous>, transform_indices = @transform_7, window_bounds = array<i64: 1, 128>}, {pipeline_mode = #tpu.pipeline_mode<synchronous>, transform_indices = @transform_8, window_bounds = array<i64: 128, 128>}, {pipeline_mode = #tpu.pipeline_mode<synchronous>, transform_indices = @transform_9, window_bounds = array<i64: 1, 128>}, {transform_indices = @transform_10, window_bounds = array<i64: 1, 8, 16, 128>}]} {
    %c0 = arith.constant 0 : index
    %c0_0 = arith.constant 0 : index
    %0 = vector.load %arg7[%c0, %c0_0] : memref<1x128xf32, #tpu.memory_space<vmem>>, vector<1x128xf32>
    %1 = arith.truncf %0 : vector<1x128xf32> to vector<1x128xbf16>
    %2 = vector.shape_cast %1 : vector<1x128xbf16> to vector<1x128xbf16>
    %3 = vector.broadcast %2 : vector<1x128xbf16> to vector<184x128xbf16>
    %c0_1 = arith.constant 0 : index
    %c0_2 = arith.constant 0 : index
    %4 = vector.load %arg13[%c0_1, %c0_2] : memref<184x128xbf16, #tpu.memory_space<vmem>>, vector<184x128xbf16>
    tpu.vector_store %arg13[%c0_1, %c0_2], %3 {strides = array<i32>} : memref<184x128xbf16, #tpu.memory_space<vmem>>, vector<184x128xbf16>,
    %c0_i32 = arith.constant 0 : i32
    %5 = arith.cmpi sgt, %arg1, %c0_i32 : i32
    %6 = arith.extui %5 : i1 to i32
    %c0_i32_3 = arith.constant 0 : i32
    %7 = arith.cmpi ne, %6, %c0_i32_3 : i32
    scf.if %7 {
      %c0_133 = arith.constant 0 : index
      %c0_134 = arith.constant 0 : index
      %c0_135 = arith.constant 0 : index
      %c0_136 = arith.constant 0 : index
      %132 = vector.load %arg2[%c0_133, %c0_134, %c0_135, %c0_136] : memref<1x1x16x128xbf16, #tpu.memory_space<vmem>>, vector<1x1x16x128xbf16>
      %133 = vector.shape_cast %132 : vector<1x1x16x128xbf16> to vector<16x128xbf16>
      %c1_137 = arith.constant 1 : index
      %c0_138 = arith.constant 0 : index
      %134 = vector.load %arg13[%c1_137, %c0_138] : memref<184x128xbf16, #tpu.memory_space<vmem>>, vector<16x128xbf16>
      tpu.vector_store %arg13[%c1_137, %c0_138], %133 {strides = array<i32>} : memref<184x128xbf16, #tpu.memory_space<vmem>>, vector<16x128xbf16>,
    } else {
    }
    %c0_4 = arith.constant 0 : index
    %c0_5 = arith.constant 0 : index
    %c0_6 = arith.constant 0 : index
    %c0_7 = arith.constant 0 : index
    %8 = vector.load %arg3[%c0_4, %c0_5, %c0_6, %c0_7] : memref<1x8x16x128xbf16, #tpu.memory_space<vmem>>, vector<1x1x16x128xbf16>
    %9 = vector.shape_cast %8 : vector<1x1x16x128xbf16> to vector<16x128xbf16>
    %c19 = arith.constant 19 : index
    %c0_8 = arith.constant 0 : index
    %10 = vector.load %arg13[%c19, %c0_8] : memref<184x128xbf16, #tpu.memory_space<vmem>>, vector<16x128xbf16>
    tpu.vector_store %arg13[%c19, %c0_8], %9 {strides = array<i32>} : memref<184x128xbf16, #tpu.memory_space<vmem>>, vector<16x128xbf16>,
    %c0_9 = arith.constant 0 : index
    %c1 = arith.constant 1 : index
    %c0_10 = arith.constant 0 : index
    %c0_11 = arith.constant 0 : index
    %11 = vector.load %arg3[%c0_9, %c1, %c0_10, %c0_11] : memref<1x8x16x128xbf16, #tpu.memory_space<vmem>>, vector<1x1x16x128xbf16>
    %12 = vector.shape_cast %11 : vector<1x1x16x128xbf16> to vector<16x128xbf16>
    %c37 = arith.constant 37 : index
    %c0_12 = arith.constant 0 : index
    %13 = vector.load %arg13[%c37, %c0_12] : memref<184x128xbf16, #tpu.memory_space<vmem>>, vector<16x128xbf16>
    tpu.vector_store %arg13[%c37, %c0_12], %12 {strides = array<i32>} : memref<184x128xbf16, #tpu.memory_space<vmem>>, vector<16x128xbf16>,
    %c0_13 = arith.constant 0 : index
    %c2 = arith.constant 2 : index
    %c0_14 = arith.constant 0 : index
    %c0_15 = arith.constant 0 : index
    %14 = vector.load %arg3[%c0_13, %c2, %c0_14, %c0_15] : memref<1x8x16x128xbf16, #tpu.memory_space<vmem>>, vector<1x1x16x128xbf16>
    %15 = vector.shape_cast %14 : vector<1x1x16x128xbf16> to vector<16x128xbf16>
    %c55 = arith.constant 55 : index
    %c0_16 = arith.constant 0 : index
    %16 = vector.load %arg13[%c55, %c0_16] : memref<184x128xbf16, #tpu.memory_space<vmem>>, vector<16x128xbf16>
    tpu.vector_store %arg13[%c55, %c0_16], %15 {strides = array<i32>} : memref<184x128xbf16, #tpu.memory_space<vmem>>, vector<16x128xbf16>,
    %c0_17 = arith.constant 0 : index
    %c3 = arith.constant 3 : index
    %c0_18 = arith.constant 0 : index
    %c0_19 = arith.constant 0 : index
    %17 = vector.load %arg3[%c0_17, %c3, %c0_18, %c0_19] : memref<1x8x16x128xbf16, #tpu.memory_space<vmem>>, vector<1x1x16x128xbf16>
    %18 = vector.shape_cast %17 : vector<1x1x16x128xbf16> to vector<16x128xbf16>
    %c73 = arith.constant 73 : index
    %c0_20 = arith.constant 0 : index
    %19 = vector.load %arg13[%c73, %c0_20] : memref<184x128xbf16, #tpu.memory_space<vmem>>, vector<16x128xbf16>
    tpu.vector_store %arg13[%c73, %c0_20], %18 {strides = array<i32>} : memref<184x128xbf16, #tpu.memory_space<vmem>>, vector<16x128xbf16>,
    %c0_21 = arith.constant 0 : index
    %c4 = arith.constant 4 : index
    %c0_22 = arith.constant 0 : index
    %c0_23 = arith.constant 0 : index
    %20 = vector.load %arg3[%c0_21, %c4, %c0_22, %c0_23] : memref<1x8x16x128xbf16, #tpu.memory_space<vmem>>, vector<1x1x16x128xbf16>
    %21 = vector.shape_cast %20 : vector<1x1x16x128xbf16> to vector<16x128xbf16>
    %c91 = arith.constant 91 : index
    %c0_24 = arith.constant 0 : index
    %22 = vector.load %arg13[%c91, %c0_24] : memref<184x128xbf16, #tpu.memory_space<vmem>>, vector<16x128xbf16>
    tpu.vector_store %arg13[%c91, %c0_24], %21 {strides = array<i32>} : memref<184x128xbf16, #tpu.memory_space<vmem>>, vector<16x128xbf16>,
    %c0_25 = arith.constant 0 : index
    %c5 = arith.constant 5 : index
    %c0_26 = arith.constant 0 : index
    %c0_27 = arith.constant 0 : index
    %23 = vector.load %arg3[%c0_25, %c5, %c0_26, %c0_27] : memref<1x8x16x128xbf16, #tpu.memory_space<vmem>>, vector<1x1x16x128xbf16>
    %24 = vector.shape_cast %23 : vector<1x1x16x128xbf16> to vector<16x128xbf16>
    %c109 = arith.constant 109 : index
    %c0_28 = arith.constant 0 : index
    %25 = vector.load %arg13[%c109, %c0_28] : memref<184x128xbf16, #tpu.memory_space<vmem>>, vector<16x128xbf16>
    tpu.vector_store %arg13[%c109, %c0_28], %24 {strides = array<i32>} : memref<184x128xbf16, #tpu.memory_space<vmem>>, vector<16x128xbf16>,
    %c0_29 = arith.constant 0 : index
    %c6 = arith.constant 6 : index
    %c0_30 = arith.constant 0 : index
    %c0_31 = arith.constant 0 : index
    %26 = vector.load %arg3[%c0_29, %c6, %c0_30, %c0_31] : memref<1x8x16x128xbf16, #tpu.memory_space<vmem>>, vector<1x1x16x128xbf16>
    %27 = vector.shape_cast %26 : vector<1x1x16x128xbf16> to vector<16x128xbf16>
    %c127 = arith.constant 127 : index
    %c0_32 = arith.constant 0 : index
    %28 = vector.load %arg13[%c127, %c0_32] : memref<184x128xbf16, #tpu.memory_space<vmem>>, vector<16x128xbf16>
    tpu.vector_store %arg13[%c127, %c0_32], %27 {strides = array<i32>} : memref<184x128xbf16, #tpu.memory_space<vmem>>, vector<16x128xbf16>,
    %c0_33 = arith.constant 0 : index
    %c7 = arith.constant 7 : index
    %c0_34 = arith.constant 0 : index
    %c0_35 = arith.constant 0 : index
    %29 = vector.load %arg3[%c0_33, %c7, %c0_34, %c0_35] : memref<1x8x16x128xbf16, #tpu.memory_space<vmem>>, vector<1x1x16x128xbf16>
    %30 = vector.shape_cast %29 : vector<1x1x16x128xbf16> to vector<16x128xbf16>
    %c145 = arith.constant 145 : index
    %c0_36 = arith.constant 0 : index
    %31 = vector.load %arg13[%c145, %c0_36] : memref<184x128xbf16, #tpu.memory_space<vmem>>, vector<16x128xbf16>
    tpu.vector_store %arg13[%c145, %c0_36], %30 {strides = array<i32>} : memref<184x128xbf16, #tpu.memory_space<vmem>>, vector<16x128xbf16>,
    %c1_i32 = arith.constant 1 : i32
    %32 = arith.cmpi slt, %arg1, %c1_i32 : i32
    %33 = arith.extui %32 : i1 to i32
    %c0_i32_37 = arith.constant 0 : i32
    %34 = arith.cmpi ne, %33, %c0_i32_37 : i32
    scf.if %34 {
      %c0_133 = arith.constant 0 : index
      %c0_134 = arith.constant 0 : index
      %c0_135 = arith.constant 0 : index
      %c0_136 = arith.constant 0 : index
      %132 = vector.load %arg4[%c0_133, %c0_134, %c0_135, %c0_136] : memref<1x1x16x128xbf16, #tpu.memory_space<vmem>>, vector<1x1x16x128xbf16>
      %133 = vector.shape_cast %132 : vector<1x1x16x128xbf16> to vector<16x128xbf16>
      %c163 = arith.constant 163 : index
      %c0_137 = arith.constant 0 : index
      %134 = vector.load %arg13[%c163, %c0_137] : memref<184x128xbf16, #tpu.memory_space<vmem>>, vector<16x128xbf16>
      tpu.vector_store %arg13[%c163, %c0_137], %133 {strides = array<i32>} : memref<184x128xbf16, #tpu.memory_space<vmem>>, vector<16x128xbf16>,
    } else {
    }
    %cst = arith.constant 0.000000e+00 : f32
    %35 = vector.broadcast %cst : f32 to vector<144x128xf32>
    %c0_38 = arith.constant 0 : index
    %c0_39 = arith.constant 0 : index
    %36 = vector.load %arg13[%c0_38, %c0_39] : memref<184x128xbf16, #tpu.memory_space<vmem>>, vector<144x128xbf16>
    %c0_40 = arith.constant 0 : index
    %c0_41 = arith.constant 0 : index
    %c0_42 = arith.constant 0 : index
    %37 = vector.load %arg5[%c0_40, %c0_41, %c0_42] : memref<9x128x128xbf16, #tpu.memory_space<vmem>>, vector<1x128x128xbf16>
    %38 = vector.shape_cast %37 : vector<1x128x128xbf16> to vector<128x128xbf16>
    %cst_43 = arith.constant dense<0.000000e+00> : vector<144x128xf32>
    %39 = tpu.matmul %36, %38, %cst_43 {dimension_numbers = #tpu.dot_dimension_numbers<[1], [0], [0], [1], [0, 0, 1, 1], [], []>} : vector<144x128xbf16>, vector<128x128xbf16>, vector<144x128xf32> -> vector<144x128xf32>
    %40 = arith.addf %35, %39 : vector<144x128xf32>
    %c1_44 = arith.constant 1 : index
    %c0_45 = arith.constant 0 : index
    %41 = vector.load %arg13[%c1_44, %c0_45] : memref<184x128xbf16, #tpu.memory_space<vmem>>, vector<144x128xbf16>
    %c1_46 = arith.constant 1 : index
    %c0_47 = arith.constant 0 : index
    %c0_48 = arith.constant 0 : index
    %42 = vector.load %arg5[%c1_46, %c0_47, %c0_48] : memref<9x128x128xbf16, #tpu.memory_space<vmem>>, vector<1x128x128xbf16>
    %43 = vector.shape_cast %42 : vector<1x128x128xbf16> to vector<128x128xbf16>
    %cst_49 = arith.constant dense<0.000000e+00> : vector<144x128xf32>
    %44 = tpu.matmul %41, %43, %cst_49 {dimension_numbers = #tpu.dot_dimension_numbers<[1], [0], [0], [1], [0, 0, 1, 1], [], []>} : vector<144x128xbf16>, vector<128x128xbf16>, vector<144x128xf32> -> vector<144x128xf32>
    %45 = arith.addf %40, %44 : vector<144x128xf32>
    %c2_50 = arith.constant 2 : index
    %c0_51 = arith.constant 0 : index
    %46 = vector.load %arg13[%c2_50, %c0_51] : memref<184x128xbf16, #tpu.memory_space<vmem>>, vector<144x128xbf16>
    %c2_52 = arith.constant 2 : index
    %c0_53 = arith.constant 0 : index
    %c0_54 = arith.constant 0 : index
    %47 = vector.load %arg5[%c2_52, %c0_53, %c0_54] : memref<9x128x128xbf16, #tpu.memory_space<vmem>>, vector<1x128x128xbf16>
    %48 = vector.shape_cast %47 : vector<1x128x128xbf16> to vector<128x128xbf16>
    %cst_55 = arith.constant dense<0.000000e+00> : vector<144x128xf32>
    %49 = tpu.matmul %46, %48, %cst_55 {dimension_numbers = #tpu.dot_dimension_numbers<[1], [0], [0], [1], [0, 0, 1, 1], [], []>} : vector<144x128xbf16>, vector<128x128xbf16>, vector<144x128xf32> -> vector<144x128xf32>
    %50 = arith.addf %45, %49 : vector<144x128xf32>
    %c18 = arith.constant 18 : index
    %c0_56 = arith.constant 0 : index
    %51 = vector.load %arg13[%c18, %c0_56] : memref<184x128xbf16, #tpu.memory_space<vmem>>, vector<144x128xbf16>
    %c3_57 = arith.constant 3 : index
    %c0_58 = arith.constant 0 : index
    %c0_59 = arith.constant 0 : index
    %52 = vector.load %arg5[%c3_57, %c0_58, %c0_59] : memref<9x128x128xbf16, #tpu.memory_space<vmem>>, vector<1x128x128xbf16>
    %53 = vector.shape_cast %52 : vector<1x128x128xbf16> to vector<128x128xbf16>
    %cst_60 = arith.constant dense<0.000000e+00> : vector<144x128xf32>
    %54 = tpu.matmul %51, %53, %cst_60 {dimension_numbers = #tpu.dot_dimension_numbers<[1], [0], [0], [1], [0, 0, 1, 1], [], []>} : vector<144x128xbf16>, vector<128x128xbf16>, vector<144x128xf32> -> vector<144x128xf32>
    %55 = arith.addf %50, %54 : vector<144x128xf32>
    %c19_61 = arith.constant 19 : index
    %c0_62 = arith.constant 0 : index
    %56 = vector.load %arg13[%c19_61, %c0_62] : memref<184x128xbf16, #tpu.memory_space<vmem>>, vector<144x128xbf16>
    %c4_63 = arith.constant 4 : index
    %c0_64 = arith.constant 0 : index
    %c0_65 = arith.constant 0 : index
    %57 = vector.load %arg5[%c4_63, %c0_64, %c0_65] : memref<9x128x128xbf16, #tpu.memory_space<vmem>>, vector<1x128x128xbf16>
    %58 = vector.shape_cast %57 : vector<1x128x128xbf16> to vector<128x128xbf16>
    %cst_66 = arith.constant dense<0.000000e+00> : vector<144x128xf32>
    %59 = tpu.matmul %56, %58, %cst_66 {dimension_numbers = #tpu.dot_dimension_numbers<[1], [0], [0], [1], [0, 0, 1, 1], [], []>} : vector<144x128xbf16>, vector<128x128xbf16>, vector<144x128xf32> -> vector<144x128xf32>
    %60 = arith.addf %55, %59 : vector<144x128xf32>
    %c20 = arith.constant 20 : index
    %c0_67 = arith.constant 0 : index
    %61 = vector.load %arg13[%c20, %c0_67] : memref<184x128xbf16, #tpu.memory_space<vmem>>, vector<144x128xbf16>
    %c5_68 = arith.constant 5 : index
    %c0_69 = arith.constant 0 : index
    %c0_70 = arith.constant 0 : index
    %62 = vector.load %arg5[%c5_68, %c0_69, %c0_70] : memref<9x128x128xbf16, #tpu.memory_space<vmem>>, vector<1x128x128xbf16>
    %63 = vector.shape_cast %62 : vector<1x128x128xbf16> to vector<128x128xbf16>
    %cst_71 = arith.constant dense<0.000000e+00> : vector<144x128xf32>
    %64 = tpu.matmul %61, %63, %cst_71 {dimension_numbers = #tpu.dot_dimension_numbers<[1], [0], [0], [1], [0, 0, 1, 1], [], []>} : vector<144x128xbf16>, vector<128x128xbf16>, vector<144x128xf32> -> vector<144x128xf32>
    %65 = arith.addf %60, %64 : vector<144x128xf32>
    %c36 = arith.constant 36 : index
    %c0_72 = arith.constant 0 : index
    %66 = vector.load %arg13[%c36, %c0_72] : memref<184x128xbf16, #tpu.memory_space<vmem>>, vector<144x128xbf16>
    %c6_73 = arith.constant 6 : index
    %c0_74 = arith.constant 0 : index
    %c0_75 = arith.constant 0 : index
    %67 = vector.load %arg5[%c6_73, %c0_74, %c0_75] : memref<9x128x128xbf16, #tpu.memory_space<vmem>>, vector<1x128x128xbf16>
    %68 = vector.shape_cast %67 : vector<1x128x128xbf16> to vector<128x128xbf16>
    %cst_76 = arith.constant dense<0.000000e+00> : vector<144x128xf32>
    %69 = tpu.matmul %66, %68, %cst_76 {dimension_numbers = #tpu.dot_dimension_numbers<[1], [0], [0], [1], [0, 0, 1, 1], [], []>} : vector<144x128xbf16>, vector<128x128xbf16>, vector<144x128xf32> -> vector<144x128xf32>
    %70 = arith.addf %65, %69 : vector<144x128xf32>
    %c37_77 = arith.constant 37 : index
    %c0_78 = arith.constant 0 : index
    %71 = vector.load %arg13[%c37_77, %c0_78] : memref<184x128xbf16, #tpu.memory_space<vmem>>, vector<144x128xbf16>
    %c7_79 = arith.constant 7 : index
    %c0_80 = arith.constant 0 : index
    %c0_81 = arith.constant 0 : index
    %72 = vector.load %arg5[%c7_79, %c0_80, %c0_81] : memref<9x128x128xbf16, #tpu.memory_space<vmem>>, vector<1x128x128xbf16>
    %73 = vector.shape_cast %72 : vector<1x128x128xbf16> to vector<128x128xbf16>
    %cst_82 = arith.constant dense<0.000000e+00> : vector<144x128xf32>
    %74 = tpu.matmul %71, %73, %cst_82 {dimension_numbers = #tpu.dot_dimension_numbers<[1], [0], [0], [1], [0, 0, 1, 1], [], []>} : vector<144x128xbf16>, vector<128x128xbf16>, vector<144x128xf32> -> vector<144x128xf32>
    %75 = arith.addf %70, %74 : vector<144x128xf32>
    %c38 = arith.constant 38 : index
    %c0_83 = arith.constant 0 : index
    %76 = vector.load %arg13[%c38, %c0_83] : memref<184x128xbf16, #tpu.memory_space<vmem>>, vector<144x128xbf16>
    %c8 = arith.constant 8 : index
    %c0_84 = arith.constant 0 : index
    %c0_85 = arith.constant 0 : index
    %77 = vector.load %arg5[%c8, %c0_84, %c0_85] : memref<9x128x128xbf16, #tpu.memory_space<vmem>>, vector<1x128x128xbf16>
    %78 = vector.shape_cast %77 : vector<1x128x128xbf16> to vector<128x128xbf16>
    %cst_86 = arith.constant dense<0.000000e+00> : vector<144x128xf32>
    %79 = tpu.matmul %76, %78, %cst_86 {dimension_numbers = #tpu.dot_dimension_numbers<[1], [0], [0], [1], [0, 0, 1, 1], [], []>} : vector<144x128xbf16>, vector<128x128xbf16>, vector<144x128xf32> -> vector<144x128xf32>
    %80 = arith.addf %75, %79 : vector<144x128xf32>
    %c0_87 = arith.constant 0 : index
    %c0_88 = arith.constant 0 : index
    %81 = vector.load %arg6[%c0_87, %c0_88] : memref<1x128xf32, #tpu.memory_space<vmem>>, vector<1x128xf32>
    %82 = vector.broadcast %81 : vector<1x128xf32> to vector<144x128xf32>
    %83 = arith.addf %80, %82 : vector<144x128xf32>
    %cst_89 = arith.constant 0.000000e+00 : f32
    %84 = vector.broadcast %cst_89 : f32 to vector<144x128xf32>
    %85 = arith.maximumf %83, %84 : vector<144x128xf32>
    %86 = arith.truncf %85 : vector<144x128xf32> to vector<144x128xbf16>
    %c0_90 = arith.constant 0 : index
    %c0_91 = arith.constant 0 : index
    %87 = vector.load %arg8[%c0_90, %c0_91] : memref<128x128xbf16, #tpu.memory_space<vmem>>, vector<128x128xbf16>
    %cst_92 = arith.constant dense<0.000000e+00> : vector<144x128xf32>
    %88 = tpu.matmul %86, %87, %cst_92 {dimension_numbers = #tpu.dot_dimension_numbers<[1], [0], [0], [1], [0, 0, 1, 1], [], []>} : vector<144x128xbf16>, vector<128x128xbf16>, vector<144x128xf32> -> vector<144x128xf32>
    %c0_93 = arith.constant 0 : index
    %c0_94 = arith.constant 0 : index
    %89 = vector.load %arg9[%c0_93, %c0_94] : memref<1x128xf32, #tpu.memory_space<vmem>>, vector<1x128xf32>
    %90 = vector.broadcast %89 : vector<1x128xf32> to vector<144x128xf32>
    %91 = arith.addf %88, %90 : vector<144x128xf32>
    %cst_95 = arith.constant 0.000000e+00 : f32
    %92 = vector.broadcast %cst_95 : f32 to vector<144x128xf32>
    %93 = arith.maximumf %91, %92 : vector<144x128xf32>
    %94 = arith.truncf %93 : vector<144x128xf32> to vector<144x128xbf16>
    %c0_96 = arith.constant 0 : index
    %c0_97 = arith.constant 0 : index
    %95 = vector.load %arg10[%c0_96, %c0_97] : memref<128x128xbf16, #tpu.memory_space<vmem>>, vector<128x128xbf16>
    %cst_98 = arith.constant dense<0.000000e+00> : vector<144x128xf32>
    %96 = tpu.matmul %94, %95, %cst_98 {dimension_numbers = #tpu.dot_dimension_numbers<[1], [0], [0], [1], [0, 0, 1, 1], [], []>} : vector<144x128xbf16>, vector<128x128xbf16>, vector<144x128xf32> -> vector<144x128xf32>
    %c0_99 = arith.constant 0 : index
    %c0_100 = arith.constant 0 : index
    %97 = vector.load %arg11[%c0_99, %c0_100] : memref<1x128xf32, #tpu.memory_space<vmem>>, vector<1x128xf32>
    %98 = vector.broadcast %97 : vector<1x128xf32> to vector<144x128xf32>
    %99 = arith.addf %96, %98 : vector<144x128xf32>
    %100 = vector.extract_strided_slice %99 {offsets = [0, 0], sizes = [16, 128], strides = [1, 1]} : vector<144x128xf32> to vector<16x128xf32>
    %c0_101 = arith.constant 0 : index
    %c0_102 = arith.constant 0 : index
    %c0_103 = arith.constant 0 : index
    %c0_104 = arith.constant 0 : index
    %101 = vector.load %arg12[%c0_101, %c0_102, %c0_103, %c0_104] : memref<1x8x16x128xf32, #tpu.memory_space<vmem>>, vector<1x1x16x128xf32>
    %102 = vector.shape_cast %101 : vector<1x1x16x128xf32> to vector<16x128xf32>
    %103 = vector.shape_cast %100 : vector<16x128xf32> to vector<1x1x16x128xf32>
    tpu.vector_store %arg12[%c0_101, %c0_102, %c0_103, %c0_104], %103 {strides = array<i32>} : memref<1x8x16x128xf32, #tpu.memory_space<vmem>>, vector<1x1x16x128xf32>,
    %104 = vector.extract_strided_slice %99 {offsets = [18, 0], sizes = [16, 128], strides = [1, 1]} : vector<144x128xf32> to vector<16x128xf32>
    %c0_105 = arith.constant 0 : index
    %c1_106 = arith.constant 1 : index
    %c0_107 = arith.constant 0 : index
    %c0_108 = arith.constant 0 : index
    %105 = vector.load %arg12[%c0_105, %c1_106, %c0_107, %c0_108] : memref<1x8x16x128xf32, #tpu.memory_space<vmem>>, vector<1x1x16x128xf32>
    %106 = vector.shape_cast %105 : vector<1x1x16x128xf32> to vector<16x128xf32>
    %107 = vector.shape_cast %104 : vector<16x128xf32> to vector<1x1x16x128xf32>
    tpu.vector_store %arg12[%c0_105, %c1_106, %c0_107, %c0_108], %107 {strides = array<i32>} : memref<1x8x16x128xf32, #tpu.memory_space<vmem>>, vector<1x1x16x128xf32>,
    %108 = vector.extract_strided_slice %99 {offsets = [36, 0], sizes = [16, 128], strides = [1, 1]} : vector<144x128xf32> to vector<16x128xf32>
    %c0_109 = arith.constant 0 : index
    %c2_110 = arith.constant 2 : index
    %c0_111 = arith.constant 0 : index
    %c0_112 = arith.constant 0 : index
    %109 = vector.load %arg12[%c0_109, %c2_110, %c0_111, %c0_112] : memref<1x8x16x128xf32, #tpu.memory_space<vmem>>, vector<1x1x16x128xf32>
    %110 = vector.shape_cast %109 : vector<1x1x16x128xf32> to vector<16x128xf32>
    %111 = vector.shape_cast %108 : vector<16x128xf32> to vector<1x1x16x128xf32>
    tpu.vector_store %arg12[%c0_109, %c2_110, %c0_111, %c0_112], %111 {strides = array<i32>} : memref<1x8x16x128xf32, #tpu.memory_space<vmem>>, vector<1x1x16x128xf32>,
    %112 = vector.extract_strided_slice %99 {offsets = [54, 0], sizes = [16, 128], strides = [1, 1]} : vector<144x128xf32> to vector<16x128xf32>
    %c0_113 = arith.constant 0 : index
    %c3_114 = arith.constant 3 : index
    %c0_115 = arith.constant 0 : index
    %c0_116 = arith.constant 0 : index
    %113 = vector.load %arg12[%c0_113, %c3_114, %c0_115, %c0_116] : memref<1x8x16x128xf32, #tpu.memory_space<vmem>>, vector<1x1x16x128xf32>
    %114 = vector.shape_cast %113 : vector<1x1x16x128xf32> to vector<16x128xf32>
    %115 = vector.shape_cast %112 : vector<16x128xf32> to vector<1x1x16x128xf32>
    tpu.vector_store %arg12[%c0_113, %c3_114, %c0_115, %c0_116], %115 {strides = array<i32>} : memref<1x8x16x128xf32, #tpu.memory_space<vmem>>, vector<1x1x16x128xf32>,
    %116 = vector.extract_strided_slice %99 {offsets = [72, 0], sizes = [16, 128], strides = [1, 1]} : vector<144x128xf32> to vector<16x128xf32>
    %c0_117 = arith.constant 0 : index
    %c4_118 = arith.constant 4 : index
    %c0_119 = arith.constant 0 : index
    %c0_120 = arith.constant 0 : index
    %117 = vector.load %arg12[%c0_117, %c4_118, %c0_119, %c0_120] : memref<1x8x16x128xf32, #tpu.memory_space<vmem>>, vector<1x1x16x128xf32>
    %118 = vector.shape_cast %117 : vector<1x1x16x128xf32> to vector<16x128xf32>
    %119 = vector.shape_cast %116 : vector<16x128xf32> to vector<1x1x16x128xf32>
    tpu.vector_store %arg12[%c0_117, %c4_118, %c0_119, %c0_120], %119 {strides = array<i32>} : memref<1x8x16x128xf32, #tpu.memory_space<vmem>>, vector<1x1x16x128xf32>,
    %120 = vector.extract_strided_slice %99 {offsets = [90, 0], sizes = [16, 128], strides = [1, 1]} : vector<144x128xf32> to vector<16x128xf32>
    %c0_121 = arith.constant 0 : index
    %c5_122 = arith.constant 5 : index
    %c0_123 = arith.constant 0 : index
    %c0_124 = arith.constant 0 : index
    %121 = vector.load %arg12[%c0_121, %c5_122, %c0_123, %c0_124] : memref<1x8x16x128xf32, #tpu.memory_space<vmem>>, vector<1x1x16x128xf32>
    %122 = vector.shape_cast %121 : vector<1x1x16x128xf32> to vector<16x128xf32>
    %123 = vector.shape_cast %120 : vector<16x128xf32> to vector<1x1x16x128xf32>
    tpu.vector_store %arg12[%c0_121, %c5_122, %c0_123, %c0_124], %123 {strides = array<i32>} : memref<1x8x16x128xf32, #tpu.memory_space<vmem>>, vector<1x1x16x128xf32>,
    %124 = vector.extract_strided_slice %99 {offsets = [108, 0], sizes = [16, 128], strides = [1, 1]} : vector<144x128xf32> to vector<16x128xf32>
    %c0_125 = arith.constant 0 : index
    %c6_126 = arith.constant 6 : index
    %c0_127 = arith.constant 0 : index
    %c0_128 = arith.constant 0 : index
    %125 = vector.load %arg12[%c0_125, %c6_126, %c0_127, %c0_128] : memref<1x8x16x128xf32, #tpu.memory_space<vmem>>, vector<1x1x16x128xf32>
    %126 = vector.shape_cast %125 : vector<1x1x16x128xf32> to vector<16x128xf32>
    %127 = vector.shape_cast %124 : vector<16x128xf32> to vector<1x1x16x128xf32>
    tpu.vector_store %arg12[%c0_125, %c6_126, %c0_127, %c0_128], %127 {strides = array<i32>} : memref<1x8x16x128xf32, #tpu.memory_space<vmem>>, vector<1x1x16x128xf32>,
    %128 = vector.extract_strided_slice %99 {offsets = [126, 0], sizes = [16, 128], strides = [1, 1]} : vector<144x128xf32> to vector<16x128xf32>
    %c0_129 = arith.constant 0 : index
    %c7_130 = arith.constant 7 : index
    %c0_131 = arith.constant 0 : index
    %c0_132 = arith.constant 0 : index
    %129 = vector.load %arg12[%c0_129, %c7_130, %c0_131, %c0_132] : memref<1x8x16x128xf32, #tpu.memory_space<vmem>>, vector<1x1x16x128xf32>
    %130 = vector.shape_cast %129 : vector<1x1x16x128xf32> to vector<16x128xf32>
    %131 = vector.shape_cast %128 : vector<16x128xf32> to vector<1x1x16x128xf32>
    tpu.vector_store %arg12[%c0_129, %c7_130, %c0_131, %c0_132], %131 {strides = array<i32>} : memref<1x8x16x128xf32, #tpu.memory_space<vmem>>, vector<1x1x16x128xf32>,
    return
  }
  func.func @transform_0(%arg0: i32, %arg1: i32) -> (i32, i32, i32, i32) {
    %c8_i32 = arith.constant 8 : i32
    %0 = arith.muli %arg1, %c8_i32 : i32
    %c1_i32 = arith.constant 1 : i32
    %1 = arith.subi %0, %c1_i32 : i32
    %c0_i32 = arith.constant 0 : i32
    %2 = arith.maxsi %1, %c0_i32 : i32
    %c0_i32_0 = arith.constant 0 : i32
    %c0_i32_1 = arith.constant 0 : i32
    %c0_i32_2 = arith.constant 0 : i32
    return %arg0, %2, %c0_i32_0, %c0_i32_1 : i32, i32, i32, i32
  }
  func.func @transform_1(%arg0: i32, %arg1: i32) -> (i32, i32, i32, i32) {
    %c0_i32 = arith.constant 0 : i32
    %c0_i32_0 = arith.constant 0 : i32
    %c0_i32_1 = arith.constant 0 : i32
    return %arg0, %arg1, %c0_i32, %c0_i32_0 : i32, i32, i32, i32
  }
  func.func @transform_2(%arg0: i32, %arg1: i32) -> (i32, i32, i32, i32) {
    %c8_i32 = arith.constant 8 : i32
    %0 = arith.muli %arg1, %c8_i32 : i32
    %c8_i32_0 = arith.constant 8 : i32
    %1 = arith.addi %0, %c8_i32_0 : i32
    %c15_i32 = arith.constant 15 : i32
    %2 = arith.minsi %1, %c15_i32 : i32
    %c0_i32 = arith.constant 0 : i32
    %c0_i32_1 = arith.constant 0 : i32
    %c0_i32_2 = arith.constant 0 : i32
    return %arg0, %2, %c0_i32, %c0_i32_1 : i32, i32, i32, i32
  }
  func.func @transform_3(%arg0: i32, %arg1: i32) -> (i32, i32, i32) {
    %c0_i32 = arith.constant 0 : i32
    %c0_i32_0 = arith.constant 0 : i32
    %c0_i32_1 = arith.constant 0 : i32
    %c0_i32_2 = arith.constant 0 : i32
    return %c0_i32, %c0_i32_0, %c0_i32_1 : i32, i32, i32
  }
  func.func @transform_4(%arg0: i32, %arg1: i32) -> (i32, i32) {
    %c0_i32 = arith.constant 0 : i32
    %c0_i32_0 = arith.constant 0 : i32
    %c0_i32_1 = arith.constant 0 : i32
    return %c0_i32, %c0_i32_0 : i32, i32
  }
  func.func @transform_5(%arg0: i32, %arg1: i32) -> (i32, i32) {
    %c0_i32 = arith.constant 0 : i32
    %c0_i32_0 = arith.constant 0 : i32
    %c0_i32_1 = arith.constant 0 : i32
    return %c0_i32, %c0_i32_0 : i32, i32
  }
  func.func @transform_6(%arg0: i32, %arg1: i32) -> (i32, i32) {
    %c0_i32 = arith.constant 0 : i32
    %c0_i32_0 = arith.constant 0 : i32
    %c0_i32_1 = arith.constant 0 : i32
    return %c0_i32, %c0_i32_0 : i32, i32
  }
  func.func @transform_7(%arg0: i32, %arg1: i32) -> (i32, i32) {
    %c0_i32 = arith.constant 0 : i32
    %c0_i32_0 = arith.constant 0 : i32
    %c0_i32_1 = arith.constant 0 : i32
    return %c0_i32, %c0_i32_0 : i32, i32
  }
  func.func @transform_8(%arg0: i32, %arg1: i32) -> (i32, i32) {
    %c0_i32 = arith.constant 0 : i32
    %c0_i32_0 = arith.constant 0 : i32
    %c0_i32_1 = arith.constant 0 : i32
    return %c0_i32, %c0_i32_0 : i32, i32
  }
  func.func @transform_9(%arg0: i32, %arg1: i32) -> (i32, i32) {
    %c0_i32 = arith.constant 0 : i32
    %c0_i32_0 = arith.constant 0 : i32
    %c0_i32_1 = arith.constant 0 : i32
    return %c0_i32, %c0_i32_0 : i32, i32
  }
  func.func @transform_10(%arg0: i32, %arg1: i32) -> (i32, i32, i32, i32) {
    %c0_i32 = arith.constant 0 : i32
    %c0_i32_0 = arith.constant 0 : i32
    %c0_i32_1 = arith.constant 0 : i32
    return %arg0, %arg1, %c0_i32, %c0_i32_0 : i32, i32, i32, i32
  }
}

</mosaic_0001>

<llo_original>
// kernel: mean_teacher_forward_test.2
$region0: #{mean_teacher_forward_test.2}
  #allocation0 [shape = 'u32[]', space=smem, size = 0x4, offset = 0x4, fixed_abs, tag = 'smem constant byte address 0x4 - core index']
  #allocation1 [shape = 'u32[144,128]{1,0:T(1,128)}', space=vmem, size = 0x12000, scoped, tag = 'internal scratch']
  #allocation2 [shape = 'bf16[184,3]{1,0:T(8,128)(2,1)}', space=vmem, size = 0xb800, scoped, tag = 'scratch operand']
  %s0 = inlined_call_operand.vmem [shape: f32[2,16,16,3], index: 0, kind: input, shape index: {}, may-alias: {0,1,2}]
  %s1 = inlined_call_operand.vmem [shape: f32[2,16,16,3], index: 1, kind: input, shape index: {}, may-alias: {0,1,2}]
  %s2 = inlined_call_operand.vmem [shape: f32[2,16,16,3], index: 2, kind: input, shape index: {}, may-alias: {0,1,2}]
  %s3 = inlined_call_operand.vmem [shape: bf16[9,3,128], index: 3, kind: input, shape index: {}]
  %s4 = inlined_call_operand.vmem [shape: f32[1,128], index: 4, kind: input, shape index: {}]
  %s5 = inlined_call_operand.vmem [shape: f32[1,3], index: 5, kind: input, shape index: {}]
  %s6 = inlined_call_operand.vmem [shape: bf16[2,16,16,128], index: 6, kind: output, shape index: {}]
  %s7 = sld [smem:[#allocation0]]
  $region65: #{mean_teacher_forward_test.2} parent=0
    _
  %s9 = ssub.s32 1, %s7
  %s10 = scalar_select 0, %s9, %s7
  loop: start=0, step=1, limit=6
  $region2: #{mean_teacher_forward_test.2} parent=0 // loop_pre_header
    _
  $region3: #{mean_teacher_forward_test.2} parent=0 // loop_header
    %s12 = sphi 0, %s16
    %p13 = scmp.ge.s32.totalorder %s12, 6
    %s19 = sphi 0, %s31
    %s20 = sphi 0, %s27
    %s21 = sphi 0, %s19
    %s22 = sphi 0, %s20
    %s23 = sphi 0, %s21
    %s24 = sphi 0, %s22
    %s44 = sphi 0, %s46
    %s47 = sphi 0, %s44
    %s48 = sphi 0, %s47
    %s64 = sphi 0, %s48
    %s72 = sphi 0, %s74
    %s75 = sphi 0, %s72
    %s76 = sphi 0, %s75
    %s92 = sphi 0, %s76
    %s108 = sphi 0, %s110
    %s111 = sphi 0, %s108
    %s112 = sphi 0, %s111
    %s128 = sphi 0, %s112
    %s132 = sphi 0, %s132
    %s134 = sphi 0, %s132
    %s135 = sphi 0, %s134
    %s149 = sphi 0, %s135
    %s153 = sphi 0, %s153
    %s155 = sphi 0, %s153
    %s156 = sphi 0, %s155
    %s170 = sphi 0, %s156
    %s174 = sphi 0, %s174
    %s176 = sphi 0, %s174
    %s177 = sphi 0, %s176
    %s191 = sphi 0, %s177
    %s199 = sphi 0, %s201
    %s202 = sphi 0, %s199
    %s203 = sphi 0, %s202
    %s219 = sphi 0, %s203
  $region4: #{mean_teacher_forward_test.2} parent=0 // loop_header_branch
    %15 = sbr.rel (%p13) target = $region8
  $region5: #{mean_teacher_forward_test.2} parent=0 // loop_body
    %s17 = ssub.s32 %s12, 1
    %s18 = ssub.s32 %s12, 2
    %s25 = sadd.s32 1, %s20
    %p26 = scmp.ge.s32.totalorder %s25, 2
    %s27 = scalar_select %p26, 0, %s25
    %s28 = sadd.s32 1, %s19
    %s29 = scalar_select %p26, %s28, %s19
    %p30 = scmp.ge.s32.totalorder %s29, 2
    %s31 = scalar_select %p30, 0, %s29
    %s32 = smul.u32 %s20, 8
    %s33 = ssub.s32 %s32, 1
    %p34 = scmp.gt.s32.totalorder %s33, 0
    %s35 = scalar_select %p34, %s33, 0
    %s36 = smul.u32 %s27, 8
    %s37 = ssub.s32 %s36, 1
    %p38 = scmp.gt.s32.totalorder %s37, 0
    %s39 = scalar_select %p38, %s37, 0
    %s40 = ssub.s32 %s19, %s31
    %s41 = ssub.s32 %s35, %s39
    %s42 = sor.u32 %s40, %s41
    %p43 = scmp.eq.s32.totalorder %s42, 0
    %s45 = sadd.s32 %s44, 1
    %s46 = scalar_select %p43, %s44, %s45
    %p49 = pneg %p43
    %p50 = scmp.eq.s32.totalorder %s12, 3
    %p51 = por %p49, %p50
    %p52 = scmp.ne.s32.totalorder %s44, %s47
    %p53 = scmp.eq.s32.totalorder %s12, 0
    %p54 = por %p52, %p53
    %p55 = scmp.ne.s32.totalorder %s44, %s47
    %p56 = scmp.eq.s32.totalorder %s17, 3
    %p57 = por %p55, %p56
    %p58 = scmp.ne.s32.totalorder %s47, %s48
    %p59 = scmp.eq.s32.totalorder %s17, 0
    %p60 = por %p58, %p59
    %p61 = scmp.ne.s32.totalorder %s47, %s48
    %p62 = scmp.eq.s32.totalorder %s18, 3
    %p63 = por %p61, %p62
    %p65 = scmp.ne.s32.totalorder %s48, %s64
    %p66 = scmp.eq.s32.totalorder %s18, 0
    %p67 = por %p65, %p66
    %s68 = ssub.s32 %s19, %s31
    %s69 = ssub.s32 %s20, %s27
    %s70 = sor.u32 %s68, %s69
    %p71 = scmp.eq.s32.totalorder %s70, 0
    %s73 = sadd.s32 %s72, 1
    %s74 = scalar_select %p71, %s72, %s73
    %p77 = pneg %p71
    %p78 = scmp.eq.s32.totalorder %s12, 3
    %p79 = por %p77, %p78
    %p80 = scmp.ne.s32.totalorder %s72, %s75
    %p81 = scmp.eq.s32.totalorder %s12, 0
    %p82 = por %p80, %p81
    %p83 = scmp.ne.s32.totalorder %s72, %s75
    %p84 = scmp.eq.s32.totalorder %s17, 3
    %p85 = por %p83, %p84
    %p86 = scmp.ne.s32.totalorder %s75, %s76
    %p87 = scmp.eq.s32.totalorder %s17, 0
    %p88 = por %p86, %p87
    %p89 = scmp.ne.s32.totalorder %s75, %s76
    %p90 = scmp.eq.s32.totalorder %s18, 3
    %p91 = por %p89, %p90
    %p93 = scmp.ne.s32.totalorder %s76, %s92
    %p94 = scmp.eq.s32.totalorder %s18, 0
    %p95 = por %p93, %p94
    %s96 = smul.u32 %s20, 8
    %s97 = sadd.s32 %s96, 8
    %p98 = scmp.lt.s32.totalorder %s97, 15
    %s99 = scalar_select %p98, %s97, 15
    %s100 = smul.u32 %s27, 8
    %s101 = sadd.s32 %s100, 8
    %p102 = scmp.lt.s32.totalorder %s101, 15
    %s103 = scalar_select %p102, %s101, 15
    %s104 = ssub.s32 %s19, %s31
    %s105 = ssub.s32 %s99, %s103
    %s106 = sor.u32 %s104, %s105
    %p107 = scmp.eq.s32.totalorder %s106, 0
    %s109 = sadd.s32 %s108, 1
    %s110 = scalar_select %p107, %s108, %s109
    %p113 = pneg %p107
    %p114 = scmp.eq.s32.totalorder %s12, 3
    %p115 = por %p113, %p114
    %p116 = scmp.ne.s32.totalorder %s108, %s111
    %p117 = scmp.eq.s32.totalorder %s12, 0
    %p118 = por %p116, %p117
    %p119 = scmp.ne.s32.totalorder %s108, %s111
    %p120 = scmp.eq.s32.totalorder %s17, 3
    %p121 = por %p119, %p120
    %p122 = scmp.ne.s32.totalorder %s111, %s112
    %p123 = scmp.eq.s32.totalorder %s17, 0
    %p124 = por %p122, %p123
    %p125 = scmp.ne.s32.totalorder %s111, %s112
    %p126 = scmp.eq.s32.totalorder %s18, 3
    %p127 = por %p125, %p126
    %p129 = scmp.ne.s32.totalorder %s112, %s128
    %p130 = scmp.eq.s32.totalorder %s18, 0
    %p131 = por %p129, %p130
    %s133 = sadd.s32 %s132, 1
    %p136 = scmp.eq.s32.totalorder %s12, 3
    %p137 = scmp.ne.s32.totalorder %s132, %s134
    %p138 = scmp.eq.s32.totalorder %s12, 0
    %p139 = por %p137, %p138
    %p140 = scmp.ne.s32.totalorder %s132, %s134
    %p141 = scmp.eq.s32.totalorder %s17, 3
    %p142 = por %p140, %p141
    %p143 = scmp.ne.s32.totalorder %s134, %s135
    %p144 = scmp.eq.s32.totalorder %s17, 0
    %p145 = por %p143, %p144
    %p146 = scmp.ne.s32.totalorder %s134, %s135
    %p147 = scmp.eq.s32.totalorder %s18, 3
    %p148 = por %p146, %p147
    %p150 = scmp.ne.s32.totalorder %s135, %s149
    %p151 = scmp.eq.s32.totalorder %s18, 0
    %p152 = por %p150, %p151
    %s154 = sadd.s32 %s153, 1
    %p157 = scmp.eq.s32.totalorder %s12, 3
    %p158 = scmp.ne.s32.totalorder %s153, %s155
    %p159 = scmp.eq.s32.totalorder %s12, 0
    %p160 = por %p158, %p159
    %p161 = scmp.ne.s32.totalorder %s153, %s155
    %p162 = scmp.eq.s32.totalorder %s17, 3
    %p163 = por %p161, %p162
    %p164 = scmp.ne.s32.totalorder %s155, %s156
    %p165 = scmp.eq.s32.totalorder %s17, 0
    %p166 = por %p164, %p165
    %p167 = scmp.ne.s32.totalorder %s155, %s156
    %p168 = scmp.eq.s32.totalorder %s18, 3
    %p169 = por %p167, %p168
    %p171 = scmp.ne.s32.totalorder %s156, %s170
    %p172 = scmp.eq.s32.totalorder %s18, 0
    %p173 = por %p171, %p172
    %s175 = sadd.s32 %s174, 1
    %p178 = scmp.eq.s32.totalorder %s12, 3
    %p179 = scmp.ne.s32.totalorder %s174, %s176
    %p180 = scmp.eq.s32.totalorder %s12, 0
    %p181 = por %p179, %p180
    %p182 = scmp.ne.s32.totalorder %s174, %s176
    %p183 = scmp.eq.s32.totalorder %s17, 3
    %p184 = por %p182, %p183
    %p185 = scmp.ne.s32.totalorder %s176, %s177
    %p186 = scmp.eq.s32.totalorder %s17, 0
    %p187 = por %p185, %p186
    %p188 = scmp.ne.s32.totalorder %s176, %s177
    %p189 = scmp.eq.s32.totalorder %s18, 3
    %p190 = por %p188, %p189
    %p192 = scmp.ne.s32.totalorder %s177, %s191
    %p193 = scmp.eq.s32.totalorder %s18, 0
    %p194 = por %p192, %p193
    %s195 = ssub.s32 %s19, %s31
    %s196 = ssub.s32 %s20, %s27
    %s197 = sor.u32 %s195, %s196
    %p198 = scmp.eq.s32.totalorder %s197, 0
    %s200 = sadd.s32 %s199, 1
    %s201 = scalar_select %p198, %s199, %s200
    %p204 = pneg %p198
    %p205 = scmp.eq.s32.totalorder %s12, 3
    %p206 = por %p204, %p205
    %p207 = scmp.ne.s32.totalorder %s199, %s202
    %p208 = scmp.eq.s32.totalorder %s12, 0
    %p209 = por %p207, %p208
    %p210 = scmp.ne.s32.totalorder %s199, %s202
    %p211 = scmp.eq.s32.totalorder %s17, 3
    %p212 = por %p210, %p211
    %p213 = scmp.ne.s32.totalorder %s202, %s203
    %p214 = scmp.eq.s32.totalorder %s17, 0
    %p215 = por %p213, %p214
    %p216 = scmp.ne.s32.totalorder %s202, %s203
    %p217 = scmp.eq.s32.totalorder %s18, 3
    %p218 = por %p216, %p217
    %p220 = scmp.ne.s32.totalorder %s203, %s219
    %p221 = scmp.eq.s32.totalorder %s18, 0
    %p222 = por %p220, %p221
    %p223 = scmp.le.s32.totalorder 1, %s12
    %p224 = scmp.lt.s32.totalorder %s12, 5
    %p225 = pnand %p223, %p224
    %p226 = pneg %p225
    // Predicated region
    $region9: #{mean_teacher_forward_test.2} parent=5 // pred_check
      _
    $region10: #{mean_teacher_forward_test.2} parent=5 // pred_check_branch
      %228 = sbr.rel (%p225) target = $region12
    $region11: #{mean_teacher_forward_test.2} parent=5 // pred_region
      %s229 = ssub.s32 %s12, 1
      // Predicated region
      $region13: #{mean_teacher_forward_test.2} parent=11 // pred_check
        %p230 = pneg %p145
      $region14: #{mean_teacher_forward_test.2} parent=11 // pred_check_branch
        %232 = sbr.rel (%p230) target = $region16
      $region15: #{mean_teacher_forward_test.2} parent=11 // pred_region
        _
      $region16: #{mean_teacher_forward_test.2} parent=11 // pred_fallthru
        _
      // Predicated region
      $region17: #{mean_teacher_forward_test.2} parent=11 // pred_check
        %p233 = pneg %p166
      $region18: #{mean_teacher_forward_test.2} parent=11 // pred_check_branch
        %235 = sbr.rel (%p233) target = $region20
      $region19: #{mean_teacher_forward_test.2} parent=11 // pred_region
        _
      $region20: #{mean_teacher_forward_test.2} parent=11 // pred_fallthru
        _
      // Predicated region
      $region21: #{mean_teacher_forward_test.2} parent=11 // pred_check
        %p236 = pneg %p187
      $region22: #{mean_teacher_forward_test.2} parent=11 // pred_check_branch
        %238 = sbr.rel (%p236) target = $region24
      $region23: #{mean_teacher_forward_test.2} parent=11 // pred_region
        _
      $region24: #{mean_teacher_forward_test.2} parent=11 // pred_fallthru
        _
    $region12: #{mean_teacher_forward_test.2} parent=5 // pred_fallthru
      _
    %p239 = scmp.lt.s32.totalorder %s12, 4
    // Predicated region
    $region25: #{mean_teacher_forward_test.2} parent=5 // pred_check
      %p240 = pneg %p239
    $region26: #{mean_teacher_forward_test.2} parent=5 // pred_check_branch
      %242 = sbr.rel (%p240) target = $region28
    $region27: #{mean_teacher_forward_test.2} parent=5 // pred_region
      // Predicated region
      $region29: #{mean_teacher_forward_test.2} parent=27 // pred_check
        %p243 = pneg %p54
      $region30: #{mean_teacher_forward_test.2} parent=27 // pred_check_branch
        %245 = sbr.rel (%p243) target = $region32
      $region31: #{mean_teacher_forward_test.2} parent=27 // pred_region
        %s246 = smul.u32 %s20, 8
        %s247 = ssub.s32 %s246, 1
        %p248 = scmp.gt.s32.totalorder %s247, 0
        %s249 = scalar_select %p248, %s247, 0
        %p250 = scmp.lt.s32.totalorder %s19, 1
        %s251 = scalar_select %p250, %s19, 1
        %p252 = scmp.lt.s32.totalorder %s249, 15
        %s253 = scalar_select %p252, %s249, 15
        %s254 = smul.addr %s253, 2
        %s255 = smul.addr %s251, 32
        %s256 = sadd.s32 %s254, %s255
        %s257 = smul.addr %s256, 8
        %s258 = scalar_lea.vmem %s0, %s257
        %s259 = smul.u32 %s20, 8
        %s260 = ssub.s32 %s259, 1
        %p261 = scmp.gt.s32.totalorder %s260, 0
        %s262 = scalar_select %p261, %s260, 0
      $region32: #{mean_teacher_forward_test.2} parent=27 // pred_fallthru
        _
      // Predicated region
      $region33: #{mean_teacher_forward_test.2} parent=27 // pred_check
        %p263 = pneg %p82
      $region34: #{mean_teacher_forward_test.2} parent=27 // pred_check_branch
        %265 = sbr.rel (%p263) target = $region36
      $region35: #{mean_teacher_forward_test.2} parent=27 // pred_region
        %s266 = smul.u32 8, %s20
        %p267 = scmp.lt.s32.totalorder %s19, 1
        %s268 = scalar_select %p267, %s19, 1
        %p269 = scmp.lt.s32.totalorder %s266, 15
        %s270 = scalar_select %p269, %s266, 15
        %s271 = smul.addr %s270, 2
        %s272 = smul.addr %s268, 32
        %s273 = sadd.s32 %s271, %s272
        %s274 = smul.addr %s273, 8
        %s275 = scalar_lea.vmem %s1, %s274
        %s276 = smul.u32 8, %s20
      $region36: #{mean_teacher_forward_test.2} parent=27 // pred_fallthru
        _
      // Predicated region
      $region37: #{mean_teacher_forward_test.2} parent=27 // pred_check
        %p277 = pneg %p118
      $region38: #{mean_teacher_forward_test.2} parent=27 // pred_check_branch
        %279 = sbr.rel (%p277) target = $region40
      $region39: #{mean_teacher_forward_test.2} parent=27 // pred_region
        %s280 = smul.u32 %s20, 8
        %s281 = sadd.s32 %s280, 8
        %p282 = scmp.lt.s32.totalorder %s281, 15
        %s283 = scalar_select %p282, %s281, 15
        %p284 = scmp.lt.s32.totalorder %s19, 1
        %s285 = scalar_select %p284, %s19, 1
        %p286 = scmp.lt.s32.totalorder %s283, 15
        %s287 = scalar_select %p286, %s283, 15
        %s288 = smul.addr %s287, 2
        %s289 = smul.addr %s285, 32
        %s290 = sadd.s32 %s288, %s289
        %s291 = smul.addr %s290, 8
        %s292 = scalar_lea.vmem %s2, %s291
        %s293 = smul.u32 %s20, 8
        %s294 = sadd.s32 %s293, 8
        %p295 = scmp.lt.s32.totalorder %s294, 15
        %s296 = scalar_select %p295, %s294, 15
      $region40: #{mean_teacher_forward_test.2} parent=27 // pred_fallthru
        _
    $region28: #{mean_teacher_forward_test.2} parent=5 // pred_fallthru
      _
    %p297 = scmp.le.s32.totalorder 1, %s12
    %p298 = scmp.lt.s32.totalorder %s12, 5
    %p299 = pnand %p297, %p298
    %p300 = pneg %p299
    // Predicated region
    $region41: #{mean_teacher_forward_test.2} parent=5 // pred_check
      _
    $region42: #{mean_teacher_forward_test.2} parent=5 // pred_check_branch
      %302 = sbr.rel (%p299) target = $region44
    $region43: #{mean_teacher_forward_test.2} parent=5 // pred_region
      %s303 = ssub.s32 %s12, 1
      %s304 = smul.u32 %s22, 8
      %s305 = ssub.s32 %s304, 1
      %p306 = scmp.gt.s32.totalorder %s305, 0
      %s307 = scalar_select %p306, %s305, 0
      %p308 = scmp.lt.s32.totalorder %s21, 1
      %s309 = scalar_select %p308, %s21, 1
      %p310 = scmp.lt.s32.totalorder %s307, 15
      %s311 = scalar_select %p310, %s307, 15
      %s312 = smul.addr %s311, 2
      %s313 = smul.addr %s309, 32
      %s314 = sadd.s32 %s312, %s313
      %s315 = smul.addr %s314, 8
      %s316 = scalar_lea.vmem %s0, %s315
      %p317 = pneg %p60
      %p318 = pneg %p57
      %s319 = smul.u32 8, %s22
      %p320 = scmp.lt.s32.totalorder %s21, 1
      %s321 = scalar_select %p320, %s21, 1
      %p322 = scmp.lt.s32.totalorder %s319, 15
      %s323 = scalar_select %p322, %s319, 15
      %s324 = smul.addr %s323, 2
      %s325 = smul.addr %s321, 32
      %s326 = sadd.s32 %s324, %s325
      %s327 = smul.addr %s326, 8
      %s328 = scalar_lea.vmem %s1, %s327
      %p329 = pneg %p88
      %p330 = pneg %p85
      %s331 = smul.u32 %s22, 8
      %s332 = sadd.s32 %s331, 8
      %p333 = scmp.lt.s32.totalorder %s332, 15
      %s334 = scalar_select %p333, %s332, 15
      %p335 = scmp.lt.s32.totalorder %s21, 1
      %s336 = scalar_select %p335, %s21, 1
      %p337 = scmp.lt.s32.totalorder %s334, 15
      %s338 = scalar_select %p337, %s334, 15
      %s339 = smul.addr %s338, 2
      %s340 = smul.addr %s336, 32
      %s341 = sadd.s32 %s339, %s340
      %s342 = smul.addr %s341, 8
      %s343 = scalar_lea.vmem %s2, %s342
      %p344 = pneg %p124
      %p345 = pneg %p121
      %p346 = pneg %p145
      %p347 = pneg %p142
      %p348 = pneg %p166
      %p349 = pneg %p163
      %p350 = pneg %p187
      %p351 = pneg %p184
      %p352 = pneg %p215
      %p353 = pneg %p212
      %s354 = smul.u32 8, %s22
      %p355 = scmp.lt.s32.totalorder %s21, 1
      %s356 = scalar_select %p355, %s21, 1
      %p357 = scmp.lt.s32.totalorder %s354, 15
      %s358 = scalar_select %p357, %s354, 15
      %s359 = smul.addr %s358, 2
      %s360 = smul.addr %s356, 32
      %s361 = sadd.s32 %s359, %s360
      %s362 = smul.addr %s361, 4
      %s363 = scalar_lea.vmem %s6, %s362
      %s364 = smul.u32 %s22, 8
      %s365 = ssub.s32 %s364, 1
      %p366 = scmp.gt.s32.totalorder %s365, 0
      %s367 = scalar_select %p366, %s365, 0
      %p368 = scmp.lt.s32.totalorder %s21, 1
      %s369 = scalar_select %p368, %s21, 1
      %p370 = scmp.lt.s32.totalorder %s367, 15
      %s371 = scalar_select %p370, %s367, 15
      %s372 = smul.addr %s371, 2
      %s373 = smul.addr %s369, 32
      %s374 = sadd.s32 %s372, %s373
      %s375 = smul.addr %s374, 8
      %s376 = scalar_lea.vmem %s0, %s375
      %s377 = smul.u32 %s22, 8
      %s378 = ssub.s32 %s377, 1
      %p379 = scmp.gt.s32.totalorder %s378, 0
      %s380 = scalar_select %p379, %s378, 0
      %s381 = smul.u32 8, %s22
      %p382 = scmp.lt.s32.totalorder %s21, 1
      %s383 = scalar_select %p382, %s21, 1
      %p384 = scmp.lt.s32.totalorder %s381, 15
      %s385 = scalar_select %p384, %s381, 15
      %s386 = smul.addr %s385, 2
      %s387 = smul.addr %s383, 32
      %s388 = sadd.s32 %s386, %s387
      %s389 = smul.addr %s388, 8
      %s390 = scalar_lea.vmem %s1, %s389
      %s391 = smul.u32 8, %s22
      %s392 = smul.u32 %s22, 8
      %s393 = sadd.s32 %s392, 8
      %p394 = scmp.lt.s32.totalorder %s393, 15
      %s395 = scalar_select %p394, %s393, 15
      %p396 = scmp.lt.s32.totalorder %s21, 1
      %s397 = scalar_select %p396, %s21, 1
      %p398 = scmp.lt.s32.totalorder %s395, 15
      %s399 = scalar_select %p398, %s395, 15
      %s400 = smul.addr %s399, 2
      %s401 = smul.addr %s397, 32
      %s402 = sadd.s32 %s400, %s401
      %s403 = smul.addr %s402, 8
      %s404 = scalar_lea.vmem %s2, %s403
      %s405 = smul.u32 %s22, 8
      %s406 = sadd.s32 %s405, 8
      %p407 = scmp.lt.s32.totalorder %s406, 15
      %s408 = scalar_select %p407, %s406, 15
      %s409 = smul.u32 8, %s22
      %p410 = scmp.lt.s32.totalorder %s21, 1
      %s411 = scalar_select %p410, %s21, 1
      %p412 = scmp.lt.s32.totalorder %s409, 15
      %s413 = scalar_select %p412, %s409, 15
      %s414 = smul.addr %s413, 2
      %s415 = smul.addr %s411, 32
      %s416 = sadd.s32 %s414, %s415
      %s417 = smul.addr %s416, 4
      %s418 = scalar_lea.vmem %s6, %s417
      %s419 = smul.u32 8, %s22
      %v421 = vld [vmem:[%s5] sm:$0x1]
      %v422 = vpack.c.bf16 %v421, %v421
      %v424 = vpack.i.b16 %v422, %v422
      %v426 = vlaneseq
      %v427 = vshrl.u32 %v426, 7
      %v428 = vsub.s32 0, %v427
      %v429 = vrot.slane %v424, %v428
      %v431 = vunpack.c.l.b16 %v429
      %v432 = vpack.c.b16 %v431, %v431
      %vm434 = vcmask 19456
      %435 = vst.msk [vmem:[#allocation2] sm:$0xf] %vm434, %v432
      %436 = vst.msk [vmem:[#allocation2 + $0x4] sm:$0xf] %vm434, %v432
      %437 = vst.msk [vmem:[#allocation2 + $0x8] sm:$0xf] %vm434, %v432
      %438 = vst.msk [vmem:[#allocation2 + $0xc] sm:$0xf] %vm434, %v432
      %439 = vst.msk [vmem:[#allocation2 + $0x10] sm:$0xf] %vm434, %v432
      %440 = vst.msk [vmem:[#allocation2 + $0x14] sm:$0xf] %vm434, %v432
      %441 = vst.msk [vmem:[#allocation2 + $0x18] sm:$0xf] %vm434, %v432
      %442 = vst.msk [vmem:[#allocation2 + $0x1c] sm:$0xf] %vm434, %v432
      %443 = vst.msk [vmem:[#allocation2 + $0x20] sm:$0xf] %vm434, %v432
      %444 = vst.msk [vmem:[#allocation2 + $0x24] sm:$0xf] %vm434, %v432
      %445 = vst.msk [vmem:[#allocation2 + $0x28] sm:$0xf] %vm434, %v432
      %446 = vst.msk [vmem:[#allocation2 + $0x2c] sm:$0xf] %vm434, %v432
      %447 = vst.msk [vmem:[#allocation2 + $0x30] sm:$0xf] %vm434, %v432
      %448 = vst.msk [vmem:[#allocation2 + $0x34] sm:$0xf] %vm434, %v432
      %449 = vst.msk [vmem:[#allocation2 + $0x38] sm:$0xf] %vm434, %v432
      %450 = vst.msk [vmem:[#allocation2 + $0x3c] sm:$0xf] %vm434, %v432
      %451 = vst.msk [vmem:[#allocation2 + $0x40] sm:$0xf] %vm434, %v432
      %452 = vst.msk [vmem:[#allocation2 + $0x44] sm:$0xf] %vm434, %v432
      %453 = vst.msk [vmem:[#allocation2 + $0x48] sm:$0xf] %vm434, %v432
      %454 = vst.msk [vmem:[#allocation2 + $0x4c] sm:$0xf] %vm434, %v432
      %455 = vst.msk [vmem:[#allocation2 + $0x50] sm:$0xf] %vm434, %v432
      %456 = vst.msk [vmem:[#allocation2 + $0x54] sm:$0xf] %vm434, %v432
      %457 = vst.msk [vmem:[#allocation2 + $0x58] sm:$0xf] %vm434, %v432
      %p458 = scmp.gt.s32.totalorder %s22, 0
      // Predicated region
      $region45: #{mean_teacher_forward_test.2} parent=43 // pred_check
        %p459 = pneg %p458
      $region46: #{mean_teacher_forward_test.2} parent=43 // pred_check_branch
        %461 = sbr.rel (%p459) target = $region48
      $region47: #{mean_teacher_forward_test.2} parent=43 // pred_region
        %v462 = vld [vmem:[%s376] sm:$0xff]
        %v463 = vld [vmem:[%s376 + $0x8] sm:$0xff]
        %v464 = vpack.c.bf16 %v463, %v462
        %v466 = vunpack.c.l.b16 %v464
        %v467 = vunpack.c.h.b16 %v464
        %v468 = vpack.c.b16 %v466, %v466
        %v469 = vpack.c.b16 %v467, %v467
        %vm470 = vsmask.f32 256
        %vm471 = vsmask.f32 4368
        %vm472 = vmor %vm470, %vm471
        %v474 = vshrl.u32 %v468, 16
        %v476 = vrot.slane %v474, 7
        %v477 = vshll.u32 %v468, 16
        %v479 = vor.u32 %v476, %v477
        %v480 = vrot.slane %v476, 4
        %v482 = vshrl.u32 %v469, 16
        %v484 = vrot.slane %v482, 7
        %v485 = vshll.u32 %v469, 16
        %v487 = vor.u32 %v484, %v485
        %v488 = vsel %vm472, %v480, %v487
        %v489 = vrot.slane %v484, 4
        %vm493 = vcmask 19456
        %vm494 = vsmask.f32 7938
        %vm495 = vmand %vm493, %vm494
        %v496 = vld [vmem:[#allocation2] sm:$0xf]
        %v497 = vsel %vm495, %v479, %v496
        %498 = vst [vmem:[#allocation2] sm:$0xf] %v497
        %499 = vst.msk [vmem:[#allocation2 + $0x4] sm:$0xf] %vm434, %v488
        %vm500 = vcmask 16384
        %vm501 = vmand %vm500, %vm470
        %v502 = vld [vmem:[#allocation2 + $0x8] sm:$0x1]
        %v503 = vsel %vm501, %v489, %v502
        %504 = vst [vmem:[#allocation2 + $0x8] sm:$0x1] %v503
      $region48: #{mean_teacher_forward_test.2} parent=43 // pred_fallthru
        _
      %v505 = vld [vmem:[%s390] sm:$0xff]
      %v506 = vld [vmem:[%s390 + $0x8] sm:$0xff]
      %v507 = vpack.c.bf16 %v506, %v505
      %v509 = vunpack.c.l.b16 %v507
      %v510 = vunpack.c.h.b16 %v507
      %v511 = vpack.c.b16 %v509, %v509
      %v512 = vpack.c.b16 %v510, %v510
      %vm513 = vsmask.f32 1280
      %vm514 = vsmask.f32 5392
      %vm515 = vmor %vm513, %vm514
      %v517 = vshrl.u32 %v511, 16
      %v519 = vrot.slane %v517, 6
      %v520 = vshll.u32 %v511, 16
      %v522 = vrot.slane %v520, 7
      %v523 = vor.u32 %v519, %v522
      %v524 = vrot.slane %v523, 4
      %v526 = vshrl.u32 %v512, 16
      %v528 = vrot.slane %v526, 6
      %v529 = vshll.u32 %v512, 16
      %v531 = vrot.slane %v529, 7
      %v532 = vor.u32 %v528, %v531
      %v533 = vsel %vm515, %v524, %v532
      %v534 = vrot.slane %v532, 4
      %vm538 = vcmask 19457
      %vm539 = vsmask.f32 7942
      %vm540 = vmand %vm538, %vm539
      %v541 = vld [vmem:[#allocation2 + $0x8] sm:$0xe]
      %v542 = vsel %vm540, %v523, %v541
      %543 = vst [vmem:[#allocation2 + $0x8] sm:$0xe] %v542
      %544 = vst.msk [vmem:[#allocation2 + $0xc] sm:$0xf] %vm434, %v533
      %vm545 = vcmask 17408
      %vm546 = vmand %vm545, %vm513
      %v547 = vld [vmem:[#allocation2 + $0x10] sm:$0x3]
      %v548 = vsel %vm546, %v534, %v547
      %549 = vst [vmem:[#allocation2 + $0x10] sm:$0x3] %v548
      %s550 = scalar_lea.vmem %s390, 16
      %v551 = vld [vmem:[%s550] sm:$0xff]
      %v552 = vld [vmem:[%s550 + $0x8] sm:$0xff]
      %v553 = vpack.c.bf16 %v552, %v551
      %v555 = vunpack.c.l.b16 %v553
      %v556 = vunpack.c.h.b16 %v553
      %v557 = vpack.c.b16 %v555, %v555
      %v558 = vpack.c.b16 %v556, %v556
      %vm559 = vsmask.f32 2304
      %vm560 = vsmask.f32 6416
      %vm561 = vmor %vm559, %vm560
      %v563 = vshrl.u32 %v557, 16
      %v565 = vrot.slane %v563, 5
      %v566 = vshll.u32 %v557, 16
      %v568 = vrot.slane %v566, 6
      %v569 = vor.u32 %v565, %v568
      %v570 = vrot.slane %v569, 4
      %v572 = vshrl.u32 %v558, 16
      %v574 = vrot.slane %v572, 5
      %v575 = vshll.u32 %v558, 16
      %v577 = vrot.slane %v575, 6
      %v578 = vor.u32 %v574, %v577
      %v579 = vsel %vm561, %v570, %v578
      %v580 = vrot.slane %v578, 4
      %vm584 = vcmask 19458
      %vm585 = vsmask.f32 7946
      %vm586 = vmand %vm584, %vm585
      %v587 = vld [vmem:[#allocation2 + $0x10] sm:$0xc]
      %v588 = vsel %vm586, %v569, %v587
      %589 = vst [vmem:[#allocation2 + $0x10] sm:$0xc] %v588
      %590 = vst.msk [vmem:[#allocation2 + $0x14] sm:$0xf] %vm434, %v579
      %vm591 = vcmask 18432
      %vm592 = vmand %vm591, %vm559
      %v593 = vld [vmem:[#allocation2 + $0x18] sm:$0x7]
      %v594 = vsel %vm592, %v580, %v593
      %595 = vst [vmem:[#allocation2 + $0x18] sm:$0x7] %v594
      %s596 = scalar_lea.vmem %s390, 32
      %v597 = vld [vmem:[%s596] sm:$0xff]
      %v598 = vld [vmem:[%s596 + $0x8] sm:$0xff]
      %v599 = vpack.c.bf16 %v598, %v597
      %v601 = vunpack.c.l.b16 %v599
      %v602 = vunpack.c.h.b16 %v599
      %v603 = vpack.c.b16 %v601, %v601
      %v604 = vpack.c.b16 %v602, %v602
      %vm605 = vsmask.f32 3328
      %vm606 = vsmask.f32 7440
      %vm607 = vmor %vm605, %vm606
      %v609 = vshll.u32 %v603, 16
      %v611 = vrot.slane %v609, 5
      %v612 = vshrl.u32 %v603, 16
      %v614 = vrot.slane %v612, 4
      %v615 = vor.u32 %v614, %v611
      %v616 = vrot.slane %v615, 4
      %v618 = vshll.u32 %v604, 16
      %v620 = vrot.slane %v618, 5
      %v621 = vsel %vm607, %v616, %v620
      %v622 = vshrl.u32 %v604, 16
      %v624 = vrot.slane %v622, 4
      %v625 = vor.u32 %v624, %v620
      %v626 = vrot.slane %v625, 4
      %vm630 = vcmask 19459
      %vm631 = vsmask.f32 7950
      %vm632 = vmand %vm630, %vm631
      %v633 = vld [vmem:[#allocation2 + $0x18] sm:$0x8]
      %v634 = vsel %vm632, %v611, %v633
      %635 = vst [vmem:[#allocation2 + $0x18] sm:$0x8] %v634
      %636 = vst.msk [vmem:[#allocation2 + $0x1c] sm:$0xf] %vm434, %v621
      %vm637 = vcmask 19456
      %vm638 = vmand %vm637, %vm605
      %v639 = vld [vmem:[#allocation2 + $0x20] sm:$0xf]
      %v640 = vsel %vm638, %v626, %v639
      %641 = vst [vmem:[#allocation2 + $0x20] sm:$0xf] %v640
      %s642 = scalar_lea.vmem %s390, 48
      %v643 = vld [vmem:[%s642] sm:$0xff]
      %v644 = vld [vmem:[%s642 + $0x8] sm:$0xff]
      %v645 = vpack.c.bf16 %v644, %v643
      %v647 = vunpack.c.l.b16 %v645
      %v648 = vunpack.c.h.b16 %v645
      %v649 = vpack.c.b16 %v647, %v647
      %v650 = vpack.c.b16 %v648, %v648
      %vm651 = vsmask.f32 256
      %vm652 = vsmask.f32 4368
      %vm653 = vmor %vm651, %vm652
      %v655 = vshrl.u32 %v649, 16
      %v657 = vrot.slane %v655, 7
      %v658 = vshll.u32 %v649, 16
      %v660 = vor.u32 %v657, %v658
      %v661 = vrot.slane %v657, 4
      %v663 = vshrl.u32 %v650, 16
      %v665 = vrot.slane %v663, 7
      %v666 = vshll.u32 %v650, 16
      %v668 = vor.u32 %v665, %v666
      %v669 = vsel %vm653, %v661, %v668
      %v670 = vrot.slane %v665, 4
      %vm674 = vsmask.f32 7938
      %vm675 = vmand %vm637, %vm674
      %v676 = vld [vmem:[#allocation2 + $0x24] sm:$0xf]
      %v677 = vsel %vm675, %v660, %v676
      %678 = vst [vmem:[#allocation2 + $0x24] sm:$0xf] %v677
      %679 = vst.msk [vmem:[#allocation2 + $0x28] sm:$0xf] %vm434, %v669
      %vm680 = vcmask 16384
      %vm681 = vmand %vm680, %vm651
      %v682 = vld [vmem:[#allocation2 + $0x2c] sm:$0x1]
      %v683 = vsel %vm681, %v670, %v682
      %684 = vst [vmem:[#allocation2 + $0x2c] sm:$0x1] %v683
      %s685 = scalar_lea.vmem %s390, 64
      %v686 = vld [vmem:[%s685] sm:$0xff]
      %v687 = vld [vmem:[%s685 + $0x8] sm:$0xff]
      %v688 = vpack.c.bf16 %v687, %v686
      %v690 = vunpack.c.l.b16 %v688
      %v691 = vunpack.c.h.b16 %v688
      %v692 = vpack.c.b16 %v690, %v690
      %v693 = vpack.c.b16 %v691, %v691
      %v695 = vshrl.u32 %v692, 16
      %v697 = vrot.slane %v695, 6
      %v698 = vshll.u32 %v692, 16
      %v700 = vrot.slane %v698, 7
      %v701 = vor.u32 %v697, %v700
      %v702 = vrot.slane %v701, 4
      %v704 = vshrl.u32 %v693, 16
      %v706 = vrot.slane %v704, 6
      %v707 = vshll.u32 %v693, 16
      %v709 = vrot.slane %v707, 7
      %v710 = vor.u32 %v706, %v709
      %v711 = vsel %vm515, %v702, %v710
      %v712 = vrot.slane %v710, 4
      %v716 = vld [vmem:[#allocation2 + $0x2c] sm:$0xe]
      %v717 = vsel %vm540, %v701, %v716
      %718 = vst [vmem:[#allocation2 + $0x2c] sm:$0xe] %v717
      %719 = vst.msk [vmem:[#allocation2 + $0x30] sm:$0xf] %vm434, %v711
      %v720 = vld [vmem:[#allocation2 + $0x34] sm:$0x3]
      %v721 = vsel %vm546, %v712, %v720
      %722 = vst [vmem:[#allocation2 + $0x34] sm:$0x3] %v721
      %s723 = scalar_lea.vmem %s390, 80
      %v724 = vld [vmem:[%s723] sm:$0xff]
      %v725 = vld [vmem:[%s723 + $0x8] sm:$0xff]
      %v726 = vpack.c.bf16 %v725, %v724
      %v728 = vunpack.c.l.b16 %v726
      %v729 = vunpack.c.h.b16 %v726
      %v730 = vpack.c.b16 %v728, %v728
      %v731 = vpack.c.b16 %v729, %v729
      %v733 = vshrl.u32 %v730, 16
      %v735 = vrot.slane %v733, 5
      %v736 = vshll.u32 %v730, 16
      %v738 = vrot.slane %v736, 6
      %v739 = vor.u32 %v735, %v738
      %v740 = vrot.slane %v739, 4
      %v742 = vshrl.u32 %v731, 16
      %v744 = vrot.slane %v742, 5
      %v745 = vshll.u32 %v731, 16
      %v747 = vrot.slane %v745, 6
      %v748 = vor.u32 %v744, %v747
      %v749 = vsel %vm561, %v740, %v748
      %v750 = vrot.slane %v748, 4
      %v754 = vld [vmem:[#allocation2 + $0x34] sm:$0xc]
      %v755 = vsel %vm586, %v739, %v754
      %756 = vst [vmem:[#allocation2 + $0x34] sm:$0xc] %v755
      %757 = vst.msk [vmem:[#allocation2 + $0x38] sm:$0xf] %vm434, %v749
      %v758 = vld [vmem:[#allocation2 + $0x3c] sm:$0x7]
      %v759 = vsel %vm592, %v750, %v758
      %760 = vst [vmem:[#allocation2 + $0x3c] sm:$0x7] %v759
      %s761 = scalar_lea.vmem %s390, 96
      %v762 = vld [vmem:[%s761] sm:$0xff]
      %v763 = vld [vmem:[%s761 + $0x8] sm:$0xff]
      %v764 = vpack.c.bf16 %v763, %v762
      %v766 = vunpack.c.l.b16 %v764
      %v767 = vunpack.c.h.b16 %v764
      %v768 = vpack.c.b16 %v766, %v766
      %v769 = vpack.c.b16 %v767, %v767
      %v771 = vshll.u32 %v768, 16
      %v773 = vrot.slane %v771, 5
      %v774 = vshrl.u32 %v768, 16
      %v776 = vrot.slane %v774, 4
      %v777 = vor.u32 %v776, %v773
      %v778 = vrot.slane %v777, 4
      %v780 = vshll.u32 %v769, 16
      %v782 = vrot.slane %v780, 5
      %v783 = vsel %vm607, %v778, %v782
      %v784 = vshrl.u32 %v769, 16
      %v786 = vrot.slane %v784, 4
      %v787 = vor.u32 %v786, %v782
      %v788 = vrot.slane %v787, 4
      %v792 = vld [vmem:[#allocation2 + $0x3c] sm:$0x8]
      %v793 = vsel %vm632, %v773, %v792
      %794 = vst [vmem:[#allocation2 + $0x3c] sm:$0x8] %v793
      %795 = vst.msk [vmem:[#allocation2 + $0x40] sm:$0xf] %vm434, %v783
      %v796 = vld [vmem:[#allocation2 + $0x44] sm:$0xf]
      %v797 = vsel %vm638, %v788, %v796
      %798 = vst [vmem:[#allocation2 + $0x44] sm:$0xf] %v797
      %s799 = scalar_lea.vmem %s390, 112
      %v800 = vld [vmem:[%s799] sm:$0xff]
      %v801 = vld [vmem:[%s799 + $0x8] sm:$0xff]
      %v802 = vpack.c.bf16 %v801, %v800
      %v804 = vunpack.c.l.b16 %v802
      %v805 = vunpack.c.h.b16 %v802
      %v806 = vpack.c.b16 %v804, %v804
      %v807 = vpack.c.b16 %v805, %v805
      %v809 = vshrl.u32 %v806, 16
      %v811 = vrot.slane %v809, 7
      %v812 = vshll.u32 %v806, 16
      %v814 = vor.u32 %v811, %v812
      %v815 = vrot.slane %v811, 4
      %v817 = vshrl.u32 %v807, 16
      %v819 = vrot.slane %v817, 7
      %v820 = vshll.u32 %v807, 16
      %v822 = vor.u32 %v819, %v820
      %v823 = vsel %vm653, %v815, %v822
      %v824 = vrot.slane %v819, 4
      %v828 = vld [vmem:[#allocation2 + $0x48] sm:$0xf]
      %v829 = vsel %vm675, %v814, %v828
      %830 = vst [vmem:[#allocation2 + $0x48] sm:$0xf] %v829
      %831 = vst.msk [vmem:[#allocation2 + $0x4c] sm:$0xf] %vm434, %v823
      %v832 = vld [vmem:[#allocation2 + $0x50] sm:$0x1]
      %v833 = vsel %vm681, %v824, %v832
      %834 = vst [vmem:[#allocation2 + $0x50] sm:$0x1] %v833
      %p835 = scmp.lt.s32.totalorder %s22, 1
      // Predicated region
      $region49: #{mean_teacher_forward_test.2} parent=43 // pred_check
        %p836 = pneg %p835
      $region50: #{mean_teacher_forward_test.2} parent=43 // pred_check_branch
        %838 = sbr.rel (%p836) target = $region52
      $region51: #{mean_teacher_forward_test.2} parent=43 // pred_region
        %v839 = vld [vmem:[%s404] sm:$0xff]
        %v840 = vld [vmem:[%s404 + $0x8] sm:$0xff]
        %v841 = vpack.c.bf16 %v840, %v839
        %v843 = vunpack.c.l.b16 %v841
        %v844 = vunpack.c.h.b16 %v841
        %v845 = vpack.c.b16 %v843, %v843
        %v846 = vpack.c.b16 %v844, %v844
        %v848 = vshrl.u32 %v845, 16
        %v850 = vrot.slane %v848, 6
        %v851 = vshll.u32 %v845, 16
        %v853 = vrot.slane %v851, 7
        %v854 = vor.u32 %v850, %v853
        %v855 = vrot.slane %v854, 4
        %v857 = vshrl.u32 %v846, 16
        %v859 = vrot.slane %v857, 6
        %v860 = vshll.u32 %v846, 16
        %v862 = vrot.slane %v860, 7
        %v863 = vor.u32 %v859, %v862
        %v864 = vsel %vm515, %v855, %v863
        %v865 = vrot.slane %v863, 4
        %v869 = vld [vmem:[#allocation2 + $0x50] sm:$0xe]
        %v870 = vsel %vm540, %v854, %v869
        %871 = vst [vmem:[#allocation2 + $0x50] sm:$0xe] %v870
        %872 = vst.msk [vmem:[#allocation2 + $0x54] sm:$0xf] %vm434, %v864
        %v873 = vld [vmem:[#allocation2 + $0x58] sm:$0x3]
        %v874 = vsel %vm546, %v865, %v873
        %875 = vst [vmem:[#allocation2 + $0x58] sm:$0x3] %v874
      $region52: #{mean_teacher_forward_test.2} parent=43 // pred_fallthru
        _
      %v876 = vld [vmem:[#allocation2] sm:$0xf]
      %v877 = vld [vmem:[#allocation2 + $0x4] sm:$0xf]
      %v878 = vld [vmem:[#allocation2 + $0x8] sm:$0xf]
      %v879 = vld [vmem:[#allocation2 + $0xc] sm:$0xf]
      %v880 = vld [vmem:[#allocation2 + $0x10] sm:$0xf]
      %v881 = vld [vmem:[#allocation2 + $0x14] sm:$0xf]
      %v882 = vld [vmem:[#allocation2 + $0x18] sm:$0xf]
      %v883 = vld [vmem:[#allocation2 + $0x1c] sm:$0xf]
      %v884 = vld [vmem:[#allocation2 + $0x20] sm:$0xf]
      %v885 = vld [vmem:[#allocation2 + $0x24] sm:$0xf]
      %v886 = vld [vmem:[#allocation2 + $0x28] sm:$0xf]
      %v887 = vld [vmem:[#allocation2 + $0x2c] sm:$0xf]
      %v888 = vld [vmem:[#allocation2 + $0x30] sm:$0xf]
      %v889 = vld [vmem:[#allocation2 + $0x34] sm:$0xf]
      %v890 = vld [vmem:[#allocation2 + $0x38] sm:$0xf]
      %v891 = vld [vmem:[#allocation2 + $0x3c] sm:$0xf]
      %v892 = vld [vmem:[#allocation2 + $0x40] sm:$0xf]
      %v893 = vld [vmem:[#allocation2 + $0x44] sm:$0xf]
      %v894 = vld [vmem:[%s3] sm:$0x3]
      %v895 = vld [vmem:[#allocation2 + $0x48] sm:$0x1]
      %s896 = scalar_lea.vmem %s3, 2
      %v897 = vld [vmem:[%s896] sm:$0x3]
      %v917 = vunpack.c.l.b16 %v876
      %v918 = vunpack.c.l.b16 %v877
      %v919 = vunpack.c.l.b16 %v878
      %v920 = vunpack.c.l.b16 %v879
      %v921 = vunpack.c.l.b16 %v880
      %v922 = vunpack.c.l.b16 %v881
      %v923 = vunpack.c.l.b16 %v882
      %v924 = vunpack.c.l.b16 %v883
      %v925 = vunpack.c.l.b16 %v884
      %v926 = vunpack.c.l.b16 %v885
      %v927 = vunpack.c.l.b16 %v886
      %v928 = vunpack.c.l.b16 %v887
      %v929 = vunpack.c.l.b16 %v888
      %v930 = vunpack.c.l.b16 %v889
      %v931 = vunpack.c.l.b16 %v890
      %v932 = vunpack.c.l.b16 %v891
      %v933 = vunpack.c.l.b16 %v892
      %v934 = vunpack.c.l.b16 %v893
      %v935 = vunpack.c.l.b16 %v895
      %v936 = vpack.c.b16 %v918, %v917
      %v937 = vpack.c.b16 %v920, %v919
      %v938 = vpack.c.b16 %v922, %v921
      %v939 = vpack.c.b16 %v924, %v923
      %v940 = vpack.c.b16 %v926, %v925
      %v941 = vpack.c.b16 %v928, %v927
      %v942 = vpack.c.b16 %v930, %v929
      %v943 = vpack.c.b16 %v932, %v931
      %v944 = vpack.c.b16 %v934, %v933
      %v945 = vpack.c.b16 %v935, %v935
      %vm946 = vsmask.f32 7424
      %v948 = vshrl.u32 %v936, 16
      %v950 = vshll.u32 %v936, 16
      %v952 = vrot.slane %v950, 1
      %v953 = vor.u32 %v948, %v952
      %v955 = vshll.u32 %v937, 16
      %v957 = vrot.slane %v955, 1
      %v958 = vsel %vm946, %v953, %v957
      %v959 = vshrl.u32 %v937, 16
      %v961 = vor.u32 %v959, %v957
      %v963 = vshll.u32 %v938, 16
      %v965 = vrot.slane %v963, 1
      %v966 = vsel %vm946, %v961, %v965
      %v967 = vshrl.u32 %v938, 16
      %v969 = vor.u32 %v967, %v965
      %v971 = vshll.u32 %v939, 16
      %v973 = vrot.slane %v971, 1
      %v974 = vsel %vm946, %v969, %v973
      %v975 = vshrl.u32 %v939, 16
      %v977 = vor.u32 %v975, %v973
      %v979 = vshll.u32 %v940, 16
      %v981 = vrot.slane %v979, 1
      %v982 = vsel %vm946, %v977, %v981
      %v983 = vshrl.u32 %v940, 16
      %v985 = vor.u32 %v983, %v981
      %v987 = vshll.u32 %v941, 16
      %v989 = vrot.slane %v987, 1
      %v990 = vsel %vm946, %v985, %v989
      %v991 = vshrl.u32 %v941, 16
      %v993 = vor.u32 %v991, %v989
      %v995 = vshll.u32 %v942, 16
      %v997 = vrot.slane %v995, 1
      %v998 = vsel %vm946, %v993, %v997
      %v999 = vshrl.u32 %v942, 16
      %v1001 = vor.u32 %v999, %v997
      %v1003 = vshll.u32 %v943, 16
      %v1005 = vrot.slane %v1003, 1
      %v1006 = vsel %vm946, %v1001, %v1005
      %v1007 = vshrl.u32 %v943, 16
      %v1009 = vor.u32 %v1007, %v1005
      %v1011 = vshll.u32 %v944, 16
      %v1013 = vrot.slane %v1011, 1
      %v1014 = vsel %vm946, %v1009, %v1013
      %v1015 = vshrl.u32 %v944, 16
      %v1017 = vor.u32 %v1015, %v1013
      %v1019 = vshll.u32 %v945, 16
      %v1021 = vrot.slane %v1019, 1
      %v1022 = vsel %vm946, %v1017, %v1021
      %vm1023 = vcmask 23552
      %v1025 = vsel %vm1023, %v958, 0
      %v1028 = vsel %vm1023, %v966, 0
      %v1031 = vsel %vm1023, %v974, 0
      %v1034 = vsel %vm1023, %v982, 0
      %v1037 = vsel %vm1023, %v990, 0
      %v1040 = vsel %vm1023, %v998, 0
      %v1043 = vsel %vm1023, %v1006, 0
      %v1046 = vsel %vm1023, %v1014, 0
      %v1049 = vsel %vm1023, %v1022, 0
      %vm1051 = vcmask 1040384
      %vm1052 = vcmask 1041408
      %v1053 = vsel %vm1051, 4294967295, 65535
      %v1054 = vsel %vm1052, %v1053, 0
      %v1056 = vand.u32 %v897, %v1054
      %1058 = vmatprep.subr.bf16.mxu0 0
      %1059 = vmatpush1.bf16.msra.mxu0 %v1056
      %1060 = vmatprep.subr.bf16.mxu0 0
      %1061 = vmatpush1.bf16.msra.mxu0 0
      %1062 = vmatprep.subr.bf16.mxu0 0
      %1063 = vmatpush1.bf16.msra.mxu0 0
      %1064 = vmatprep.subr.bf16.mxu0 0
      %1065 = vmatpush1.bf16.msra.mxu0 0
      %1066 = vmatprep.subr.bf16.mxu0 0
      %1067 = vmatpush1.bf16.msra.mxu0 0
      %1068 = vmatprep.subr.bf16.mxu0 0
      %1069 = vmatpush1.bf16.msra.mxu0 0
      %1070 = vmatprep.subr.bf16.mxu0 0
      %1071 = vmatpush1.bf16.msra.mxu0 0
      %1072 = vmatprep.subr.bf16.mxu0 0
      %1073 = vmatpush1.bf16.msra.mxu0 0
      %1074 = vmatprep.subr.bf16.mxu0 0
      %1075 = vmatpush1.bf16.msra.mxu0 0
      %1076 = vmatprep.subr.bf16.mxu0 0
      %1077 = vmatpush1.bf16.msra.mxu0 0
      %1078 = vmatprep.subr.bf16.mxu0 0
      %1079 = vmatpush1.bf16.msra.mxu0 0
      %1080 = vmatprep.subr.bf16.mxu0 0
      %1081 = vmatpush1.bf16.msra.mxu0 0
      %1082 = vmatprep.subr.bf16.mxu0 0
      %1083 = vmatpush1.bf16.msra.mxu0 0
      %1084 = vmatprep.subr.bf16.mxu0 0
      %1085 = vmatpush1.bf16.msra.mxu0 0
      %1086 = vmatprep.subr.bf16.mxu0 0
      %1087 = vmatpush1.bf16.msra.mxu0 0
      %1088 = vmatprep.subr.bf16.mxu0 0
      %1089 = vmatpush1.bf16.msra.mxu0 0
      %1090 = vmatprep.mubr.bf16.mxu0 0
      %1091 = vmatmul.mubr.bf16.gmra.mrb[0].mxu0 %v1025
      %v1092 = vpop.f32.mrb[0].mxu0
      %v1093 = vadd.f32 0.0, %v1092
      %v1094 = vpop.f32.mrb[0].mxu0
      %v1095 = vpop.f32.mrb[0].mxu0
      %v1096 = vadd.f32 0.0, %v1095
      %v1097 = vpop.f32.mrb[0].mxu0
      %1098 = vmatprep.mubr.bf16.mxu0 0
      %1099 = vmatmul.mubr.bf16.gmra.mrb[0].mxu0 %v1028
      %v1100 = vpop.f32.mrb[0].mxu0
      %v1101 = vadd.f32 0.0, %v1100
      %v1102 = vpop.f32.mrb[0].mxu0
      %v1103 = vpop.f32.mrb[0].mxu0
      %v1104 = vadd.f32 0.0, %v1103
      %v1105 = vpop.f32.mrb[0].mxu0
      %1106 = vmatprep.mubr.bf16.mxu0 0
      %1107 = vmatmul.mubr.bf16.gmra.mrb[0].mxu0 %v1031
      %v1108 = vpop.f32.mrb[0].mxu0
      %v1109 = vadd.f32 0.0, %v1108
      %v1110 = vpop.f32.mrb[0].mxu0
      %v1111 = vpop.f32.mrb[0].mxu0
      %v1112 = vadd.f32 0.0, %v1111
      %v1113 = vpop.f32.mrb[0].mxu0
      %1114 = vmatprep.mubr.bf16.mxu0 0
      %1115 = vmatmul.mubr.bf16.gmra.mrb[0].mxu0 %v1034
      %v1116 = vpop.f32.mrb[0].mxu0
      %v1117 = vadd.f32 0.0, %v1116
      %v1118 = vpop.f32.mrb[0].mxu0
      %v1119 = vpop.f32.mrb[0].mxu0
      %v1120 = vadd.f32 0.0, %v1119
      %v1121 = vpop.f32.mrb[0].mxu0
      %1122 = vmatprep.mubr.bf16.mxu0 0
      %1123 = vmatmul.mubr.bf16.gmra.mrb[0].mxu0 %v1037
      %v1124 = vpop.f32.mrb[0].mxu0
      %v1125 = vadd.f32 0.0, %v1124
      %v1126 = vpop.f32.mrb[0].mxu0
      %v1127 = vpop.f32.mrb[0].mxu0
      %v1128 = vadd.f32 0.0, %v1127
      %v1129 = vpop.f32.mrb[0].mxu0
      %1130 = vmatprep.mubr.bf16.mxu0 0
      %1131 = vmatmul.mubr.bf16.gmra.mrb[0].mxu0 %v1040
      %v1132 = vpop.f32.mrb[0].mxu0
      %v1133 = vadd.f32 0.0, %v1132
      %v1134 = vpop.f32.mrb[0].mxu0
      %v1135 = vpop.f32.mrb[0].mxu0
      %v1136 = vadd.f32 0.0, %v1135
      %v1137 = vpop.f32.mrb[0].mxu0
      %1138 = vmatprep.mubr.bf16.mxu0 0
      %1139 = vmatmul.mubr.bf16.gmra.mrb[0].mxu0 %v1043
      %v1140 = vpop.f32.mrb[0].mxu0
      %v1141 = vadd.f32 0.0, %v1140
      %v1142 = vpop.f32.mrb[0].mxu0
      %v1143 = vpop.f32.mrb[0].mxu0
      %v1144 = vadd.f32 0.0, %v1143
      %v1145 = vpop.f32.mrb[0].mxu0
      %1146 = vmatprep.mubr.bf16.mxu0 0
      %1147 = vmatmul.mubr.bf16.gmra.mrb[0].mxu0 %v1046
      %v1148 = vpop.f32.mrb[0].mxu0
      %v1149 = vadd.f32 0.0, %v1148
      %v1150 = vpop.f32.mrb[0].mxu0
      %v1151 = vpop.f32.mrb[0].mxu0
      %v1152 = vadd.f32 0.0, %v1151
      %v1153 = vpop.f32.mrb[0].mxu0
      %1154 = vmatprep.mubr.bf16.mxu0 0
      %1155 = vmatmul.mubr.bf16.gmra.mrb[0].mxu0 %v1049
      %v1156 = vpop.f32.mrb[0].mxu0
      %v1157 = vadd.f32 0.0, %v1156
      %v1158 = vpop.f32.mrb[0].mxu0
      %v1159 = vpop.f32.mrb[0].mxu0
      %v1160 = vadd.f32 0.0, %v1159
      %v1161 = vpop.f32.mrb[0].mxu0
      %1162 = vdwg.mxu0
      %v1163 = vsel %vm1023, %v936, 0
      %v1165 = vsel %vm1023, %v937, 0
      %v1167 = vsel %vm1023, %v938, 0
      %v1169 = vsel %vm1023, %v939, 0
      %v1171 = vsel %vm1023, %v940, 0
      %v1173 = vsel %vm1023, %v941, 0
      %v1175 = vsel %vm1023, %v942, 0
      %v1177 = vsel %vm1023, %v943, 0
      %v1179 = vsel %vm1023, %v944, 0
      %v1182 = vand.u32 %v894, %v1054
      %1184 = vmatprep.subr.bf16.mxu0 0
      %1185 = vmatpush1.bf16.msra.mxu0 %v1182
      %1186 = vmatprep.subr.bf16.mxu0 0
      %1187 = vmatpush1.bf16.msra.mxu0 0
      %1188 = vmatprep.subr.bf16.mxu0 0
      %1189 = vmatpush1.bf16.msra.mxu0 0
      %1190 = vmatprep.subr.bf16.mxu0 0
      %1191 = vmatpush1.bf16.msra.mxu0 0
      %1192 = vmatprep.subr.bf16.mxu0 0
      %1193 = vmatpush1.bf16.msra.mxu0 0
      %1194 = vmatprep.subr.bf16.mxu0 0
      %1195 = vmatpush1.bf16.msra.mxu0 0
      %1196 = vmatprep.subr.bf16.mxu0 0
      %1197 = vmatpush1.bf16.msra.mxu0 0
      %1198 = vmatprep.subr.bf16.mxu0 0
      %1199 = vmatpush1.bf16.msra.mxu0 0
      %1200 = vmatprep.subr.bf16.mxu0 0
      %1201 = vmatpush1.bf16.msra.mxu0 0
      %1202 = vmatprep.subr.bf16.mxu0 0
      %1203 = vmatpush1.bf16.msra.mxu0 0
      %1204 = vmatprep.subr.bf16.mxu0 0
      %1205 = vmatpush1.bf16.msra.mxu0 0
      %1206 = vmatprep.subr.bf16.mxu0 0
      %1207 = vmatpush1.bf16.msra.mxu0 0
      %1208 = vmatprep.subr.bf16.mxu0 0
      %1209 = vmatpush1.bf16.msra.mxu0 0
      %1210 = vmatprep.subr.bf16.mxu0 0
      %1211 = vmatpush1.bf16.msra.mxu0 0
      %1212 = vmatprep.subr.bf16.mxu0 0
      %1213 = vmatpush1.bf16.msra.mxu0 0
      %1214 = vmatprep.subr.bf16.mxu0 0
      %1215 = vmatpush1.bf16.msra.mxu0 0
      %1216 = vmatprep.mubr.bf16.mxu0 0
      %1217 = vmatmul.mubr.bf16.gmra.mrb[0].mxu0 %v1163
      %v1218 = vpop.f32.mrb[0].mxu0
      %v1219 = vadd.f32 %v1093, %v1218
      %v1220 = vpop.f32.mrb[0].mxu0
      %v1221 = vpop.f32.mrb[0].mxu0
      %v1222 = vadd.f32 %v1096, %v1221
      %v1223 = vpop.f32.mrb[0].mxu0
      %1224 = vmatprep.mubr.bf16.mxu0 0
      %1225 = vmatmul.mubr.bf16.gmra.mrb[0].mxu0 %v1165
      %v1226 = vpop.f32.mrb[0].mxu0
      %v1227 = vadd.f32 %v1101, %v1226
      %v1228 = vpop.f32.mrb[0].mxu0
      %v1229 = vpop.f32.mrb[0].mxu0
      %v1230 = vadd.f32 %v1104, %v1229
      %v1231 = vpop.f32.mrb[0].mxu0
      %1232 = vmatprep.mubr.bf16.mxu0 0
      %1233 = vmatmul.mubr.bf16.gmra.mrb[0].mxu0 %v1167
      %v1234 = vpop.f32.mrb[0].mxu0
      %v1235 = vadd.f32 %v1109, %v1234
      %v1236 = vpop.f32.mrb[0].mxu0
      %v1237 = vpop.f32.mrb[0].mxu0
      %v1238 = vadd.f32 %v1112, %v1237
      %v1239 = vpop.f32.mrb[0].mxu0
      %1240 = vmatprep.mubr.bf16.mxu0 0
      %1241 = vmatmul.mubr.bf16.gmra.mrb[0].mxu0 %v1169
      %v1242 = vpop.f32.mrb[0].mxu0
      %v1243 = vadd.f32 %v1117, %v1242
      %v1244 = vpop.f32.mrb[0].mxu0
      %v1245 = vpop.f32.mrb[0].mxu0
      %v1246 = vadd.f32 %v1120, %v1245
      %v1247 = vpop.f32.mrb[0].mxu0
      %1248 = vmatprep.mubr.bf16.mxu0 0
      %1249 = vmatmul.mubr.bf16.gmra.mrb[0].mxu0 %v1171
      %v1250 = vpop.f32.mrb[0].mxu0
      %v1251 = vadd.f32 %v1125, %v1250
      %v1252 = vpop.f32.mrb[0].mxu0
      %v1253 = vpop.f32.mrb[0].mxu0
      %v1254 = vadd.f32 %v1128, %v1253
      %v1255 = vpop.f32.mrb[0].mxu0
      %1256 = vmatprep.mubr.bf16.mxu0 0
      %1257 = vmatmul.mubr.bf16.gmra.mrb[0].mxu0 %v1173
      %v1258 = vpop.f32.mrb[0].mxu0
      %v1259 = vadd.f32 %v1133, %v1258
      %v1260 = vpop.f32.mrb[0].mxu0
      %v1261 = vpop.f32.mrb[0].mxu0
      %v1262 = vadd.f32 %v1136, %v1261
      %v1263 = vpop.f32.mrb[0].mxu0
      %1264 = vmatprep.mubr.bf16.mxu0 0
      %1265 = vmatmul.mubr.bf16.gmra.mrb[0].mxu0 %v1175
      %v1266 = vpop.f32.mrb[0].mxu0
      %v1267 = vadd.f32 %v1141, %v1266
      %v1268 = vpop.f32.mrb[0].mxu0
      %v1269 = vpop.f32.mrb[0].mxu0
      %v1270 = vadd.f32 %v1144, %v1269
      %v1271 = vpop.f32.mrb[0].mxu0
      %1272 = vmatprep.mubr.bf16.mxu0 0
      %1273 = vmatmul.mubr.bf16.gmra.mrb[0].mxu0 %v1177
      %v1274 = vpop.f32.mrb[0].mxu0
      %v1275 = vadd.f32 %v1149, %v1274
      %v1276 = vpop.f32.mrb[0].mxu0
      %v1277 = vpop.f32.mrb[0].mxu0
      %v1278 = vadd.f32 %v1152, %v1277
      %v1279 = vpop.f32.mrb[0].mxu0
      %1280 = vmatprep.mubr.bf16.mxu0 0
      %1281 = vmatmul.mubr.bf16.gmra.mrb[0].mxu0 %v1179
      %v1282 = vpop.f32.mrb[0].mxu0
      %v1283 = vadd.f32 %v1157, %v1282
      %v1284 = vpop.f32.mrb[0].mxu0
      %v1285 = vpop.f32.mrb[0].mxu0
      %v1286 = vadd.f32 %v1160, %v1285
      %v1287 = vpop.f32.mrb[0].mxu0
      %1288 = vdwg.mxu0
      %v1289 = vld [vmem:[#allocation2] sm:$0xe]
      %s1290 = scalar_lea.vmem %s3, 4
      %v1291 = vld [vmem:[%s1290] sm:$0x3]
      %v1293 = vunpack.c.l.b16 %v1289
      %v1294 = vpack.c.b16 %v918, %v1293
      %vm1295 = vcmask 1046528
      %v1296 = vrot.slane %v1294, 1
      %v1297 = vrot.slane %v937, 1
      %v1298 = vsel %vm1295, %v1296, %v1297
      %v1299 = vrot.slane %v938, 1
      %v1300 = vsel %vm1295, %v1297, %v1299
      %v1301 = vrot.slane %v939, 1
      %v1302 = vsel %vm1295, %v1299, %v1301
      %v1303 = vrot.slane %v940, 1
      %v1304 = vsel %vm1295, %v1301, %v1303
      %v1305 = vrot.slane %v941, 1
      %v1306 = vsel %vm1295, %v1303, %v1305
      %v1307 = vrot.slane %v942, 1
      %v1308 = vsel %vm1295, %v1305, %v1307
      %v1309 = vrot.slane %v943, 1
      %v1310 = vsel %vm1295, %v1307, %v1309
      %v1311 = vrot.slane %v944, 1
      %v1312 = vsel %vm1295, %v1309, %v1311
      %v1313 = vrot.slane %v945, 1
      %v1314 = vsel %vm1295, %v1311, %v1313
      %v1316 = vsel %vm1023, %v1298, 0
      %v1319 = vsel %vm1023, %v1300, 0
      %v1322 = vsel %vm1023, %v1302, 0
      %v1325 = vsel %vm1023, %v1304, 0
      %v1328 = vsel %vm1023, %v1306, 0
      %v1331 = vsel %vm1023, %v1308, 0
      %v1334 = vsel %vm1023, %v1310, 0
      %v1337 = vsel %vm1023, %v1312, 0
      %v1340 = vsel %vm1023, %v1314, 0
      %v1343 = vand.u32 %v1291, %v1054
      %1345 = vmatprep.subr.bf16.mxu0 0
      %1346 = vmatpush1.bf16.msra.mxu0 %v1343
      %1347 = vmatprep.subr.bf16.mxu0 0
      %1348 = vmatpush1.bf16.msra.mxu0 0
      %1349 = vmatprep.subr.bf16.mxu0 0
      %1350 = vmatpush1.bf16.msra.mxu0 0
      %1351 = vmatprep.subr.bf16.mxu0 0
      %1352 = vmatpush1.bf16.msra.mxu0 0
      %1353 = vmatprep.subr.bf16.mxu0 0
      %1354 = vmatpush1.bf16.msra.mxu0 0
      %1355 = vmatprep.subr.bf16.mxu0 0
      %1356 = vmatpush1.bf16.msra.mxu0 0
      %1357 = vmatprep.subr.bf16.mxu0 0
      %1358 = vmatpush1.bf16.msra.mxu0 0
      %1359 = vmatprep.subr.bf16.mxu0 0
      %1360 = vmatpush1.bf16.msra.mxu0 0
      %1361 = vmatprep.subr.bf16.mxu0 0
      %1362 = vmatpush1.bf16.msra.mxu0 0
      %1363 = vmatprep.subr.bf16.mxu0 0
      %1364 = vmatpush1.bf16.msra.mxu0 0
      %1365 = vmatprep.subr.bf16.mxu0 0
      %1366 = vmatpush1.bf16.msra.mxu0 0
      %1367 = vmatprep.subr.bf16.mxu0 0
      %1368 = vmatpush1.bf16.msra.mxu0 0
      %1369 = vmatprep.subr.bf16.mxu0 0
      %1370 = vmatpush1.bf16.msra.mxu0 0
      %1371 = vmatprep.subr.bf16.mxu0 0
      %1372 = vmatpush1.bf16.msra.mxu0 0
      %1373 = vmatprep.subr.bf16.mxu0 0
      %1374 = vmatpush1.bf16.msra.mxu0 0
      %1375 = vmatprep.subr.bf16.mxu0 0
      %1376 = vmatpush1.bf16.msra.mxu0 0
      %1377 = vmatprep.mubr.bf16.mxu0 0
      %1378 = vmatmul.mubr.bf16.gmra.mrb[0].mxu0 %v1316
      %v1379 = vpop.f32.mrb[0].mxu0
      %v1380 = vadd.f32 0.0, %v1379
      %v1381 = vpop.f32.mrb[0].mxu0
      %v1382 = vpop.f32.mrb[0].mxu0
      %v1383 = vadd.f32 0.0, %v1382
      %v1384 = vpop.f32.mrb[0].mxu0
      %1385 = vmatprep.mubr.bf16.mxu0 0
      %1386 = vmatmul.mubr.bf16.gmra.mrb[0].mxu0 %v1319
      %v1387 = vpop.f32.mrb[0].mxu0
      %v1388 = vadd.f32 0.0, %v1387
      %v1389 = vpop.f32.mrb[0].mxu0
      %v1390 = vpop.f32.mrb[0].mxu0
      %v1391 = vadd.f32 0.0, %v1390
      %v1392 = vpop.f32.mrb[0].mxu0
      %1393 = vmatprep.mubr.bf16.mxu0 0
      %1394 = vmatmul.mubr.bf16.gmra.mrb[0].mxu0 %v1322
      %v1395 = vpop.f32.mrb[0].mxu0
      %v1396 = vadd.f32 0.0, %v1395
      %v1397 = vpop.f32.mrb[0].mxu0
      %v1398 = vpop.f32.mrb[0].mxu0
      %v1399 = vadd.f32 0.0, %v1398
      %v1400 = vpop.f32.mrb[0].mxu0
      %1401 = vmatprep.mubr.bf16.mxu0 0
      %1402 = vmatmul.mubr.bf16.gmra.mrb[0].mxu0 %v1325
      %v1403 = vpop.f32.mrb[0].mxu0
      %v1404 = vadd.f32 0.0, %v1403
      %v1405 = vpop.f32.mrb[0].mxu0
      %v1406 = vpop.f32.mrb[0].mxu0
      %v1407 = vadd.f32 0.0, %v1406
      %v1408 = vpop.f32.mrb[0].mxu0
      %1409 = vmatprep.mubr.bf16.mxu0 0
      %1410 = vmatmul.mubr.bf16.gmra.mrb[0].mxu0 %v1328
      %v1411 = vpop.f32.mrb[0].mxu0
      %v1412 = vadd.f32 0.0, %v1411
      %v1413 = vpop.f32.mrb[0].mxu0
      %v1414 = vpop.f32.mrb[0].mxu0
      %v1415 = vadd.f32 0.0, %v1414
      %v1416 = vpop.f32.mrb[0].mxu0
      %1417 = vmatprep.mubr.bf16.mxu0 0
      %1418 = vmatmul.mubr.bf16.gmra.mrb[0].mxu0 %v1331
      %v1419 = vpop.f32.mrb[0].mxu0
      %v1420 = vadd.f32 0.0, %v1419
      %v1421 = vpop.f32.mrb[0].mxu0
      %v1422 = vpop.f32.mrb[0].mxu0
      %v1423 = vadd.f32 0.0, %v1422
      %v1424 = vpop.f32.mrb[0].mxu0
      %1425 = vmatprep.mubr.bf16.mxu0 0
      %1426 = vmatmul.mubr.bf16.gmra.mrb[0].mxu0 %v1334
      %v1427 = vpop.f32.mrb[0].mxu0
      %v1428 = vadd.f32 0.0, %v1427
      %v1429 = vpop.f32.mrb[0].mxu0
      %v1430 = vpop.f32.mrb[0].mxu0
      %v1431 = vadd.f32 0.0, %v1430
      %v1432 = vpop.f32.mrb[0].mxu0
      %1433 = vmatprep.mubr.bf16.mxu0 0
      %1434 = vmatmul.mubr.bf16.gmra.mrb[0].mxu0 %v1337
      %v1435 = vpop.f32.mrb[0].mxu0
      %v1436 = vadd.f32 0.0, %v1435
      %v1437 = vpop.f32.mrb[0].mxu0
      %v1438 = vpop.f32.mrb[0].mxu0
      %v1439 = vadd.f32 0.0, %v1438
      %v1440 = vpop.f32.mrb[0].mxu0
      %1441 = vmatprep.mubr.bf16.mxu0 0
      %1442 = vmatmul.mubr.bf16.gmra.mrb[0].mxu0 %v1340
      %v1443 = vpop.f32.mrb[0].mxu0
      %v1444 = vadd.f32 0.0, %v1443
      %v1445 = vpop.f32.mrb[0].mxu0
      %v1446 = vpop.f32.mrb[0].mxu0
      %v1447 = vadd.f32 0.0, %v1446
      %v1448 = vpop.f32.mrb[0].mxu0
      %1449 = vdwg.mxu0
      %v1450 = vadd.f32 %v1219, %v1380
      %v1451 = vadd.f32 %v1222, %v1383
      %v1452 = vadd.f32 %v1227, %v1388
      %v1453 = vadd.f32 %v1230, %v1391
      %v1454 = vadd.f32 %v1235, %v1396
      %v1455 = vadd.f32 %v1238, %v1399
      %v1456 = vadd.f32 %v1243, %v1404
      %v1457 = vadd.f32 %v1246, %v1407
      %v1458 = vadd.f32 %v1251, %v1412
      %v1459 = vadd.f32 %v1254, %v1415
      %v1460 = vadd.f32 %v1259, %v1420
      %v1461 = vadd.f32 %v1262, %v1423
      %v1462 = vadd.f32 %v1267, %v1428
      %v1463 = vadd.f32 %v1270, %v1431
      %v1464 = vadd.f32 %v1275, %v1436
      %v1465 = vadd.f32 %v1278, %v1439
      %v1466 = vadd.f32 %v1283, %v1444
      %v1467 = vadd.f32 %v1286, %v1447
      %v1468 = vld [vmem:[#allocation2 + $0x8] sm:$0xe]
      %v1469 = vld [vmem:[#allocation2 + $0xc] sm:$0xf]
      %v1470 = vld [vmem:[#allocation2 + $0x10] sm:$0xf]
      %v1471 = vld [vmem:[#allocation2 + $0x14] sm:$0xf]
      %v1472 = vld [vmem:[#allocation2 + $0x18] sm:$0xf]
      %v1473 = vld [vmem:[#allocation2 + $0x1c] sm:$0xf]
      %v1474 = vld [vmem:[#allocation2 + $0x20] sm:$0xf]
      %v1475 = vld [vmem:[#allocation2 + $0x24] sm:$0xf]
      %v1476 = vld [vmem:[#allocation2 + $0x28] sm:$0xf]
      %v1477 = vld [vmem:[#allocation2 + $0x2c] sm:$0xf]
      %v1478 = vld [vmem:[#allocation2 + $0x30] sm:$0xf]
      %v1479 = vld [vmem:[#allocation2 + $0x34] sm:$0xf]
      %v1480 = vld [vmem:[#allocation2 + $0x38] sm:$0xf]
      %v1481 = vld [vmem:[#allocation2 + $0x3c] sm:$0xf]
      %v1482 = vld [vmem:[#allocation2 + $0x40] sm:$0xf]
      %v1483 = vld [vmem:[#allocation2 + $0x44] sm:$0xf]
      %v1484 = vld [vmem:[#allocation2 + $0x48] sm:$0xf]
      %v1485 = vld [vmem:[#allocation2 + $0x4c] sm:$0xf]
      %v1486 = vld [vmem:[#allocation2 + $0x50] sm:$0x1]
      %s1487 = scalar_lea.vmem %s3, 6
      %v1488 = vld [vmem:[%s1487] sm:$0x3]
      %v1508 = vunpack.c.l.b16 %v1468
      %v1509 = vunpack.c.l.b16 %v1469
      %v1510 = vunpack.c.l.b16 %v1470
      %v1511 = vunpack.c.l.b16 %v1471
      %v1512 = vunpack.c.l.b16 %v1472
      %v1513 = vunpack.c.l.b16 %v1473
      %v1514 = vunpack.c.l.b16 %v1474
      %v1515 = vunpack.c.l.b16 %v1475
      %v1516 = vunpack.c.l.b16 %v1476
      %v1517 = vunpack.c.l.b16 %v1477
      %v1518 = vunpack.c.l.b16 %v1478
      %v1519 = vunpack.c.l.b16 %v1479
      %v1520 = vunpack.c.l.b16 %v1480
      %v1521 = vunpack.c.l.b16 %v1481
      %v1522 = vunpack.c.l.b16 %v1482
      %v1523 = vunpack.c.l.b16 %v1483
      %v1524 = vunpack.c.l.b16 %v1484
      %v1525 = vunpack.c.l.b16 %v1485
      %v1526 = vunpack.c.l.b16 %v1486
      %v1527 = vpack.c.b16 %v1509, %v1508
      %v1528 = vpack.c.b16 %v1511, %v1510
      %v1529 = vpack.c.b16 %v1513, %v1512
      %v1530 = vpack.c.b16 %v1515, %v1514
      %v1531 = vpack.c.b16 %v1517, %v1516
      %v1532 = vpack.c.b16 %v1519, %v1518
      %v1533 = vpack.c.b16 %v1521, %v1520
      %v1534 = vpack.c.b16 %v1523, %v1522
      %v1535 = vpack.c.b16 %v1525, %v1524
      %v1536 = vpack.c.b16 %v1526, %v1526
      %v1537 = vrot.slane %v1527, 1
      %v1538 = vrot.slane %v1528, 1
      %v1539 = vsel %vm1295, %v1537, %v1538
      %v1540 = vrot.slane %v1529, 1
      %v1541 = vsel %vm1295, %v1538, %v1540
      %v1542 = vrot.slane %v1530, 1
      %v1543 = vsel %vm1295, %v1540, %v1542
      %v1544 = vrot.slane %v1531, 1
      %v1545 = vsel %vm1295, %v1542, %v1544
      %v1546 = vrot.slane %v1532, 1
      %v1547 = vsel %vm1295, %v1544, %v1546
      %v1548 = vrot.slane %v1533, 1
      %v1549 = vsel %vm1295, %v1546, %v1548
      %v1550 = vrot.slane %v1534, 1
      %v1551 = vsel %vm1295, %v1548, %v1550
      %v1552 = vrot.slane %v1535, 1
      %v1553 = vsel %vm1295, %v1550, %v1552
      %v1554 = vrot.slane %v1536, 1
      %v1555 = vsel %vm1295, %v1552, %v1554
      %v1557 = vsel %vm1023, %v1539, 0
      %v1560 = vsel %vm1023, %v1541, 0
      %v1563 = vsel %vm1023, %v1543, 0
      %v1566 = vsel %vm1023, %v1545, 0
      %v1569 = vsel %vm1023, %v1547, 0
      %v1572 = vsel %vm1023, %v1549, 0
      %v1575 = vsel %vm1023, %v1551, 0
      %v1578 = vsel %vm1023, %v1553, 0
      %v1581 = vsel %vm1023, %v1555, 0
      %v1584 = vand.u32 %v1488, %v1054
      %1586 = vmatprep.subr.bf16.mxu0 0
      %1587 = vmatpush1.bf16.msra.mxu0 %v1584
      %1588 = vmatprep.subr.bf16.mxu0 0
      %1589 = vmatpush1.bf16.msra.mxu0 0
      %1590 = vmatprep.subr.bf16.mxu0 0
      %1591 = vmatpush1.bf16.msra.mxu0 0
      %1592 = vmatprep.subr.bf16.mxu0 0
      %1593 = vmatpush1.bf16.msra.mxu0 0
      %1594 = vmatprep.subr.bf16.mxu0 0
      %1595 = vmatpush1.bf16.msra.mxu0 0
      %1596 = vmatprep.subr.bf16.mxu0 0
      %1597 = vmatpush1.bf16.msra.mxu0 0
      %1598 = vmatprep.subr.bf16.mxu0 0
      %1599 = vmatpush1.bf16.msra.mxu0 0
      %1600 = vmatprep.subr.bf16.mxu0 0
      %1601 = vmatpush1.bf16.msra.mxu0 0
      %1602 = vmatprep.subr.bf16.mxu0 0
      %1603 = vmatpush1.bf16.msra.mxu0 0
      %1604 = vmatprep.subr.bf16.mxu0 0
      %1605 = vmatpush1.bf16.msra.mxu0 0
      %1606 = vmatprep.subr.bf16.mxu0 0
      %1607 = vmatpush1.bf16.msra.mxu0 0
      %1608 = vmatprep.subr.bf16.mxu0 0
      %1609 = vmatpush1.bf16.msra.mxu0 0
      %1610 = vmatprep.subr.bf16.mxu0 0
      %1611 = vmatpush1.bf16.msra.mxu0 0
      %1612 = vmatprep.subr.bf16.mxu0 0
      %1613 = vmatpush1.bf16.msra.mxu0 0
      %1614 = vmatprep.subr.bf16.mxu0 0
      %1615 = vmatpush1.bf16.msra.mxu0 0
      %1616 = vmatprep.subr.bf16.mxu0 0
      %1617 = vmatpush1.bf16.msra.mxu0 0
      %1618 = vmatprep.mubr.bf16.mxu0 0
      %1619 = vmatmul.mubr.bf16.gmra.mrb[0].mxu0 %v1557
      %v1620 = vpop.f32.mrb[0].mxu0
      %v1621 = vadd.f32 0.0, %v1620
      %v1622 = vpop.f32.mrb[0].mxu0
      %v1623 = vpop.f32.mrb[0].mxu0
      %v1624 = vadd.f32 0.0, %v1623
      %v1625 = vpop.f32.mrb[0].mxu0
      %1626 = vmatprep.mubr.bf16.mxu0 0
      %1627 = vmatmul.mubr.bf16.gmra.mrb[0].mxu0 %v1560
      %v1628 = vpop.f32.mrb[0].mxu0
      %v1629 = vadd.f32 0.0, %v1628
      %v1630 = vpop.f32.mrb[0].mxu0
      %v1631 = vpop.f32.mrb[0].mxu0
      %v1632 = vadd.f32 0.0, %v1631
      %v1633 = vpop.f32.mrb[0].mxu0
      %1634 = vmatprep.mubr.bf16.mxu0 0
      %1635 = vmatmul.mubr.bf16.gmra.mrb[0].mxu0 %v1563
      %v1636 = vpop.f32.mrb[0].mxu0
      %v1637 = vadd.f32 0.0, %v1636
      %v1638 = vpop.f32.mrb[0].mxu0
      %v1639 = vpop.f32.mrb[0].mxu0
      %v1640 = vadd.f32 0.0, %v1639
      %v1641 = vpop.f32.mrb[0].mxu0
      %1642 = vmatprep.mubr.bf16.mxu0 0
      %1643 = vmatmul.mubr.bf16.gmra.mrb[0].mxu0 %v1566
      %v1644 = vpop.f32.mrb[0].mxu0
      %v1645 = vadd.f32 0.0, %v1644
      %v1646 = vpop.f32.mrb[0].mxu0
      %v1647 = vpop.f32.mrb[0].mxu0
      %v1648 = vadd.f32 0.0, %v1647
      %v1649 = vpop.f32.mrb[0].mxu0
      %1650 = vmatprep.mubr.bf16.mxu0 0
      %1651 = vmatmul.mubr.bf16.gmra.mrb[0].mxu0 %v1569
      %v1652 = vpop.f32.mrb[0].mxu0
      %v1653 = vadd.f32 0.0, %v1652
      %v1654 = vpop.f32.mrb[0].mxu0
      %v1655 = vpop.f32.mrb[0].mxu0
      %v1656 = vadd.f32 0.0, %v1655
      %v1657 = vpop.f32.mrb[0].mxu0
      %1658 = vmatprep.mubr.bf16.mxu0 0
      %1659 = vmatmul.mubr.bf16.gmra.mrb[0].mxu0 %v1572
      %v1660 = vpop.f32.mrb[0].mxu0
      %v1661 = vadd.f32 0.0, %v1660
      %v1662 = vpop.f32.mrb[0].mxu0
      %v1663 = vpop.f32.mrb[0].mxu0
      %v1664 = vadd.f32 0.0, %v1663
      %v1665 = vpop.f32.mrb[0].mxu0
      %1666 = vmatprep.mubr.bf16.mxu0 0
      %1667 = vmatmul.mubr.bf16.gmra.mrb[0].mxu0 %v1575
      %v1668 = vpop.f32.mrb[0].mxu0
      %v1669 = vadd.f32 0.0, %v1668
      %v1670 = vpop.f32.mrb[0].mxu0
      %v1671 = vpop.f32.mrb[0].mxu0
      %v1672 = vadd.f32 0.0, %v1671
      %v1673 = vpop.f32.mrb[0].mxu0
      %1674 = vmatprep.mubr.bf16.mxu0 0
      %1675 = vmatmul.mubr.bf16.gmra.mrb[0].mxu0 %v1578
      %v1676 = vpop.f32.mrb[0].mxu0
      %v1677 = vadd.f32 0.0, %v1676
      %v1678 = vpop.f32.mrb[0].mxu0
      %v1679 = vpop.f32.mrb[0].mxu0
      %v1680 = vadd.f32 0.0, %v1679
      %v1681 = vpop.f32.mrb[0].mxu0
      %1682 = vmatprep.mubr.bf16.mxu0 0
      %1683 = vmatmul.mubr.bf16.gmra.mrb[0].mxu0 %v1581
      %v1684 = vpop.f32.mrb[0].mxu0
      %v1685 = vadd.f32 0.0, %v1684
      %v1686 = vpop.f32.mrb[0].mxu0
      %v1687 = vpop.f32.mrb[0].mxu0
      %v1688 = vadd.f32 0.0, %v1687
      %v1689 = vpop.f32.mrb[0].mxu0
      %1690 = vdwg.mxu0
      %v1691 = vadd.f32 %v1450, %v1621
      %v1692 = vadd.f32 %v1451, %v1624
      %v1693 = vadd.f32 %v1452, %v1629
      %v1694 = vadd.f32 %v1453, %v1632
      %v1695 = vadd.f32 %v1454, %v1637
      %v1696 = vadd.f32 %v1455, %v1640
      %v1697 = vadd.f32 %v1456, %v1645
      %v1698 = vadd.f32 %v1457, %v1648
      %v1699 = vadd.f32 %v1458, %v1653
      %v1700 = vadd.f32 %v1459, %v1656
      %v1701 = vadd.f32 %v1460, %v1661
      %v1702 = vadd.f32 %v1461, %v1664
      %v1703 = vadd.f32 %v1462, %v1669
      %v1704 = vadd.f32 %v1463, %v1672
      %v1705 = vadd.f32 %v1464, %v1677
      %v1706 = vadd.f32 %v1465, %v1680
      %v1707 = vadd.f32 %v1466, %v1685
      %v1708 = vadd.f32 %v1467, %v1688
      %v1709 = vld [vmem:[#allocation2 + $0x50] sm:$0x3]
      %s1710 = scalar_lea.vmem %s3, 8
      %v1711 = vld [vmem:[%s1710] sm:$0x3]
      %v1713 = vunpack.c.l.b16 %v1709
      %v1714 = vpack.c.b16 %v1713, %v1713
      %vm1715 = vsmask.f32 6400
      %v1717 = vshrl.u32 %v1527, 16
      %v1719 = vrot.slane %v1717, 1
      %v1720 = vshll.u32 %v1527, 16
      %v1722 = vrot.slane %v1720, 2
      %v1723 = vor.u32 %v1719, %v1722
      %v1725 = vshrl.u32 %v1528, 16
      %v1727 = vrot.slane %v1725, 1
      %v1728 = vshll.u32 %v1528, 16
      %v1730 = vrot.slane %v1728, 2
      %v1731 = vor.u32 %v1727, %v1730
      %v1732 = vsel %vm1715, %v1723, %v1731
      %v1734 = vshrl.u32 %v1529, 16
      %v1736 = vrot.slane %v1734, 1
      %v1737 = vshll.u32 %v1529, 16
      %v1739 = vrot.slane %v1737, 2
      %v1740 = vor.u32 %v1736, %v1739
      %v1741 = vsel %vm1715, %v1731, %v1740
      %v1743 = vshrl.u32 %v1530, 16
      %v1745 = vrot.slane %v1743, 1
      %v1746 = vshll.u32 %v1530, 16
      %v1748 = vrot.slane %v1746, 2
      %v1749 = vor.u32 %v1745, %v1748
      %v1750 = vsel %vm1715, %v1740, %v1749
      %v1752 = vshrl.u32 %v1531, 16
      %v1754 = vrot.slane %v1752, 1
      %v1755 = vshll.u32 %v1531, 16
      %v1757 = vrot.slane %v1755, 2
      %v1758 = vor.u32 %v1754, %v1757
      %v1759 = vsel %vm1715, %v1749, %v1758
      %v1761 = vshrl.u32 %v1532, 16
      %v1763 = vrot.slane %v1761, 1
      %v1764 = vshll.u32 %v1532, 16
      %v1766 = vrot.slane %v1764, 2
      %v1767 = vor.u32 %v1763, %v1766
      %v1768 = vsel %vm1715, %v1758, %v1767
      %v1770 = vshrl.u32 %v1533, 16
      %v1772 = vrot.slane %v1770, 1
      %v1773 = vshll.u32 %v1533, 16
      %v1775 = vrot.slane %v1773, 2
      %v1776 = vor.u32 %v1772, %v1775
      %v1777 = vsel %vm1715, %v1767, %v1776
      %v1779 = vshrl.u32 %v1534, 16
      %v1781 = vrot.slane %v1779, 1
      %v1782 = vshll.u32 %v1534, 16
      %v1784 = vrot.slane %v1782, 2
      %v1785 = vor.u32 %v1781, %v1784
      %v1786 = vsel %vm1715, %v1776, %v1785
      %v1788 = vshrl.u32 %v1535, 16
      %v1790 = vrot.slane %v1788, 1
      %v1791 = vshll.u32 %v1535, 16
      %v1793 = vrot.slane %v1791, 2
      %v1794 = vor.u32 %v1790, %v1793
      %v1795 = vsel %vm1715, %v1785, %v1794
      %v1797 = vshrl.u32 %v1714, 16
      %v1799 = vrot.slane %v1797, 1
      %v1800 = vshll.u32 %v1714, 16
      %v1802 = vrot.slane %v1800, 2
      %v1803 = vor.u32 %v1799, %v1802
      %v1804 = vsel %vm1715, %v1794, %v1803
      %v1806 = vsel %vm1023, %v1732, 0
      %v1809 = vsel %vm1023, %v1741, 0
      %v1812 = vsel %vm1023, %v1750, 0
      %v1815 = vsel %vm1023, %v1759, 0
      %v1818 = vsel %vm1023, %v1768, 0
      %v1821 = vsel %vm1023, %v1777, 0
      %v1824 = vsel %vm1023, %v1786, 0
      %v1827 = vsel %vm1023, %v1795, 0
      %v1830 = vsel %vm1023, %v1804, 0
      %v1833 = vand.u32 %v1711, %v1054
      %1835 = vmatprep.subr.bf16.mxu0 0
      %1836 = vmatpush1.bf16.msra.mxu0 %v1833
      %1837 = vmatprep.subr.bf16.mxu0 0
      %1838 = vmatpush1.bf16.msra.mxu0 0
      %1839 = vmatprep.subr.bf16.mxu0 0
      %1840 = vmatpush1.bf16.msra.mxu0 0
      %1841 = vmatprep.subr.bf16.mxu0 0
      %1842 = vmatpush1.bf16.msra.mxu0 0
      %1843 = vmatprep.subr.bf16.mxu0 0
      %1844 = vmatpush1.bf16.msra.mxu0 0
      %1845 = vmatprep.subr.bf16.mxu0 0
      %1846 = vmatpush1.bf16.msra.mxu0 0
      %1847 = vmatprep.subr.bf16.mxu0 0
      %1848 = vmatpush1.bf16.msra.mxu0 0
      %1849 = vmatprep.subr.bf16.mxu0 0
      %1850 = vmatpush1.bf16.msra.mxu0 0
      %1851 = vmatprep.subr.bf16.mxu0 0
      %1852 = vmatpush1.bf16.msra.mxu0 0
      %1853 = vmatprep.subr.bf16.mxu0 0
      %1854 = vmatpush1.bf16.msra.mxu0 0
      %1855 = vmatprep.subr.bf16.mxu0 0
      %1856 = vmatpush1.bf16.msra.mxu0 0
      %1857 = vmatprep.subr.bf16.mxu0 0
      %1858 = vmatpush1.bf16.msra.mxu0 0
      %1859 = vmatprep.subr.bf16.mxu0 0
      %1860 = vmatpush1.bf16.msra.mxu0 0
      %1861 = vmatprep.subr.bf16.mxu0 0
      %1862 = vmatpush1.bf16.msra.mxu0 0
      %1863 = vmatprep.subr.bf16.mxu0 0
      %1864 = vmatpush1.bf16.msra.mxu0 0
      %1865 = vmatprep.subr.bf16.mxu0 0
      %1866 = vmatpush1.bf16.msra.mxu0 0
      %1867 = vmatprep.mubr.bf16.mxu0 0
      %1868 = vmatmul.mubr.bf16.gmra.mrb[0].mxu0 %v1806
      %v1869 = vpop.f32.mrb[0].mxu0
      %v1870 = vadd.f32 0.0, %v1869
      %v1871 = vpop.f32.mrb[0].mxu0
      %v1872 = vpop.f32.mrb[0].mxu0
      %v1873 = vadd.f32 0.0, %v1872
      %v1874 = vpop.f32.mrb[0].mxu0
      %1875 = vmatprep.mubr.bf16.mxu0 0
      %1876 = vmatmul.mubr.bf16.gmra.mrb[0].mxu0 %v1809
      %v1877 = vpop.f32.mrb[0].mxu0
      %v1878 = vadd.f32 0.0, %v1877
      %v1879 = vpop.f32.mrb[0].mxu0
      %v1880 = vpop.f32.mrb[0].mxu0
      %v1881 = vadd.f32 0.0, %v1880
      %v1882 = vpop.f32.mrb[0].mxu0
      %1883 = vmatprep.mubr.bf16.mxu0 0
      %1884 = vmatmul.mubr.bf16.gmra.mrb[0].mxu0 %v1812
      %v1885 = vpop.f32.mrb[0].mxu0
      %v1886 = vadd.f32 0.0, %v1885
      %v1887 = vpop.f32.mrb[0].mxu0
      %v1888 = vpop.f32.mrb[0].mxu0
      %v1889 = vadd.f32 0.0, %v1888
      %v1890 = vpop.f32.mrb[0].mxu0
      %1891 = vmatprep.mubr.bf16.mxu0 0
      %1892 = vmatmul.mubr.bf16.gmra.mrb[0].mxu0 %v1815
      %v1893 = vpop.f32.mrb[0].mxu0
      %v1894 = vadd.f32 0.0, %v1893
      %v1895 = vpop.f32.mrb[0].mxu0
      %v1896 = vpop.f32.mrb[0].mxu0
      %v1897 = vadd.f32 0.0, %v1896
      %v1898 = vpop.f32.mrb[0].mxu0
      %1899 = vmatprep.mubr.bf16.mxu0 0
      %1900 = vmatmul.mubr.bf16.gmra.mrb[0].mxu0 %v1818
      %v1901 = vpop.f32.mrb[0].mxu0
      %v1902 = vadd.f32 0.0, %v1901
      %v1903 = vpop.f32.mrb[0].mxu0
      %v1904 = vpop.f32.mrb[0].mxu0
      %v1905 = vadd.f32 0.0, %v1904
      %v1906 = vpop.f32.mrb[0].mxu0
      %1907 = vmatprep.mubr.bf16.mxu0 0
      %1908 = vmatmul.mubr.bf16.gmra.mrb[0].mxu0 %v1821
      %v1909 = vpop.f32.mrb[0].mxu0
      %v1910 = vadd.f32 0.0, %v1909
      %v1911 = vpop.f32.mrb[0].mxu0
      %v1912 = vpop.f32.mrb[0].mxu0
      %v1913 = vadd.f32 0.0, %v1912
      %v1914 = vpop.f32.mrb[0].mxu0
      %1915 = vmatprep.mubr.bf16.mxu0 0
      %1916 = vmatmul.mubr.bf16.gmra.mrb[0].mxu0 %v1824
      %v1917 = vpop.f32.mrb[0].mxu0
      %v1918 = vadd.f32 0.0, %v1917
      %v1919 = vpop.f32.mrb[0].mxu0
      %v1920 = vpop.f32.mrb[0].mxu0
      %v1921 = vadd.f32 0.0, %v1920
      %v1922 = vpop.f32.mrb[0].mxu0
      %1923 = vmatprep.mubr.bf16.mxu0 0
      %1924 = vmatmul.mubr.bf16.gmra.mrb[0].mxu0 %v1827
      %v1925 = vpop.f32.mrb[0].mxu0
      %v1926 = vadd.f32 0.0, %v1925
      %v1927 = vpop.f32.mrb[0].mxu0
      %v1928 = vpop.f32.mrb[0].mxu0
      %v1929 = vadd.f32 0.0, %v1928
      %v1930 = vpop.f32.mrb[0].mxu0
      %1931 = vmatprep.mubr.bf16.mxu0 0
      %1932 = vmatmul.mubr.bf16.gmra.mrb[0].mxu0 %v1830
      %v1933 = vpop.f32.mrb[0].mxu0
      %v1934 = vadd.f32 0.0, %v1933
      %v1935 = vpop.f32.mrb[0].mxu0
      %v1936 = vpop.f32.mrb[0].mxu0
      %v1937 = vadd.f32 0.0, %v1936
      %v1938 = vpop.f32.mrb[0].mxu0
      %1939 = vdwg.mxu0
      %v1940 = vadd.f32 %v1691, %v1870
      %v1941 = vadd.f32 %v1692, %v1873
      %v1942 = vadd.f32 %v1693, %v1878
      %v1943 = vadd.f32 %v1694, %v1881
      %v1944 = vadd.f32 %v1695, %v1886
      %v1945 = vadd.f32 %v1696, %v1889
      %v1946 = vadd.f32 %v1697, %v1894
      %v1947 = vadd.f32 %v1698, %v1897
      %v1948 = vadd.f32 %v1699, %v1902
      %v1949 = vadd.f32 %v1700, %v1905
      %v1950 = vadd.f32 %v1701, %v1910
      %v1951 = vadd.f32 %v1702, %v1913
      %v1952 = vadd.f32 %v1703, %v1918
      %v1953 = vadd.f32 %v1704, %v1921
      %v1954 = vadd.f32 %v1705, %v1926
      %v1955 = vadd.f32 %v1706, %v1929
      %v1956 = vadd.f32 %v1707, %v1934
      %v1957 = vadd.f32 %v1708, %v1937
      %v1958 = vld [vmem:[#allocation2 + $0x8] sm:$0xc]
      %s1959 = scalar_lea.vmem %s3, 10
      %v1960 = vld [vmem:[%s1959] sm:$0x3]
      %v1962 = vunpack.c.l.b16 %v1958
      %v1963 = vpack.c.b16 %v1509, %v1962
      %vm1964 = vcmask 1045504
      %v1965 = vrot.slane %v1963, 2
      %v1966 = vrot.slane %v1528, 2
      %v1967 = vsel %vm1964, %v1965, %v1966
      %v1968 = vrot.slane %v1529, 2
      %v1969 = vsel %vm1964, %v1966, %v1968
      %v1970 = vrot.slane %v1530, 2
      %v1971 = vsel %vm1964, %v1968, %v1970
      %v1972 = vrot.slane %v1531, 2
      %v1973 = vsel %vm1964, %v1970, %v1972
      %v1974 = vrot.slane %v1532, 2
      %v1975 = vsel %vm1964, %v1972, %v1974
      %v1976 = vrot.slane %v1533, 2
      %v1977 = vsel %vm1964, %v1974, %v1976
      %v1978 = vrot.slane %v1534, 2
      %v1979 = vsel %vm1964, %v1976, %v1978
      %v1980 = vrot.slane %v1535, 2
      %v1981 = vsel %vm1964, %v1978, %v1980
      %v1982 = vrot.slane %v1714, 2
      %v1983 = vsel %vm1964, %v1980, %v1982
      %v1985 = vsel %vm1023, %v1967, 0
      %v1988 = vsel %vm1023, %v1969, 0
      %v1991 = vsel %vm1023, %v1971, 0
      %v1994 = vsel %vm1023, %v1973, 0
      %v1997 = vsel %vm1023, %v1975, 0
      %v2000 = vsel %vm1023, %v1977, 0
      %v2003 = vsel %vm1023, %v1979, 0
      %v2006 = vsel %vm1023, %v1981, 0
      %v2009 = vsel %vm1023, %v1983, 0
      %v2012 = vand.u32 %v1960, %v1054
      %2014 = vmatprep.subr.bf16.mxu0 0
      %2015 = vmatpush1.bf16.msra.mxu0 %v2012
      %2016 = vmatprep.subr.bf16.mxu0 0
      %2017 = vmatpush1.bf16.msra.mxu0 0
      %2018 = vmatprep.subr.bf16.mxu0 0
      %2019 = vmatpush1.bf16.msra.mxu0 0
      %2020 = vmatprep.subr.bf16.mxu0 0
      %2021 = vmatpush1.bf16.msra.mxu0 0
      %2022 = vmatprep.subr.bf16.mxu0 0
      %2023 = vmatpush1.bf16.msra.mxu0 0
      %2024 = vmatprep.subr.bf16.mxu0 0
      %2025 = vmatpush1.bf16.msra.mxu0 0
      %2026 = vmatprep.subr.bf16.mxu0 0
      %2027 = vmatpush1.bf16.msra.mxu0 0
      %2028 = vmatprep.subr.bf16.mxu0 0
      %2029 = vmatpush1.bf16.msra.mxu0 0
      %2030 = vmatprep.subr.bf16.mxu0 0
      %2031 = vmatpush1.bf16.msra.mxu0 0
      %2032 = vmatprep.subr.bf16.mxu0 0
      %2033 = vmatpush1.bf16.msra.mxu0 0
      %2034 = vmatprep.subr.bf16.mxu0 0
      %2035 = vmatpush1.bf16.msra.mxu0 0
      %2036 = vmatprep.subr.bf16.mxu0 0
      %2037 = vmatpush1.bf16.msra.mxu0 0
      %2038 = vmatprep.subr.bf16.mxu0 0
      %2039 = vmatpush1.bf16.msra.mxu0 0
      %2040 = vmatprep.subr.bf16.mxu0 0
      %2041 = vmatpush1.bf16.msra.mxu0 0
      %2042 = vmatprep.subr.bf16.mxu0 0
      %2043 = vmatpush1.bf16.msra.mxu0 0
      %2044 = vmatprep.subr.bf16.mxu0 0
      %2045 = vmatpush1.bf16.msra.mxu0 0
      %2046 = vmatprep.mubr.bf16.mxu0 0
      %2047 = vmatmul.mubr.bf16.gmra.mrb[0].mxu0 %v1985
      %v2048 = vpop.f32.mrb[0].mxu0
      %v2049 = vadd.f32 0.0, %v2048
      %v2050 = vpop.f32.mrb[0].mxu0
      %v2051 = vpop.f32.mrb[0].mxu0
      %v2052 = vadd.f32 0.0, %v2051
      %v2053 = vpop.f32.mrb[0].mxu0
      %2054 = vmatprep.mubr.bf16.mxu0 0
      %2055 = vmatmul.mubr.bf16.gmra.mrb[0].mxu0 %v1988
      %v2056 = vpop.f32.mrb[0].mxu0
      %v2057 = vadd.f32 0.0, %v2056
      %v2058 = vpop.f32.mrb[0].mxu0
      %v2059 = vpop.f32.mrb[0].mxu0
      %v2060 = vadd.f32 0.0, %v2059
      %v2061 = vpop.f32.mrb[0].mxu0
      %2062 = vmatprep.mubr.bf16.mxu0 0
      %2063 = vmatmul.mubr.bf16.gmra.mrb[0].mxu0 %v1991
      %v2064 = vpop.f32.mrb[0].mxu0
      %v2065 = vadd.f32 0.0, %v2064
      %v2066 = vpop.f32.mrb[0].mxu0
      %v2067 = vpop.f32.mrb[0].mxu0
      %v2068 = vadd.f32 0.0, %v2067
      %v2069 = vpop.f32.mrb[0].mxu0
      %2070 = vmatprep.mubr.bf16.mxu0 0
      %2071 = vmatmul.mubr.bf16.gmra.mrb[0].mxu0 %v1994
      %v2072 = vpop.f32.mrb[0].mxu0
      %v2073 = vadd.f32 0.0, %v2072
      %v2074 = vpop.f32.mrb[0].mxu0
      %v2075 = vpop.f32.mrb[0].mxu0
      %v2076 = vadd.f32 0.0, %v2075
      %v2077 = vpop.f32.mrb[0].mxu0
      %2078 = vmatprep.mubr.bf16.mxu0 0
      %2079 = vmatmul.mubr.bf16.gmra.mrb[0].mxu0 %v1997
      %v2080 = vpop.f32.mrb[0].mxu0
      %v2081 = vadd.f32 0.0, %v2080
      %v2082 = vpop.f32.mrb[0].mxu0
      %v2083 = vpop.f32.mrb[0].mxu0
      %v2084 = vadd.f32 0.0, %v2083
      %v2085 = vpop.f32.mrb[0].mxu0
      %2086 = vmatprep.mubr.bf16.mxu0 0
      %2087 = vmatmul.mubr.bf16.gmra.mrb[0].mxu0 %v2000
      %v2088 = vpop.f32.mrb[0].mxu0
      %v2089 = vadd.f32 0.0, %v2088
      %v2090 = vpop.f32.mrb[0].mxu0
      %v2091 = vpop.f32.mrb[0].mxu0
      %v2092 = vadd.f32 0.0, %v2091
      %v2093 = vpop.f32.mrb[0].mxu0
      %2094 = vmatprep.mubr.bf16.mxu0 0
      %2095 = vmatmul.mubr.bf16.gmra.mrb[0].mxu0 %v2003
      %v2096 = vpop.f32.mrb[0].mxu0
      %v2097 = vadd.f32 0.0, %v2096
      %v2098 = vpop.f32.mrb[0].mxu0
      %v2099 = vpop.f32.mrb[0].mxu0
      %v2100 = vadd.f32 0.0, %v2099
      %v2101 = vpop.f32.mrb[0].mxu0
      %2102 = vmatprep.mubr.bf16.mxu0 0
      %2103 = vmatmul.mubr.bf16.gmra.mrb[0].mxu0 %v2006
      %v2104 = vpop.f32.mrb[0].mxu0
      %v2105 = vadd.f32 0.0, %v2104
      %v2106 = vpop.f32.mrb[0].mxu0
      %v2107 = vpop.f32.mrb[0].mxu0
      %v2108 = vadd.f32 0.0, %v2107
      %v2109 = vpop.f32.mrb[0].mxu0
      %2110 = vmatprep.mubr.bf16.mxu0 0
      %2111 = vmatmul.mubr.bf16.gmra.mrb[0].mxu0 %v2009
      %v2112 = vpop.f32.mrb[0].mxu0
      %v2113 = vadd.f32 0.0, %v2112
      %v2114 = vpop.f32.mrb[0].mxu0
      %v2115 = vpop.f32.mrb[0].mxu0
      %v2116 = vadd.f32 0.0, %v2115
      %v2117 = vpop.f32.mrb[0].mxu0
      %2118 = vdwg.mxu0
      %v2119 = vadd.f32 %v1940, %v2049
      %v2120 = vadd.f32 %v1941, %v2052
      %v2121 = vadd.f32 %v1942, %v2057
      %v2122 = vadd.f32 %v1943, %v2060
      %v2123 = vadd.f32 %v1944, %v2065
      %v2124 = vadd.f32 %v1945, %v2068
      %v2125 = vadd.f32 %v1946, %v2073
      %v2126 = vadd.f32 %v1947, %v2076
      %v2127 = vadd.f32 %v1948, %v2081
      %v2128 = vadd.f32 %v1949, %v2084
      %v2129 = vadd.f32 %v1950, %v2089
      %v2130 = vadd.f32 %v1951, %v2092
      %v2131 = vadd.f32 %v1952, %v2097
      %v2132 = vadd.f32 %v1953, %v2100
      %v2133 = vadd.f32 %v1954, %v2105
      %v2134 = vadd.f32 %v1955, %v2108
      %v2135 = vadd.f32 %v1956, %v2113
      %v2136 = vadd.f32 %v1957, %v2116
      %v2137 = vld [vmem:[#allocation2 + $0x10] sm:$0xc]
      %v2138 = vld [vmem:[#allocation2 + $0x14] sm:$0xf]
      %v2139 = vld [vmem:[#allocation2 + $0x18] sm:$0xf]
      %v2140 = vld [vmem:[#allocation2 + $0x1c] sm:$0xf]
      %v2141 = vld [vmem:[#allocation2 + $0x20] sm:$0xf]
      %v2142 = vld [vmem:[#allocation2 + $0x24] sm:$0xf]
      %v2143 = vld [vmem:[#allocation2 + $0x28] sm:$0xf]
      %v2144 = vld [vmem:[#allocation2 + $0x2c] sm:$0xf]
      %v2145 = vld [vmem:[#allocation2 + $0x30] sm:$0xf]
      %v2146 = vld [vmem:[#allocation2 + $0x34] sm:$0xf]
      %v2147 = vld [vmem:[#allocation2 + $0x38] sm:$0xf]
      %v2148 = vld [vmem:[#allocation2 + $0x3c] sm:$0xf]
      %v2149 = vld [vmem:[#allocation2 + $0x40] sm:$0xf]
      %v2150 = vld [vmem:[#allocation2 + $0x44] sm:$0xf]
      %v2151 = vld [vmem:[#allocation2 + $0x48] sm:$0xf]
      %v2152 = vld [vmem:[#allocation2 + $0x4c] sm:$0xf]
      %v2153 = vld [vmem:[#allocation2 + $0x50] sm:$0xf]
      %v2154 = vld [vmem:[#allocation2 + $0x54] sm:$0xf]
      %v2155 = vld [vmem:[#allocation2 + $0x58] sm:$0x3]
      %s2156 = scalar_lea.vmem %s3, 12
      %v2157 = vld [vmem:[%s2156] sm:$0x3]
      %v2177 = vunpack.c.l.b16 %v2137
      %v2178 = vunpack.c.l.b16 %v2138
      %v2179 = vunpack.c.l.b16 %v2139
      %v2180 = vunpack.c.l.b16 %v2140
      %v2181 = vunpack.c.l.b16 %v2141
      %v2182 = vunpack.c.l.b16 %v2142
      %v2183 = vunpack.c.l.b16 %v2143
      %v2184 = vunpack.c.l.b16 %v2144
      %v2185 = vunpack.c.l.b16 %v2145
      %v2186 = vunpack.c.l.b16 %v2146
      %v2187 = vunpack.c.l.b16 %v2147
      %v2188 = vunpack.c.l.b16 %v2148
      %v2189 = vunpack.c.l.b16 %v2149
      %v2190 = vunpack.c.l.b16 %v2150
      %v2191 = vunpack.c.l.b16 %v2151
      %v2192 = vunpack.c.l.b16 %v2152
      %v2193 = vunpack.c.l.b16 %v2153
      %v2194 = vunpack.c.l.b16 %v2154
      %v2195 = vunpack.c.l.b16 %v2155
      %v2196 = vpack.c.b16 %v2178, %v2177
      %v2197 = vpack.c.b16 %v2180, %v2179
      %v2198 = vpack.c.b16 %v2182, %v2181
      %v2199 = vpack.c.b16 %v2184, %v2183
      %v2200 = vpack.c.b16 %v2186, %v2185
      %v2201 = vpack.c.b16 %v2188, %v2187
      %v2202 = vpack.c.b16 %v2190, %v2189
      %v2203 = vpack.c.b16 %v2192, %v2191
      %v2204 = vpack.c.b16 %v2194, %v2193
      %v2205 = vpack.c.b16 %v2195, %v2195
      %v2206 = vrot.slane %v2196, 2
      %v2207 = vrot.slane %v2197, 2
      %v2208 = vsel %vm1964, %v2206, %v2207
      %v2209 = vrot.slane %v2198, 2
      %v2210 = vsel %vm1964, %v2207, %v2209
      %v2211 = vrot.slane %v2199, 2
      %v2212 = vsel %vm1964, %v2209, %v2211
      %v2213 = vrot.slane %v2200, 2
      %v2214 = vsel %vm1964, %v2211, %v2213
      %v2215 = vrot.slane %v2201, 2
      %v2216 = vsel %vm1964, %v2213, %v2215
      %v2217 = vrot.slane %v2202, 2
      %v2218 = vsel %vm1964, %v2215, %v2217
      %v2219 = vrot.slane %v2203, 2
      %v2220 = vsel %vm1964, %v2217, %v2219
      %v2221 = vrot.slane %v2204, 2
      %v2222 = vsel %vm1964, %v2219, %v2221
      %v2223 = vrot.slane %v2205, 2
      %v2224 = vsel %vm1964, %v2221, %v2223
      %v2226 = vsel %vm1023, %v2208, 0
      %v2229 = vsel %vm1023, %v2210, 0
      %v2232 = vsel %vm1023, %v2212, 0
      %v2235 = vsel %vm1023, %v2214, 0
      %v2238 = vsel %vm1023, %v2216, 0
      %v2241 = vsel %vm1023, %v2218, 0
      %v2244 = vsel %vm1023, %v2220, 0
      %v2247 = vsel %vm1023, %v2222, 0
      %v2250 = vsel %vm1023, %v2224, 0
      %v2253 = vand.u32 %v2157, %v1054
      %2255 = vmatprep.subr.bf16.mxu0 0
      %2256 = vmatpush1.bf16.msra.mxu0 %v2253
      %2257 = vmatprep.subr.bf16.mxu0 0
      %2258 = vmatpush1.bf16.msra.mxu0 0
      %2259 = vmatprep.subr.bf16.mxu0 0
      %2260 = vmatpush1.bf16.msra.mxu0 0
      %2261 = vmatprep.subr.bf16.mxu0 0
      %2262 = vmatpush1.bf16.msra.mxu0 0
      %2263 = vmatprep.subr.bf16.mxu0 0
      %2264 = vmatpush1.bf16.msra.mxu0 0
      %2265 = vmatprep.subr.bf16.mxu0 0
      %2266 = vmatpush1.bf16.msra.mxu0 0
      %2267 = vmatprep.subr.bf16.mxu0 0
      %2268 = vmatpush1.bf16.msra.mxu0 0
      %2269 = vmatprep.subr.bf16.mxu0 0
      %2270 = vmatpush1.bf16.msra.mxu0 0
      %2271 = vmatprep.subr.bf16.mxu0 0
      %2272 = vmatpush1.bf16.msra.mxu0 0
      %2273 = vmatprep.subr.bf16.mxu0 0
      %2274 = vmatpush1.bf16.msra.mxu0 0
      %2275 = vmatprep.subr.bf16.mxu0 0
      %2276 = vmatpush1.bf16.msra.mxu0 0
      %2277 = vmatprep.subr.bf16.mxu0 0
      %2278 = vmatpush1.bf16.msra.mxu0 0
      %2279 = vmatprep.subr.bf16.mxu0 0
      %2280 = vmatpush1.bf16.msra.mxu0 0
      %2281 = vmatprep.subr.bf16.mxu0 0
      %2282 = vmatpush1.bf16.msra.mxu0 0
      %2283 = vmatprep.subr.bf16.mxu0 0
      %2284 = vmatpush1.bf16.msra.mxu0 0
      %2285 = vmatprep.subr.bf16.mxu0 0
      %2286 = vmatpush1.bf16.msra.mxu0 0
      %2287 = vmatprep.mubr.bf16.mxu0 0
      %2288 = vmatmul.mubr.bf16.gmra.mrb[0].mxu0 %v2226
      %v2289 = vpop.f32.mrb[0].mxu0
      %v2290 = vadd.f32 0.0, %v2289
      %v2291 = vpop.f32.mrb[0].mxu0
      %v2292 = vpop.f32.mrb[0].mxu0
      %v2293 = vadd.f32 0.0, %v2292
      %v2294 = vpop.f32.mrb[0].mxu0
      %2295 = vmatprep.mubr.bf16.mxu0 0
      %2296 = vmatmul.mubr.bf16.gmra.mrb[0].mxu0 %v2229
      %v2297 = vpop.f32.mrb[0].mxu0
      %v2298 = vadd.f32 0.0, %v2297
      %v2299 = vpop.f32.mrb[0].mxu0
      %v2300 = vpop.f32.mrb[0].mxu0
      %v2301 = vadd.f32 0.0, %v2300
      %v2302 = vpop.f32.mrb[0].mxu0
      %2303 = vmatprep.mubr.bf16.mxu0 0
      %2304 = vmatmul.mubr.bf16.gmra.mrb[0].mxu0 %v2232
      %v2305 = vpop.f32.mrb[0].mxu0
      %v2306 = vadd.f32 0.0, %v2305
      %v2307 = vpop.f32.mrb[0].mxu0
      %v2308 = vpop.f32.mrb[0].mxu0
      %v2309 = vadd.f32 0.0, %v2308
      %v2310 = vpop.f32.mrb[0].mxu0
      %2311 = vmatprep.mubr.bf16.mxu0 0
      %2312 = vmatmul.mubr.bf16.gmra.mrb[0].mxu0 %v2235
      %v2313 = vpop.f32.mrb[0].mxu0
      %v2314 = vadd.f32 0.0, %v2313
      %v2315 = vpop.f32.mrb[0].mxu0
      %v2316 = vpop.f32.mrb[0].mxu0
      %v2317 = vadd.f32 0.0, %v2316
      %v2318 = vpop.f32.mrb[0].mxu0
      %2319 = vmatprep.mubr.bf16.mxu0 0
      %2320 = vmatmul.mubr.bf16.gmra.mrb[0].mxu0 %v2238
      %v2321 = vpop.f32.mrb[0].mxu0
      %v2322 = vadd.f32 0.0, %v2321
      %v2323 = vpop.f32.mrb[0].mxu0
      %v2324 = vpop.f32.mrb[0].mxu0
      %v2325 = vadd.f32 0.0, %v2324
      %v2326 = vpop.f32.mrb[0].mxu0
      %2327 = vmatprep.mubr.bf16.mxu0 0
      %2328 = vmatmul.mubr.bf16.gmra.mrb[0].mxu0 %v2241
      %v2329 = vpop.f32.mrb[0].mxu0
      %v2330 = vadd.f32 0.0, %v2329
      %v2331 = vpop.f32.mrb[0].mxu0
      %v2332 = vpop.f32.mrb[0].mxu0
      %v2333 = vadd.f32 0.0, %v2332
      %v2334 = vpop.f32.mrb[0].mxu0
      %2335 = vmatprep.mubr.bf16.mxu0 0
      %2336 = vmatmul.mubr.bf16.gmra.mrb[0].mxu0 %v2244
      %v2337 = vpop.f32.mrb[0].mxu0
      %v2338 = vadd.f32 0.0, %v2337
      %v2339 = vpop.f32.mrb[0].mxu0
      %v2340 = vpop.f32.mrb[0].mxu0
      %v2341 = vadd.f32 0.0, %v2340
      %v2342 = vpop.f32.mrb[0].mxu0
      %2343 = vmatprep.mubr.bf16.mxu0 0
      %2344 = vmatmul.mubr.bf16.gmra.mrb[0].mxu0 %v2247
      %v2345 = vpop.f32.mrb[0].mxu0
      %v2346 = vadd.f32 0.0, %v2345
      %v2347 = vpop.f32.mrb[0].mxu0
      %v2348 = vpop.f32.mrb[0].mxu0
      %v2349 = vadd.f32 0.0, %v2348
      %v2350 = vpop.f32.mrb[0].mxu0
      %2351 = vmatprep.mubr.bf16.mxu0 0
      %2352 = vmatmul.mubr.bf16.gmra.mrb[0].mxu0 %v2250
      %v2353 = vpop.f32.mrb[0].mxu0
      %v2354 = vadd.f32 0.0, %v2353
      %v2355 = vpop.f32.mrb[0].mxu0
      %v2356 = vpop.f32.mrb[0].mxu0
      %v2357 = vadd.f32 0.0, %v2356
      %v2358 = vpop.f32.mrb[0].mxu0
      %2359 = vdwg.mxu0
      %v2360 = vadd.f32 %v2119, %v2290
      %v2361 = vadd.f32 %v2120, %v2293
      %v2362 = vadd.f32 %v2121, %v2298
      %v2363 = vadd.f32 %v2122, %v2301
      %v2364 = vadd.f32 %v2123, %v2306
      %v2365 = vadd.f32 %v2124, %v2309
      %v2366 = vadd.f32 %v2125, %v2314
      %v2367 = vadd.f32 %v2126, %v2317
      %v2368 = vadd.f32 %v2127, %v2322
      %v2369 = vadd.f32 %v2128, %v2325
      %v2370 = vadd.f32 %v2129, %v2330
      %v2371 = vadd.f32 %v2130, %v2333
      %v2372 = vadd.f32 %v2131, %v2338
      %v2373 = vadd.f32 %v2132, %v2341
      %v2374 = vadd.f32 %v2133, %v2346
      %v2375 = vadd.f32 %v2134, %v2349
      %v2376 = vadd.f32 %v2135, %v2354
      %v2377 = vadd.f32 %v2136, %v2357
      %v2378 = vld [vmem:[#allocation2 + $0x58] sm:$0x7]
      %s2379 = scalar_lea.vmem %s3, 14
      %v2380 = vld [vmem:[%s2379] sm:$0x3]
      %v2382 = vunpack.c.l.b16 %v2378
      %v2383 = vpack.c.b16 %v2382, %v2382
      %vm2384 = vsmask.f32 5376
      %v2386 = vshrl.u32 %v2196, 16
      %v2388 = vrot.slane %v2386, 2
      %v2389 = vshll.u32 %v2196, 16
      %v2391 = vrot.slane %v2389, 3
      %v2392 = vor.u32 %v2388, %v2391
      %v2394 = vshrl.u32 %v2197, 16
      %v2396 = vrot.slane %v2394, 2
      %v2397 = vshll.u32 %v2197, 16
      %v2399 = vrot.slane %v2397, 3
      %v2400 = vor.u32 %v2396, %v2399
      %v2401 = vsel %vm2384, %v2392, %v2400
      %v2403 = vshrl.u32 %v2198, 16
      %v2405 = vrot.slane %v2403, 2
      %v2406 = vshll.u32 %v2198, 16
      %v2408 = vrot.slane %v2406, 3
      %v2409 = vor.u32 %v2405, %v2408
      %v2410 = vsel %vm2384, %v2400, %v2409
      %v2412 = vshrl.u32 %v2199, 16
      %v2414 = vrot.slane %v2412, 2
      %v2415 = vshll.u32 %v2199, 16
      %v2417 = vrot.slane %v2415, 3
      %v2418 = vor.u32 %v2414, %v2417
      %v2419 = vsel %vm2384, %v2409, %v2418
      %v2421 = vshrl.u32 %v2200, 16
      %v2423 = vrot.slane %v2421, 2
      %v2424 = vshll.u32 %v2200, 16
      %v2426 = vrot.slane %v2424, 3
      %v2427 = vor.u32 %v2423, %v2426
      %v2428 = vsel %vm2384, %v2418, %v2427
      %v2430 = vshrl.u32 %v2201, 16
      %v2432 = vrot.slane %v2430, 2
      %v2433 = vshll.u32 %v2201, 16
      %v2435 = vrot.slane %v2433, 3
      %v2436 = vor.u32 %v2432, %v2435
      %v2437 = vsel %vm2384, %v2427, %v2436
      %v2439 = vshrl.u32 %v2202, 16
      %v2441 = vrot.slane %v2439, 2
      %v2442 = vshll.u32 %v2202, 16
      %v2444 = vrot.slane %v2442, 3
      %v2445 = vor.u32 %v2441, %v2444
      %v2446 = vsel %vm2384, %v2436, %v2445
      %v2448 = vshrl.u32 %v2203, 16
      %v2450 = vrot.slane %v2448, 2
      %v2451 = vshll.u32 %v2203, 16
      %v2453 = vrot.slane %v2451, 3
      %v2454 = vor.u32 %v2450, %v2453
      %v2455 = vsel %vm2384, %v2445, %v2454
      %v2457 = vshrl.u32 %v2204, 16
      %v2459 = vrot.slane %v2457, 2
      %v2460 = vshll.u32 %v2204, 16
      %v2462 = vrot.slane %v2460, 3
      %v2463 = vor.u32 %v2459, %v2462
      %v2464 = vsel %vm2384, %v2454, %v2463
      %v2466 = vshrl.u32 %v2383, 16
      %v2468 = vrot.slane %v2466, 2
      %v2469 = vshll.u32 %v2383, 16
      %v2471 = vrot.slane %v2469, 3
      %v2472 = vor.u32 %v2468, %v2471
      %v2473 = vsel %vm2384, %v2463, %v2472
      %v2475 = vsel %vm1023, %v2401, 0
      %v2478 = vsel %vm1023, %v2410, 0
      %v2481 = vsel %vm1023, %v2419, 0
      %v2484 = vsel %vm1023, %v2428, 0
      %v2487 = vsel %vm1023, %v2437, 0
      %v2490 = vsel %vm1023, %v2446, 0
      %v2493 = vsel %vm1023, %v2455, 0
      %v2496 = vsel %vm1023, %v2464, 0
      %v2499 = vsel %vm1023, %v2473, 0
      %v2502 = vand.u32 %v2380, %v1054
      %2504 = vmatprep.subr.bf16.mxu0 0
      %2505 = vmatpush1.bf16.msra.mxu0 %v2502
      %2506 = vmatprep.subr.bf16.mxu0 0
      %2507 = vmatpush1.bf16.msra.mxu0 0
      %2508 = vmatprep.subr.bf16.mxu0 0
      %2509 = vmatpush1.bf16.msra.mxu0 0
      %2510 = vmatprep.subr.bf16.mxu0 0
      %2511 = vmatpush1.bf16.msra.mxu0 0
      %2512 = vmatprep.subr.bf16.mxu0 0
      %2513 = vmatpush1.bf16.msra.mxu0 0
      %2514 = vmatprep.subr.bf16.mxu0 0
      %2515 = vmatpush1.bf16.msra.mxu0 0
      %2516 = vmatprep.subr.bf16.mxu0 0
      %2517 = vmatpush1.bf16.msra.mxu0 0
      %2518 = vmatprep.subr.bf16.mxu0 0
      %2519 = vmatpush1.bf16.msra.mxu0 0
      %2520 = vmatprep.subr.bf16.mxu0 0
      %2521 = vmatpush1.bf16.msra.mxu0 0
      %2522 = vmatprep.subr.bf16.mxu0 0
      %2523 = vmatpush1.bf16.msra.mxu0 0
      %2524 = vmatprep.subr.bf16.mxu0 0
      %2525 = vmatpush1.bf16.msra.mxu0 0
      %2526 = vmatprep.subr.bf16.mxu0 0
      %2527 = vmatpush1.bf16.msra.mxu0 0
      %2528 = vmatprep.subr.bf16.mxu0 0
      %2529 = vmatpush1.bf16.msra.mxu0 0
      %2530 = vmatprep.subr.bf16.mxu0 0
      %2531 = vmatpush1.bf16.msra.mxu0 0
      %2532 = vmatprep.subr.bf16.mxu0 0
      %2533 = vmatpush1.bf16.msra.mxu0 0
      %2534 = vmatprep.subr.bf16.mxu0 0
      %2535 = vmatpush1.bf16.msra.mxu0 0
      %2536 = vmatprep.mubr.bf16.mxu0 0
      %2537 = vmatmul.mubr.bf16.gmra.mrb[0].mxu0 %v2475
      %v2538 = vpop.f32.mrb[0].mxu0
      %v2539 = vadd.f32 0.0, %v2538
      %v2540 = vpop.f32.mrb[0].mxu0
      %v2541 = vpop.f32.mrb[0].mxu0
      %v2542 = vadd.f32 0.0, %v2541
      %v2543 = vpop.f32.mrb[0].mxu0
      %2544 = vmatprep.mubr.bf16.mxu0 0
      %2545 = vmatmul.mubr.bf16.gmra.mrb[0].mxu0 %v2478
      %v2546 = vpop.f32.mrb[0].mxu0
      %v2547 = vadd.f32 0.0, %v2546
      %v2548 = vpop.f32.mrb[0].mxu0
      %v2549 = vpop.f32.mrb[0].mxu0
      %v2550 = vadd.f32 0.0, %v2549
      %v2551 = vpop.f32.mrb[0].mxu0
      %2552 = vmatprep.mubr.bf16.mxu0 0
      %2553 = vmatmul.mubr.bf16.gmra.mrb[0].mxu0 %v2481
      %v2554 = vpop.f32.mrb[0].mxu0
      %v2555 = vadd.f32 0.0, %v2554
      %v2556 = vpop.f32.mrb[0].mxu0
      %v2557 = vpop.f32.mrb[0].mxu0
      %v2558 = vadd.f32 0.0, %v2557
      %v2559 = vpop.f32.mrb[0].mxu0
      %2560 = vmatprep.mubr.bf16.mxu0 0
      %2561 = vmatmul.mubr.bf16.gmra.mrb[0].mxu0 %v2484
      %v2562 = vpop.f32.mrb[0].mxu0
      %v2563 = vadd.f32 0.0, %v2562
      %v2564 = vpop.f32.mrb[0].mxu0
      %v2565 = vpop.f32.mrb[0].mxu0
      %v2566 = vadd.f32 0.0, %v2565
      %v2567 = vpop.f32.mrb[0].mxu0
      %2568 = vmatprep.mubr.bf16.mxu0 0
      %2569 = vmatmul.mubr.bf16.gmra.mrb[0].mxu0 %v2487
      %v2570 = vpop.f32.mrb[0].mxu0
      %v2571 = vadd.f32 0.0, %v2570
      %v2572 = vpop.f32.mrb[0].mxu0
      %v2573 = vpop.f32.mrb[0].mxu0
      %v2574 = vadd.f32 0.0, %v2573
      %v2575 = vpop.f32.mrb[0].mxu0
      %2576 = vmatprep.mubr.bf16.mxu0 0
      %2577 = vmatmul.mubr.bf16.gmra.mrb[0].mxu0 %v2490
      %v2578 = vpop.f32.mrb[0].mxu0
      %v2579 = vadd.f32 0.0, %v2578
      %v2580 = vpop.f32.mrb[0].mxu0
      %v2581 = vpop.f32.mrb[0].mxu0
      %v2582 = vadd.f32 0.0, %v2581
      %v2583 = vpop.f32.mrb[0].mxu0
      %2584 = vmatprep.mubr.bf16.mxu0 0
      %2585 = vmatmul.mubr.bf16.gmra.mrb[0].mxu0 %v2493
      %v2586 = vpop.f32.mrb[0].mxu0
      %v2587 = vadd.f32 0.0, %v2586
      %v2588 = vpop.f32.mrb[0].mxu0
      %v2589 = vpop.f32.mrb[0].mxu0
      %v2590 = vadd.f32 0.0, %v2589
      %v2591 = vpop.f32.mrb[0].mxu0
      %2592 = vmatprep.mubr.bf16.mxu0 0
      %2593 = vmatmul.mubr.bf16.gmra.mrb[0].mxu0 %v2496
      %v2594 = vpop.f32.mrb[0].mxu0
      %v2595 = vadd.f32 0.0, %v2594
      %v2596 = vpop.f32.mrb[0].mxu0
      %v2597 = vpop.f32.mrb[0].mxu0
      %v2598 = vadd.f32 0.0, %v2597
      %v2599 = vpop.f32.mrb[0].mxu0
      %2600 = vmatprep.mubr.bf16.mxu0 0
      %2601 = vmatmul.mubr.bf16.gmra.mrb[0].mxu0 %v2499
      %v2602 = vpop.f32.mrb[0].mxu0
      %v2603 = vadd.f32 0.0, %v2602
      %v2604 = vpop.f32.mrb[0].mxu0
      %v2605 = vpop.f32.mrb[0].mxu0
      %v2606 = vadd.f32 0.0, %v2605
      %v2607 = vpop.f32.mrb[0].mxu0
      %2608 = vdwg.mxu0
      %v2609 = vadd.f32 %v2360, %v2539
      %v2610 = vadd.f32 %v2361, %v2542
      %v2611 = vadd.f32 %v2362, %v2547
      %v2612 = vadd.f32 %v2363, %v2550
      %v2613 = vadd.f32 %v2364, %v2555
      %v2614 = vadd.f32 %v2365, %v2558
      %v2615 = vadd.f32 %v2366, %v2563
      %v2616 = vadd.f32 %v2367, %v2566
      %v2617 = vadd.f32 %v2368, %v2571
      %v2618 = vadd.f32 %v2369, %v2574
      %v2619 = vadd.f32 %v2370, %v2579
      %v2620 = vadd.f32 %v2371, %v2582
      %v2621 = vadd.f32 %v2372, %v2587
      %v2622 = vadd.f32 %v2373, %v2590
      %v2623 = vadd.f32 %v2374, %v2595
      %v2624 = vadd.f32 %v2375, %v2598
      %v2625 = vadd.f32 %v2376, %v2603
      %v2626 = vadd.f32 %v2377, %v2606
      %v2627 = vld [vmem:[#allocation2 + $0x10] sm:$0x8]
      %s2628 = scalar_lea.vmem %s3, 16
      %v2629 = vld [vmem:[%s2628] sm:$0x3]
      %v2631 = vunpack.c.l.b16 %v2627
      %v2632 = vpack.c.b16 %v2178, %v2631
      %vm2633 = vcmask 1044480
      %v2634 = vrot.slane %v2632, 3
      %v2635 = vrot.slane %v2197, 3
      %v2636 = vsel %vm2633, %v2634, %v2635
      %v2637 = vrot.slane %v2198, 3
      %v2638 = vsel %vm2633, %v2635, %v2637
      %v2639 = vrot.slane %v2199, 3
      %v2640 = vsel %vm2633, %v2637, %v2639
      %v2641 = vrot.slane %v2200, 3
      %v2642 = vsel %vm2633, %v2639, %v2641
      %v2643 = vrot.slane %v2201, 3
      %v2644 = vsel %vm2633, %v2641, %v2643
      %v2645 = vrot.slane %v2202, 3
      %v2646 = vsel %vm2633, %v2643, %v2645
      %v2647 = vrot.slane %v2203, 3
      %v2648 = vsel %vm2633, %v2645, %v2647
      %v2649 = vrot.slane %v2204, 3
      %v2650 = vsel %vm2633, %v2647, %v2649
      %v2651 = vrot.slane %v2383, 3
      %v2652 = vsel %vm2633, %v2649, %v2651
      %v2654 = vsel %vm1023, %v2636, 0
      %v2657 = vsel %vm1023, %v2638, 0
      %v2660 = vsel %vm1023, %v2640, 0
      %v2663 = vsel %vm1023, %v2642, 0
      %v2666 = vsel %vm1023, %v2644, 0
      %v2669 = vsel %vm1023, %v2646, 0
      %v2672 = vsel %vm1023, %v2648, 0
      %v2675 = vsel %vm1023, %v2650, 0
      %v2678 = vsel %vm1023, %v2652, 0
      %v2681 = vand.u32 %v2629, %v1054
      %2683 = vmatprep.subr.bf16.mxu0 0
      %2684 = vmatpush1.bf16.msra.mxu0 %v2681
      %2685 = vmatprep.subr.bf16.mxu0 0
      %2686 = vmatpush1.bf16.msra.mxu0 0
      %2687 = vmatprep.subr.bf16.mxu0 0
      %2688 = vmatpush1.bf16.msra.mxu0 0
      %2689 = vmatprep.subr.bf16.mxu0 0
      %2690 = vmatpush1.bf16.msra.mxu0 0
      %2691 = vmatprep.subr.bf16.mxu0 0
      %2692 = vmatpush1.bf16.msra.mxu0 0
      %2693 = vmatprep.subr.bf16.mxu0 0
      %2694 = vmatpush1.bf16.msra.mxu0 0
      %2695 = vmatprep.subr.bf16.mxu0 0
      %2696 = vmatpush1.bf16.msra.mxu0 0
      %2697 = vmatprep.subr.bf16.mxu0 0
      %2698 = vmatpush1.bf16.msra.mxu0 0
      %2699 = vmatprep.subr.bf16.mxu0 0
      %2700 = vmatpush1.bf16.msra.mxu0 0
      %2701 = vmatprep.subr.bf16.mxu0 0
      %2702 = vmatpush1.bf16.msra.mxu0 0
      %2703 = vmatprep.subr.bf16.mxu0 0
      %2704 = vmatpush1.bf16.msra.mxu0 0
      %2705 = vmatprep.subr.bf16.mxu0 0
      %2706 = vmatpush1.bf16.msra.mxu0 0
      %2707 = vmatprep.subr.bf16.mxu0 0
      %2708 = vmatpush1.bf16.msra.mxu0 0
      %2709 = vmatprep.subr.bf16.mxu0 0
      %2710 = vmatpush1.bf16.msra.mxu0 0
      %2711 = vmatprep.subr.bf16.mxu0 0
      %2712 = vmatpush1.bf16.msra.mxu0 0
      %2713 = vmatprep.subr.bf16.mxu0 0
      %2714 = vmatpush1.bf16.msra.mxu0 0
      %2715 = vmatprep.mubr.bf16.mxu0 0
      %2716 = vmatmul.mubr.bf16.gmra.mrb[0].mxu0 %v2654
      %v2717 = vpop.f32.mrb[0].mxu0
      %v2718 = vadd.f32 0.0, %v2717
      %v2719 = vpop.f32.mrb[0].mxu0
      %v2720 = vpop.f32.mrb[0].mxu0
      %v2721 = vadd.f32 0.0, %v2720
      %v2722 = vpop.f32.mrb[0].mxu0
      %2723 = vmatprep.mubr.bf16.mxu0 0
      %2724 = vmatmul.mubr.bf16.gmra.mrb[0].mxu0 %v2657
      %v2725 = vpop.f32.mrb[0].mxu0
      %v2726 = vadd.f32 0.0, %v2725
      %v2727 = vpop.f32.mrb[0].mxu0
      %v2728 = vpop.f32.mrb[0].mxu0
      %v2729 = vadd.f32 0.0, %v2728
      %v2730 = vpop.f32.mrb[0].mxu0
      %2731 = vmatprep.mubr.bf16.mxu0 0
      %2732 = vmatmul.mubr.bf16.gmra.mrb[0].mxu0 %v2660
      %v2733 = vpop.f32.mrb[0].mxu0
      %v2734 = vadd.f32 0.0, %v2733
      %v2735 = vpop.f32.mrb[0].mxu0
      %v2736 = vpop.f32.mrb[0].mxu0
      %v2737 = vadd.f32 0.0, %v2736
      %v2738 = vpop.f32.mrb[0].mxu0
      %2739 = vmatprep.mubr.bf16.mxu0 0
      %2740 = vmatmul.mubr.bf16.gmra.mrb[0].mxu0 %v2663
      %v2741 = vpop.f32.mrb[0].mxu0
      %v2742 = vadd.f32 0.0, %v2741
      %v2743 = vpop.f32.mrb[0].mxu0
      %v2744 = vpop.f32.mrb[0].mxu0
      %v2745 = vadd.f32 0.0, %v2744
      %v2746 = vpop.f32.mrb[0].mxu0
      %2747 = vmatprep.mubr.bf16.mxu0 0
      %2748 = vmatmul.mubr.bf16.gmra.mrb[0].mxu0 %v2666
      %v2749 = vpop.f32.mrb[0].mxu0
      %v2750 = vadd.f32 0.0, %v2749
      %v2751 = vpop.f32.mrb[0].mxu0
      %v2752 = vpop.f32.mrb[0].mxu0
      %v2753 = vadd.f32 0.0, %v2752
      %v2754 = vpop.f32.mrb[0].mxu0
      %2755 = vmatprep.mubr.bf16.mxu0 0
      %2756 = vmatmul.mubr.bf16.gmra.mrb[0].mxu0 %v2669
      %v2757 = vpop.f32.mrb[0].mxu0
      %v2758 = vadd.f32 0.0, %v2757
      %v2759 = vpop.f32.mrb[0].mxu0
      %v2760 = vpop.f32.mrb[0].mxu0
      %v2761 = vadd.f32 0.0, %v2760
      %v2762 = vpop.f32.mrb[0].mxu0
      %2763 = vmatprep.mubr.bf16.mxu0 0
      %2764 = vmatmul.mubr.bf16.gmra.mrb[0].mxu0 %v2672
      %v2765 = vpop.f32.mrb[0].mxu0
      %v2766 = vadd.f32 0.0, %v2765
      %v2767 = vpop.f32.mrb[0].mxu0
      %v2768 = vpop.f32.mrb[0].mxu0
      %v2769 = vadd.f32 0.0, %v2768
      %v2770 = vpop.f32.mrb[0].mxu0
      %2771 = vmatprep.mubr.bf16.mxu0 0
      %2772 = vmatmul.mubr.bf16.gmra.mrb[0].mxu0 %v2675
      %v2773 = vpop.f32.mrb[0].mxu0
      %v2774 = vadd.f32 0.0, %v2773
      %v2775 = vpop.f32.mrb[0].mxu0
      %v2776 = vpop.f32.mrb[0].mxu0
      %v2777 = vadd.f32 0.0, %v2776
      %v2778 = vpop.f32.mrb[0].mxu0
      %2779 = vmatprep.mubr.bf16.mxu0 0
      %2780 = vmatmul.mubr.bf16.gmra.mrb[0].mxu0 %v2678
      %v2781 = vpop.f32.mrb[0].mxu0
      %v2782 = vadd.f32 0.0, %v2781
      %v2783 = vpop.f32.mrb[0].mxu0
      %v2784 = vpop.f32.mrb[0].mxu0
      %v2785 = vadd.f32 0.0, %v2784
      %v2786 = vpop.f32.mrb[0].mxu0
      %2787 = vdwg.mxu0
      %v2788 = vadd.f32 %v2609, %v2718
      %v2789 = vadd.f32 %v2610, %v2721
      %v2790 = vadd.f32 %v2611, %v2726
      %v2791 = vadd.f32 %v2612, %v2729
      %v2792 = vadd.f32 %v2613, %v2734
      %v2793 = vadd.f32 %v2614, %v2737
      %v2794 = vadd.f32 %v2615, %v2742
      %v2795 = vadd.f32 %v2616, %v2745
      %v2796 = vadd.f32 %v2617, %v2750
      %v2797 = vadd.f32 %v2618, %v2753
      %v2798 = vadd.f32 %v2619, %v2758
      %v2799 = vadd.f32 %v2620, %v2761
      %v2800 = vadd.f32 %v2621, %v2766
      %v2801 = vadd.f32 %v2622, %v2769
      %v2802 = vadd.f32 %v2623, %v2774
      %v2803 = vadd.f32 %v2624, %v2777
      %v2804 = vadd.f32 %v2625, %v2782
      %v2805 = vadd.f32 %v2626, %v2785
      %v2806 = vld [vmem:[%s4] sm:$0x1]
      %v2808 = vlaneseq
      %v2809 = vshrl.u32 %v2808, 7
      %v2810 = vsub.s32 0, %v2809
      %v2811 = vrot.slane %v2806, %v2810
      %v2813 = vadd.f32 %v2788, %v2811
      %v2814 = vadd.f32 %v2789, %v2811
      %v2815 = vadd.f32 %v2790, %v2811
      %v2816 = vadd.f32 %v2791, %v2811
      %v2817 = vadd.f32 %v2792, %v2811
      %v2818 = vadd.f32 %v2793, %v2811
      %v2819 = vadd.f32 %v2794, %v2811
      %v2820 = vadd.f32 %v2795, %v2811
      %v2821 = vadd.f32 %v2796, %v2811
      %v2822 = vadd.f32 %v2797, %v2811
      %v2823 = vadd.f32 %v2798, %v2811
      %v2824 = vadd.f32 %v2799, %v2811
      %v2825 = vadd.f32 %v2800, %v2811
      %v2826 = vadd.f32 %v2801, %v2811
      %v2827 = vadd.f32 %v2802, %v2811
      %v2828 = vadd.f32 %v2803, %v2811
      %v2829 = vadd.f32 %v2804, %v2811
      %v2830 = vadd.f32 %v2805, %v2811
      %v2831 = vmax.f32 %v2813, 0.0
      %v2832 = vmax.f32 %v2814, 0.0
      %v2833 = vmax.f32 %v2815, 0.0
      %v2834 = vmax.f32 %v2816, 0.0
      %v2835 = vmax.f32 %v2817, 0.0
      %v2836 = vmax.f32 %v2818, 0.0
      %v2837 = vmax.f32 %v2819, 0.0
      %v2838 = vmax.f32 %v2820, 0.0
      %v2839 = vmax.f32 %v2821, 0.0
      %v2840 = vmax.f32 %v2822, 0.0
      %v2841 = vmax.f32 %v2823, 0.0
      %v2842 = vmax.f32 %v2824, 0.0
      %v2843 = vmax.f32 %v2825, 0.0
      %v2844 = vmax.f32 %v2826, 0.0
      %v2845 = vmax.f32 %v2827, 0.0
      %v2846 = vmax.f32 %v2828, 0.0
      %v2847 = vmax.f32 %v2829, 0.0
      %v2848 = vmax.f32 %v2830, 0.0
      %v2849 = vpack.c.bf16 %v2832, %v2831
      %v2851 = vunpack.c.l.b16 %v2849
      %v2852 = vunpack.c.h.b16 %v2849
      %v2853 = vpack.c.b16 %v2851, %v2851
      %v2854 = vpack.c.b16 %v2852, %v2852
      %2857 = vst [vmem:[%s418] sm:$0xf] %v2853
      %2858 = vst [vmem:[%s418 + $0x4] sm:$0xf] %v2854
      %v2859 = vpack.c.bf16 %v2834, %v2833
      %v2860 = vpack.c.bf16 %v2835, %v2835
      %v2863 = vunpack.c.l.b16 %v2859
      %v2864 = vunpack.c.h.b16 %v2859
      %v2865 = vunpack.c.l.b16 %v2860
      %v2866 = vpack.c.b16 %v2863, %v2863
      %v2867 = vpack.c.b16 %v2864, %v2864
      %v2868 = vpack.c.b16 %v2865, %v2865
      %vm2869 = vcmask 1042432
      %vm2870 = vcmask 1046532
      %vm2871 = vmor %vm2869, %vm2870
      %v2872 = vrot.slane %v2866, 5
      %v2873 = vrot.slane %v2872, 4
      %v2874 = vrot.slane %v2867, 5
      %v2875 = vsel %vm2871, %v2873, %v2874
      %v2876 = vrot.slane %v2874, 4
      %v2877 = vrot.slane %v2868, 5
      %v2878 = vsel %vm2871, %v2876, %v2877
      %s2881 = scalar_lea.vmem %s418, 8
      %2882 = vst [vmem:[%s2881] sm:$0xf] %v2875
      %2883 = vst [vmem:[%s2881 + $0x4] sm:$0xf] %v2878
      %v2884 = vpack.c.bf16 %v2836, %v2835
      %v2885 = vpack.c.bf16 %v2837, %v2837
      %v2888 = vunpack.c.l.b16 %v2884
      %v2889 = vunpack.c.h.b16 %v2884
      %v2890 = vunpack.c.l.b16 %v2885
      %v2891 = vpack.c.b16 %v2888, %v2888
      %v2892 = vpack.c.b16 %v2889, %v2889
      %v2893 = vpack.c.b16 %v2890, %v2890
      %vm2894 = vcmask 1041408
      %vm2895 = vcmask 1045508
      %vm2896 = vmor %vm2894, %vm2895
      %v2897 = vrot.slane %v2891, 6
      %v2898 = vrot.slane %v2897, 4
      %v2899 = vrot.slane %v2892, 6
      %v2900 = vsel %vm2896, %v2898, %v2899
      %v2901 = vrot.slane %v2899, 4
      %v2902 = vrot.slane %v2893, 6
      %v2903 = vsel %vm2896, %v2901, %v2902
      %s2906 = scalar_lea.vmem %s418, 16
      %2907 = vst [vmem:[%s2906] sm:$0xf] %v2900
      %2908 = vst [vmem:[%s2906 + $0x4] sm:$0xf] %v2903
      %v2909 = vpack.c.bf16 %v2838, %v2837
      %v2910 = vpack.c.bf16 %v2839, %v2839
      %v2913 = vunpack.c.l.b16 %v2909
      %v2914 = vunpack.c.h.b16 %v2909
      %v2915 = vunpack.c.l.b16 %v2910
      %v2916 = vpack.c.b16 %v2913, %v2913
      %v2917 = vpack.c.b16 %v2914, %v2914
      %v2918 = vpack.c.b16 %v2915, %v2915
      %vm2919 = vcmask 1040384
      %vm2920 = vcmask 1044484
      %vm2921 = vmor %vm2919, %vm2920
      %v2922 = vrot.slane %v2916, 7
      %v2923 = vrot.slane %v2922, 4
      %v2924 = vrot.slane %v2917, 7
      %v2925 = vsel %vm2921, %v2923, %v2924
      %v2926 = vrot.slane %v2924, 4
      %v2927 = vrot.slane %v2918, 7
      %v2928 = vsel %vm2921, %v2926, %v2927
      %s2931 = scalar_lea.vmem %s418, 24
      %2932 = vst [vmem:[%s2931] sm:$0xf] %v2925
      %2933 = vst [vmem:[%s2931 + $0x4] sm:$0xf] %v2928
      %v2934 = vpack.c.bf16 %v2841, %v2840
      %v2936 = vunpack.c.l.b16 %v2934
      %v2937 = vunpack.c.h.b16 %v2934
      %v2938 = vpack.c.b16 %v2936, %v2936
      %v2939 = vpack.c.b16 %v2937, %v2937
      %s2942 = scalar_lea.vmem %s418, 32
      %2943 = vst [vmem:[%s2942] sm:$0xf] %v2938
      %2944 = vst [vmem:[%s2942 + $0x4] sm:$0xf] %v2939
      %v2945 = vpack.c.bf16 %v2843, %v2842
      %v2946 = vpack.c.bf16 %v2844, %v2844
      %v2949 = vunpack.c.l.b16 %v2945
      %v2950 = vunpack.c.h.b16 %v2945
      %v2951 = vunpack.c.l.b16 %v2946
      %v2952 = vpack.c.b16 %v2949, %v2949
      %v2953 = vpack.c.b16 %v2950, %v2950
      %v2954 = vpack.c.b16 %v2951, %v2951
      %v2955 = vrot.slane %v2952, 5
      %v2956 = vrot.slane %v2955, 4
      %v2957 = vrot.slane %v2953, 5
      %v2958 = vsel %vm2871, %v2956, %v2957
      %v2959 = vrot.slane %v2957, 4
      %v2960 = vrot.slane %v2954, 5
      %v2961 = vsel %vm2871, %v2959, %v2960
      %s2964 = scalar_lea.vmem %s418, 40
      %2965 = vst [vmem:[%s2964] sm:$0xf] %v2958
      %2966 = vst [vmem:[%s2964 + $0x4] sm:$0xf] %v2961
      %v2967 = vpack.c.bf16 %v2845, %v2844
      %v2968 = vpack.c.bf16 %v2846, %v2846
      %v2971 = vunpack.c.l.b16 %v2967
      %v2972 = vunpack.c.h.b16 %v2967
      %v2973 = vunpack.c.l.b16 %v2968
      %v2974 = vpack.c.b16 %v2971, %v2971
      %v2975 = vpack.c.b16 %v2972, %v2972
      %v2976 = vpack.c.b16 %v2973, %v2973
      %v2977 = vrot.slane %v2974, 6
      %v2978 = vrot.slane %v2977, 4
      %v2979 = vrot.slane %v2975, 6
      %v2980 = vsel %vm2896, %v2978, %v2979
      %v2981 = vrot.slane %v2979, 4
      %v2982 = vrot.slane %v2976, 6
      %v2983 = vsel %vm2896, %v2981, %v2982
      %s2986 = scalar_lea.vmem %s418, 48
      %2987 = vst [vmem:[%s2986] sm:$0xf] %v2980
      %2988 = vst [vmem:[%s2986 + $0x4] sm:$0xf] %v2983
      %v2989 = vpack.c.bf16 %v2847, %v2846
      %v2990 = vpack.c.bf16 %v2848, %v2848
      %v2993 = vunpack.c.l.b16 %v2989
      %v2994 = vunpack.c.h.b16 %v2989
      %v2995 = vunpack.c.l.b16 %v2990
      %v2996 = vpack.c.b16 %v2993, %v2993
      %v2997 = vpack.c.b16 %v2994, %v2994
      %v2998 = vpack.c.b16 %v2995, %v2995
      %v2999 = vrot.slane %v2996, 7
      %v3000 = vrot.slane %v2999, 4
      %v3001 = vrot.slane %v2997, 7
      %v3002 = vsel %vm2921, %v3000, %v3001
      %v3003 = vrot.slane %v3001, 4
      %v3004 = vrot.slane %v2998, 7
      %v3005 = vsel %vm2921, %v3003, %v3004
      %s3008 = scalar_lea.vmem %s418, 56
      %3009 = vst [vmem:[%s3008] sm:$0xf] %v3002
      %3010 = vst [vmem:[%s3008 + $0x4] sm:$0xf] %v3005
      %s3011 = smul.u32 8, %s22
      %p3012 = scmp.lt.s32.totalorder %s21, 1
      %s3013 = scalar_select %p3012, %s21, 1
      %p3014 = scmp.lt.s32.totalorder %s3011, 15
      %s3015 = scalar_select %p3014, %s3011, 15
      %s3016 = smul.addr %s3015, 2
      %s3017 = smul.addr %s3013, 32
      %s3018 = sadd.s32 %s3016, %s3017
      %s3019 = smul.addr %s3018, 4
      %s3020 = scalar_lea.vmem %s6, %s3019
      // Predicated region
      $region53: #{mean_teacher_forward_test.2} parent=43 // pred_check
        %p3021 = pneg %p212
      $region54: #{mean_teacher_forward_test.2} parent=43 // pred_check_branch
        %3023 = sbr.rel (%p3021) target = $region56
      $region55: #{mean_teacher_forward_test.2} parent=43 // pred_region
        %s3024 = smul.u32 8, %s22
      $region56: #{mean_teacher_forward_test.2} parent=43 // pred_fallthru
        _
    $region44: #{mean_teacher_forward_test.2} parent=5 // pred_fallthru
      _
    %p3025 = scmp.le.s32.totalorder 2, %s12
    // Predicated region
    $region57: #{mean_teacher_forward_test.2} parent=5 // pred_check
      %p3026 = pneg %p3025
    $region58: #{mean_teacher_forward_test.2} parent=5 // pred_check_branch
      %3028 = sbr.rel (%p3026) target = $region60
    $region59: #{mean_teacher_forward_test.2} parent=5 // pred_region
      %s3029 = ssub.s32 %s12, 2
      // Predicated region
      $region61: #{mean_teacher_forward_test.2} parent=59 // pred_check
        %p3030 = pneg %p218
      $region62: #{mean_teacher_forward_test.2} parent=59 // pred_check_branch
        %3032 = sbr.rel (%p3030) target = $region64
      $region63: #{mean_teacher_forward_test.2} parent=59 // pred_region
        %s3033 = smul.u32 8, %s24
        %p3034 = scmp.lt.s32.totalorder %s23, 1
        %s3035 = scalar_select %p3034, %s23, 1
        %p3036 = scmp.lt.s32.totalorder %s3033, 15
        %s3037 = scalar_select %p3036, %s3033, 15
        %s3038 = smul.addr %s3037, 2
        %s3039 = smul.addr %s3035, 32
        %s3040 = sadd.s32 %s3038, %s3039
        %s3041 = smul.addr %s3040, 4
        %s3042 = scalar_lea.vmem %s6, %s3041
      $region64: #{mean_teacher_forward_test.2} parent=59 // pred_fallthru
        _
    $region60: #{mean_teacher_forward_test.2} parent=5 // pred_fallthru
      _
  $region6: #{mean_teacher_forward_test.2} parent=0 // loop_footer
    %s16 = sadd.s32 1, %s12
  $region7: #{mean_teacher_forward_test.2} parent=0 // loop_footer_branch
    %11 = sbr.rel target = $region3
  $region8: #{mean_teacher_forward_test.2} parent=0 // loop_exit
    _

// kernel: mean_teacher_forward_test.3
$region0: #{mean_teacher_forward_test.3}
  #allocation0 [shape = 'u32[]', space=smem, size = 0x4, offset = 0x4, fixed_abs, tag = 'smem constant byte address 0x4 - core index']
  #allocation1 [shape = 'u32[144,128]{1,0:T(1,128)}', space=vmem, size = 0x12000, scoped, tag = 'internal scratch']
  #allocation2 [shape = 'bf16[184,128]{1,0:T(8,128)(2,1)}', space=vmem, size = 0xb800, scoped, tag = 'scratch operand']
  %s0 = inlined_call_operand.vmem [shape: bf16[2,16,16,128], index: 0, kind: input, shape index: {}, may-alias: {0,1,2}]
  %s1 = inlined_call_operand.vmem [shape: bf16[2,16,16,128], index: 1, kind: input, shape index: {}, may-alias: {0,1,2}]
  %s2 = inlined_call_operand.vmem [shape: bf16[2,16,16,128], index: 2, kind: input, shape index: {}, may-alias: {0,1,2}]
  %s3 = inlined_call_operand.vmem [shape: bf16[9,128,128], index: 3, kind: input, shape index: {}]
  %s4 = inlined_call_operand.vmem [shape: f32[1,128], index: 4, kind: input, shape index: {}]
  %s5 = inlined_call_operand.vmem [shape: f32[1,128], index: 5, kind: input, shape index: {}]
  %s6 = inlined_call_operand.vmem [shape: bf16[128,128], index: 6, kind: input, shape index: {}]
  %s7 = inlined_call_operand.vmem [shape: f32[1,128], index: 7, kind: input, shape index: {}]
  %s8 = inlined_call_operand.vmem [shape: bf16[128,128], index: 8, kind: input, shape index: {}]
  %s9 = inlined_call_operand.vmem [shape: f32[1,128], index: 9, kind: input, shape index: {}]
  %s10 = inlined_call_operand.vmem [shape: f32[2,16,16,128], index: 10, kind: output, shape index: {}]
  %s11 = sld [smem:[#allocation0]]
  $region81: #{mean_teacher_forward_test.3} parent=0
    _
  %s13 = ssub.s32 1, %s11
  %s14 = scalar_select 0, %s13, %s11
  loop: start=0, step=1, limit=6
  $region2: #{mean_teacher_forward_test.3} parent=0 // loop_pre_header
    _
  $region3: #{mean_teacher_forward_test.3} parent=0 // loop_header
    %s16 = sphi 0, %s20
    %p17 = scmp.ge.s32.totalorder %s16, 6
    %s23 = sphi 0, %s35
    %s24 = sphi 0, %s31
    %s25 = sphi 0, %s23
    %s26 = sphi 0, %s24
    %s27 = sphi 0, %s25
    %s28 = sphi 0, %s26
    %s48 = sphi 0, %s50
    %s51 = sphi 0, %s48
    %s52 = sphi 0, %s51
    %s68 = sphi 0, %s52
    %s76 = sphi 0, %s78
    %s79 = sphi 0, %s76
    %s80 = sphi 0, %s79
    %s96 = sphi 0, %s80
    %s112 = sphi 0, %s114
    %s115 = sphi 0, %s112
    %s116 = sphi 0, %s115
    %s132 = sphi 0, %s116
    %s136 = sphi 0, %s136
    %s138 = sphi 0, %s136
    %s139 = sphi 0, %s138
    %s153 = sphi 0, %s139
    %s157 = sphi 0, %s157
    %s159 = sphi 0, %s157
    %s160 = sphi 0, %s159
    %s174 = sphi 0, %s160
    %s178 = sphi 0, %s178
    %s180 = sphi 0, %s178
    %s181 = sphi 0, %s180
    %s195 = sphi 0, %s181
    %s199 = sphi 0, %s199
    %s201 = sphi 0, %s199
    %s202 = sphi 0, %s201
    %s216 = sphi 0, %s202
    %s220 = sphi 0, %s220
    %s222 = sphi 0, %s220
    %s223 = sphi 0, %s222
    %s237 = sphi 0, %s223
    %s241 = sphi 0, %s241
    %s243 = sphi 0, %s241
    %s244 = sphi 0, %s243
    %s258 = sphi 0, %s244
    %s262 = sphi 0, %s262
    %s264 = sphi 0, %s262
    %s265 = sphi 0, %s264
    %s279 = sphi 0, %s265
    %s287 = sphi 0, %s289
    %s290 = sphi 0, %s287
    %s291 = sphi 0, %s290
    %s307 = sphi 0, %s291
  $region4: #{mean_teacher_forward_test.3} parent=0 // loop_header_branch
    %19 = sbr.rel (%p17) target = $region8
  $region5: #{mean_teacher_forward_test.3} parent=0 // loop_body
    %s21 = ssub.s32 %s16, 1
    %s22 = ssub.s32 %s16, 2
    %s29 = sadd.s32 1, %s24
    %p30 = scmp.ge.s32.totalorder %s29, 2
    %s31 = scalar_select %p30, 0, %s29
    %s32 = sadd.s32 1, %s23
    %s33 = scalar_select %p30, %s32, %s23
    %p34 = scmp.ge.s32.totalorder %s33, 2
    %s35 = scalar_select %p34, 0, %s33
    %s36 = smul.u32 %s24, 8
    %s37 = ssub.s32 %s36, 1
    %p38 = scmp.gt.s32.totalorder %s37, 0
    %s39 = scalar_select %p38, %s37, 0
    %s40 = smul.u32 %s31, 8
    %s41 = ssub.s32 %s40, 1
    %p42 = scmp.gt.s32.totalorder %s41, 0
    %s43 = scalar_select %p42, %s41, 0
    %s44 = ssub.s32 %s23, %s35
    %s45 = ssub.s32 %s39, %s43
    %s46 = sor.u32 %s44, %s45
    %p47 = scmp.eq.s32.totalorder %s46, 0
    %s49 = sadd.s32 %s48, 1
    %s50 = scalar_select %p47, %s48, %s49
    %p53 = pneg %p47
    %p54 = scmp.eq.s32.totalorder %s16, 3
    %p55 = por %p53, %p54
    %p56 = scmp.ne.s32.totalorder %s48, %s51
    %p57 = scmp.eq.s32.totalorder %s16, 0
    %p58 = por %p56, %p57
    %p59 = scmp.ne.s32.totalorder %s48, %s51
    %p60 = scmp.eq.s32.totalorder %s21, 3
    %p61 = por %p59, %p60
    %p62 = scmp.ne.s32.totalorder %s51, %s52
    %p63 = scmp.eq.s32.totalorder %s21, 0
    %p64 = por %p62, %p63
    %p65 = scmp.ne.s32.totalorder %s51, %s52
    %p66 = scmp.eq.s32.totalorder %s22, 3
    %p67 = por %p65, %p66
    %p69 = scmp.ne.s32.totalorder %s52, %s68
    %p70 = scmp.eq.s32.totalorder %s22, 0
    %p71 = por %p69, %p70
    %s72 = ssub.s32 %s23, %s35
    %s73 = ssub.s32 %s24, %s31
    %s74 = sor.u32 %s72, %s73
    %p75 = scmp.eq.s32.totalorder %s74, 0
    %s77 = sadd.s32 %s76, 1
    %s78 = scalar_select %p75, %s76, %s77
    %p81 = pneg %p75
    %p82 = scmp.eq.s32.totalorder %s16, 3
    %p83 = por %p81, %p82
    %p84 = scmp.ne.s32.totalorder %s76, %s79
    %p85 = scmp.eq.s32.totalorder %s16, 0
    %p86 = por %p84, %p85
    %p87 = scmp.ne.s32.totalorder %s76, %s79
    %p88 = scmp.eq.s32.totalorder %s21, 3
    %p89 = por %p87, %p88
    %p90 = scmp.ne.s32.totalorder %s79, %s80
    %p91 = scmp.eq.s32.totalorder %s21, 0
    %p92 = por %p90, %p91
    %p93 = scmp.ne.s32.totalorder %s79, %s80
    %p94 = scmp.eq.s32.totalorder %s22, 3
    %p95 = por %p93, %p94
    %p97 = scmp.ne.s32.totalorder %s80, %s96
    %p98 = scmp.eq.s32.totalorder %s22, 0
    %p99 = por %p97, %p98
    %s100 = smul.u32 %s24, 8
    %s101 = sadd.s32 %s100, 8
    %p102 = scmp.lt.s32.totalorder %s101, 15
    %s103 = scalar_select %p102, %s101, 15
    %s104 = smul.u32 %s31, 8
    %s105 = sadd.s32 %s104, 8
    %p106 = scmp.lt.s32.totalorder %s105, 15
    %s107 = scalar_select %p106, %s105, 15
    %s108 = ssub.s32 %s23, %s35
    %s109 = ssub.s32 %s103, %s107
    %s110 = sor.u32 %s108, %s109
    %p111 = scmp.eq.s32.totalorder %s110, 0
    %s113 = sadd.s32 %s112, 1
    %s114 = scalar_select %p111, %s112, %s113
    %p117 = pneg %p111
    %p118 = scmp.eq.s32.totalorder %s16, 3
    %p119 = por %p117, %p118
    %p120 = scmp.ne.s32.totalorder %s112, %s115
    %p121 = scmp.eq.s32.totalorder %s16, 0
    %p122 = por %p120, %p121
    %p123 = scmp.ne.s32.totalorder %s112, %s115
    %p124 = scmp.eq.s32.totalorder %s21, 3
    %p125 = por %p123, %p124
    %p126 = scmp.ne.s32.totalorder %s115, %s116
    %p127 = scmp.eq.s32.totalorder %s21, 0
    %p128 = por %p126, %p127
    %p129 = scmp.ne.s32.totalorder %s115, %s116
    %p130 = scmp.eq.s32.totalorder %s22, 3
    %p131 = por %p129, %p130
    %p133 = scmp.ne.s32.totalorder %s116, %s132
    %p134 = scmp.eq.s32.totalorder %s22, 0
    %p135 = por %p133, %p134
    %s137 = sadd.s32 %s136, 1
    %p140 = scmp.eq.s32.totalorder %s16, 3
    %p141 = scmp.ne.s32.totalorder %s136, %s138
    %p142 = scmp.eq.s32.totalorder %s16, 0
    %p143 = por %p141, %p142
    %p144 = scmp.ne.s32.totalorder %s136, %s138
    %p145 = scmp.eq.s32.totalorder %s21, 3
    %p146 = por %p144, %p145
    %p147 = scmp.ne.s32.totalorder %s138, %s139
    %p148 = scmp.eq.s32.totalorder %s21, 0
    %p149 = por %p147, %p148
    %p150 = scmp.ne.s32.totalorder %s138, %s139
    %p151 = scmp.eq.s32.totalorder %s22, 3
    %p152 = por %p150, %p151
    %p154 = scmp.ne.s32.totalorder %s139, %s153
    %p155 = scmp.eq.s32.totalorder %s22, 0
    %p156 = por %p154, %p155
    %s158 = sadd.s32 %s157, 1
    %p161 = scmp.eq.s32.totalorder %s16, 3
    %p162 = scmp.ne.s32.totalorder %s157, %s159
    %p163 = scmp.eq.s32.totalorder %s16, 0
    %p164 = por %p162, %p163
    %p165 = scmp.ne.s32.totalorder %s157, %s159
    %p166 = scmp.eq.s32.totalorder %s21, 3
    %p167 = por %p165, %p166
    %p168 = scmp.ne.s32.totalorder %s159, %s160
    %p169 = scmp.eq.s32.totalorder %s21, 0
    %p170 = por %p168, %p169
    %p171 = scmp.ne.s32.totalorder %s159, %s160
    %p172 = scmp.eq.s32.totalorder %s22, 3
    %p173 = por %p171, %p172
    %p175 = scmp.ne.s32.totalorder %s160, %s174
    %p176 = scmp.eq.s32.totalorder %s22, 0
    %p177 = por %p175, %p176
    %s179 = sadd.s32 %s178, 1
    %p182 = scmp.eq.s32.totalorder %s16, 3
    %p183 = scmp.ne.s32.totalorder %s178, %s180
    %p184 = scmp.eq.s32.totalorder %s16, 0
    %p185 = por %p183, %p184
    %p186 = scmp.ne.s32.totalorder %s178, %s180
    %p187 = scmp.eq.s32.totalorder %s21, 3
    %p188 = por %p186, %p187
    %p189 = scmp.ne.s32.totalorder %s180, %s181
    %p190 = scmp.eq.s32.totalorder %s21, 0
    %p191 = por %p189, %p190
    %p192 = scmp.ne.s32.totalorder %s180, %s181
    %p193 = scmp.eq.s32.totalorder %s22, 3
    %p194 = por %p192, %p193
    %p196 = scmp.ne.s32.totalorder %s181, %s195
    %p197 = scmp.eq.s32.totalorder %s22, 0
    %p198 = por %p196, %p197
    %s200 = sadd.s32 %s199, 1
    %p203 = scmp.eq.s32.totalorder %s16, 3
    %p204 = scmp.ne.s32.totalorder %s199, %s201
    %p205 = scmp.eq.s32.totalorder %s16, 0
    %p206 = por %p204, %p205
    %p207 = scmp.ne.s32.totalorder %s199, %s201
    %p208 = scmp.eq.s32.totalorder %s21, 3
    %p209 = por %p207, %p208
    %p210 = scmp.ne.s32.totalorder %s201, %s202
    %p211 = scmp.eq.s32.totalorder %s21, 0
    %p212 = por %p210, %p211
    %p213 = scmp.ne.s32.totalorder %s201, %s202
    %p214 = scmp.eq.s32.totalorder %s22, 3
    %p215 = por %p213, %p214
    %p217 = scmp.ne.s32.totalorder %s202, %s216
    %p218 = scmp.eq.s32.totalorder %s22, 0
    %p219 = por %p217, %p218
    %s221 = sadd.s32 %s220, 1
    %p224 = scmp.eq.s32.totalorder %s16, 3
    %p225 = scmp.ne.s32.totalorder %s220, %s222
    %p226 = scmp.eq.s32.totalorder %s16, 0
    %p227 = por %p225, %p226
    %p228 = scmp.ne.s32.totalorder %s220, %s222
    %p229 = scmp.eq.s32.totalorder %s21, 3
    %p230 = por %p228, %p229
    %p231 = scmp.ne.s32.totalorder %s222, %s223
    %p232 = scmp.eq.s32.totalorder %s21, 0
    %p233 = por %p231, %p232
    %p234 = scmp.ne.s32.totalorder %s222, %s223
    %p235 = scmp.eq.s32.totalorder %s22, 3
    %p236 = por %p234, %p235
    %p238 = scmp.ne.s32.totalorder %s223, %s237
    %p239 = scmp.eq.s32.totalorder %s22, 0
    %p240 = por %p238, %p239
    %s242 = sadd.s32 %s241, 1
    %p245 = scmp.eq.s32.totalorder %s16, 3
    %p246 = scmp.ne.s32.totalorder %s241, %s243
    %p247 = scmp.eq.s32.totalorder %s16, 0
    %p248 = por %p246, %p247
    %p249 = scmp.ne.s32.totalorder %s241, %s243
    %p250 = scmp.eq.s32.totalorder %s21, 3
    %p251 = por %p249, %p250
    %p252 = scmp.ne.s32.totalorder %s243, %s244
    %p253 = scmp.eq.s32.totalorder %s21, 0
    %p254 = por %p252, %p253
    %p255 = scmp.ne.s32.totalorder %s243, %s244
    %p256 = scmp.eq.s32.totalorder %s22, 3
    %p257 = por %p255, %p256
    %p259 = scmp.ne.s32.totalorder %s244, %s258
    %p260 = scmp.eq.s32.totalorder %s22, 0
    %p261 = por %p259, %p260
    %s263 = sadd.s32 %s262, 1
    %p266 = scmp.eq.s32.totalorder %s16, 3
    %p267 = scmp.ne.s32.totalorder %s262, %s264
    %p268 = scmp.eq.s32.totalorder %s16, 0
    %p269 = por %p267, %p268
    %p270 = scmp.ne.s32.totalorder %s262, %s264
    %p271 = scmp.eq.s32.totalorder %s21, 3
    %p272 = por %p270, %p271
    %p273 = scmp.ne.s32.totalorder %s264, %s265
    %p274 = scmp.eq.s32.totalorder %s21, 0
    %p275 = por %p273, %p274
    %p276 = scmp.ne.s32.totalorder %s264, %s265
    %p277 = scmp.eq.s32.totalorder %s22, 3
    %p278 = por %p276, %p277
    %p280 = scmp.ne.s32.totalorder %s265, %s279
    %p281 = scmp.eq.s32.totalorder %s22, 0
    %p282 = por %p280, %p281
    %s283 = ssub.s32 %s23, %s35
    %s284 = ssub.s32 %s24, %s31
    %s285 = sor.u32 %s283, %s284
    %p286 = scmp.eq.s32.totalorder %s285, 0
    %s288 = sadd.s32 %s287, 1
    %s289 = scalar_select %p286, %s287, %s288
    %p292 = pneg %p286
    %p293 = scmp.eq.s32.totalorder %s16, 3
    %p294 = por %p292, %p293
    %p295 = scmp.ne.s32.totalorder %s287, %s290
    %p296 = scmp.eq.s32.totalorder %s16, 0
    %p297 = por %p295, %p296
    %p298 = scmp.ne.s32.totalorder %s287, %s290
    %p299 = scmp.eq.s32.totalorder %s21, 3
    %p300 = por %p298, %p299
    %p301 = scmp.ne.s32.totalorder %s290, %s291
    %p302 = scmp.eq.s32.totalorder %s21, 0
    %p303 = por %p301, %p302
    %p304 = scmp.ne.s32.totalorder %s290, %s291
    %p305 = scmp.eq.s32.totalorder %s22, 3
    %p306 = por %p304, %p305
    %p308 = scmp.ne.s32.totalorder %s291, %s307
    %p309 = scmp.eq.s32.totalorder %s22, 0
    %p310 = por %p308, %p309
    %p311 = scmp.le.s32.totalorder 1, %s16
    %p312 = scmp.lt.s32.totalorder %s16, 5
    %p313 = pnand %p311, %p312
    %p314 = pneg %p313
    // Predicated region
    $region9: #{mean_teacher_forward_test.3} parent=5 // pred_check
      _
    $region10: #{mean_teacher_forward_test.3} parent=5 // pred_check_branch
      %316 = sbr.rel (%p313) target = $region12
    $region11: #{mean_teacher_forward_test.3} parent=5 // pred_region
      %s317 = ssub.s32 %s16, 1
      // Predicated region
      $region13: #{mean_teacher_forward_test.3} parent=11 // pred_check
        %p318 = pneg %p149
      $region14: #{mean_teacher_forward_test.3} parent=11 // pred_check_branch
        %320 = sbr.rel (%p318) target = $region16
      $region15: #{mean_teacher_forward_test.3} parent=11 // pred_region
        _
      $region16: #{mean_teacher_forward_test.3} parent=11 // pred_fallthru
        _
      // Predicated region
      $region17: #{mean_teacher_forward_test.3} parent=11 // pred_check
        %p321 = pneg %p170
      $region18: #{mean_teacher_forward_test.3} parent=11 // pred_check_branch
        %323 = sbr.rel (%p321) target = $region20
      $region19: #{mean_teacher_forward_test.3} parent=11 // pred_region
        _
      $region20: #{mean_teacher_forward_test.3} parent=11 // pred_fallthru
        _
      // Predicated region
      $region21: #{mean_teacher_forward_test.3} parent=11 // pred_check
        %p324 = pneg %p191
      $region22: #{mean_teacher_forward_test.3} parent=11 // pred_check_branch
        %326 = sbr.rel (%p324) target = $region24
      $region23: #{mean_teacher_forward_test.3} parent=11 // pred_region
        _
      $region24: #{mean_teacher_forward_test.3} parent=11 // pred_fallthru
        _
      // Predicated region
      $region25: #{mean_teacher_forward_test.3} parent=11 // pred_check
        %p327 = pneg %p212
      $region26: #{mean_teacher_forward_test.3} parent=11 // pred_check_branch
        %329 = sbr.rel (%p327) target = $region28
      $region27: #{mean_teacher_forward_test.3} parent=11 // pred_region
        _
      $region28: #{mean_teacher_forward_test.3} parent=11 // pred_fallthru
        _
      // Predicated region
      $region29: #{mean_teacher_forward_test.3} parent=11 // pred_check
        %p330 = pneg %p233
      $region30: #{mean_teacher_forward_test.3} parent=11 // pred_check_branch
        %332 = sbr.rel (%p330) target = $region32
      $region31: #{mean_teacher_forward_test.3} parent=11 // pred_region
        _
      $region32: #{mean_teacher_forward_test.3} parent=11 // pred_fallthru
        _
      // Predicated region
      $region33: #{mean_teacher_forward_test.3} parent=11 // pred_check
        %p333 = pneg %p254
      $region34: #{mean_teacher_forward_test.3} parent=11 // pred_check_branch
        %335 = sbr.rel (%p333) target = $region36
      $region35: #{mean_teacher_forward_test.3} parent=11 // pred_region
        _
      $region36: #{mean_teacher_forward_test.3} parent=11 // pred_fallthru
        _
      // Predicated region
      $region37: #{mean_teacher_forward_test.3} parent=11 // pred_check
        %p336 = pneg %p275
      $region38: #{mean_teacher_forward_test.3} parent=11 // pred_check_branch
        %338 = sbr.rel (%p336) target = $region40
      $region39: #{mean_teacher_forward_test.3} parent=11 // pred_region
        _
      $region40: #{mean_teacher_forward_test.3} parent=11 // pred_fallthru
        _
    $region12: #{mean_teacher_forward_test.3} parent=5 // pred_fallthru
      _
    %p339 = scmp.lt.s32.totalorder %s16, 4
    // Predicated region
    $region41: #{mean_teacher_forward_test.3} parent=5 // pred_check
      %p340 = pneg %p339
    $region42: #{mean_teacher_forward_test.3} parent=5 // pred_check_branch
      %342 = sbr.rel (%p340) target = $region44
    $region43: #{mean_teacher_forward_test.3} parent=5 // pred_region
      // Predicated region
      $region45: #{mean_teacher_forward_test.3} parent=43 // pred_check
        %p343 = pneg %p58
      $region46: #{mean_teacher_forward_test.3} parent=43 // pred_check_branch
        %345 = sbr.rel (%p343) target = $region48
      $region47: #{mean_teacher_forward_test.3} parent=43 // pred_region
        %s346 = smul.u32 %s24, 8
        %s347 = ssub.s32 %s346, 1
        %p348 = scmp.gt.s32.totalorder %s347, 0
        %s349 = scalar_select %p348, %s347, 0
        %p350 = scmp.lt.s32.totalorder %s23, 1
        %s351 = scalar_select %p350, %s23, 1
        %p352 = scmp.lt.s32.totalorder %s349, 15
        %s353 = scalar_select %p352, %s349, 15
        %s354 = smul.addr %s353, 2
        %s355 = smul.addr %s351, 32
        %s356 = sadd.s32 %s354, %s355
        %s357 = smul.addr %s356, 4
        %s358 = scalar_lea.vmem %s0, %s357
        %s359 = smul.u32 %s24, 8
        %s360 = ssub.s32 %s359, 1
        %p361 = scmp.gt.s32.totalorder %s360, 0
        %s362 = scalar_select %p361, %s360, 0
      $region48: #{mean_teacher_forward_test.3} parent=43 // pred_fallthru
        _
      // Predicated region
      $region49: #{mean_teacher_forward_test.3} parent=43 // pred_check
        %p363 = pneg %p86
      $region50: #{mean_teacher_forward_test.3} parent=43 // pred_check_branch
        %365 = sbr.rel (%p363) target = $region52
      $region51: #{mean_teacher_forward_test.3} parent=43 // pred_region
        %s366 = smul.u32 8, %s24
        %p367 = scmp.lt.s32.totalorder %s23, 1
        %s368 = scalar_select %p367, %s23, 1
        %p369 = scmp.lt.s32.totalorder %s366, 15
        %s370 = scalar_select %p369, %s366, 15
        %s371 = smul.addr %s370, 2
        %s372 = smul.addr %s368, 32
        %s373 = sadd.s32 %s371, %s372
        %s374 = smul.addr %s373, 4
        %s375 = scalar_lea.vmem %s1, %s374
        %s376 = smul.u32 8, %s24
      $region52: #{mean_teacher_forward_test.3} parent=43 // pred_fallthru
        _
      // Predicated region
      $region53: #{mean_teacher_forward_test.3} parent=43 // pred_check
        %p377 = pneg %p122
      $region54: #{mean_teacher_forward_test.3} parent=43 // pred_check_branch
        %379 = sbr.rel (%p377) target = $region56
      $region55: #{mean_teacher_forward_test.3} parent=43 // pred_region
        %s380 = smul.u32 %s24, 8
        %s381 = sadd.s32 %s380, 8
        %p382 = scmp.lt.s32.totalorder %s381, 15
        %s383 = scalar_select %p382, %s381, 15
        %p384 = scmp.lt.s32.totalorder %s23, 1
        %s385 = scalar_select %p384, %s23, 1
        %p386 = scmp.lt.s32.totalorder %s383, 15
        %s387 = scalar_select %p386, %s383, 15
        %s388 = smul.addr %s387, 2
        %s389 = smul.addr %s385, 32
        %s390 = sadd.s32 %s388, %s389
        %s391 = smul.addr %s390, 4
        %s392 = scalar_lea.vmem %s2, %s391
        %s393 = smul.u32 %s24, 8
        %s394 = sadd.s32 %s393, 8
        %p395 = scmp.lt.s32.totalorder %s394, 15
        %s396 = scalar_select %p395, %s394, 15
      $region56: #{mean_teacher_forward_test.3} parent=43 // pred_fallthru
        _
    $region44: #{mean_teacher_forward_test.3} parent=5 // pred_fallthru
      _
    %p397 = scmp.le.s32.totalorder 1, %s16
    %p398 = scmp.lt.s32.totalorder %s16, 5
    %p399 = pnand %p397, %p398
    %p400 = pneg %p399
    // Predicated region
    $region57: #{mean_teacher_forward_test.3} parent=5 // pred_check
      _
    $region58: #{mean_teacher_forward_test.3} parent=5 // pred_check_branch
      %402 = sbr.rel (%p399) target = $region60
    $region59: #{mean_teacher_forward_test.3} parent=5 // pred_region
      %s403 = ssub.s32 %s16, 1
      %s404 = smul.u32 %s26, 8
      %s405 = ssub.s32 %s404, 1
      %p406 = scmp.gt.s32.totalorder %s405, 0
      %s407 = scalar_select %p406, %s405, 0
      %p408 = scmp.lt.s32.totalorder %s25, 1
      %s409 = scalar_select %p408, %s25, 1
      %p410 = scmp.lt.s32.totalorder %s407, 15
      %s411 = scalar_select %p410, %s407, 15
      %s412 = smul.addr %s411, 2
      %s413 = smul.addr %s409, 32
      %s414 = sadd.s32 %s412, %s413
      %s415 = smul.addr %s414, 4
      %s416 = scalar_lea.vmem %s0, %s415
      %p417 = pneg %p64
      %p418 = pneg %p61
      %s419 = smul.u32 8, %s26
      %p420 = scmp.lt.s32.totalorder %s25, 1
      %s421 = scalar_select %p420, %s25, 1
      %p422 = scmp.lt.s32.totalorder %s419, 15
      %s423 = scalar_select %p422, %s419, 15
      %s424 = smul.addr %s423, 2
      %s425 = smul.addr %s421, 32
      %s426 = sadd.s32 %s424, %s425
      %s427 = smul.addr %s426, 4
      %s428 = scalar_lea.vmem %s1, %s427
      %p429 = pneg %p92
      %p430 = pneg %p89
      %s431 = smul.u32 %s26, 8
      %s432 = sadd.s32 %s431, 8
      %p433 = scmp.lt.s32.totalorder %s432, 15
      %s434 = scalar_select %p433, %s432, 15
      %p435 = scmp.lt.s32.totalorder %s25, 1
      %s436 = scalar_select %p435, %s25, 1
      %p437 = scmp.lt.s32.totalorder %s434, 15
      %s438 = scalar_select %p437, %s434, 15
      %s439 = smul.addr %s438, 2
      %s440 = smul.addr %s436, 32
      %s441 = sadd.s32 %s439, %s440
      %s442 = smul.addr %s441, 4
      %s443 = scalar_lea.vmem %s2, %s442
      %p444 = pneg %p128
      %p445 = pneg %p125
      %p446 = pneg %p149
      %p447 = pneg %p146
      %p448 = pneg %p170
      %p449 = pneg %p167
      %p450 = pneg %p191
      %p451 = pneg %p188
      %p452 = pneg %p212
      %p453 = pneg %p209
      %p454 = pneg %p233
      %p455 = pneg %p230
      %p456 = pneg %p254
      %p457 = pneg %p251
      %p458 = pneg %p275
      %p459 = pneg %p272
      %p460 = pneg %p303
      %p461 = pneg %p300
      %s462 = smul.u32 8, %s26
      %p463 = scmp.lt.s32.totalorder %s25, 1
      %s464 = scalar_select %p463, %s25, 1
      %p465 = scmp.lt.s32.totalorder %s462, 15
      %s466 = scalar_select %p465, %s462, 15
      %s467 = smul.addr %s466, 2
      %s468 = smul.addr %s464, 32
      %s469 = sadd.s32 %s467, %s468
      %s470 = smul.addr %s469, 8
      %s471 = scalar_lea.vmem %s10, %s470
      %s472 = smul.u32 %s26, 8
      %s473 = ssub.s32 %s472, 1
      %p474 = scmp.gt.s32.totalorder %s473, 0
      %s475 = scalar_select %p474, %s473, 0
      %p476 = scmp.lt.s32.totalorder %s25, 1
      %s477 = scalar_select %p476, %s25, 1
      %p478 = scmp.lt.s32.totalorder %s475, 15
      %s479 = scalar_select %p478, %s475, 15
      %s480 = smul.addr %s479, 2
      %s481 = smul.addr %s477, 32
      %s482 = sadd.s32 %s480, %s481
      %s483 = smul.addr %s482, 4
      %s484 = scalar_lea.vmem %s0, %s483
      %s485 = smul.u32 %s26, 8
      %s486 = ssub.s32 %s485, 1
      %p487 = scmp.gt.s32.totalorder %s486, 0
      %s488 = scalar_select %p487, %s486, 0
      %s489 = smul.u32 8, %s26
      %p490 = scmp.lt.s32.totalorder %s25, 1
      %s491 = scalar_select %p490, %s25, 1
      %p492 = scmp.lt.s32.totalorder %s489, 15
      %s493 = scalar_select %p492, %s489, 15
      %s494 = smul.addr %s493, 2
      %s495 = smul.addr %s491, 32
      %s496 = sadd.s32 %s494, %s495
      %s497 = smul.addr %s496, 4
      %s498 = scalar_lea.vmem %s1, %s497
      %s499 = smul.u32 8, %s26
      %s500 = smul.u32 %s26, 8
      %s501 = sadd.s32 %s500, 8
      %p502 = scmp.lt.s32.totalorder %s501, 15
      %s503 = scalar_select %p502, %s501, 15
      %p504 = scmp.lt.s32.totalorder %s25, 1
      %s505 = scalar_select %p504, %s25, 1
      %p506 = scmp.lt.s32.totalorder %s503, 15
      %s507 = scalar_select %p506, %s503, 15
      %s508 = smul.addr %s507, 2
      %s509 = smul.addr %s505, 32
      %s510 = sadd.s32 %s508, %s509
      %s511 = smul.addr %s510, 4
      %s512 = scalar_lea.vmem %s2, %s511
      %s513 = smul.u32 %s26, 8
      %s514 = sadd.s32 %s513, 8
      %p515 = scmp.lt.s32.totalorder %s514, 15
      %s516 = scalar_select %p515, %s514, 15
      %s517 = smul.u32 8, %s26
      %p518 = scmp.lt.s32.totalorder %s25, 1
      %s519 = scalar_select %p518, %s25, 1
      %p520 = scmp.lt.s32.totalorder %s517, 15
      %s521 = scalar_select %p520, %s517, 15
      %s522 = smul.addr %s521, 2
      %s523 = smul.addr %s519, 32
      %s524 = sadd.s32 %s522, %s523
      %s525 = smul.addr %s524, 8
      %s526 = scalar_lea.vmem %s10, %s525
      %s527 = smul.u32 8, %s26
      %v529 = vld [vmem:[%s5] sm:$0x1]
      %v530 = vpack.c.bf16 %v529, %v529
      %v532 = vpack.i.b16 %v530, %v530
      %v534 = vlaneseq
      %v535 = vshrl.u32 %v534, 7
      %v536 = vsub.s32 0, %v535
      %v537 = vrot.slane %v532, %v536
      %v539 = vunpack.c.l.b16 %v537
      %v540 = vpack.c.b16 %v539, %v539
      %542 = vst [vmem:[#allocation2] sm:$0xf] %v540
      %543 = vst [vmem:[#allocation2 + $0x4] sm:$0xf] %v540
      %544 = vst [vmem:[#allocation2 + $0x8] sm:$0xf] %v540
      %545 = vst [vmem:[#allocation2 + $0xc] sm:$0xf] %v540
      %546 = vst [vmem:[#allocation2 + $0x10] sm:$0xf] %v540
      %547 = vst [vmem:[#allocation2 + $0x14] sm:$0xf] %v540
      %548 = vst [vmem:[#allocation2 + $0x18] sm:$0xf] %v540
      %549 = vst [vmem:[#allocation2 + $0x1c] sm:$0xf] %v540
      %550 = vst [vmem:[#allocation2 + $0x20] sm:$0xf] %v540
      %551 = vst [vmem:[#allocation2 + $0x24] sm:$0xf] %v540
      %552 = vst [vmem:[#allocation2 + $0x28] sm:$0xf] %v540
      %553 = vst [vmem:[#allocation2 + $0x2c] sm:$0xf] %v540
      %554 = vst [vmem:[#allocation2 + $0x30] sm:$0xf] %v540
      %555 = vst [vmem:[#allocation2 + $0x34] sm:$0xf] %v540
      %556 = vst [vmem:[#allocation2 + $0x38] sm:$0xf] %v540
      %557 = vst [vmem:[#allocation2 + $0x3c] sm:$0xf] %v540
      %558 = vst [vmem:[#allocation2 + $0x40] sm:$0xf] %v540
      %559 = vst [vmem:[#allocation2 + $0x44] sm:$0xf] %v540
      %560 = vst [vmem:[#allocation2 + $0x48] sm:$0xf] %v540
      %561 = vst [vmem:[#allocation2 + $0x4c] sm:$0xf] %v540
      %562 = vst [vmem:[#allocation2 + $0x50] sm:$0xf] %v540
      %563 = vst [vmem:[#allocation2 + $0x54] sm:$0xf] %v540
      %564 = vst [vmem:[#allocation2 + $0x58] sm:$0xf] %v540
      %p565 = scmp.gt.s32.totalorder %s26, 0
      // Predicated region
      $region61: #{mean_teacher_forward_test.3} parent=59 // pred_check
        %p566 = pneg %p565
      $region62: #{mean_teacher_forward_test.3} parent=59 // pred_check_branch
        %568 = sbr.rel (%p566) target = $region64
      $region63: #{mean_teacher_forward_test.3} parent=59 // pred_region
        %v569 = vld [vmem:[%s484] sm:$0xf]
        %v570 = vld [vmem:[%s484 + $0x4] sm:$0xf]
        %vm571 = vsmask.f32 256
        %vm572 = vsmask.f32 4368
        %vm573 = vmor %vm571, %vm572
        %v575 = vshrl.u32 %v569, 16
        %v577 = vrot.slane %v575, 7
        %v578 = vshll.u32 %v569, 16
        %v580 = vor.u32 %v577, %v578
        %v581 = vrot.slane %v577, 4
        %v583 = vshrl.u32 %v570, 16
        %v585 = vrot.slane %v583, 7
        %v586 = vshll.u32 %v570, 16
        %v588 = vor.u32 %v585, %v586
        %v589 = vsel %vm573, %v581, %v588
        %v590 = vrot.slane %v585, 4
        %vm594 = vcmask 1043456
        %vm595 = vsmask.f32 7938
        %vm596 = vmand %vm594, %vm595
        %v597 = vld [vmem:[#allocation2] sm:$0xf]
        %v598 = vsel %vm596, %v580, %v597
        %599 = vst [vmem:[#allocation2] sm:$0xf] %v598
        %600 = vst [vmem:[#allocation2 + $0x4] sm:$0xf] %v589
        %vm601 = vcmask 1040384
        %vm602 = vmand %vm601, %vm571
        %v603 = vld [vmem:[#allocation2 + $0x8] sm:$0x1]
        %v604 = vsel %vm602, %v590, %v603
        %605 = vst [vmem:[#allocation2 + $0x8] sm:$0x1] %v604
      $region64: #{mean_teacher_forward_test.3} parent=59 // pred_fallthru
        _
      %v606 = vld [vmem:[%s498] sm:$0xf]
      %v607 = vld [vmem:[%s498 + $0x4] sm:$0xf]
      %vm608 = vsmask.f32 1280
      %vm609 = vsmask.f32 5392
      %vm610 = vmor %vm608, %vm609
      %v612 = vshrl.u32 %v606, 16
      %v614 = vrot.slane %v612, 6
      %v615 = vshll.u32 %v606, 16
      %v617 = vrot.slane %v615, 7
      %v618 = vor.u32 %v614, %v617
      %v619 = vrot.slane %v618, 4
      %v621 = vshrl.u32 %v607, 16
      %v623 = vrot.slane %v621, 6
      %v624 = vshll.u32 %v607, 16
      %v626 = vrot.slane %v624, 7
      %v627 = vor.u32 %v623, %v626
      %v628 = vsel %vm610, %v619, %v627
      %v629 = vrot.slane %v627, 4
      %vm633 = vcmask 1043457
      %vm634 = vsmask.f32 7942
      %vm635 = vmand %vm633, %vm634
      %v636 = vld [vmem:[#allocation2 + $0x8] sm:$0xe]
      %v637 = vsel %vm635, %v618, %v636
      %638 = vst [vmem:[#allocation2 + $0x8] sm:$0xe] %v637
      %639 = vst [vmem:[#allocation2 + $0xc] sm:$0xf] %v628
      %vm640 = vcmask 1041408
      %vm641 = vmand %vm640, %vm608
      %v642 = vld [vmem:[#allocation2 + $0x10] sm:$0x3]
      %v643 = vsel %vm641, %v629, %v642
      %644 = vst [vmem:[#allocation2 + $0x10] sm:$0x3] %v643
      %s645 = scalar_lea.vmem %s498, 8
      %v646 = vld [vmem:[%s645] sm:$0xf]
      %v647 = vld [vmem:[%s645 + $0x4] sm:$0xf]
      %vm648 = vsmask.f32 2304
      %vm649 = vsmask.f32 6416
      %vm650 = vmor %vm648, %vm649
      %v652 = vshrl.u32 %v646, 16
      %v654 = vrot.slane %v652, 5
      %v655 = vshll.u32 %v646, 16
      %v657 = vrot.slane %v655, 6
      %v658 = vor.u32 %v654, %v657
      %v659 = vrot.slane %v658, 4
      %v661 = vshrl.u32 %v647, 16
      %v663 = vrot.slane %v661, 5
      %v664 = vshll.u32 %v647, 16
      %v666 = vrot.slane %v664, 6
      %v667 = vor.u32 %v663, %v666
      %v668 = vsel %vm650, %v659, %v667
      %v669 = vrot.slane %v667, 4
      %vm673 = vcmask 1043458
      %vm674 = vsmask.f32 7946
      %vm675 = vmand %vm673, %vm674
      %v676 = vld [vmem:[#allocation2 + $0x10] sm:$0xc]
      %v677 = vsel %vm675, %v658, %v676
      %678 = vst [vmem:[#allocation2 + $0x10] sm:$0xc] %v677
      %679 = vst [vmem:[#allocation2 + $0x14] sm:$0xf] %v668
      %vm680 = vcmask 1042432
      %vm681 = vmand %vm680, %vm648
      %v682 = vld [vmem:[#allocation2 + $0x18] sm:$0x7]
      %v683 = vsel %vm681, %v669, %v682
      %684 = vst [vmem:[#allocation2 + $0x18] sm:$0x7] %v683
      %s685 = scalar_lea.vmem %s498, 16
      %v686 = vld [vmem:[%s685] sm:$0xf]
      %v687 = vld [vmem:[%s685 + $0x4] sm:$0xf]
      %vm688 = vsmask.f32 3328
      %vm689 = vsmask.f32 7440
      %vm690 = vmor %vm688, %vm689
      %v692 = vshll.u32 %v686, 16
      %v694 = vrot.slane %v692, 5
      %v695 = vshrl.u32 %v686, 16
      %v697 = vrot.slane %v695, 4
      %v698 = vor.u32 %v697, %v694
      %v699 = vrot.slane %v698, 4
      %v701 = vshll.u32 %v687, 16
      %v703 = vrot.slane %v701, 5
      %v704 = vsel %vm690, %v699, %v703
      %v705 = vshrl.u32 %v687, 16
      %v707 = vrot.slane %v705, 4
      %v708 = vor.u32 %v707, %v703
      %v709 = vrot.slane %v708, 4
      %vm713 = vcmask 1043459
      %vm714 = vsmask.f32 7950
      %vm715 = vmand %vm713, %vm714
      %v716 = vld [vmem:[#allocation2 + $0x18] sm:$0x8]
      %v717 = vsel %vm715, %v694, %v716
      %718 = vst [vmem:[#allocation2 + $0x18] sm:$0x8] %v717
      %719 = vst [vmem:[#allocation2 + $0x1c] sm:$0xf] %v704
      %vm720 = vcmask 1043456
      %vm721 = vmand %vm720, %vm688
      %v722 = vld [vmem:[#allocation2 + $0x20] sm:$0xf]
      %v723 = vsel %vm721, %v709, %v722
      %724 = vst [vmem:[#allocation2 + $0x20] sm:$0xf] %v723
      %s725 = scalar_lea.vmem %s498, 24
      %v726 = vld [vmem:[%s725] sm:$0xf]
      %v727 = vld [vmem:[%s725 + $0x4] sm:$0xf]
      %vm728 = vsmask.f32 256
      %vm729 = vsmask.f32 4368
      %vm730 = vmor %vm728, %vm729
      %v732 = vshrl.u32 %v726, 16
      %v734 = vrot.slane %v732, 7
      %v735 = vshll.u32 %v726, 16
      %v737 = vor.u32 %v734, %v735
      %v738 = vrot.slane %v734, 4
      %v740 = vshrl.u32 %v727, 16
      %v742 = vrot.slane %v740, 7
      %v743 = vshll.u32 %v727, 16
      %v745 = vor.u32 %v742, %v743
      %v746 = vsel %vm730, %v738, %v745
      %v747 = vrot.slane %v742, 4
      %vm751 = vsmask.f32 7938
      %vm752 = vmand %vm720, %vm751
      %v753 = vld [vmem:[#allocation2 + $0x24] sm:$0xf]
      %v754 = vsel %vm752, %v737, %v753
      %755 = vst [vmem:[#allocation2 + $0x24] sm:$0xf] %v754
      %756 = vst [vmem:[#allocation2 + $0x28] sm:$0xf] %v746
      %vm757 = vcmask 1040384
      %vm758 = vmand %vm757, %vm728
      %v759 = vld [vmem:[#allocation2 + $0x2c] sm:$0x1]
      %v760 = vsel %vm758, %v747, %v759
      %761 = vst [vmem:[#allocation2 + $0x2c] sm:$0x1] %v760
      %s762 = scalar_lea.vmem %s498, 32
      %v763 = vld [vmem:[%s762] sm:$0xf]
      %v764 = vld [vmem:[%s762 + $0x4] sm:$0xf]
      %v766 = vshrl.u32 %v763, 16
      %v768 = vrot.slane %v766, 6
      %v769 = vshll.u32 %v763, 16
      %v771 = vrot.slane %v769, 7
      %v772 = vor.u32 %v768, %v771
      %v773 = vrot.slane %v772, 4
      %v775 = vshrl.u32 %v764, 16
      %v777 = vrot.slane %v775, 6
      %v778 = vshll.u32 %v764, 16
      %v780 = vrot.slane %v778, 7
      %v781 = vor.u32 %v777, %v780
      %v782 = vsel %vm610, %v773, %v781
      %v783 = vrot.slane %v781, 4
      %v787 = vld [vmem:[#allocation2 + $0x2c] sm:$0xe]
      %v788 = vsel %vm635, %v772, %v787
      %789 = vst [vmem:[#allocation2 + $0x2c] sm:$0xe] %v788
      %790 = vst [vmem:[#allocation2 + $0x30] sm:$0xf] %v782
      %v791 = vld [vmem:[#allocation2 + $0x34] sm:$0x3]
      %v792 = vsel %vm641, %v783, %v791
      %793 = vst [vmem:[#allocation2 + $0x34] sm:$0x3] %v792
      %s794 = scalar_lea.vmem %s498, 40
      %v795 = vld [vmem:[%s794] sm:$0xf]
      %v796 = vld [vmem:[%s794 + $0x4] sm:$0xf]
      %v798 = vshrl.u32 %v795, 16
      %v800 = vrot.slane %v798, 5
      %v801 = vshll.u32 %v795, 16
      %v803 = vrot.slane %v801, 6
      %v804 = vor.u32 %v800, %v803
      %v805 = vrot.slane %v804, 4
      %v807 = vshrl.u32 %v796, 16
      %v809 = vrot.slane %v807, 5
      %v810 = vshll.u32 %v796, 16
      %v812 = vrot.slane %v810, 6
      %v813 = vor.u32 %v809, %v812
      %v814 = vsel %vm650, %v805, %v813
      %v815 = vrot.slane %v813, 4
      %v819 = vld [vmem:[#allocation2 + $0x34] sm:$0xc]
      %v820 = vsel %vm675, %v804, %v819
      %821 = vst [vmem:[#allocation2 + $0x34] sm:$0xc] %v820
      %822 = vst [vmem:[#allocation2 + $0x38] sm:$0xf] %v814
      %v823 = vld [vmem:[#allocation2 + $0x3c] sm:$0x7]
      %v824 = vsel %vm681, %v815, %v823
      %825 = vst [vmem:[#allocation2 + $0x3c] sm:$0x7] %v824
      %s826 = scalar_lea.vmem %s498, 48
      %v827 = vld [vmem:[%s826] sm:$0xf]
      %v828 = vld [vmem:[%s826 + $0x4] sm:$0xf]
      %v830 = vshll.u32 %v827, 16
      %v832 = vrot.slane %v830, 5
      %v833 = vshrl.u32 %v827, 16
      %v835 = vrot.slane %v833, 4
      %v836 = vor.u32 %v835, %v832
      %v837 = vrot.slane %v836, 4
      %v839 = vshll.u32 %v828, 16
      %v841 = vrot.slane %v839, 5
      %v842 = vsel %vm690, %v837, %v841
      %v843 = vshrl.u32 %v828, 16
      %v845 = vrot.slane %v843, 4
      %v846 = vor.u32 %v845, %v841
      %v847 = vrot.slane %v846, 4
      %v851 = vld [vmem:[#allocation2 + $0x3c] sm:$0x8]
      %v852 = vsel %vm715, %v832, %v851
      %853 = vst [vmem:[#allocation2 + $0x3c] sm:$0x8] %v852
      %854 = vst [vmem:[#allocation2 + $0x40] sm:$0xf] %v842
      %v855 = vld [vmem:[#allocation2 + $0x44] sm:$0xf]
      %v856 = vsel %vm721, %v847, %v855
      %857 = vst [vmem:[#allocation2 + $0x44] sm:$0xf] %v856
      %s858 = scalar_lea.vmem %s498, 56
      %v859 = vld [vmem:[%s858] sm:$0xf]
      %v860 = vld [vmem:[%s858 + $0x4] sm:$0xf]
      %v862 = vshrl.u32 %v859, 16
      %v864 = vrot.slane %v862, 7
      %v865 = vshll.u32 %v859, 16
      %v867 = vor.u32 %v864, %v865
      %v868 = vrot.slane %v864, 4
      %v870 = vshrl.u32 %v860, 16
      %v872 = vrot.slane %v870, 7
      %v873 = vshll.u32 %v860, 16
      %v875 = vor.u32 %v872, %v873
      %v876 = vsel %vm730, %v868, %v875
      %v877 = vrot.slane %v872, 4
      %v881 = vld [vmem:[#allocation2 + $0x48] sm:$0xf]
      %v882 = vsel %vm752, %v867, %v881
      %883 = vst [vmem:[#allocation2 + $0x48] sm:$0xf] %v882
      %884 = vst [vmem:[#allocation2 + $0x4c] sm:$0xf] %v876
      %v885 = vld [vmem:[#allocation2 + $0x50] sm:$0x1]
      %v886 = vsel %vm758, %v877, %v885
      %887 = vst [vmem:[#allocation2 + $0x50] sm:$0x1] %v886
      %p888 = scmp.lt.s32.totalorder %s26, 1
      // Predicated region
      $region65: #{mean_teacher_forward_test.3} parent=59 // pred_check
        %p889 = pneg %p888
      $region66: #{mean_teacher_forward_test.3} parent=59 // pred_check_branch
        %891 = sbr.rel (%p889) target = $region68
      $region67: #{mean_teacher_forward_test.3} parent=59 // pred_region
        %v892 = vld [vmem:[%s512] sm:$0xf]
        %v893 = vld [vmem:[%s512 + $0x4] sm:$0xf]
        %v895 = vshrl.u32 %v892, 16
        %v897 = vrot.slane %v895, 6
        %v898 = vshll.u32 %v892, 16
        %v900 = vrot.slane %v898, 7
        %v901 = vor.u32 %v897, %v900
        %v902 = vrot.slane %v901, 4
        %v904 = vshrl.u32 %v893, 16
        %v906 = vrot.slane %v904, 6
        %v907 = vshll.u32 %v893, 16
        %v909 = vrot.slane %v907, 7
        %v910 = vor.u32 %v906, %v909
        %v911 = vsel %vm610, %v902, %v910
        %v912 = vrot.slane %v910, 4
        %v916 = vld [vmem:[#allocation2 + $0x50] sm:$0xe]
        %v917 = vsel %vm635, %v901, %v916
        %918 = vst [vmem:[#allocation2 + $0x50] sm:$0xe] %v917
        %919 = vst [vmem:[#allocation2 + $0x54] sm:$0xf] %v911
        %v920 = vld [vmem:[#allocation2 + $0x58] sm:$0x3]
        %v921 = vsel %vm641, %v912, %v920
        %922 = vst [vmem:[#allocation2 + $0x58] sm:$0x3] %v921
      $region68: #{mean_teacher_forward_test.3} parent=59 // pred_fallthru
        _
      %v923 = vld [vmem:[#allocation2] sm:$0xf]
      %v924 = vld [vmem:[#allocation2 + $0x4] sm:$0xf]
      %v925 = vld [vmem:[#allocation2 + $0x8] sm:$0xf]
      %v926 = vld [vmem:[#allocation2 + $0xc] sm:$0xf]
      %v927 = vld [vmem:[#allocation2 + $0x10] sm:$0xf]
      %v928 = vld [vmem:[#allocation2 + $0x14] sm:$0xf]
      %v929 = vld [vmem:[#allocation2 + $0x18] sm:$0xf]
      %v930 = vld [vmem:[#allocation2 + $0x1c] sm:$0xf]
      %v931 = vld [vmem:[#allocation2 + $0x20] sm:$0xf]
      %v932 = vld [vmem:[#allocation2 + $0x24] sm:$0xf]
      %v933 = vld [vmem:[#allocation2 + $0x28] sm:$0xf]
      %v934 = vld [vmem:[#allocation2 + $0x2c] sm:$0xf]
      %v935 = vld [vmem:[#allocation2 + $0x30] sm:$0xf]
      %v936 = vld [vmem:[#allocation2 + $0x34] sm:$0xf]
      %v937 = vld [vmem:[#allocation2 + $0x38] sm:$0xf]
      %v938 = vld [vmem:[#allocation2 + $0x3c] sm:$0xf]
      %v939 = vld [vmem:[#allocation2 + $0x40] sm:$0xf]
      %v940 = vld [vmem:[#allocation2 + $0x44] sm:$0xf]
      %v941 = vld [vmem:[%s3] sm:$0xf]
      %v942 = vld [vmem:[%s3 + $0x4] sm:$0xf]
      %v943 = vld [vmem:[%s3 + $0x8] sm:$0xf]
      %v944 = vld [vmem:[%s3 + $0xc] sm:$0xf]
      %v945 = vld [vmem:[%s3 + $0x10] sm:$0xf]
      %v946 = vld [vmem:[%s3 + $0x14] sm:$0xf]
      %v947 = vld [vmem:[%s3 + $0x18] sm:$0xf]
      %v948 = vld [vmem:[%s3 + $0x1c] sm:$0xf]
      %v949 = vld [vmem:[%s3 + $0x20] sm:$0xf]
      %v950 = vld [vmem:[%s3 + $0x24] sm:$0xf]
      %v951 = vld [vmem:[%s3 + $0x28] sm:$0xf]
      %v952 = vld [vmem:[%s3 + $0x2c] sm:$0xf]
      %v953 = vld [vmem:[%s3 + $0x30] sm:$0xf]
      %v954 = vld [vmem:[%s3 + $0x34] sm:$0xf]
      %v955 = vld [vmem:[%s3 + $0x38] sm:$0xf]
      %v956 = vld [vmem:[%s3 + $0x3c] sm:$0xf]
      %v957 = vld [vmem:[#allocation2 + $0x48] sm:$0x1]
      %s958 = scalar_lea.vmem %s3, 64
      %v959 = vld [vmem:[%s958] sm:$0xf]
      %v960 = vld [vmem:[%s958 + $0x4] sm:$0xf]
      %v961 = vld [vmem:[%s958 + $0x8] sm:$0xf]
      %v962 = vld [vmem:[%s958 + $0xc] sm:$0xf]
      %v963 = vld [vmem:[%s958 + $0x10] sm:$0xf]
      %v964 = vld [vmem:[%s958 + $0x14] sm:$0xf]
      %v965 = vld [vmem:[%s958 + $0x18] sm:$0xf]
      %v966 = vld [vmem:[%s958 + $0x1c] sm:$0xf]
      %v967 = vld [vmem:[%s958 + $0x20] sm:$0xf]
      %v968 = vld [vmem:[%s958 + $0x24] sm:$0xf]
      %v969 = vld [vmem:[%s958 + $0x28] sm:$0xf]
      %v970 = vld [vmem:[%s958 + $0x2c] sm:$0xf]
      %v971 = vld [vmem:[%s958 + $0x30] sm:$0xf]
      %v972 = vld [vmem:[%s958 + $0x34] sm:$0xf]
      %v973 = vld [vmem:[%s958 + $0x38] sm:$0xf]
      %v974 = vld [vmem:[%s958 + $0x3c] sm:$0xf]
      %v994 = vunpack.c.l.b16 %v923
      %v995 = vunpack.c.l.b16 %v924
      %v996 = vunpack.c.l.b16 %v925
      %v997 = vunpack.c.l.b16 %v926
      %v998 = vunpack.c.l.b16 %v927
      %v999 = vunpack.c.l.b16 %v928
      %v1000 = vunpack.c.l.b16 %v929
      %v1001 = vunpack.c.l.b16 %v930
      %v1002 = vunpack.c.l.b16 %v931
      %v1003 = vunpack.c.l.b16 %v932
      %v1004 = vunpack.c.l.b16 %v933
      %v1005 = vunpack.c.l.b16 %v934
      %v1006 = vunpack.c.l.b16 %v935
      %v1007 = vunpack.c.l.b16 %v936
      %v1008 = vunpack.c.l.b16 %v937
      %v1009 = vunpack.c.l.b16 %v938
      %v1010 = vunpack.c.l.b16 %v939
      %v1011 = vunpack.c.l.b16 %v940
      %v1012 = vunpack.c.l.b16 %v957
      %v1013 = vpack.c.b16 %v995, %v994
      %v1014 = vpack.c.b16 %v997, %v996
      %v1015 = vpack.c.b16 %v999, %v998
      %v1016 = vpack.c.b16 %v1001, %v1000
      %v1017 = vpack.c.b16 %v1003, %v1002
      %v1018 = vpack.c.b16 %v1005, %v1004
      %v1019 = vpack.c.b16 %v1007, %v1006
      %v1020 = vpack.c.b16 %v1009, %v1008
      %v1021 = vpack.c.b16 %v1011, %v1010
      %v1022 = vpack.c.b16 %v1012, %v1012
      %vm1023 = vsmask.f32 7424
      %v1025 = vshrl.u32 %v1013, 16
      %v1027 = vshll.u32 %v1013, 16
      %v1029 = vrot.slane %v1027, 1
      %v1030 = vor.u32 %v1025, %v1029
      %v1032 = vshll.u32 %v1014, 16
      %v1034 = vrot.slane %v1032, 1
      %v1035 = vsel %vm1023, %v1030, %v1034
      %v1036 = vshrl.u32 %v1014, 16
      %v1038 = vor.u32 %v1036, %v1034
      %v1040 = vshll.u32 %v1015, 16
      %v1042 = vrot.slane %v1040, 1
      %v1043 = vsel %vm1023, %v1038, %v1042
      %v1044 = vshrl.u32 %v1015, 16
      %v1046 = vor.u32 %v1044, %v1042
      %v1048 = vshll.u32 %v1016, 16
      %v1050 = vrot.slane %v1048, 1
      %v1051 = vsel %vm1023, %v1046, %v1050
      %v1052 = vshrl.u32 %v1016, 16
      %v1054 = vor.u32 %v1052, %v1050
      %v1056 = vshll.u32 %v1017, 16
      %v1058 = vrot.slane %v1056, 1
      %v1059 = vsel %vm1023, %v1054, %v1058
      %v1060 = vshrl.u32 %v1017, 16
      %v1062 = vor.u32 %v1060, %v1058
      %v1064 = vshll.u32 %v1018, 16
      %v1066 = vrot.slane %v1064, 1
      %v1067 = vsel %vm1023, %v1062, %v1066
      %v1068 = vshrl.u32 %v1018, 16
      %v1070 = vor.u32 %v1068, %v1066
      %v1072 = vshll.u32 %v1019, 16
      %v1074 = vrot.slane %v1072, 1
      %v1075 = vsel %vm1023, %v1070, %v1074
      %v1076 = vshrl.u32 %v1019, 16
      %v1078 = vor.u32 %v1076, %v1074
      %v1080 = vshll.u32 %v1020, 16
      %v1082 = vrot.slane %v1080, 1
      %v1083 = vsel %vm1023, %v1078, %v1082
      %v1084 = vshrl.u32 %v1020, 16
      %v1086 = vor.u32 %v1084, %v1082
      %v1088 = vshll.u32 %v1021, 16
      %v1090 = vrot.slane %v1088, 1
      %v1091 = vsel %vm1023, %v1086, %v1090
      %v1092 = vshrl.u32 %v1021, 16
      %v1094 = vor.u32 %v1092, %v1090
      %v1096 = vshll.u32 %v1022, 16
      %v1098 = vrot.slane %v1096, 1
      %v1099 = vsel %vm1023, %v1094, %v1098
      %v1125 = vunpack.c.l.b16 %v959
      %v1126 = vunpack.c.l.b16 %v960
      %v1127 = vunpack.c.l.b16 %v961
      %v1128 = vunpack.c.l.b16 %v962
      %v1129 = vunpack.c.l.b16 %v963
      %v1130 = vunpack.c.l.b16 %v964
      %v1131 = vunpack.c.l.b16 %v965
      %v1132 = vunpack.c.l.b16 %v966
      %v1133 = vunpack.c.l.b16 %v967
      %v1134 = vunpack.c.l.b16 %v968
      %v1135 = vunpack.c.l.b16 %v969
      %v1136 = vunpack.c.l.b16 %v970
      %v1137 = vunpack.c.l.b16 %v971
      %v1138 = vunpack.c.l.b16 %v972
      %v1139 = vunpack.c.l.b16 %v973
      %v1140 = vunpack.c.l.b16 %v974
      %v1141 = vpack.c.b16 %v1126, %v1125
      %v1142 = vpack.c.b16 %v1128, %v1127
      %v1143 = vpack.c.b16 %v1130, %v1129
      %v1144 = vpack.c.b16 %v1132, %v1131
      %v1145 = vpack.c.b16 %v1134, %v1133
      %v1146 = vpack.c.b16 %v1136, %v1135
      %v1147 = vpack.c.b16 %v1138, %v1137
      %v1148 = vpack.c.b16 %v1140, %v1139
      %1157 = vmatprep.subr.bf16.mxu0 0
      %1158 = vmatpush1.bf16.msra.mxu0 %v1141
      %1159 = vmatprep.subr.bf16.mxu0 0
      %1160 = vmatpush1.bf16.msra.mxu0 %v1142
      %1161 = vmatprep.subr.bf16.mxu0 0
      %1162 = vmatpush1.bf16.msra.mxu0 %v1143
      %1163 = vmatprep.subr.bf16.mxu0 0
      %1164 = vmatpush1.bf16.msra.mxu0 %v1144
      %1165 = vmatprep.subr.bf16.mxu0 0
      %1166 = vmatpush1.bf16.msra.mxu0 %v1145
      %1167 = vmatprep.subr.bf16.mxu0 0
      %1168 = vmatpush1.bf16.msra.mxu0 %v1146
      %1169 = vmatprep.subr.bf16.mxu0 0
      %1170 = vmatpush1.bf16.msra.mxu0 %v1147
      %1171 = vmatprep.subr.bf16.mxu0 0
      %1172 = vmatpush1.bf16.msra.mxu0 %v1148
      %1173 = vmatprep.subr.bf16.mxu0 0
      %1174 = vmatpush1.bf16.msra.mxu0 0
      %1175 = vmatprep.subr.bf16.mxu0 0
      %1176 = vmatpush1.bf16.msra.mxu0 0
      %1177 = vmatprep.subr.bf16.mxu0 0
      %1178 = vmatpush1.bf16.msra.mxu0 0
      %1179 = vmatprep.subr.bf16.mxu0 0
      %1180 = vmatpush1.bf16.msra.mxu0 0
      %1181 = vmatprep.subr.bf16.mxu0 0
      %1182 = vmatpush1.bf16.msra.mxu0 0
      %1183 = vmatprep.subr.bf16.mxu0 0
      %1184 = vmatpush1.bf16.msra.mxu0 0
      %1185 = vmatprep.subr.bf16.mxu0 0
      %1186 = vmatpush1.bf16.msra.mxu0 0
      %1187 = vmatprep.subr.bf16.mxu0 0
      %1188 = vmatpush1.bf16.msra.mxu0 0
      %1189 = vmatprep.mubr.bf16.mxu0 0
      %1190 = vmatmul.mubr.bf16.gmra.mrb[0].mxu0 %v1035
      %v1191 = vpop.f32.mrb[0].mxu0
      %v1192 = vadd.f32 0.0, %v1191
      %v1193 = vpop.f32.mrb[0].mxu0
      %v1194 = vpop.f32.mrb[0].mxu0
      %v1195 = vadd.f32 0.0, %v1194
      %v1196 = vpop.f32.mrb[0].mxu0
      %1197 = vmatprep.mubr.bf16.mxu0 0
      %1198 = vmatmul.mubr.bf16.gmra.mrb[0].mxu0 %v1043
      %v1199 = vpop.f32.mrb[0].mxu0
      %v1200 = vadd.f32 0.0, %v1199
      %v1201 = vpop.f32.mrb[0].mxu0
      %v1202 = vpop.f32.mrb[0].mxu0
      %v1203 = vadd.f32 0.0, %v1202
      %v1204 = vpop.f32.mrb[0].mxu0
      %1205 = vmatprep.mubr.bf16.mxu0 0
      %1206 = vmatmul.mubr.bf16.gmra.mrb[0].mxu0 %v1051
      %v1207 = vpop.f32.mrb[0].mxu0
      %v1208 = vadd.f32 0.0, %v1207
      %v1209 = vpop.f32.mrb[0].mxu0
      %v1210 = vpop.f32.mrb[0].mxu0
      %v1211 = vadd.f32 0.0, %v1210
      %v1212 = vpop.f32.mrb[0].mxu0
      %1213 = vmatprep.mubr.bf16.mxu0 0
      %1214 = vmatmul.mubr.bf16.gmra.mrb[0].mxu0 %v1059
      %v1215 = vpop.f32.mrb[0].mxu0
      %v1216 = vadd.f32 0.0, %v1215
      %v1217 = vpop.f32.mrb[0].mxu0
      %v1218 = vpop.f32.mrb[0].mxu0
      %v1219 = vadd.f32 0.0, %v1218
      %v1220 = vpop.f32.mrb[0].mxu0
      %1221 = vmatprep.mubr.bf16.mxu0 0
      %1222 = vmatmul.mubr.bf16.gmra.mrb[0].mxu0 %v1067
      %v1223 = vpop.f32.mrb[0].mxu0
      %v1224 = vadd.f32 0.0, %v1223
      %v1225 = vpop.f32.mrb[0].mxu0
      %v1226 = vpop.f32.mrb[0].mxu0
      %v1227 = vadd.f32 0.0, %v1226
      %v1228 = vpop.f32.mrb[0].mxu0
      %1229 = vmatprep.mubr.bf16.mxu0 0
      %1230 = vmatmul.mubr.bf16.gmra.mrb[0].mxu0 %v1075
      %v1231 = vpop.f32.mrb[0].mxu0
      %v1232 = vadd.f32 0.0, %v1231
      %v1233 = vpop.f32.mrb[0].mxu0
      %v1234 = vpop.f32.mrb[0].mxu0
      %v1235 = vadd.f32 0.0, %v1234
      %v1236 = vpop.f32.mrb[0].mxu0
      %1237 = vmatprep.mubr.bf16.mxu0 0
      %1238 = vmatmul.mubr.bf16.gmra.mrb[0].mxu0 %v1083
      %v1239 = vpop.f32.mrb[0].mxu0
      %v1240 = vadd.f32 0.0, %v1239
      %v1241 = vpop.f32.mrb[0].mxu0
      %v1242 = vpop.f32.mrb[0].mxu0
      %v1243 = vadd.f32 0.0, %v1242
      %v1244 = vpop.f32.mrb[0].mxu0
      %1245 = vmatprep.mubr.bf16.mxu0 0
      %1246 = vmatmul.mubr.bf16.gmra.mrb[0].mxu0 %v1091
      %v1247 = vpop.f32.mrb[0].mxu0
      %v1248 = vadd.f32 0.0, %v1247
      %v1249 = vpop.f32.mrb[0].mxu0
      %v1250 = vpop.f32.mrb[0].mxu0
      %v1251 = vadd.f32 0.0, %v1250
      %v1252 = vpop.f32.mrb[0].mxu0
      %1253 = vmatprep.mubr.bf16.mxu0 0
      %1254 = vmatmul.mubr.bf16.gmra.mrb[0].mxu0 %v1099
      %v1255 = vpop.f32.mrb[0].mxu0
      %v1256 = vadd.f32 0.0, %v1255
      %v1257 = vpop.f32.mrb[0].mxu0
      %v1258 = vpop.f32.mrb[0].mxu0
      %v1259 = vadd.f32 0.0, %v1258
      %v1260 = vpop.f32.mrb[0].mxu0
      %1261 = vdwg.mxu0
      %v1287 = vunpack.c.l.b16 %v941
      %v1288 = vunpack.c.l.b16 %v942
      %v1289 = vunpack.c.l.b16 %v943
      %v1290 = vunpack.c.l.b16 %v944
      %v1291 = vunpack.c.l.b16 %v945
      %v1292 = vunpack.c.l.b16 %v946
      %v1293 = vunpack.c.l.b16 %v947
      %v1294 = vunpack.c.l.b16 %v948
      %v1295 = vunpack.c.l.b16 %v949
      %v1296 = vunpack.c.l.b16 %v950
      %v1297 = vunpack.c.l.b16 %v951
      %v1298 = vunpack.c.l.b16 %v952
      %v1299 = vunpack.c.l.b16 %v953
      %v1300 = vunpack.c.l.b16 %v954
      %v1301 = vunpack.c.l.b16 %v955
      %v1302 = vunpack.c.l.b16 %v956
      %v1303 = vpack.c.b16 %v1288, %v1287
      %v1304 = vpack.c.b16 %v1290, %v1289
      %v1305 = vpack.c.b16 %v1292, %v1291
      %v1306 = vpack.c.b16 %v1294, %v1293
      %v1307 = vpack.c.b16 %v1296, %v1295
      %v1308 = vpack.c.b16 %v1298, %v1297
      %v1309 = vpack.c.b16 %v1300, %v1299
      %v1310 = vpack.c.b16 %v1302, %v1301
      %1319 = vmatprep.subr.bf16.mxu0 0
      %1320 = vmatpush1.bf16.msra.mxu0 %v1303
      %1321 = vmatprep.subr.bf16.mxu0 0
      %1322 = vmatpush1.bf16.msra.mxu0 %v1304
      %1323 = vmatprep.subr.bf16.mxu0 0
      %1324 = vmatpush1.bf16.msra.mxu0 %v1305
      %1325 = vmatprep.subr.bf16.mxu0 0
      %1326 = vmatpush1.bf16.msra.mxu0 %v1306
      %1327 = vmatprep.subr.bf16.mxu0 0
      %1328 = vmatpush1.bf16.msra.mxu0 %v1307
      %1329 = vmatprep.subr.bf16.mxu0 0
      %1330 = vmatpush1.bf16.msra.mxu0 %v1308
      %1331 = vmatprep.subr.bf16.mxu0 0
      %1332 = vmatpush1.bf16.msra.mxu0 %v1309
      %1333 = vmatprep.subr.bf16.mxu0 0
      %1334 = vmatpush1.bf16.msra.mxu0 %v1310
      %1335 = vmatprep.subr.bf16.mxu0 0
      %1336 = vmatpush1.bf16.msra.mxu0 0
      %1337 = vmatprep.subr.bf16.mxu0 0
      %1338 = vmatpush1.bf16.msra.mxu0 0
      %1339 = vmatprep.subr.bf16.mxu0 0
      %1340 = vmatpush1.bf16.msra.mxu0 0
      %1341 = vmatprep.subr.bf16.mxu0 0
      %1342 = vmatpush1.bf16.msra.mxu0 0
      %1343 = vmatprep.subr.bf16.mxu0 0
      %1344 = vmatpush1.bf16.msra.mxu0 0
      %1345 = vmatprep.subr.bf16.mxu0 0
      %1346 = vmatpush1.bf16.msra.mxu0 0
      %1347 = vmatprep.subr.bf16.mxu0 0
      %1348 = vmatpush1.bf16.msra.mxu0 0
      %1349 = vmatprep.subr.bf16.mxu0 0
      %1350 = vmatpush1.bf16.msra.mxu0 0
      %1351 = vmatprep.mubr.bf16.mxu0 0
      %1352 = vmatmul.mubr.bf16.gmra.mrb[0].mxu0 %v1013
      %v1353 = vpop.f32.mrb[0].mxu0
      %v1354 = vadd.f32 %v1192, %v1353
      %v1355 = vpop.f32.mrb[0].mxu0
      %v1356 = vpop.f32.mrb[0].mxu0
      %v1357 = vadd.f32 %v1195, %v1356
      %v1358 = vpop.f32.mrb[0].mxu0
      %1359 = vmatprep.mubr.bf16.mxu0 0
      %1360 = vmatmul.mubr.bf16.gmra.mrb[0].mxu0 %v1014
      %v1361 = vpop.f32.mrb[0].mxu0
      %v1362 = vadd.f32 %v1200, %v1361
      %v1363 = vpop.f32.mrb[0].mxu0
      %v1364 = vpop.f32.mrb[0].mxu0
      %v1365 = vadd.f32 %v1203, %v1364
      %v1366 = vpop.f32.mrb[0].mxu0
      %1367 = vmatprep.mubr.bf16.mxu0 0
      %1368 = vmatmul.mubr.bf16.gmra.mrb[0].mxu0 %v1015
      %v1369 = vpop.f32.mrb[0].mxu0
      %v1370 = vadd.f32 %v1208, %v1369
      %v1371 = vpop.f32.mrb[0].mxu0
      %v1372 = vpop.f32.mrb[0].mxu0
      %v1373 = vadd.f32 %v1211, %v1372
      %v1374 = vpop.f32.mrb[0].mxu0
      %1375 = vmatprep.mubr.bf16.mxu0 0
      %1376 = vmatmul.mubr.bf16.gmra.mrb[0].mxu0 %v1016
      %v1377 = vpop.f32.mrb[0].mxu0
      %v1378 = vadd.f32 %v1216, %v1377
      %v1379 = vpop.f32.mrb[0].mxu0
      %v1380 = vpop.f32.mrb[0].mxu0
      %v1381 = vadd.f32 %v1219, %v1380
      %v1382 = vpop.f32.mrb[0].mxu0
      %1383 = vmatprep.mubr.bf16.mxu0 0
      %1384 = vmatmul.mubr.bf16.gmra.mrb[0].mxu0 %v1017
      %v1385 = vpop.f32.mrb[0].mxu0
      %v1386 = vadd.f32 %v1224, %v1385
      %v1387 = vpop.f32.mrb[0].mxu0
      %v1388 = vpop.f32.mrb[0].mxu0
      %v1389 = vadd.f32 %v1227, %v1388
      %v1390 = vpop.f32.mrb[0].mxu0
      %1391 = vmatprep.mubr.bf16.mxu0 0
      %1392 = vmatmul.mubr.bf16.gmra.mrb[0].mxu0 %v1018
      %v1393 = vpop.f32.mrb[0].mxu0
      %v1394 = vadd.f32 %v1232, %v1393
      %v1395 = vpop.f32.mrb[0].mxu0
      %v1396 = vpop.f32.mrb[0].mxu0
      %v1397 = vadd.f32 %v1235, %v1396
      %v1398 = vpop.f32.mrb[0].mxu0
      %1399 = vmatprep.mubr.bf16.mxu0 0
      %1400 = vmatmul.mubr.bf16.gmra.mrb[0].mxu0 %v1019
      %v1401 = vpop.f32.mrb[0].mxu0
      %v1402 = vadd.f32 %v1240, %v1401
      %v1403 = vpop.f32.mrb[0].mxu0
      %v1404 = vpop.f32.mrb[0].mxu0
      %v1405 = vadd.f32 %v1243, %v1404
      %v1406 = vpop.f32.mrb[0].mxu0
      %1407 = vmatprep.mubr.bf16.mxu0 0
      %1408 = vmatmul.mubr.bf16.gmra.mrb[0].mxu0 %v1020
      %v1409 = vpop.f32.mrb[0].mxu0
      %v1410 = vadd.f32 %v1248, %v1409
      %v1411 = vpop.f32.mrb[0].mxu0
      %v1412 = vpop.f32.mrb[0].mxu0
      %v1413 = vadd.f32 %v1251, %v1412
      %v1414 = vpop.f32.mrb[0].mxu0
      %1415 = vmatprep.mubr.bf16.mxu0 0
      %1416 = vmatmul.mubr.bf16.gmra.mrb[0].mxu0 %v1021
      %v1417 = vpop.f32.mrb[0].mxu0
      %v1418 = vadd.f32 %v1256, %v1417
      %v1419 = vpop.f32.mrb[0].mxu0
      %v1420 = vpop.f32.mrb[0].mxu0
      %v1421 = vadd.f32 %v1259, %v1420
      %v1422 = vpop.f32.mrb[0].mxu0
      %1423 = vdwg.mxu0
      %v1424 = vld [vmem:[#allocation2] sm:$0xe]
      %s1425 = scalar_lea.vmem %s3, 128
      %v1426 = vld [vmem:[%s1425] sm:$0xf]
      %v1427 = vld [vmem:[%s1425 + $0x4] sm:$0xf]
      %v1428 = vld [vmem:[%s1425 + $0x8] sm:$0xf]
      %v1429 = vld [vmem:[%s1425 + $0xc] sm:$0xf]
      %v1430 = vld [vmem:[%s1425 + $0x10] sm:$0xf]
      %v1431 = vld [vmem:[%s1425 + $0x14] sm:$0xf]
      %v1432 = vld [vmem:[%s1425 + $0x18] sm:$0xf]
      %v1433 = vld [vmem:[%s1425 + $0x1c] sm:$0xf]
      %v1434 = vld [vmem:[%s1425 + $0x20] sm:$0xf]
      %v1435 = vld [vmem:[%s1425 + $0x24] sm:$0xf]
      %v1436 = vld [vmem:[%s1425 + $0x28] sm:$0xf]
      %v1437 = vld [vmem:[%s1425 + $0x2c] sm:$0xf]
      %v1438 = vld [vmem:[%s1425 + $0x30] sm:$0xf]
      %v1439 = vld [vmem:[%s1425 + $0x34] sm:$0xf]
      %v1440 = vld [vmem:[%s1425 + $0x38] sm:$0xf]
      %v1441 = vld [vmem:[%s1425 + $0x3c] sm:$0xf]
      %v1443 = vunpack.c.l.b16 %v1424
      %v1444 = vpack.c.b16 %v995, %v1443
      %vm1445 = vcmask 1046528
      %v1446 = vrot.slane %v1444, 1
      %v1447 = vrot.slane %v1014, 1
      %v1448 = vsel %vm1445, %v1446, %v1447
      %v1449 = vrot.slane %v1015, 1
      %v1450 = vsel %vm1445, %v1447, %v1449
      %v1451 = vrot.slane %v1016, 1
      %v1452 = vsel %vm1445, %v1449, %v1451
      %v1453 = vrot.slane %v1017, 1
      %v1454 = vsel %vm1445, %v1451, %v1453
      %v1455 = vrot.slane %v1018, 1
      %v1456 = vsel %vm1445, %v1453, %v1455
      %v1457 = vrot.slane %v1019, 1
      %v1458 = vsel %vm1445, %v1455, %v1457
      %v1459 = vrot.slane %v1020, 1
      %v1460 = vsel %vm1445, %v1457, %v1459
      %v1461 = vrot.slane %v1021, 1
      %v1462 = vsel %vm1445, %v1459, %v1461
      %v1463 = vrot.slane %v1022, 1
      %v1464 = vsel %vm1445, %v1461, %v1463
      %v1490 = vunpack.c.l.b16 %v1426
      %v1491 = vunpack.c.l.b16 %v1427
      %v1492 = vunpack.c.l.b16 %v1428
      %v1493 = vunpack.c.l.b16 %v1429
      %v1494 = vunpack.c.l.b16 %v1430
      %v1495 = vunpack.c.l.b16 %v1431
      %v1496 = vunpack.c.l.b16 %v1432
      %v1497 = vunpack.c.l.b16 %v1433
      %v1498 = vunpack.c.l.b16 %v1434
      %v1499 = vunpack.c.l.b16 %v1435
      %v1500 = vunpack.c.l.b16 %v1436
      %v1501 = vunpack.c.l.b16 %v1437
      %v1502 = vunpack.c.l.b16 %v1438
      %v1503 = vunpack.c.l.b16 %v1439
      %v1504 = vunpack.c.l.b16 %v1440
      %v1505 = vunpack.c.l.b16 %v1441
      %v1506 = vpack.c.b16 %v1491, %v1490
      %v1507 = vpack.c.b16 %v1493, %v1492
      %v1508 = vpack.c.b16 %v1495, %v1494
      %v1509 = vpack.c.b16 %v1497, %v1496
      %v1510 = vpack.c.b16 %v1499, %v1498
      %v1511 = vpack.c.b16 %v1501, %v1500
      %v1512 = vpack.c.b16 %v1503, %v1502
      %v1513 = vpack.c.b16 %v1505, %v1504
      %1522 = vmatprep.subr.bf16.mxu0 0
      %1523 = vmatpush1.bf16.msra.mxu0 %v1506
      %1524 = vmatprep.subr.bf16.mxu0 0
      %1525 = vmatpush1.bf16.msra.mxu0 %v1507
      %1526 = vmatprep.subr.bf16.mxu0 0
      %1527 = vmatpush1.bf16.msra.mxu0 %v1508
      %1528 = vmatprep.subr.bf16.mxu0 0
      %1529 = vmatpush1.bf16.msra.mxu0 %v1509
      %1530 = vmatprep.subr.bf16.mxu0 0
      %1531 = vmatpush1.bf16.msra.mxu0 %v1510
      %1532 = vmatprep.subr.bf16.mxu0 0
      %1533 = vmatpush1.bf16.msra.mxu0 %v1511
      %1534 = vmatprep.subr.bf16.mxu0 0
      %1535 = vmatpush1.bf16.msra.mxu0 %v1512
      %1536 = vmatprep.subr.bf16.mxu0 0
      %1537 = vmatpush1.bf16.msra.mxu0 %v1513
      %1538 = vmatprep.subr.bf16.mxu0 0
      %1539 = vmatpush1.bf16.msra.mxu0 0
      %1540 = vmatprep.subr.bf16.mxu0 0
      %1541 = vmatpush1.bf16.msra.mxu0 0
      %1542 = vmatprep.subr.bf16.mxu0 0
      %1543 = vmatpush1.bf16.msra.mxu0 0
      %1544 = vmatprep.subr.bf16.mxu0 0
      %1545 = vmatpush1.bf16.msra.mxu0 0
      %1546 = vmatprep.subr.bf16.mxu0 0
      %1547 = vmatpush1.bf16.msra.mxu0 0
      %1548 = vmatprep.subr.bf16.mxu0 0
      %1549 = vmatpush1.bf16.msra.mxu0 0
      %1550 = vmatprep.subr.bf16.mxu0 0
      %1551 = vmatpush1.bf16.msra.mxu0 0
      %1552 = vmatprep.subr.bf16.mxu0 0
      %1553 = vmatpush1.bf16.msra.mxu0 0
      %1554 = vmatprep.mubr.bf16.mxu0 0
      %1555 = vmatmul.mubr.bf16.gmra.mrb[0].mxu0 %v1448
      %v1556 = vpop.f32.mrb[0].mxu0
      %v1557 = vadd.f32 0.0, %v1556
      %v1558 = vpop.f32.mrb[0].mxu0
      %v1559 = vpop.f32.mrb[0].mxu0
      %v1560 = vadd.f32 0.0, %v1559
      %v1561 = vpop.f32.mrb[0].mxu0
      %1562 = vmatprep.mubr.bf16.mxu0 0
      %1563 = vmatmul.mubr.bf16.gmra.mrb[0].mxu0 %v1450
      %v1564 = vpop.f32.mrb[0].mxu0
      %v1565 = vadd.f32 0.0, %v1564
      %v1566 = vpop.f32.mrb[0].mxu0
      %v1567 = vpop.f32.mrb[0].mxu0
      %v1568 = vadd.f32 0.0, %v1567
      %v1569 = vpop.f32.mrb[0].mxu0
      %1570 = vmatprep.mubr.bf16.mxu0 0
      %1571 = vmatmul.mubr.bf16.gmra.mrb[0].mxu0 %v1452
      %v1572 = vpop.f32.mrb[0].mxu0
      %v1573 = vadd.f32 0.0, %v1572
      %v1574 = vpop.f32.mrb[0].mxu0
      %v1575 = vpop.f32.mrb[0].mxu0
      %v1576 = vadd.f32 0.0, %v1575
      %v1577 = vpop.f32.mrb[0].mxu0
      %1578 = vmatprep.mubr.bf16.mxu0 0
      %1579 = vmatmul.mubr.bf16.gmra.mrb[0].mxu0 %v1454
      %v1580 = vpop.f32.mrb[0].mxu0
      %v1581 = vadd.f32 0.0, %v1580
      %v1582 = vpop.f32.mrb[0].mxu0
      %v1583 = vpop.f32.mrb[0].mxu0
      %v1584 = vadd.f32 0.0, %v1583
      %v1585 = vpop.f32.mrb[0].mxu0
      %1586 = vmatprep.mubr.bf16.mxu0 0
      %1587 = vmatmul.mubr.bf16.gmra.mrb[0].mxu0 %v1456
      %v1588 = vpop.f32.mrb[0].mxu0
      %v1589 = vadd.f32 0.0, %v1588
      %v1590 = vpop.f32.mrb[0].mxu0
      %v1591 = vpop.f32.mrb[0].mxu0
      %v1592 = vadd.f32 0.0, %v1591
      %v1593 = vpop.f32.mrb[0].mxu0
      %1594 = vmatprep.mubr.bf16.mxu0 0
      %1595 = vmatmul.mubr.bf16.gmra.mrb[0].mxu0 %v1458
      %v1596 = vpop.f32.mrb[0].mxu0
      %v1597 = vadd.f32 0.0, %v1596
      %v1598 = vpop.f32.mrb[0].mxu0
      %v1599 = vpop.f32.mrb[0].mxu0
      %v1600 = vadd.f32 0.0, %v1599
      %v1601 = vpop.f32.mrb[0].mxu0
      %1602 = vmatprep.mubr.bf16.mxu0 0
      %1603 = vmatmul.mubr.bf16.gmra.mrb[0].mxu0 %v1460
      %v1604 = vpop.f32.mrb[0].mxu0
      %v1605 = vadd.f32 0.0, %v1604
      %v1606 = vpop.f32.mrb[0].mxu0
      %v1607 = vpop.f32.mrb[0].mxu0
      %v1608 = vadd.f32 0.0, %v1607
      %v1609 = vpop.f32.mrb[0].mxu0
      %1610 = vmatprep.mubr.bf16.mxu0 0
      %1611 = vmatmul.mubr.bf16.gmra.mrb[0].mxu0 %v1462
      %v1612 = vpop.f32.mrb[0].mxu0
      %v1613 = vadd.f32 0.0, %v1612
      %v1614 = vpop.f32.mrb[0].mxu0
      %v1615 = vpop.f32.mrb[0].mxu0
      %v1616 = vadd.f32 0.0, %v1615
      %v1617 = vpop.f32.mrb[0].mxu0
      %1618 = vmatprep.mubr.bf16.mxu0 0
      %1619 = vmatmul.mubr.bf16.gmra.mrb[0].mxu0 %v1464
      %v1620 = vpop.f32.mrb[0].mxu0
      %v1621 = vadd.f32 0.0, %v1620
      %v1622 = vpop.f32.mrb[0].mxu0
      %v1623 = vpop.f32.mrb[0].mxu0
      %v1624 = vadd.f32 0.0, %v1623
      %v1625 = vpop.f32.mrb[0].mxu0
      %1626 = vdwg.mxu0
      %v1627 = vadd.f32 %v1354, %v1557
      %v1628 = vadd.f32 %v1357, %v1560
      %v1629 = vadd.f32 %v1362, %v1565
      %v1630 = vadd.f32 %v1365, %v1568
      %v1631 = vadd.f32 %v1370, %v1573
      %v1632 = vadd.f32 %v1373, %v1576
      %v1633 = vadd.f32 %v1378, %v1581
      %v1634 = vadd.f32 %v1381, %v1584
      %v1635 = vadd.f32 %v1386, %v1589
      %v1636 = vadd.f32 %v1389, %v1592
      %v1637 = vadd.f32 %v1394, %v1597
      %v1638 = vadd.f32 %v1397, %v1600
      %v1639 = vadd.f32 %v1402, %v1605
      %v1640 = vadd.f32 %v1405, %v1608
      %v1641 = vadd.f32 %v1410, %v1613
      %v1642 = vadd.f32 %v1413, %v1616
      %v1643 = vadd.f32 %v1418, %v1621
      %v1644 = vadd.f32 %v1421, %v1624
      %v1645 = vld [vmem:[#allocation2 + $0x8] sm:$0xe]
      %v1646 = vld [vmem:[#allocation2 + $0xc] sm:$0xf]
      %v1647 = vld [vmem:[#allocation2 + $0x10] sm:$0xf]
      %v1648 = vld [vmem:[#allocation2 + $0x14] sm:$0xf]
      %v1649 = vld [vmem:[#allocation2 + $0x18] sm:$0xf]
      %v1650 = vld [vmem:[#allocation2 + $0x1c] sm:$0xf]
      %v1651 = vld [vmem:[#allocation2 + $0x20] sm:$0xf]
      %v1652 = vld [vmem:[#allocation2 + $0x24] sm:$0xf]
      %v1653 = vld [vmem:[#allocation2 + $0x28] sm:$0xf]
      %v1654 = vld [vmem:[#allocation2 + $0x2c] sm:$0xf]
      %v1655 = vld [vmem:[#allocation2 + $0x30] sm:$0xf]
      %v1656 = vld [vmem:[#allocation2 + $0x34] sm:$0xf]
      %v1657 = vld [vmem:[#allocation2 + $0x38] sm:$0xf]
      %v1658 = vld [vmem:[#allocation2 + $0x3c] sm:$0xf]
      %v1659 = vld [vmem:[#allocation2 + $0x40] sm:$0xf]
      %v1660 = vld [vmem:[#allocation2 + $0x44] sm:$0xf]
      %v1661 = vld [vmem:[#allocation2 + $0x48] sm:$0xf]
      %v1662 = vld [vmem:[#allocation2 + $0x4c] sm:$0xf]
      %v1663 = vld [vmem:[#allocation2 + $0x50] sm:$0x1]
      %s1664 = scalar_lea.vmem %s3, 192
      %v1665 = vld [vmem:[%s1664] sm:$0xf]
      %v1666 = vld [vmem:[%s1664 + $0x4] sm:$0xf]
      %v1667 = vld [vmem:[%s1664 + $0x8] sm:$0xf]
      %v1668 = vld [vmem:[%s1664 + $0xc] sm:$0xf]
      %v1669 = vld [vmem:[%s1664 + $0x10] sm:$0xf]
      %v1670 = vld [vmem:[%s1664 + $0x14] sm:$0xf]
      %v1671 = vld [vmem:[%s1664 + $0x18] sm:$0xf]
      %v1672 = vld [vmem:[%s1664 + $0x1c] sm:$0xf]
      %v1673 = vld [vmem:[%s1664 + $0x20] sm:$0xf]
      %v1674 = vld [vmem:[%s1664 + $0x24] sm:$0xf]
      %v1675 = vld [vmem:[%s1664 + $0x28] sm:$0xf]
      %v1676 = vld [vmem:[%s1664 + $0x2c] sm:$0xf]
      %v1677 = vld [vmem:[%s1664 + $0x30] sm:$0xf]
      %v1678 = vld [vmem:[%s1664 + $0x34] sm:$0xf]
      %v1679 = vld [vmem:[%s1664 + $0x38] sm:$0xf]
      %v1680 = vld [vmem:[%s1664 + $0x3c] sm:$0xf]
      %v1700 = vunpack.c.l.b16 %v1645
      %v1701 = vunpack.c.l.b16 %v1646
      %v1702 = vunpack.c.l.b16 %v1647
      %v1703 = vunpack.c.l.b16 %v1648
      %v1704 = vunpack.c.l.b16 %v1649
      %v1705 = vunpack.c.l.b16 %v1650
      %v1706 = vunpack.c.l.b16 %v1651
      %v1707 = vunpack.c.l.b16 %v1652
      %v1708 = vunpack.c.l.b16 %v1653
      %v1709 = vunpack.c.l.b16 %v1654
      %v1710 = vunpack.c.l.b16 %v1655
      %v1711 = vunpack.c.l.b16 %v1656
      %v1712 = vunpack.c.l.b16 %v1657
      %v1713 = vunpack.c.l.b16 %v1658
      %v1714 = vunpack.c.l.b16 %v1659
      %v1715 = vunpack.c.l.b16 %v1660
      %v1716 = vunpack.c.l.b16 %v1661
      %v1717 = vunpack.c.l.b16 %v1662
      %v1718 = vunpack.c.l.b16 %v1663
      %v1719 = vpack.c.b16 %v1701, %v1700
      %v1720 = vpack.c.b16 %v1703, %v1702
      %v1721 = vpack.c.b16 %v1705, %v1704
      %v1722 = vpack.c.b16 %v1707, %v1706
      %v1723 = vpack.c.b16 %v1709, %v1708
      %v1724 = vpack.c.b16 %v1711, %v1710
      %v1725 = vpack.c.b16 %v1713, %v1712
      %v1726 = vpack.c.b16 %v1715, %v1714
      %v1727 = vpack.c.b16 %v1717, %v1716
      %v1728 = vpack.c.b16 %v1718, %v1718
      %v1729 = vrot.slane %v1719, 1
      %v1730 = vrot.slane %v1720, 1
      %v1731 = vsel %vm1445, %v1729, %v1730
      %v1732 = vrot.slane %v1721, 1
      %v1733 = vsel %vm1445, %v1730, %v1732
      %v1734 = vrot.slane %v1722, 1
      %v1735 = vsel %vm1445, %v1732, %v1734
      %v1736 = vrot.slane %v1723, 1
      %v1737 = vsel %vm1445, %v1734, %v1736
      %v1738 = vrot.slane %v1724, 1
      %v1739 = vsel %vm1445, %v1736, %v1738
      %v1740 = vrot.slane %v1725, 1
      %v1741 = vsel %vm1445, %v1738, %v1740
      %v1742 = vrot.slane %v1726, 1
      %v1743 = vsel %vm1445, %v1740, %v1742
      %v1744 = vrot.slane %v1727, 1
      %v1745 = vsel %vm1445, %v1742, %v1744
      %v1746 = vrot.slane %v1728, 1
      %v1747 = vsel %vm1445, %v1744, %v1746
      %v1773 = vunpack.c.l.b16 %v1665
      %v1774 = vunpack.c.l.b16 %v1666
      %v1775 = vunpack.c.l.b16 %v1667
      %v1776 = vunpack.c.l.b16 %v1668
      %v1777 = vunpack.c.l.b16 %v1669
      %v1778 = vunpack.c.l.b16 %v1670
      %v1779 = vunpack.c.l.b16 %v1671
      %v1780 = vunpack.c.l.b16 %v1672
      %v1781 = vunpack.c.l.b16 %v1673
      %v1782 = vunpack.c.l.b16 %v1674
      %v1783 = vunpack.c.l.b16 %v1675
      %v1784 = vunpack.c.l.b16 %v1676
      %v1785 = vunpack.c.l.b16 %v1677
      %v1786 = vunpack.c.l.b16 %v1678
      %v1787 = vunpack.c.l.b16 %v1679
      %v1788 = vunpack.c.l.b16 %v1680
      %v1789 = vpack.c.b16 %v1774, %v1773
      %v1790 = vpack.c.b16 %v1776, %v1775
      %v1791 = vpack.c.b16 %v1778, %v1777
      %v1792 = vpack.c.b16 %v1780, %v1779
      %v1793 = vpack.c.b16 %v1782, %v1781
      %v1794 = vpack.c.b16 %v1784, %v1783
      %v1795 = vpack.c.b16 %v1786, %v1785
      %v1796 = vpack.c.b16 %v1788, %v1787
      %1805 = vmatprep.subr.bf16.mxu0 0
      %1806 = vmatpush1.bf16.msra.mxu0 %v1789
      %1807 = vmatprep.subr.bf16.mxu0 0
      %1808 = vmatpush1.bf16.msra.mxu0 %v1790
      %1809 = vmatprep.subr.bf16.mxu0 0
      %1810 = vmatpush1.bf16.msra.mxu0 %v1791
      %1811 = vmatprep.subr.bf16.mxu0 0
      %1812 = vmatpush1.bf16.msra.mxu0 %v1792
      %1813 = vmatprep.subr.bf16.mxu0 0
      %1814 = vmatpush1.bf16.msra.mxu0 %v1793
      %1815 = vmatprep.subr.bf16.mxu0 0
      %1816 = vmatpush1.bf16.msra.mxu0 %v1794
      %1817 = vmatprep.subr.bf16.mxu0 0
      %1818 = vmatpush1.bf16.msra.mxu0 %v1795
      %1819 = vmatprep.subr.bf16.mxu0 0
      %1820 = vmatpush1.bf16.msra.mxu0 %v1796
      %1821 = vmatprep.subr.bf16.mxu0 0
      %1822 = vmatpush1.bf16.msra.mxu0 0
      %1823 = vmatprep.subr.bf16.mxu0 0
      %1824 = vmatpush1.bf16.msra.mxu0 0
      %1825 = vmatprep.subr.bf16.mxu0 0
      %1826 = vmatpush1.bf16.msra.mxu0 0
      %1827 = vmatprep.subr.bf16.mxu0 0
      %1828 = vmatpush1.bf16.msra.mxu0 0
      %1829 = vmatprep.subr.bf16.mxu0 0
      %1830 = vmatpush1.bf16.msra.mxu0 0
      %1831 = vmatprep.subr.bf16.mxu0 0
      %1832 = vmatpush1.bf16.msra.mxu0 0
      %1833 = vmatprep.subr.bf16.mxu0 0
      %1834 = vmatpush1.bf16.msra.mxu0 0
      %1835 = vmatprep.subr.bf16.mxu0 0
      %1836 = vmatpush1.bf16.msra.mxu0 0
      %1837 = vmatprep.mubr.bf16.mxu0 0
      %1838 = vmatmul.mubr.bf16.gmra.mrb[0].mxu0 %v1731
      %v1839 = vpop.f32.mrb[0].mxu0
      %v1840 = vadd.f32 0.0, %v1839
      %v1841 = vpop.f32.mrb[0].mxu0
      %v1842 = vpop.f32.mrb[0].mxu0
      %v1843 = vadd.f32 0.0, %v1842
      %v1844 = vpop.f32.mrb[0].mxu0
      %1845 = vmatprep.mubr.bf16.mxu0 0
      %1846 = vmatmul.mubr.bf16.gmra.mrb[0].mxu0 %v1733
      %v1847 = vpop.f32.mrb[0].mxu0
      %v1848 = vadd.f32 0.0, %v1847
      %v1849 = vpop.f32.mrb[0].mxu0
      %v1850 = vpop.f32.mrb[0].mxu0
      %v1851 = vadd.f32 0.0, %v1850
      %v1852 = vpop.f32.mrb[0].mxu0
      %1853 = vmatprep.mubr.bf16.mxu0 0
      %1854 = vmatmul.mubr.bf16.gmra.mrb[0].mxu0 %v1735
      %v1855 = vpop.f32.mrb[0].mxu0
      %v1856 = vadd.f32 0.0, %v1855
      %v1857 = vpop.f32.mrb[0].mxu0
      %v1858 = vpop.f32.mrb[0].mxu0
      %v1859 = vadd.f32 0.0, %v1858
      %v1860 = vpop.f32.mrb[0].mxu0
      %1861 = vmatprep.mubr.bf16.mxu0 0
      %1862 = vmatmul.mubr.bf16.gmra.mrb[0].mxu0 %v1737
      %v1863 = vpop.f32.mrb[0].mxu0
      %v1864 = vadd.f32 0.0, %v1863
      %v1865 = vpop.f32.mrb[0].mxu0
      %v1866 = vpop.f32.mrb[0].mxu0
      %v1867 = vadd.f32 0.0, %v1866
      %v1868 = vpop.f32.mrb[0].mxu0
      %1869 = vmatprep.mubr.bf16.mxu0 0
      %1870 = vmatmul.mubr.bf16.gmra.mrb[0].mxu0 %v1739
      %v1871 = vpop.f32.mrb[0].mxu0
      %v1872 = vadd.f32 0.0, %v1871
      %v1873 = vpop.f32.mrb[0].mxu0
      %v1874 = vpop.f32.mrb[0].mxu0
      %v1875 = vadd.f32 0.0, %v1874
      %v1876 = vpop.f32.mrb[0].mxu0
      %1877 = vmatprep.mubr.bf16.mxu0 0
      %1878 = vmatmul.mubr.bf16.gmra.mrb[0].mxu0 %v1741
      %v1879 = vpop.f32.mrb[0].mxu0
      %v1880 = vadd.f32 0.0, %v1879
      %v1881 = vpop.f32.mrb[0].mxu0
      %v1882 = vpop.f32.mrb[0].mxu0
      %v1883 = vadd.f32 0.0, %v1882
      %v1884 = vpop.f32.mrb[0].mxu0
      %1885 = vmatprep.mubr.bf16.mxu0 0
      %1886 = vmatmul.mubr.bf16.gmra.mrb[0].mxu0 %v1743
      %v1887 = vpop.f32.mrb[0].mxu0
      %v1888 = vadd.f32 0.0, %v1887
      %v1889 = vpop.f32.mrb[0].mxu0
      %v1890 = vpop.f32.mrb[0].mxu0
      %v1891 = vadd.f32 0.0, %v1890
      %v1892 = vpop.f32.mrb[0].mxu0
      %1893 = vmatprep.mubr.bf16.mxu0 0
      %1894 = vmatmul.mubr.bf16.gmra.mrb[0].mxu0 %v1745
      %v1895 = vpop.f32.mrb[0].mxu0
      %v1896 = vadd.f32 0.0, %v1895
      %v1897 = vpop.f32.mrb[0].mxu0
      %v1898 = vpop.f32.mrb[0].mxu0
      %v1899 = vadd.f32 0.0, %v1898
      %v1900 = vpop.f32.mrb[0].mxu0
      %1901 = vmatprep.mubr.bf16.mxu0 0
      %1902 = vmatmul.mubr.bf16.gmra.mrb[0].mxu0 %v1747
      %v1903 = vpop.f32.mrb[0].mxu0
      %v1904 = vadd.f32 0.0, %v1903
      %v1905 = vpop.f32.mrb[0].mxu0
      %v1906 = vpop.f32.mrb[0].mxu0
      %v1907 = vadd.f32 0.0, %v1906
      %v1908 = vpop.f32.mrb[0].mxu0
      %1909 = vdwg.mxu0
      %v1910 = vadd.f32 %v1627, %v1840
      %v1911 = vadd.f32 %v1628, %v1843
      %v1912 = vadd.f32 %v1629, %v1848
      %v1913 = vadd.f32 %v1630, %v1851
      %v1914 = vadd.f32 %v1631, %v1856
      %v1915 = vadd.f32 %v1632, %v1859
      %v1916 = vadd.f32 %v1633, %v1864
      %v1917 = vadd.f32 %v1634, %v1867
      %v1918 = vadd.f32 %v1635, %v1872
      %v1919 = vadd.f32 %v1636, %v1875
      %v1920 = vadd.f32 %v1637, %v1880
      %v1921 = vadd.f32 %v1638, %v1883
      %v1922 = vadd.f32 %v1639, %v1888
      %v1923 = vadd.f32 %v1640, %v1891
      %v1924 = vadd.f32 %v1641, %v1896
      %v1925 = vadd.f32 %v1642, %v1899
      %v1926 = vadd.f32 %v1643, %v1904
      %v1927 = vadd.f32 %v1644, %v1907
      %v1928 = vld [vmem:[#allocation2 + $0x50] sm:$0x3]
      %s1929 = scalar_lea.vmem %s3, 256
      %v1930 = vld [vmem:[%s1929] sm:$0xf]
      %v1931 = vld [vmem:[%s1929 + $0x4] sm:$0xf]
      %v1932 = vld [vmem:[%s1929 + $0x8] sm:$0xf]
      %v1933 = vld [vmem:[%s1929 + $0xc] sm:$0xf]
      %v1934 = vld [vmem:[%s1929 + $0x10] sm:$0xf]
      %v1935 = vld [vmem:[%s1929 + $0x14] sm:$0xf]
      %v1936 = vld [vmem:[%s1929 + $0x18] sm:$0xf]
      %v1937 = vld [vmem:[%s1929 + $0x1c] sm:$0xf]
      %v1938 = vld [vmem:[%s1929 + $0x20] sm:$0xf]
      %v1939 = vld [vmem:[%s1929 + $0x24] sm:$0xf]
      %v1940 = vld [vmem:[%s1929 + $0x28] sm:$0xf]
      %v1941 = vld [vmem:[%s1929 + $0x2c] sm:$0xf]
      %v1942 = vld [vmem:[%s1929 + $0x30] sm:$0xf]
      %v1943 = vld [vmem:[%s1929 + $0x34] sm:$0xf]
      %v1944 = vld [vmem:[%s1929 + $0x38] sm:$0xf]
      %v1945 = vld [vmem:[%s1929 + $0x3c] sm:$0xf]
      %v1947 = vunpack.c.l.b16 %v1928
      %v1948 = vpack.c.b16 %v1947, %v1947
      %vm1949 = vsmask.f32 6400
      %v1951 = vshrl.u32 %v1719, 16
      %v1953 = vrot.slane %v1951, 1
      %v1954 = vshll.u32 %v1719, 16
      %v1956 = vrot.slane %v1954, 2
      %v1957 = vor.u32 %v1953, %v1956
      %v1959 = vshrl.u32 %v1720, 16
      %v1961 = vrot.slane %v1959, 1
      %v1962 = vshll.u32 %v1720, 16
      %v1964 = vrot.slane %v1962, 2
      %v1965 = vor.u32 %v1961, %v1964
      %v1966 = vsel %vm1949, %v1957, %v1965
      %v1968 = vshrl.u32 %v1721, 16
      %v1970 = vrot.slane %v1968, 1
      %v1971 = vshll.u32 %v1721, 16
      %v1973 = vrot.slane %v1971, 2
      %v1974 = vor.u32 %v1970, %v1973
      %v1975 = vsel %vm1949, %v1965, %v1974
      %v1977 = vshrl.u32 %v1722, 16
      %v1979 = vrot.slane %v1977, 1
      %v1980 = vshll.u32 %v1722, 16
      %v1982 = vrot.slane %v1980, 2
      %v1983 = vor.u32 %v1979, %v1982
      %v1984 = vsel %vm1949, %v1974, %v1983
      %v1986 = vshrl.u32 %v1723, 16
      %v1988 = vrot.slane %v1986, 1
      %v1989 = vshll.u32 %v1723, 16
      %v1991 = vrot.slane %v1989, 2
      %v1992 = vor.u32 %v1988, %v1991
      %v1993 = vsel %vm1949, %v1983, %v1992
      %v1995 = vshrl.u32 %v1724, 16
      %v1997 = vrot.slane %v1995, 1
      %v1998 = vshll.u32 %v1724, 16
      %v2000 = vrot.slane %v1998, 2
      %v2001 = vor.u32 %v1997, %v2000
      %v2002 = vsel %vm1949, %v1992, %v2001
      %v2004 = vshrl.u32 %v1725, 16
      %v2006 = vrot.slane %v2004, 1
      %v2007 = vshll.u32 %v1725, 16
      %v2009 = vrot.slane %v2007, 2
      %v2010 = vor.u32 %v2006, %v2009
      %v2011 = vsel %vm1949, %v2001, %v2010
      %v2013 = vshrl.u32 %v1726, 16
      %v2015 = vrot.slane %v2013, 1
      %v2016 = vshll.u32 %v1726, 16
      %v2018 = vrot.slane %v2016, 2
      %v2019 = vor.u32 %v2015, %v2018
      %v2020 = vsel %vm1949, %v2010, %v2019
      %v2022 = vshrl.u32 %v1727, 16
      %v2024 = vrot.slane %v2022, 1
      %v2025 = vshll.u32 %v1727, 16
      %v2027 = vrot.slane %v2025, 2
      %v2028 = vor.u32 %v2024, %v2027
      %v2029 = vsel %vm1949, %v2019, %v2028
      %v2031 = vshrl.u32 %v1948, 16
      %v2033 = vrot.slane %v2031, 1
      %v2034 = vshll.u32 %v1948, 16
      %v2036 = vrot.slane %v2034, 2
      %v2037 = vor.u32 %v2033, %v2036
      %v2038 = vsel %vm1949, %v2028, %v2037
      %v2064 = vunpack.c.l.b16 %v1930
      %v2065 = vunpack.c.l.b16 %v1931
      %v2066 = vunpack.c.l.b16 %v1932
      %v2067 = vunpack.c.l.b16 %v1933
      %v2068 = vunpack.c.l.b16 %v1934
      %v2069 = vunpack.c.l.b16 %v1935
      %v2070 = vunpack.c.l.b16 %v1936
      %v2071 = vunpack.c.l.b16 %v1937
      %v2072 = vunpack.c.l.b16 %v1938
      %v2073 = vunpack.c.l.b16 %v1939
      %v2074 = vunpack.c.l.b16 %v1940
      %v2075 = vunpack.c.l.b16 %v1941
      %v2076 = vunpack.c.l.b16 %v1942
      %v2077 = vunpack.c.l.b16 %v1943
      %v2078 = vunpack.c.l.b16 %v1944
      %v2079 = vunpack.c.l.b16 %v1945
      %v2080 = vpack.c.b16 %v2065, %v2064
      %v2081 = vpack.c.b16 %v2067, %v2066
      %v2082 = vpack.c.b16 %v2069, %v2068
      %v2083 = vpack.c.b16 %v2071, %v2070
      %v2084 = vpack.c.b16 %v2073, %v2072
      %v2085 = vpack.c.b16 %v2075, %v2074
      %v2086 = vpack.c.b16 %v2077, %v2076
      %v2087 = vpack.c.b16 %v2079, %v2078
      %2096 = vmatprep.subr.bf16.mxu0 0
      %2097 = vmatpush1.bf16.msra.mxu0 %v2080
      %2098 = vmatprep.subr.bf16.mxu0 0
      %2099 = vmatpush1.bf16.msra.mxu0 %v2081
      %2100 = vmatprep.subr.bf16.mxu0 0
      %2101 = vmatpush1.bf16.msra.mxu0 %v2082
      %2102 = vmatprep.subr.bf16.mxu0 0
      %2103 = vmatpush1.bf16.msra.mxu0 %v2083
      %2104 = vmatprep.subr.bf16.mxu0 0
      %2105 = vmatpush1.bf16.msra.mxu0 %v2084
      %2106 = vmatprep.subr.bf16.mxu0 0
      %2107 = vmatpush1.bf16.msra.mxu0 %v2085
      %2108 = vmatprep.subr.bf16.mxu0 0
      %2109 = vmatpush1.bf16.msra.mxu0 %v2086
      %2110 = vmatprep.subr.bf16.mxu0 0
      %2111 = vmatpush1.bf16.msra.mxu0 %v2087
      %2112 = vmatprep.subr.bf16.mxu0 0
      %2113 = vmatpush1.bf16.msra.mxu0 0
      %2114 = vmatprep.subr.bf16.mxu0 0
      %2115 = vmatpush1.bf16.msra.mxu0 0
      %2116 = vmatprep.subr.bf16.mxu0 0
      %2117 = vmatpush1.bf16.msra.mxu0 0
      %2118 = vmatprep.subr.bf16.mxu0 0
      %2119 = vmatpush1.bf16.msra.mxu0 0
      %2120 = vmatprep.subr.bf16.mxu0 0
      %2121 = vmatpush1.bf16.msra.mxu0 0
      %2122 = vmatprep.subr.bf16.mxu0 0
      %2123 = vmatpush1.bf16.msra.mxu0 0
      %2124 = vmatprep.subr.bf16.mxu0 0
      %2125 = vmatpush1.bf16.msra.mxu0 0
      %2126 = vmatprep.subr.bf16.mxu0 0
      %2127 = vmatpush1.bf16.msra.mxu0 0
      %2128 = vmatprep.mubr.bf16.mxu0 0
      %2129 = vmatmul.mubr.bf16.gmra.mrb[0].mxu0 %v1966
      %v2130 = vpop.f32.mrb[0].mxu0
      %v2131 = vadd.f32 0.0, %v2130
      %v2132 = vpop.f32.mrb[0].mxu0
      %v2133 = vpop.f32.mrb[0].mxu0
      %v2134 = vadd.f32 0.0, %v2133
      %v2135 = vpop.f32.mrb[0].mxu0
      %2136 = vmatprep.mubr.bf16.mxu0 0
      %2137 = vmatmul.mubr.bf16.gmra.mrb[0].mxu0 %v1975
      %v2138 = vpop.f32.mrb[0].mxu0
      %v2139 = vadd.f32 0.0, %v2138
      %v2140 = vpop.f32.mrb[0].mxu0
      %v2141 = vpop.f32.mrb[0].mxu0
      %v2142 = vadd.f32 0.0, %v2141
      %v2143 = vpop.f32.mrb[0].mxu0
      %2144 = vmatprep.mubr.bf16.mxu0 0
      %2145 = vmatmul.mubr.bf16.gmra.mrb[0].mxu0 %v1984
      %v2146 = vpop.f32.mrb[0].mxu0
      %v2147 = vadd.f32 0.0, %v2146
      %v2148 = vpop.f32.mrb[0].mxu0
      %v2149 = vpop.f32.mrb[0].mxu0
      %v2150 = vadd.f32 0.0, %v2149
      %v2151 = vpop.f32.mrb[0].mxu0
      %2152 = vmatprep.mubr.bf16.mxu0 0
      %2153 = vmatmul.mubr.bf16.gmra.mrb[0].mxu0 %v1993
      %v2154 = vpop.f32.mrb[0].mxu0
      %v2155 = vadd.f32 0.0, %v2154
      %v2156 = vpop.f32.mrb[0].mxu0
      %v2157 = vpop.f32.mrb[0].mxu0
      %v2158 = vadd.f32 0.0, %v2157
      %v2159 = vpop.f32.mrb[0].mxu0
      %2160 = vmatprep.mubr.bf16.mxu0 0
      %2161 = vmatmul.mubr.bf16.gmra.mrb[0].mxu0 %v2002
      %v2162 = vpop.f32.mrb[0].mxu0
      %v2163 = vadd.f32 0.0, %v2162
      %v2164 = vpop.f32.mrb[0].mxu0
      %v2165 = vpop.f32.mrb[0].mxu0
      %v2166 = vadd.f32 0.0, %v2165
      %v2167 = vpop.f32.mrb[0].mxu0
      %2168 = vmatprep.mubr.bf16.mxu0 0
      %2169 = vmatmul.mubr.bf16.gmra.mrb[0].mxu0 %v2011
      %v2170 = vpop.f32.mrb[0].mxu0
      %v2171 = vadd.f32 0.0, %v2170
      %v2172 = vpop.f32.mrb[0].mxu0
      %v2173 = vpop.f32.mrb[0].mxu0
      %v2174 = vadd.f32 0.0, %v2173
      %v2175 = vpop.f32.mrb[0].mxu0
      %2176 = vmatprep.mubr.bf16.mxu0 0
      %2177 = vmatmul.mubr.bf16.gmra.mrb[0].mxu0 %v2020
      %v2178 = vpop.f32.mrb[0].mxu0
      %v2179 = vadd.f32 0.0, %v2178
      %v2180 = vpop.f32.mrb[0].mxu0
      %v2181 = vpop.f32.mrb[0].mxu0
      %v2182 = vadd.f32 0.0, %v2181
      %v2183 = vpop.f32.mrb[0].mxu0
      %2184 = vmatprep.mubr.bf16.mxu0 0
      %2185 = vmatmul.mubr.bf16.gmra.mrb[0].mxu0 %v2029
      %v2186 = vpop.f32.mrb[0].mxu0
      %v2187 = vadd.f32 0.0, %v2186
      %v2188 = vpop.f32.mrb[0].mxu0
      %v2189 = vpop.f32.mrb[0].mxu0
      %v2190 = vadd.f32 0.0, %v2189
      %v2191 = vpop.f32.mrb[0].mxu0
      %2192 = vmatprep.mubr.bf16.mxu0 0
      %2193 = vmatmul.mubr.bf16.gmra.mrb[0].mxu0 %v2038
      %v2194 = vpop.f32.mrb[0].mxu0
      %v2195 = vadd.f32 0.0, %v2194
      %v2196 = vpop.f32.mrb[0].mxu0
      %v2197 = vpop.f32.mrb[0].mxu0
      %v2198 = vadd.f32 0.0, %v2197
      %v2199 = vpop.f32.mrb[0].mxu0
      %2200 = vdwg.mxu0
      %v2201 = vadd.f32 %v1910, %v2131
      %v2202 = vadd.f32 %v1911, %v2134
      %v2203 = vadd.f32 %v1912, %v2139
      %v2204 = vadd.f32 %v1913, %v2142
      %v2205 = vadd.f32 %v1914, %v2147
      %v2206 = vadd.f32 %v1915, %v2150
      %v2207 = vadd.f32 %v1916, %v2155
      %v2208 = vadd.f32 %v1917, %v2158
      %v2209 = vadd.f32 %v1918, %v2163
      %v2210 = vadd.f32 %v1919, %v2166
      %v2211 = vadd.f32 %v1920, %v2171
      %v2212 = vadd.f32 %v1921, %v2174
      %v2213 = vadd.f32 %v1922, %v2179
      %v2214 = vadd.f32 %v1923, %v2182
      %v2215 = vadd.f32 %v1924, %v2187
      %v2216 = vadd.f32 %v1925, %v2190
      %v2217 = vadd.f32 %v1926, %v2195
      %v2218 = vadd.f32 %v1927, %v2198
      %v2219 = vld [vmem:[#allocation2 + $0x8] sm:$0xc]
      %s2220 = scalar_lea.vmem %s3, 320
      %v2221 = vld [vmem:[%s2220] sm:$0xf]
      %v2222 = vld [vmem:[%s2220 + $0x4] sm:$0xf]
      %v2223 = vld [vmem:[%s2220 + $0x8] sm:$0xf]
      %v2224 = vld [vmem:[%s2220 + $0xc] sm:$0xf]
      %v2225 = vld [vmem:[%s2220 + $0x10] sm:$0xf]
      %v2226 = vld [vmem:[%s2220 + $0x14] sm:$0xf]
      %v2227 = vld [vmem:[%s2220 + $0x18] sm:$0xf]
      %v2228 = vld [vmem:[%s2220 + $0x1c] sm:$0xf]
      %v2229 = vld [vmem:[%s2220 + $0x20] sm:$0xf]
      %v2230 = vld [vmem:[%s2220 + $0x24] sm:$0xf]
      %v2231 = vld [vmem:[%s2220 + $0x28] sm:$0xf]
      %v2232 = vld [vmem:[%s2220 + $0x2c] sm:$0xf]
      %v2233 = vld [vmem:[%s2220 + $0x30] sm:$0xf]
      %v2234 = vld [vmem:[%s2220 + $0x34] sm:$0xf]
      %v2235 = vld [vmem:[%s2220 + $0x38] sm:$0xf]
      %v2236 = vld [vmem:[%s2220 + $0x3c] sm:$0xf]
      %v2238 = vunpack.c.l.b16 %v2219
      %v2239 = vpack.c.b16 %v1701, %v2238
      %vm2240 = vcmask 1045504
      %v2241 = vrot.slane %v2239, 2
      %v2242 = vrot.slane %v1720, 2
      %v2243 = vsel %vm2240, %v2241, %v2242
      %v2244 = vrot.slane %v1721, 2
      %v2245 = vsel %vm2240, %v2242, %v2244
      %v2246 = vrot.slane %v1722, 2
      %v2247 = vsel %vm2240, %v2244, %v2246
      %v2248 = vrot.slane %v1723, 2
      %v2249 = vsel %vm2240, %v2246, %v2248
      %v2250 = vrot.slane %v1724, 2
      %v2251 = vsel %vm2240, %v2248, %v2250
      %v2252 = vrot.slane %v1725, 2
      %v2253 = vsel %vm2240, %v2250, %v2252
      %v2254 = vrot.slane %v1726, 2
      %v2255 = vsel %vm2240, %v2252, %v2254
      %v2256 = vrot.slane %v1727, 2
      %v2257 = vsel %vm2240, %v2254, %v2256
      %v2258 = vrot.slane %v1948, 2
      %v2259 = vsel %vm2240, %v2256, %v2258
      %v2285 = vunpack.c.l.b16 %v2221
      %v2286 = vunpack.c.l.b16 %v2222
      %v2287 = vunpack.c.l.b16 %v2223
      %v2288 = vunpack.c.l.b16 %v2224
      %v2289 = vunpack.c.l.b16 %v2225
      %v2290 = vunpack.c.l.b16 %v2226
      %v2291 = vunpack.c.l.b16 %v2227
      %v2292 = vunpack.c.l.b16 %v2228
      %v2293 = vunpack.c.l.b16 %v2229
      %v2294 = vunpack.c.l.b16 %v2230
      %v2295 = vunpack.c.l.b16 %v2231
      %v2296 = vunpack.c.l.b16 %v2232
      %v2297 = vunpack.c.l.b16 %v2233
      %v2298 = vunpack.c.l.b16 %v2234
      %v2299 = vunpack.c.l.b16 %v2235
      %v2300 = vunpack.c.l.b16 %v2236
      %v2301 = vpack.c.b16 %v2286, %v2285
      %v2302 = vpack.c.b16 %v2288, %v2287
      %v2303 = vpack.c.b16 %v2290, %v2289
      %v2304 = vpack.c.b16 %v2292, %v2291
      %v2305 = vpack.c.b16 %v2294, %v2293
      %v2306 = vpack.c.b16 %v2296, %v2295
      %v2307 = vpack.c.b16 %v2298, %v2297
      %v2308 = vpack.c.b16 %v2300, %v2299
      %2317 = vmatprep.subr.bf16.mxu0 0
      %2318 = vmatpush1.bf16.msra.mxu0 %v2301
      %2319 = vmatprep.subr.bf16.mxu0 0
      %2320 = vmatpush1.bf16.msra.mxu0 %v2302
      %2321 = vmatprep.subr.bf16.mxu0 0
      %2322 = vmatpush1.bf16.msra.mxu0 %v2303
      %2323 = vmatprep.subr.bf16.mxu0 0
      %2324 = vmatpush1.bf16.msra.mxu0 %v2304
      %2325 = vmatprep.subr.bf16.mxu0 0
      %2326 = vmatpush1.bf16.msra.mxu0 %v2305
      %2327 = vmatprep.subr.bf16.mxu0 0
      %2328 = vmatpush1.bf16.msra.mxu0 %v2306
      %2329 = vmatprep.subr.bf16.mxu0 0
      %2330 = vmatpush1.bf16.msra.mxu0 %v2307
      %2331 = vmatprep.subr.bf16.mxu0 0
      %2332 = vmatpush1.bf16.msra.mxu0 %v2308
      %2333 = vmatprep.subr.bf16.mxu0 0
      %2334 = vmatpush1.bf16.msra.mxu0 0
      %2335 = vmatprep.subr.bf16.mxu0 0
      %2336 = vmatpush1.bf16.msra.mxu0 0
      %2337 = vmatprep.subr.bf16.mxu0 0
      %2338 = vmatpush1.bf16.msra.mxu0 0
      %2339 = vmatprep.subr.bf16.mxu0 0
      %2340 = vmatpush1.bf16.msra.mxu0 0
      %2341 = vmatprep.subr.bf16.mxu0 0
      %2342 = vmatpush1.bf16.msra.mxu0 0
      %2343 = vmatprep.subr.bf16.mxu0 0
      %2344 = vmatpush1.bf16.msra.mxu0 0
      %2345 = vmatprep.subr.bf16.mxu0 0
      %2346 = vmatpush1.bf16.msra.mxu0 0
      %2347 = vmatprep.subr.bf16.mxu0 0
      %2348 = vmatpush1.bf16.msra.mxu0 0
      %2349 = vmatprep.mubr.bf16.mxu0 0
      %2350 = vmatmul.mubr.bf16.gmra.mrb[0].mxu0 %v2243
      %v2351 = vpop.f32.mrb[0].mxu0
      %v2352 = vadd.f32 0.0, %v2351
      %v2353 = vpop.f32.mrb[0].mxu0
      %v2354 = vpop.f32.mrb[0].mxu0
      %v2355 = vadd.f32 0.0, %v2354
      %v2356 = vpop.f32.mrb[0].mxu0
      %2357 = vmatprep.mubr.bf16.mxu0 0
      %2358 = vmatmul.mubr.bf16.gmra.mrb[0].mxu0 %v2245
      %v2359 = vpop.f32.mrb[0].mxu0
      %v2360 = vadd.f32 0.0, %v2359
      %v2361 = vpop.f32.mrb[0].mxu0
      %v2362 = vpop.f32.mrb[0].mxu0
      %v2363 = vadd.f32 0.0, %v2362
      %v2364 = vpop.f32.mrb[0].mxu0
      %2365 = vmatprep.mubr.bf16.mxu0 0
      %2366 = vmatmul.mubr.bf16.gmra.mrb[0].mxu0 %v2247
      %v2367 = vpop.f32.mrb[0].mxu0
      %v2368 = vadd.f32 0.0, %v2367
      %v2369 = vpop.f32.mrb[0].mxu0
      %v2370 = vpop.f32.mrb[0].mxu0
      %v2371 = vadd.f32 0.0, %v2370
      %v2372 = vpop.f32.mrb[0].mxu0
      %2373 = vmatprep.mubr.bf16.mxu0 0
      %2374 = vmatmul.mubr.bf16.gmra.mrb[0].mxu0 %v2249
      %v2375 = vpop.f32.mrb[0].mxu0
      %v2376 = vadd.f32 0.0, %v2375
      %v2377 = vpop.f32.mrb[0].mxu0
      %v2378 = vpop.f32.mrb[0].mxu0
      %v2379 = vadd.f32 0.0, %v2378
      %v2380 = vpop.f32.mrb[0].mxu0
      %2381 = vmatprep.mubr.bf16.mxu0 0
      %2382 = vmatmul.mubr.bf16.gmra.mrb[0].mxu0 %v2251
      %v2383 = vpop.f32.mrb[0].mxu0
      %v2384 = vadd.f32 0.0, %v2383
      %v2385 = vpop.f32.mrb[0].mxu0
      %v2386 = vpop.f32.mrb[0].mxu0
      %v2387 = vadd.f32 0.0, %v2386
      %v2388 = vpop.f32.mrb[0].mxu0
      %2389 = vmatprep.mubr.bf16.mxu0 0
      %2390 = vmatmul.mubr.bf16.gmra.mrb[0].mxu0 %v2253
      %v2391 = vpop.f32.mrb[0].mxu0
      %v2392 = vadd.f32 0.0, %v2391
      %v2393 = vpop.f32.mrb[0].mxu0
      %v2394 = vpop.f32.mrb[0].mxu0
      %v2395 = vadd.f32 0.0, %v2394
      %v2396 = vpop.f32.mrb[0].mxu0
      %2397 = vmatprep.mubr.bf16.mxu0 0
      %2398 = vmatmul.mubr.bf16.gmra.mrb[0].mxu0 %v2255
      %v2399 = vpop.f32.mrb[0].mxu0
      %v2400 = vadd.f32 0.0, %v2399
      %v2401 = vpop.f32.mrb[0].mxu0
      %v2402 = vpop.f32.mrb[0].mxu0
      %v2403 = vadd.f32 0.0, %v2402
      %v2404 = vpop.f32.mrb[0].mxu0
      %2405 = vmatprep.mubr.bf16.mxu0 0
      %2406 = vmatmul.mubr.bf16.gmra.mrb[0].mxu0 %v2257
      %v2407 = vpop.f32.mrb[0].mxu0
      %v2408 = vadd.f32 0.0, %v2407
      %v2409 = vpop.f32.mrb[0].mxu0
      %v2410 = vpop.f32.mrb[0].mxu0
      %v2411 = vadd.f32 0.0, %v2410
      %v2412 = vpop.f32.mrb[0].mxu0
      %2413 = vmatprep.mubr.bf16.mxu0 0
      %2414 = vmatmul.mubr.bf16.gmra.mrb[0].mxu0 %v2259
      %v2415 = vpop.f32.mrb[0].mxu0
      %v2416 = vadd.f32 0.0, %v2415
      %v2417 = vpop.f32.mrb[0].mxu0
      %v2418 = vpop.f32.mrb[0].mxu0
      %v2419 = vadd.f32 0.0, %v2418
      %v2420 = vpop.f32.mrb[0].mxu0
      %2421 = vdwg.mxu0
      %v2422 = vadd.f32 %v2201, %v2352
      %v2423 = vadd.f32 %v2202, %v2355
      %v2424 = vadd.f32 %v2203, %v2360
      %v2425 = vadd.f32 %v2204, %v2363
      %v2426 = vadd.f32 %v2205, %v2368
      %v2427 = vadd.f32 %v2206, %v2371
      %v2428 = vadd.f32 %v2207, %v2376
      %v2429 = vadd.f32 %v2208, %v2379
      %v2430 = vadd.f32 %v2209, %v2384
      %v2431 = vadd.f32 %v2210, %v2387
      %v2432 = vadd.f32 %v2211, %v2392
      %v2433 = vadd.f32 %v2212, %v2395
      %v2434 = vadd.f32 %v2213, %v2400
      %v2435 = vadd.f32 %v2214, %v2403
      %v2436 = vadd.f32 %v2215, %v2408
      %v2437 = vadd.f32 %v2216, %v2411
      %v2438 = vadd.f32 %v2217, %v2416
      %v2439 = vadd.f32 %v2218, %v2419
      %v2440 = vld [vmem:[#allocation2 + $0x10] sm:$0xc]
      %v2441 = vld [vmem:[#allocation2 + $0x14] sm:$0xf]
      %v2442 = vld [vmem:[#allocation2 + $0x18] sm:$0xf]
      %v2443 = vld [vmem:[#allocation2 + $0x1c] sm:$0xf]
      %v2444 = vld [vmem:[#allocation2 + $0x20] sm:$0xf]
      %v2445 = vld [vmem:[#allocation2 + $0x24] sm:$0xf]
      %v2446 = vld [vmem:[#allocation2 + $0x28] sm:$0xf]
      %v2447 = vld [vmem:[#allocation2 + $0x2c] sm:$0xf]
      %v2448 = vld [vmem:[#allocation2 + $0x30] sm:$0xf]
      %v2449 = vld [vmem:[#allocation2 + $0x34] sm:$0xf]
      %v2450 = vld [vmem:[#allocation2 + $0x38] sm:$0xf]
      %v2451 = vld [vmem:[#allocation2 + $0x3c] sm:$0xf]
      %v2452 = vld [vmem:[#allocation2 + $0x40] sm:$0xf]
      %v2453 = vld [vmem:[#allocation2 + $0x44] sm:$0xf]
      %v2454 = vld [vmem:[#allocation2 + $0x48] sm:$0xf]
      %v2455 = vld [vmem:[#allocation2 + $0x4c] sm:$0xf]
      %v2456 = vld [vmem:[#allocation2 + $0x50] sm:$0xf]
      %v2457 = vld [vmem:[#allocation2 + $0x54] sm:$0xf]
      %v2458 = vld [vmem:[#allocation2 + $0x58] sm:$0x3]
      %s2459 = scalar_lea.vmem %s3, 384
      %v2460 = vld [vmem:[%s2459] sm:$0xf]
      %v2461 = vld [vmem:[%s2459 + $0x4] sm:$0xf]
      %v2462 = vld [vmem:[%s2459 + $0x8] sm:$0xf]
      %v2463 = vld [vmem:[%s2459 + $0xc] sm:$0xf]
      %v2464 = vld [vmem:[%s2459 + $0x10] sm:$0xf]
      %v2465 = vld [vmem:[%s2459 + $0x14] sm:$0xf]
      %v2466 = vld [vmem:[%s2459 + $0x18] sm:$0xf]
      %v2467 = vld [vmem:[%s2459 + $0x1c] sm:$0xf]
      %v2468 = vld [vmem:[%s2459 + $0x20] sm:$0xf]
      %v2469 = vld [vmem:[%s2459 + $0x24] sm:$0xf]
      %v2470 = vld [vmem:[%s2459 + $0x28] sm:$0xf]
      %v2471 = vld [vmem:[%s2459 + $0x2c] sm:$0xf]
      %v2472 = vld [vmem:[%s2459 + $0x30] sm:$0xf]
      %v2473 = vld [vmem:[%s2459 + $0x34] sm:$0xf]
      %v2474 = vld [vmem:[%s2459 + $0x38] sm:$0xf]
      %v2475 = vld [vmem:[%s2459 + $0x3c] sm:$0xf]
      %v2495 = vunpack.c.l.b16 %v2440
      %v2496 = vunpack.c.l.b16 %v2441
      %v2497 = vunpack.c.l.b16 %v2442
      %v2498 = vunpack.c.l.b16 %v2443
      %v2499 = vunpack.c.l.b16 %v2444
      %v2500 = vunpack.c.l.b16 %v2445
      %v2501 = vunpack.c.l.b16 %v2446
      %v2502 = vunpack.c.l.b16 %v2447
      %v2503 = vunpack.c.l.b16 %v2448
      %v2504 = vunpack.c.l.b16 %v2449
      %v2505 = vunpack.c.l.b16 %v2450
      %v2506 = vunpack.c.l.b16 %v2451
      %v2507 = vunpack.c.l.b16 %v2452
      %v2508 = vunpack.c.l.b16 %v2453
      %v2509 = vunpack.c.l.b16 %v2454
      %v2510 = vunpack.c.l.b16 %v2455
      %v2511 = vunpack.c.l.b16 %v2456
      %v2512 = vunpack.c.l.b16 %v2457
      %v2513 = vunpack.c.l.b16 %v2458
      %v2514 = vpack.c.b16 %v2496, %v2495
      %v2515 = vpack.c.b16 %v2498, %v2497
      %v2516 = vpack.c.b16 %v2500, %v2499
      %v2517 = vpack.c.b16 %v2502, %v2501
      %v2518 = vpack.c.b16 %v2504, %v2503
      %v2519 = vpack.c.b16 %v2506, %v2505
      %v2520 = vpack.c.b16 %v2508, %v2507
      %v2521 = vpack.c.b16 %v2510, %v2509
      %v2522 = vpack.c.b16 %v2512, %v2511
      %v2523 = vpack.c.b16 %v2513, %v2513
      %v2524 = vrot.slane %v2514, 2
      %v2525 = vrot.slane %v2515, 2
      %v2526 = vsel %vm2240, %v2524, %v2525
      %v2527 = vrot.slane %v2516, 2
      %v2528 = vsel %vm2240, %v2525, %v2527
      %v2529 = vrot.slane %v2517, 2
      %v2530 = vsel %vm2240, %v2527, %v2529
      %v2531 = vrot.slane %v2518, 2
      %v2532 = vsel %vm2240, %v2529, %v2531
      %v2533 = vrot.slane %v2519, 2
      %v2534 = vsel %vm2240, %v2531, %v2533
      %v2535 = vrot.slane %v2520, 2
      %v2536 = vsel %vm2240, %v2533, %v2535
      %v2537 = vrot.slane %v2521, 2
      %v2538 = vsel %vm2240, %v2535, %v2537
      %v2539 = vrot.slane %v2522, 2
      %v2540 = vsel %vm2240, %v2537, %v2539
      %v2541 = vrot.slane %v2523, 2
      %v2542 = vsel %vm2240, %v2539, %v2541
      %v2568 = vunpack.c.l.b16 %v2460
      %v2569 = vunpack.c.l.b16 %v2461
      %v2570 = vunpack.c.l.b16 %v2462
      %v2571 = vunpack.c.l.b16 %v2463
      %v2572 = vunpack.c.l.b16 %v2464
      %v2573 = vunpack.c.l.b16 %v2465
      %v2574 = vunpack.c.l.b16 %v2466
      %v2575 = vunpack.c.l.b16 %v2467
      %v2576 = vunpack.c.l.b16 %v2468
      %v2577 = vunpack.c.l.b16 %v2469
      %v2578 = vunpack.c.l.b16 %v2470
      %v2579 = vunpack.c.l.b16 %v2471
      %v2580 = vunpack.c.l.b16 %v2472
      %v2581 = vunpack.c.l.b16 %v2473
      %v2582 = vunpack.c.l.b16 %v2474
      %v2583 = vunpack.c.l.b16 %v2475
      %v2584 = vpack.c.b16 %v2569, %v2568
      %v2585 = vpack.c.b16 %v2571, %v2570
      %v2586 = vpack.c.b16 %v2573, %v2572
      %v2587 = vpack.c.b16 %v2575, %v2574
      %v2588 = vpack.c.b16 %v2577, %v2576
      %v2589 = vpack.c.b16 %v2579, %v2578
      %v2590 = vpack.c.b16 %v2581, %v2580
      %v2591 = vpack.c.b16 %v2583, %v2582
      %2600 = vmatprep.subr.bf16.mxu0 0
      %2601 = vmatpush1.bf16.msra.mxu0 %v2584
      %2602 = vmatprep.subr.bf16.mxu0 0
      %2603 = vmatpush1.bf16.msra.mxu0 %v2585
      %2604 = vmatprep.subr.bf16.mxu0 0
      %2605 = vmatpush1.bf16.msra.mxu0 %v2586
      %2606 = vmatprep.subr.bf16.mxu0 0
      %2607 = vmatpush1.bf16.msra.mxu0 %v2587
      %2608 = vmatprep.subr.bf16.mxu0 0
      %2609 = vmatpush1.bf16.msra.mxu0 %v2588
      %2610 = vmatprep.subr.bf16.mxu0 0
      %2611 = vmatpush1.bf16.msra.mxu0 %v2589
      %2612 = vmatprep.subr.bf16.mxu0 0
      %2613 = vmatpush1.bf16.msra.mxu0 %v2590
      %2614 = vmatprep.subr.bf16.mxu0 0
      %2615 = vmatpush1.bf16.msra.mxu0 %v2591
      %2616 = vmatprep.subr.bf16.mxu0 0
      %2617 = vmatpush1.bf16.msra.mxu0 0
      %2618 = vmatprep.subr.bf16.mxu0 0
      %2619 = vmatpush1.bf16.msra.mxu0 0
      %2620 = vmatprep.subr.bf16.mxu0 0
      %2621 = vmatpush1.bf16.msra.mxu0 0
      %2622 = vmatprep.subr.bf16.mxu0 0
      %2623 = vmatpush1.bf16.msra.mxu0 0
      %2624 = vmatprep.subr.bf16.mxu0 0
      %2625 = vmatpush1.bf16.msra.mxu0 0
      %2626 = vmatprep.subr.bf16.mxu0 0
      %2627 = vmatpush1.bf16.msra.mxu0 0
      %2628 = vmatprep.subr.bf16.mxu0 0
      %2629 = vmatpush1.bf16.msra.mxu0 0
      %2630 = vmatprep.subr.bf16.mxu0 0
      %2631 = vmatpush1.bf16.msra.mxu0 0
      %2632 = vmatprep.mubr.bf16.mxu0 0
      %2633 = vmatmul.mubr.bf16.gmra.mrb[0].mxu0 %v2526
      %v2634 = vpop.f32.mrb[0].mxu0
      %v2635 = vadd.f32 0.0, %v2634
      %v2636 = vpop.f32.mrb[0].mxu0
      %v2637 = vpop.f32.mrb[0].mxu0
      %v2638 = vadd.f32 0.0, %v2637
      %v2639 = vpop.f32.mrb[0].mxu0
      %2640 = vmatprep.mubr.bf16.mxu0 0
      %2641 = vmatmul.mubr.bf16.gmra.mrb[0].mxu0 %v2528
      %v2642 = vpop.f32.mrb[0].mxu0
      %v2643 = vadd.f32 0.0, %v2642
      %v2644 = vpop.f32.mrb[0].mxu0
      %v2645 = vpop.f32.mrb[0].mxu0
      %v2646 = vadd.f32 0.0, %v2645
      %v2647 = vpop.f32.mrb[0].mxu0
      %2648 = vmatprep.mubr.bf16.mxu0 0
      %2649 = vmatmul.mubr.bf16.gmra.mrb[0].mxu0 %v2530
      %v2650 = vpop.f32.mrb[0].mxu0
      %v2651 = vadd.f32 0.0, %v2650
      %v2652 = vpop.f32.mrb[0].mxu0
      %v2653 = vpop.f32.mrb[0].mxu0
      %v2654 = vadd.f32 0.0, %v2653
      %v2655 = vpop.f32.mrb[0].mxu0
      %2656 = vmatprep.mubr.bf16.mxu0 0
      %2657 = vmatmul.mubr.bf16.gmra.mrb[0].mxu0 %v2532
      %v2658 = vpop.f32.mrb[0].mxu0
      %v2659 = vadd.f32 0.0, %v2658
      %v2660 = vpop.f32.mrb[0].mxu0
      %v2661 = vpop.f32.mrb[0].mxu0
      %v2662 = vadd.f32 0.0, %v2661
      %v2663 = vpop.f32.mrb[0].mxu0
      %2664 = vmatprep.mubr.bf16.mxu0 0
      %2665 = vmatmul.mubr.bf16.gmra.mrb[0].mxu0 %v2534
      %v2666 = vpop.f32.mrb[0].mxu0
      %v2667 = vadd.f32 0.0, %v2666
      %v2668 = vpop.f32.mrb[0].mxu0
      %v2669 = vpop.f32.mrb[0].mxu0
      %v2670 = vadd.f32 0.0, %v2669
      %v2671 = vpop.f32.mrb[0].mxu0
      %2672 = vmatprep.mubr.bf16.mxu0 0
      %2673 = vmatmul.mubr.bf16.gmra.mrb[0].mxu0 %v2536
      %v2674 = vpop.f32.mrb[0].mxu0
      %v2675 = vadd.f32 0.0, %v2674
      %v2676 = vpop.f32.mrb[0].mxu0
      %v2677 = vpop.f32.mrb[0].mxu0
      %v2678 = vadd.f32 0.0, %v2677
      %v2679 = vpop.f32.mrb[0].mxu0
      %2680 = vmatprep.mubr.bf16.mxu0 0
      %2681 = vmatmul.mubr.bf16.gmra.mrb[0].mxu0 %v2538
      %v2682 = vpop.f32.mrb[0].mxu0
      %v2683 = vadd.f32 0.0, %v2682
      %v2684 = vpop.f32.mrb[0].mxu0
      %v2685 = vpop.f32.mrb[0].mxu0
      %v2686 = vadd.f32 0.0, %v2685
      %v2687 = vpop.f32.mrb[0].mxu0
      %2688 = vmatprep.mubr.bf16.mxu0 0
      %2689 = vmatmul.mubr.bf16.gmra.mrb[0].mxu0 %v2540
      %v2690 = vpop.f32.mrb[0].mxu0
      %v2691 = vadd.f32 0.0, %v2690
      %v2692 = vpop.f32.mrb[0].mxu0
      %v2693 = vpop.f32.mrb[0].mxu0
      %v2694 = vadd.f32 0.0, %v2693
      %v2695 = vpop.f32.mrb[0].mxu0
      %2696 = vmatprep.mubr.bf16.mxu0 0
      %2697 = vmatmul.mubr.bf16.gmra.mrb[0].mxu0 %v2542
      %v2698 = vpop.f32.mrb[0].mxu0
      %v2699 = vadd.f32 0.0, %v2698
      %v2700 = vpop.f32.mrb[0].mxu0
      %v2701 = vpop.f32.mrb[0].mxu0
      %v2702 = vadd.f32 0.0, %v2701
      %v2703 = vpop.f32.mrb[0].mxu0
      %2704 = vdwg.mxu0
      %v2705 = vadd.f32 %v2422, %v2635
      %v2706 = vadd.f32 %v2423, %v2638
      %v2707 = vadd.f32 %v2424, %v2643
      %v2708 = vadd.f32 %v2425, %v2646
      %v2709 = vadd.f32 %v2426, %v2651
      %v2710 = vadd.f32 %v2427, %v2654
      %v2711 = vadd.f32 %v2428, %v2659
      %v2712 = vadd.f32 %v2429, %v2662
      %v2713 = vadd.f32 %v2430, %v2667
      %v2714 = vadd.f32 %v2431, %v2670
      %v2715 = vadd.f32 %v2432, %v2675
      %v2716 = vadd.f32 %v2433, %v2678
      %v2717 = vadd.f32 %v2434, %v2683
      %v2718 = vadd.f32 %v2435, %v2686
      %v2719 = vadd.f32 %v2436, %v2691
      %v2720 = vadd.f32 %v2437, %v2694
      %v2721 = vadd.f32 %v2438, %v2699
      %v2722 = vadd.f32 %v2439, %v2702
      %v2723 = vld [vmem:[#allocation2 + $0x58] sm:$0x7]
      %s2724 = scalar_lea.vmem %s3, 448
      %v2725 = vld [vmem:[%s2724] sm:$0xf]
      %v2726 = vld [vmem:[%s2724 + $0x4] sm:$0xf]
      %v2727 = vld [vmem:[%s2724 + $0x8] sm:$0xf]
      %v2728 = vld [vmem:[%s2724 + $0xc] sm:$0xf]
      %v2729 = vld [vmem:[%s2724 + $0x10] sm:$0xf]
      %v2730 = vld [vmem:[%s2724 + $0x14] sm:$0xf]
      %v2731 = vld [vmem:[%s2724 + $0x18] sm:$0xf]
      %v2732 = vld [vmem:[%s2724 + $0x1c] sm:$0xf]
      %v2733 = vld [vmem:[%s2724 + $0x20] sm:$0xf]
      %v2734 = vld [vmem:[%s2724 + $0x24] sm:$0xf]
      %v2735 = vld [vmem:[%s2724 + $0x28] sm:$0xf]
      %v2736 = vld [vmem:[%s2724 + $0x2c] sm:$0xf]
      %v2737 = vld [vmem:[%s2724 + $0x30] sm:$0xf]
      %v2738 = vld [vmem:[%s2724 + $0x34] sm:$0xf]
      %v2739 = vld [vmem:[%s2724 + $0x38] sm:$0xf]
      %v2740 = vld [vmem:[%s2724 + $0x3c] sm:$0xf]
      %v2742 = vunpack.c.l.b16 %v2723
      %v2743 = vpack.c.b16 %v2742, %v2742
      %vm2744 = vsmask.f32 5376
      %v2746 = vshrl.u32 %v2514, 16
      %v2748 = vrot.slane %v2746, 2
      %v2749 = vshll.u32 %v2514, 16
      %v2751 = vrot.slane %v2749, 3
      %v2752 = vor.u32 %v2748, %v2751
      %v2754 = vshrl.u32 %v2515, 16
      %v2756 = vrot.slane %v2754, 2
      %v2757 = vshll.u32 %v2515, 16
      %v2759 = vrot.slane %v2757, 3
      %v2760 = vor.u32 %v2756, %v2759
      %v2761 = vsel %vm2744, %v2752, %v2760
      %v2763 = vshrl.u32 %v2516, 16
      %v2765 = vrot.slane %v2763, 2
      %v2766 = vshll.u32 %v2516, 16
      %v2768 = vrot.slane %v2766, 3
      %v2769 = vor.u32 %v2765, %v2768
      %v2770 = vsel %vm2744, %v2760, %v2769
      %v2772 = vshrl.u32 %v2517, 16
      %v2774 = vrot.slane %v2772, 2
      %v2775 = vshll.u32 %v2517, 16
      %v2777 = vrot.slane %v2775, 3
      %v2778 = vor.u32 %v2774, %v2777
      %v2779 = vsel %vm2744, %v2769, %v2778
      %v2781 = vshrl.u32 %v2518, 16
      %v2783 = vrot.slane %v2781, 2
      %v2784 = vshll.u32 %v2518, 16
      %v2786 = vrot.slane %v2784, 3
      %v2787 = vor.u32 %v2783, %v2786
      %v2788 = vsel %vm2744, %v2778, %v2787
      %v2790 = vshrl.u32 %v2519, 16
      %v2792 = vrot.slane %v2790, 2
      %v2793 = vshll.u32 %v2519, 16
      %v2795 = vrot.slane %v2793, 3
      %v2796 = vor.u32 %v2792, %v2795
      %v2797 = vsel %vm2744, %v2787, %v2796
      %v2799 = vshrl.u32 %v2520, 16
      %v2801 = vrot.slane %v2799, 2
      %v2802 = vshll.u32 %v2520, 16
      %v2804 = vrot.slane %v2802, 3
      %v2805 = vor.u32 %v2801, %v2804
      %v2806 = vsel %vm2744, %v2796, %v2805
      %v2808 = vshrl.u32 %v2521, 16
      %v2810 = vrot.slane %v2808, 2
      %v2811 = vshll.u32 %v2521, 16
      %v2813 = vrot.slane %v2811, 3
      %v2814 = vor.u32 %v2810, %v2813
      %v2815 = vsel %vm2744, %v2805, %v2814
      %v2817 = vshrl.u32 %v2522, 16
      %v2819 = vrot.slane %v2817, 2
      %v2820 = vshll.u32 %v2522, 16
      %v2822 = vrot.slane %v2820, 3
      %v2823 = vor.u32 %v2819, %v2822
      %v2824 = vsel %vm2744, %v2814, %v2823
      %v2826 = vshrl.u32 %v2743, 16
      %v2828 = vrot.slane %v2826, 2
      %v2829 = vshll.u32 %v2743, 16
      %v2831 = vrot.slane %v2829, 3
      %v2832 = vor.u32 %v2828, %v2831
      %v2833 = vsel %vm2744, %v2823, %v2832
      %v2859 = vunpack.c.l.b16 %v2725
      %v2860 = vunpack.c.l.b16 %v2726
      %v2861 = vunpack.c.l.b16 %v2727
      %v2862 = vunpack.c.l.b16 %v2728
      %v2863 = vunpack.c.l.b16 %v2729
      %v2864 = vunpack.c.l.b16 %v2730
      %v2865 = vunpack.c.l.b16 %v2731
      %v2866 = vunpack.c.l.b16 %v2732
      %v2867 = vunpack.c.l.b16 %v2733
      %v2868 = vunpack.c.l.b16 %v2734
      %v2869 = vunpack.c.l.b16 %v2735
      %v2870 = vunpack.c.l.b16 %v2736
      %v2871 = vunpack.c.l.b16 %v2737
      %v2872 = vunpack.c.l.b16 %v2738
      %v2873 = vunpack.c.l.b16 %v2739
      %v2874 = vunpack.c.l.b16 %v2740
      %v2875 = vpack.c.b16 %v2860, %v2859
      %v2876 = vpack.c.b16 %v2862, %v2861
      %v2877 = vpack.c.b16 %v2864, %v2863
      %v2878 = vpack.c.b16 %v2866, %v2865
      %v2879 = vpack.c.b16 %v2868, %v2867
      %v2880 = vpack.c.b16 %v2870, %v2869
      %v2881 = vpack.c.b16 %v2872, %v2871
      %v2882 = vpack.c.b16 %v2874, %v2873
      %2891 = vmatprep.subr.bf16.mxu0 0
      %2892 = vmatpush1.bf16.msra.mxu0 %v2875
      %2893 = vmatprep.subr.bf16.mxu0 0
      %2894 = vmatpush1.bf16.msra.mxu0 %v2876
      %2895 = vmatprep.subr.bf16.mxu0 0
      %2896 = vmatpush1.bf16.msra.mxu0 %v2877
      %2897 = vmatprep.subr.bf16.mxu0 0
      %2898 = vmatpush1.bf16.msra.mxu0 %v2878
      %2899 = vmatprep.subr.bf16.mxu0 0
      %2900 = vmatpush1.bf16.msra.mxu0 %v2879
      %2901 = vmatprep.subr.bf16.mxu0 0
      %2902 = vmatpush1.bf16.msra.mxu0 %v2880
      %2903 = vmatprep.subr.bf16.mxu0 0
      %2904 = vmatpush1.bf16.msra.mxu0 %v2881
      %2905 = vmatprep.subr.bf16.mxu0 0
      %2906 = vmatpush1.bf16.msra.mxu0 %v2882
      %2907 = vmatprep.subr.bf16.mxu0 0
      %2908 = vmatpush1.bf16.msra.mxu0 0
      %2909 = vmatprep.subr.bf16.mxu0 0
      %2910 = vmatpush1.bf16.msra.mxu0 0
      %2911 = vmatprep.subr.bf16.mxu0 0
      %2912 = vmatpush1.bf16.msra.mxu0 0
      %2913 = vmatprep.subr.bf16.mxu0 0
      %2914 = vmatpush1.bf16.msra.mxu0 0
      %2915 = vmatprep.subr.bf16.mxu0 0
      %2916 = vmatpush1.bf16.msra.mxu0 0
      %2917 = vmatprep.subr.bf16.mxu0 0
      %2918 = vmatpush1.bf16.msra.mxu0 0
      %2919 = vmatprep.subr.bf16.mxu0 0
      %2920 = vmatpush1.bf16.msra.mxu0 0
      %2921 = vmatprep.subr.bf16.mxu0 0
      %2922 = vmatpush1.bf16.msra.mxu0 0
      %2923 = vmatprep.mubr.bf16.mxu0 0
      %2924 = vmatmul.mubr.bf16.gmra.mrb[0].mxu0 %v2761
      %v2925 = vpop.f32.mrb[0].mxu0
      %v2926 = vadd.f32 0.0, %v2925
      %v2927 = vpop.f32.mrb[0].mxu0
      %v2928 = vpop.f32.mrb[0].mxu0
      %v2929 = vadd.f32 0.0, %v2928
      %v2930 = vpop.f32.mrb[0].mxu0
      %2931 = vmatprep.mubr.bf16.mxu0 0
      %2932 = vmatmul.mubr.bf16.gmra.mrb[0].mxu0 %v2770
      %v2933 = vpop.f32.mrb[0].mxu0
      %v2934 = vadd.f32 0.0, %v2933
      %v2935 = vpop.f32.mrb[0].mxu0
      %v2936 = vpop.f32.mrb[0].mxu0
      %v2937 = vadd.f32 0.0, %v2936
      %v2938 = vpop.f32.mrb[0].mxu0
      %2939 = vmatprep.mubr.bf16.mxu0 0
      %2940 = vmatmul.mubr.bf16.gmra.mrb[0].mxu0 %v2779
      %v2941 = vpop.f32.mrb[0].mxu0
      %v2942 = vadd.f32 0.0, %v2941
      %v2943 = vpop.f32.mrb[0].mxu0
      %v2944 = vpop.f32.mrb[0].mxu0
      %v2945 = vadd.f32 0.0, %v2944
      %v2946 = vpop.f32.mrb[0].mxu0
      %2947 = vmatprep.mubr.bf16.mxu0 0
      %2948 = vmatmul.mubr.bf16.gmra.mrb[0].mxu0 %v2788
      %v2949 = vpop.f32.mrb[0].mxu0
      %v2950 = vadd.f32 0.0, %v2949
      %v2951 = vpop.f32.mrb[0].mxu0
      %v2952 = vpop.f32.mrb[0].mxu0
      %v2953 = vadd.f32 0.0, %v2952
      %v2954 = vpop.f32.mrb[0].mxu0
      %2955 = vmatprep.mubr.bf16.mxu0 0
      %2956 = vmatmul.mubr.bf16.gmra.mrb[0].mxu0 %v2797
      %v2957 = vpop.f32.mrb[0].mxu0
      %v2958 = vadd.f32 0.0, %v2957
      %v2959 = vpop.f32.mrb[0].mxu0
      %v2960 = vpop.f32.mrb[0].mxu0
      %v2961 = vadd.f32 0.0, %v2960
      %v2962 = vpop.f32.mrb[0].mxu0
      %2963 = vmatprep.mubr.bf16.mxu0 0
      %2964 = vmatmul.mubr.bf16.gmra.mrb[0].mxu0 %v2806
      %v2965 = vpop.f32.mrb[0].mxu0
      %v2966 = vadd.f32 0.0, %v2965
      %v2967 = vpop.f32.mrb[0].mxu0
      %v2968 = vpop.f32.mrb[0].mxu0
      %v2969 = vadd.f32 0.0, %v2968
      %v2970 = vpop.f32.mrb[0].mxu0
      %2971 = vmatprep.mubr.bf16.mxu0 0
      %2972 = vmatmul.mubr.bf16.gmra.mrb[0].mxu0 %v2815
      %v2973 = vpop.f32.mrb[0].mxu0
      %v2974 = vadd.f32 0.0, %v2973
      %v2975 = vpop.f32.mrb[0].mxu0
      %v2976 = vpop.f32.mrb[0].mxu0
      %v2977 = vadd.f32 0.0, %v2976
      %v2978 = vpop.f32.mrb[0].mxu0
      %2979 = vmatprep.mubr.bf16.mxu0 0
      %2980 = vmatmul.mubr.bf16.gmra.mrb[0].mxu0 %v2824
      %v2981 = vpop.f32.mrb[0].mxu0
      %v2982 = vadd.f32 0.0, %v2981
      %v2983 = vpop.f32.mrb[0].mxu0
      %v2984 = vpop.f32.mrb[0].mxu0
      %v2985 = vadd.f32 0.0, %v2984
      %v2986 = vpop.f32.mrb[0].mxu0
      %2987 = vmatprep.mubr.bf16.mxu0 0
      %2988 = vmatmul.mubr.bf16.gmra.mrb[0].mxu0 %v2833
      %v2989 = vpop.f32.mrb[0].mxu0
      %v2990 = vadd.f32 0.0, %v2989
      %v2991 = vpop.f32.mrb[0].mxu0
      %v2992 = vpop.f32.mrb[0].mxu0
      %v2993 = vadd.f32 0.0, %v2992
      %v2994 = vpop.f32.mrb[0].mxu0
      %2995 = vdwg.mxu0
      %v2996 = vadd.f32 %v2705, %v2926
      %v2997 = vadd.f32 %v2706, %v2929
      %v2998 = vadd.f32 %v2707, %v2934
      %v2999 = vadd.f32 %v2708, %v2937
      %v3000 = vadd.f32 %v2709, %v2942
      %v3001 = vadd.f32 %v2710, %v2945
      %v3002 = vadd.f32 %v2711, %v2950
      %v3003 = vadd.f32 %v2712, %v2953
      %v3004 = vadd.f32 %v2713, %v2958
      %v3005 = vadd.f32 %v2714, %v2961
      %v3006 = vadd.f32 %v2715, %v2966
      %v3007 = vadd.f32 %v2716, %v2969
      %v3008 = vadd.f32 %v2717, %v2974
      %v3009 = vadd.f32 %v2718, %v2977
      %v3010 = vadd.f32 %v2719, %v2982
      %v3011 = vadd.f32 %v2720, %v2985
      %v3012 = vadd.f32 %v2721, %v2990
      %v3013 = vadd.f32 %v2722, %v2993
      %v3014 = vld [vmem:[#allocation2 + $0x10] sm:$0x8]
      %s3015 = scalar_lea.vmem %s3, 512
      %v3016 = vld [vmem:[%s3015] sm:$0xf]
      %v3017 = vld [vmem:[%s3015 + $0x4] sm:$0xf]
      %v3018 = vld [vmem:[%s3015 + $0x8] sm:$0xf]
      %v3019 = vld [vmem:[%s3015 + $0xc] sm:$0xf]
      %v3020 = vld [vmem:[%s3015 + $0x10] sm:$0xf]
      %v3021 = vld [vmem:[%s3015 + $0x14] sm:$0xf]
      %v3022 = vld [vmem:[%s3015 + $0x18] sm:$0xf]
      %v3023 = vld [vmem:[%s3015 + $0x1c] sm:$0xf]
      %v3024 = vld [vmem:[%s3015 + $0x20] sm:$0xf]
      %v3025 = vld [vmem:[%s3015 + $0x24] sm:$0xf]
      %v3026 = vld [vmem:[%s3015 + $0x28] sm:$0xf]
      %v3027 = vld [vmem:[%s3015 + $0x2c] sm:$0xf]
      %v3028 = vld [vmem:[%s3015 + $0x30] sm:$0xf]
      %v3029 = vld [vmem:[%s3015 + $0x34] sm:$0xf]
      %v3030 = vld [vmem:[%s3015 + $0x38] sm:$0xf]
      %v3031 = vld [vmem:[%s3015 + $0x3c] sm:$0xf]
      %v3033 = vunpack.c.l.b16 %v3014
      %v3034 = vpack.c.b16 %v2496, %v3033
      %vm3035 = vcmask 1044480
      %v3036 = vrot.slane %v3034, 3
      %v3037 = vrot.slane %v2515, 3
      %v3038 = vsel %vm3035, %v3036, %v3037
      %v3039 = vrot.slane %v2516, 3
      %v3040 = vsel %vm3035, %v3037, %v3039
      %v3041 = vrot.slane %v2517, 3
      %v3042 = vsel %vm3035, %v3039, %v3041
      %v3043 = vrot.slane %v2518, 3
      %v3044 = vsel %vm3035, %v3041, %v3043
      %v3045 = vrot.slane %v2519, 3
      %v3046 = vsel %vm3035, %v3043, %v3045
      %v3047 = vrot.slane %v2520, 3
      %v3048 = vsel %vm3035, %v3045, %v3047
      %v3049 = vrot.slane %v2521, 3
      %v3050 = vsel %vm3035, %v3047, %v3049
      %v3051 = vrot.slane %v2522, 3
      %v3052 = vsel %vm3035, %v3049, %v3051
      %v3053 = vrot.slane %v2743, 3
      %v3054 = vsel %vm3035, %v3051, %v3053
      %v3080 = vunpack.c.l.b16 %v3016
      %v3081 = vunpack.c.l.b16 %v3017
      %v3082 = vunpack.c.l.b16 %v3018
      %v3083 = vunpack.c.l.b16 %v3019
      %v3084 = vunpack.c.l.b16 %v3020
      %v3085 = vunpack.c.l.b16 %v3021
      %v3086 = vunpack.c.l.b16 %v3022
      %v3087 = vunpack.c.l.b16 %v3023
      %v3088 = vunpack.c.l.b16 %v3024
      %v3089 = vunpack.c.l.b16 %v3025
      %v3090 = vunpack.c.l.b16 %v3026
      %v3091 = vunpack.c.l.b16 %v3027
      %v3092 = vunpack.c.l.b16 %v3028
      %v3093 = vunpack.c.l.b16 %v3029
      %v3094 = vunpack.c.l.b16 %v3030
      %v3095 = vunpack.c.l.b16 %v3031
      %v3096 = vpack.c.b16 %v3081, %v3080
      %v3097 = vpack.c.b16 %v3083, %v3082
      %v3098 = vpack.c.b16 %v3085, %v3084
      %v3099 = vpack.c.b16 %v3087, %v3086
      %v3100 = vpack.c.b16 %v3089, %v3088
      %v3101 = vpack.c.b16 %v3091, %v3090
      %v3102 = vpack.c.b16 %v3093, %v3092
      %v3103 = vpack.c.b16 %v3095, %v3094
      %3112 = vmatprep.subr.bf16.mxu0 0
      %3113 = vmatpush1.bf16.msra.mxu0 %v3096
      %3114 = vmatprep.subr.bf16.mxu0 0
      %3115 = vmatpush1.bf16.msra.mxu0 %v3097
      %3116 = vmatprep.subr.bf16.mxu0 0
      %3117 = vmatpush1.bf16.msra.mxu0 %v3098
      %3118 = vmatprep.subr.bf16.mxu0 0
      %3119 = vmatpush1.bf16.msra.mxu0 %v3099
      %3120 = vmatprep.subr.bf16.mxu0 0
      %3121 = vmatpush1.bf16.msra.mxu0 %v3100
      %3122 = vmatprep.subr.bf16.mxu0 0
      %3123 = vmatpush1.bf16.msra.mxu0 %v3101
      %3124 = vmatprep.subr.bf16.mxu0 0
      %3125 = vmatpush1.bf16.msra.mxu0 %v3102
      %3126 = vmatprep.subr.bf16.mxu0 0
      %3127 = vmatpush1.bf16.msra.mxu0 %v3103
      %3128 = vmatprep.subr.bf16.mxu0 0
      %3129 = vmatpush1.bf16.msra.mxu0 0
      %3130 = vmatprep.subr.bf16.mxu0 0
      %3131 = vmatpush1.bf16.msra.mxu0 0
      %3132 = vmatprep.subr.bf16.mxu0 0
      %3133 = vmatpush1.bf16.msra.mxu0 0
      %3134 = vmatprep.subr.bf16.mxu0 0
      %3135 = vmatpush1.bf16.msra.mxu0 0
      %3136 = vmatprep.subr.bf16.mxu0 0
      %3137 = vmatpush1.bf16.msra.mxu0 0
      %3138 = vmatprep.subr.bf16.mxu0 0
      %3139 = vmatpush1.bf16.msra.mxu0 0
      %3140 = vmatprep.subr.bf16.mxu0 0
      %3141 = vmatpush1.bf16.msra.mxu0 0
      %3142 = vmatprep.subr.bf16.mxu0 0
      %3143 = vmatpush1.bf16.msra.mxu0 0
      %3144 = vmatprep.mubr.bf16.mxu0 0
      %3145 = vmatmul.mubr.bf16.gmra.mrb[0].mxu0 %v3038
      %v3146 = vpop.f32.mrb[0].mxu0
      %v3147 = vadd.f32 0.0, %v3146
      %v3148 = vpop.f32.mrb[0].mxu0
      %v3149 = vpop.f32.mrb[0].mxu0
      %v3150 = vadd.f32 0.0, %v3149
      %v3151 = vpop.f32.mrb[0].mxu0
      %3152 = vmatprep.mubr.bf16.mxu0 0
      %3153 = vmatmul.mubr.bf16.gmra.mrb[0].mxu0 %v3040
      %v3154 = vpop.f32.mrb[0].mxu0
      %v3155 = vadd.f32 0.0, %v3154
      %v3156 = vpop.f32.mrb[0].mxu0
      %v3157 = vpop.f32.mrb[0].mxu0
      %v3158 = vadd.f32 0.0, %v3157
      %v3159 = vpop.f32.mrb[0].mxu0
      %3160 = vmatprep.mubr.bf16.mxu0 0
      %3161 = vmatmul.mubr.bf16.gmra.mrb[0].mxu0 %v3042
      %v3162 = vpop.f32.mrb[0].mxu0
      %v3163 = vadd.f32 0.0, %v3162
      %v3164 = vpop.f32.mrb[0].mxu0
      %v3165 = vpop.f32.mrb[0].mxu0
      %v3166 = vadd.f32 0.0, %v3165
      %v3167 = vpop.f32.mrb[0].mxu0
      %3168 = vmatprep.mubr.bf16.mxu0 0
      %3169 = vmatmul.mubr.bf16.gmra.mrb[0].mxu0 %v3044
      %v3170 = vpop.f32.mrb[0].mxu0
      %v3171 = vadd.f32 0.0, %v3170
      %v3172 = vpop.f32.mrb[0].mxu0
      %v3173 = vpop.f32.mrb[0].mxu0
      %v3174 = vadd.f32 0.0, %v3173
      %v3175 = vpop.f32.mrb[0].mxu0
      %3176 = vmatprep.mubr.bf16.mxu0 0
      %3177 = vmatmul.mubr.bf16.gmra.mrb[0].mxu0 %v3046
      %v3178 = vpop.f32.mrb[0].mxu0
      %v3179 = vadd.f32 0.0, %v3178
      %v3180 = vpop.f32.mrb[0].mxu0
      %v3181 = vpop.f32.mrb[0].mxu0
      %v3182 = vadd.f32 0.0, %v3181
      %v3183 = vpop.f32.mrb[0].mxu0
      %3184 = vmatprep.mubr.bf16.mxu0 0
      %3185 = vmatmul.mubr.bf16.gmra.mrb[0].mxu0 %v3048
      %v3186 = vpop.f32.mrb[0].mxu0
      %v3187 = vadd.f32 0.0, %v3186
      %v3188 = vpop.f32.mrb[0].mxu0
      %v3189 = vpop.f32.mrb[0].mxu0
      %v3190 = vadd.f32 0.0, %v3189
      %v3191 = vpop.f32.mrb[0].mxu0
      %3192 = vmatprep.mubr.bf16.mxu0 0
      %3193 = vmatmul.mubr.bf16.gmra.mrb[0].mxu0 %v3050
      %v3194 = vpop.f32.mrb[0].mxu0
      %v3195 = vadd.f32 0.0, %v3194
      %v3196 = vpop.f32.mrb[0].mxu0
      %v3197 = vpop.f32.mrb[0].mxu0
      %v3198 = vadd.f32 0.0, %v3197
      %v3199 = vpop.f32.mrb[0].mxu0
      %3200 = vmatprep.mubr.bf16.mxu0 0
      %3201 = vmatmul.mubr.bf16.gmra.mrb[0].mxu0 %v3052
      %v3202 = vpop.f32.mrb[0].mxu0
      %v3203 = vadd.f32 0.0, %v3202
      %v3204 = vpop.f32.mrb[0].mxu0
      %v3205 = vpop.f32.mrb[0].mxu0
      %v3206 = vadd.f32 0.0, %v3205
      %v3207 = vpop.f32.mrb[0].mxu0
      %3208 = vmatprep.mubr.bf16.mxu0 0
      %3209 = vmatmul.mubr.bf16.gmra.mrb[0].mxu0 %v3054
      %v3210 = vpop.f32.mrb[0].mxu0
      %v3211 = vadd.f32 0.0, %v3210
      %v3212 = vpop.f32.mrb[0].mxu0
      %v3213 = vpop.f32.mrb[0].mxu0
      %v3214 = vadd.f32 0.0, %v3213
      %v3215 = vpop.f32.mrb[0].mxu0
      %3216 = vdwg.mxu0
      %v3217 = vadd.f32 %v2996, %v3147
      %v3218 = vadd.f32 %v2997, %v3150
      %v3219 = vadd.f32 %v2998, %v3155
      %v3220 = vadd.f32 %v2999, %v3158
      %v3221 = vadd.f32 %v3000, %v3163
      %v3222 = vadd.f32 %v3001, %v3166
      %v3223 = vadd.f32 %v3002, %v3171
      %v3224 = vadd.f32 %v3003, %v3174
      %v3225 = vadd.f32 %v3004, %v3179
      %v3226 = vadd.f32 %v3005, %v3182
      %v3227 = vadd.f32 %v3006, %v3187
      %v3228 = vadd.f32 %v3007, %v3190
      %v3229 = vadd.f32 %v3008, %v3195
      %v3230 = vadd.f32 %v3009, %v3198
      %v3231 = vadd.f32 %v3010, %v3203
      %v3232 = vadd.f32 %v3011, %v3206
      %v3233 = vadd.f32 %v3012, %v3211
      %v3234 = vadd.f32 %v3013, %v3214
      %v3235 = vld [vmem:[%s4] sm:$0x1]
      %v3237 = vlaneseq
      %v3238 = vshrl.u32 %v3237, 7
      %v3239 = vsub.s32 0, %v3238
      %v3240 = vrot.slane %v3235, %v3239
      %v3242 = vadd.f32 %v3217, %v3240
      %v3243 = vadd.f32 %v3218, %v3240
      %v3244 = vadd.f32 %v3219, %v3240
      %v3245 = vadd.f32 %v3220, %v3240
      %v3246 = vadd.f32 %v3221, %v3240
      %v3247 = vadd.f32 %v3222, %v3240
      %v3248 = vadd.f32 %v3223, %v3240
      %v3249 = vadd.f32 %v3224, %v3240
      %v3250 = vadd.f32 %v3225, %v3240
      %v3251 = vadd.f32 %v3226, %v3240
      %v3252 = vadd.f32 %v3227, %v3240
      %v3253 = vadd.f32 %v3228, %v3240
      %v3254 = vadd.f32 %v3229, %v3240
      %v3255 = vadd.f32 %v3230, %v3240
      %v3256 = vadd.f32 %v3231, %v3240
      %v3257 = vadd.f32 %v3232, %v3240
      %v3258 = vadd.f32 %v3233, %v3240
      %v3259 = vadd.f32 %v3234, %v3240
      %v3260 = vmax.f32 %v3242, 0.0
      %v3261 = vmax.f32 %v3243, 0.0
      %v3262 = vmax.f32 %v3244, 0.0
      %v3263 = vmax.f32 %v3245, 0.0
      %v3264 = vmax.f32 %v3246, 0.0
      %v3265 = vmax.f32 %v3247, 0.0
      %v3266 = vmax.f32 %v3248, 0.0
      %v3267 = vmax.f32 %v3249, 0.0
      %v3268 = vmax.f32 %v3250, 0.0
      %v3269 = vmax.f32 %v3251, 0.0
      %v3270 = vmax.f32 %v3252, 0.0
      %v3271 = vmax.f32 %v3253, 0.0
      %v3272 = vmax.f32 %v3254, 0.0
      %v3273 = vmax.f32 %v3255, 0.0
      %v3274 = vmax.f32 %v3256, 0.0
      %v3275 = vmax.f32 %v3257, 0.0
      %v3276 = vmax.f32 %v3258, 0.0
      %v3277 = vmax.f32 %v3259, 0.0
      %v3278 = vpack.c.bf16 %v3261, %v3260
      %v3279 = vpack.c.bf16 %v3263, %v3262
      %v3280 = vpack.c.bf16 %v3265, %v3264
      %v3281 = vpack.c.bf16 %v3267, %v3266
      %v3282 = vpack.c.bf16 %v3269, %v3268
      %v3283 = vpack.c.bf16 %v3271, %v3270
      %v3284 = vpack.c.bf16 %v3273, %v3272
      %v3285 = vpack.c.bf16 %v3275, %v3274
      %v3286 = vpack.c.bf16 %v3277, %v3276
      %v3287 = vld [vmem:[%s6] sm:$0xf]
      %v3288 = vld [vmem:[%s6 + $0x4] sm:$0xf]
      %v3289 = vld [vmem:[%s6 + $0x8] sm:$0xf]
      %v3290 = vld [vmem:[%s6 + $0xc] sm:$0xf]
      %v3291 = vld [vmem:[%s6 + $0x10] sm:$0xf]
      %v3292 = vld [vmem:[%s6 + $0x14] sm:$0xf]
      %v3293 = vld [vmem:[%s6 + $0x18] sm:$0xf]
      %v3294 = vld [vmem:[%s6 + $0x1c] sm:$0xf]
      %v3295 = vld [vmem:[%s6 + $0x20] sm:$0xf]
      %v3296 = vld [vmem:[%s6 + $0x24] sm:$0xf]
      %v3297 = vld [vmem:[%s6 + $0x28] sm:$0xf]
      %v3298 = vld [vmem:[%s6 + $0x2c] sm:$0xf]
      %v3299 = vld [vmem:[%s6 + $0x30] sm:$0xf]
      %v3300 = vld [vmem:[%s6 + $0x34] sm:$0xf]
      %v3301 = vld [vmem:[%s6 + $0x38] sm:$0xf]
      %v3302 = vld [vmem:[%s6 + $0x3c] sm:$0xf]
      %v3303 = vld [vmem:[%s7] sm:$0x1]
      %v3305 = vlaneseq
      %v3306 = vshrl.u32 %v3305, 7
      %v3307 = vsub.s32 0, %v3306
      %v3308 = vrot.slane %v3303, %v3307
      %v3326 = vunpack.c.l.b16 %v3287
      %v3327 = vunpack.c.l.b16 %v3288
      %v3328 = vunpack.c.l.b16 %v3289
      %v3329 = vunpack.c.l.b16 %v3290
      %v3330 = vunpack.c.l.b16 %v3291
      %v3331 = vunpack.c.l.b16 %v3292
      %v3332 = vunpack.c.l.b16 %v3293
      %v3333 = vunpack.c.l.b16 %v3294
      %v3334 = vunpack.c.l.b16 %v3295
      %v3335 = vunpack.c.l.b16 %v3296
      %v3336 = vunpack.c.l.b16 %v3297
      %v3337 = vunpack.c.l.b16 %v3298
      %v3338 = vunpack.c.l.b16 %v3299
      %v3339 = vunpack.c.l.b16 %v3300
      %v3340 = vunpack.c.l.b16 %v3301
      %v3341 = vunpack.c.l.b16 %v3302
      %v3342 = vpack.c.b16 %v3327, %v3326
      %v3343 = vpack.c.b16 %v3329, %v3328
      %v3344 = vpack.c.b16 %v3331, %v3330
      %v3345 = vpack.c.b16 %v3333, %v3332
      %v3346 = vpack.c.b16 %v3335, %v3334
      %v3347 = vpack.c.b16 %v3337, %v3336
      %v3348 = vpack.c.b16 %v3339, %v3338
      %v3349 = vpack.c.b16 %v3341, %v3340
      %3358 = vmatprep.subr.bf16.mxu0 0
      %3359 = vmatpush1.bf16.msra.mxu0 %v3342
      %3360 = vmatprep.subr.bf16.mxu0 0
      %3361 = vmatpush1.bf16.msra.mxu0 %v3343
      %3362 = vmatprep.subr.bf16.mxu0 0
      %3363 = vmatpush1.bf16.msra.mxu0 %v3344
      %3364 = vmatprep.subr.bf16.mxu0 0
      %3365 = vmatpush1.bf16.msra.mxu0 %v3345
      %3366 = vmatprep.subr.bf16.mxu0 0
      %3367 = vmatpush1.bf16.msra.mxu0 %v3346
      %3368 = vmatprep.subr.bf16.mxu0 0
      %3369 = vmatpush1.bf16.msra.mxu0 %v3347
      %3370 = vmatprep.subr.bf16.mxu0 0
      %3371 = vmatpush1.bf16.msra.mxu0 %v3348
      %3372 = vmatprep.subr.bf16.mxu0 0
      %3373 = vmatpush1.bf16.msra.mxu0 %v3349
      %3374 = vmatprep.subr.bf16.mxu0 0
      %3375 = vmatpush1.bf16.msra.mxu0 0
      %3376 = vmatprep.subr.bf16.mxu0 0
      %3377 = vmatpush1.bf16.msra.mxu0 0
      %3378 = vmatprep.subr.bf16.mxu0 0
      %3379 = vmatpush1.bf16.msra.mxu0 0
      %3380 = vmatprep.subr.bf16.mxu0 0
      %3381 = vmatpush1.bf16.msra.mxu0 0
      %3382 = vmatprep.subr.bf16.mxu0 0
      %3383 = vmatpush1.bf16.msra.mxu0 0
      %3384 = vmatprep.subr.bf16.mxu0 0
      %3385 = vmatpush1.bf16.msra.mxu0 0
      %3386 = vmatprep.subr.bf16.mxu0 0
      %3387 = vmatpush1.bf16.msra.mxu0 0
      %3388 = vmatprep.subr.bf16.mxu0 0
      %3389 = vmatpush1.bf16.msra.mxu0 0
      %3390 = vmatprep.mubr.bf16.mxu0 0
      %3391 = vmatmul.mubr.bf16.gmra.mrb[0].mxu0 %v3278
      %v3392 = vpop.f32.mrb[0].mxu0
      %v3393 = vadd.f32 %v3308, %v3392
      %v3394 = vpop.f32.mrb[0].mxu0
      %v3395 = vpop.f32.mrb[0].mxu0
      %v3396 = vadd.f32 %v3308, %v3395
      %v3397 = vpop.f32.mrb[0].mxu0
      %3398 = vmatprep.mubr.bf16.mxu0 0
      %3399 = vmatmul.mubr.bf16.gmra.mrb[0].mxu0 %v3279
      %v3400 = vpop.f32.mrb[0].mxu0
      %v3401 = vadd.f32 %v3308, %v3400
      %v3402 = vpop.f32.mrb[0].mxu0
      %v3403 = vpop.f32.mrb[0].mxu0
      %v3404 = vadd.f32 %v3308, %v3403
      %v3405 = vpop.f32.mrb[0].mxu0
      %3406 = vmatprep.mubr.bf16.mxu0 0
      %3407 = vmatmul.mubr.bf16.gmra.mrb[0].mxu0 %v3280
      %v3408 = vpop.f32.mrb[0].mxu0
      %v3409 = vadd.f32 %v3308, %v3408
      %v3410 = vpop.f32.mrb[0].mxu0
      %v3411 = vpop.f32.mrb[0].mxu0
      %v3412 = vadd.f32 %v3308, %v3411
      %v3413 = vpop.f32.mrb[0].mxu0
      %3414 = vmatprep.mubr.bf16.mxu0 0
      %3415 = vmatmul.mubr.bf16.gmra.mrb[0].mxu0 %v3281
      %v3416 = vpop.f32.mrb[0].mxu0
      %v3417 = vadd.f32 %v3308, %v3416
      %v3418 = vpop.f32.mrb[0].mxu0
      %v3419 = vpop.f32.mrb[0].mxu0
      %v3420 = vadd.f32 %v3308, %v3419
      %v3421 = vpop.f32.mrb[0].mxu0
      %3422 = vmatprep.mubr.bf16.mxu0 0
      %3423 = vmatmul.mubr.bf16.gmra.mrb[0].mxu0 %v3282
      %v3424 = vpop.f32.mrb[0].mxu0
      %v3425 = vadd.f32 %v3308, %v3424
      %v3426 = vpop.f32.mrb[0].mxu0
      %v3427 = vpop.f32.mrb[0].mxu0
      %v3428 = vadd.f32 %v3308, %v3427
      %v3429 = vpop.f32.mrb[0].mxu0
      %3430 = vmatprep.mubr.bf16.mxu0 0
      %3431 = vmatmul.mubr.bf16.gmra.mrb[0].mxu0 %v3283
      %v3432 = vpop.f32.mrb[0].mxu0
      %v3433 = vadd.f32 %v3308, %v3432
      %v3434 = vpop.f32.mrb[0].mxu0
      %v3435 = vpop.f32.mrb[0].mxu0
      %v3436 = vadd.f32 %v3308, %v3435
      %v3437 = vpop.f32.mrb[0].mxu0
      %3438 = vmatprep.mubr.bf16.mxu0 0
      %3439 = vmatmul.mubr.bf16.gmra.mrb[0].mxu0 %v3284
      %v3440 = vpop.f32.mrb[0].mxu0
      %v3441 = vadd.f32 %v3308, %v3440
      %v3442 = vpop.f32.mrb[0].mxu0
      %v3443 = vpop.f32.mrb[0].mxu0
      %v3444 = vadd.f32 %v3308, %v3443
      %v3445 = vpop.f32.mrb[0].mxu0
      %3446 = vmatprep.mubr.bf16.mxu0 0
      %3447 = vmatmul.mubr.bf16.gmra.mrb[0].mxu0 %v3285
      %v3448 = vpop.f32.mrb[0].mxu0
      %v3449 = vadd.f32 %v3308, %v3448
      %v3450 = vpop.f32.mrb[0].mxu0
      %v3451 = vpop.f32.mrb[0].mxu0
      %v3452 = vadd.f32 %v3308, %v3451
      %v3453 = vpop.f32.mrb[0].mxu0
      %3454 = vmatprep.mubr.bf16.mxu0 0
      %3455 = vmatmul.mubr.bf16.gmra.mrb[0].mxu0 %v3286
      %v3456 = vpop.f32.mrb[0].mxu0
      %v3457 = vadd.f32 %v3308, %v3456
      %v3458 = vpop.f32.mrb[0].mxu0
      %v3459 = vpop.f32.mrb[0].mxu0
      %v3460 = vadd.f32 %v3308, %v3459
      %v3461 = vpop.f32.mrb[0].mxu0
      %3462 = vdwg.mxu0
      %v3463 = vmax.f32 %v3393, 0.0
      %v3464 = vmax.f32 %v3396, 0.0
      %v3465 = vmax.f32 %v3401, 0.0
      %v3466 = vmax.f32 %v3404, 0.0
      %v3467 = vmax.f32 %v3409, 0.0
      %v3468 = vmax.f32 %v3412, 0.0
      %v3469 = vmax.f32 %v3417, 0.0
      %v3470 = vmax.f32 %v3420, 0.0
      %v3471 = vmax.f32 %v3425, 0.0
      %v3472 = vmax.f32 %v3428, 0.0
      %v3473 = vmax.f32 %v3433, 0.0
      %v3474 = vmax.f32 %v3436, 0.0
      %v3475 = vmax.f32 %v3441, 0.0
      %v3476 = vmax.f32 %v3444, 0.0
      %v3477 = vmax.f32 %v3449, 0.0
      %v3478 = vmax.f32 %v3452, 0.0
      %v3479 = vmax.f32 %v3457, 0.0
      %v3480 = vmax.f32 %v3460, 0.0
      %v3481 = vpack.c.bf16 %v3464, %v3463
      %v3482 = vpack.c.bf16 %v3466, %v3465
      %v3483 = vpack.c.bf16 %v3468, %v3467
      %v3484 = vpack.c.bf16 %v3470, %v3469
      %v3485 = vpack.c.bf16 %v3472, %v3471
      %v3486 = vpack.c.bf16 %v3474, %v3473
      %v3487 = vpack.c.bf16 %v3476, %v3475
      %v3488 = vpack.c.bf16 %v3478, %v3477
      %v3489 = vpack.c.bf16 %v3480, %v3479
      %v3490 = vld [vmem:[%s8] sm:$0xf]
      %v3491 = vld [vmem:[%s8 + $0x4] sm:$0xf]
      %v3492 = vld [vmem:[%s8 + $0x8] sm:$0xf]
      %v3493 = vld [vmem:[%s8 + $0xc] sm:$0xf]
      %v3494 = vld [vmem:[%s8 + $0x10] sm:$0xf]
      %v3495 = vld [vmem:[%s8 + $0x14] sm:$0xf]
      %v3496 = vld [vmem:[%s8 + $0x18] sm:$0xf]
      %v3497 = vld [vmem:[%s8 + $0x1c] sm:$0xf]
      %v3498 = vld [vmem:[%s8 + $0x20] sm:$0xf]
      %v3499 = vld [vmem:[%s8 + $0x24] sm:$0xf]
      %v3500 = vld [vmem:[%s8 + $0x28] sm:$0xf]
      %v3501 = vld [vmem:[%s8 + $0x2c] sm:$0xf]
      %v3502 = vld [vmem:[%s8 + $0x30] sm:$0xf]
      %v3503 = vld [vmem:[%s8 + $0x34] sm:$0xf]
      %v3504 = vld [vmem:[%s8 + $0x38] sm:$0xf]
      %v3505 = vld [vmem:[%s8 + $0x3c] sm:$0xf]
      %v3506 = vld [vmem:[%s9] sm:$0x1]
      %v3508 = vlaneseq
      %v3509 = vshrl.u32 %v3508, 7
      %v3510 = vsub.s32 0, %v3509
      %v3511 = vrot.slane %v3506, %v3510
      %v3529 = vunpack.c.l.b16 %v3490
      %v3530 = vunpack.c.l.b16 %v3491
      %v3531 = vunpack.c.l.b16 %v3492
      %v3532 = vunpack.c.l.b16 %v3493
      %v3533 = vunpack.c.l.b16 %v3494
      %v3534 = vunpack.c.l.b16 %v3495
      %v3535 = vunpack.c.l.b16 %v3496
      %v3536 = vunpack.c.l.b16 %v3497
      %v3537 = vunpack.c.l.b16 %v3498
      %v3538 = vunpack.c.l.b16 %v3499
      %v3539 = vunpack.c.l.b16 %v3500
      %v3540 = vunpack.c.l.b16 %v3501
      %v3541 = vunpack.c.l.b16 %v3502
      %v3542 = vunpack.c.l.b16 %v3503
      %v3543 = vunpack.c.l.b16 %v3504
      %v3544 = vunpack.c.l.b16 %v3505
      %v3545 = vpack.c.b16 %v3530, %v3529
      %v3546 = vpack.c.b16 %v3532, %v3531
      %v3547 = vpack.c.b16 %v3534, %v3533
      %v3548 = vpack.c.b16 %v3536, %v3535
      %v3549 = vpack.c.b16 %v3538, %v3537
      %v3550 = vpack.c.b16 %v3540, %v3539
      %v3551 = vpack.c.b16 %v3542, %v3541
      %v3552 = vpack.c.b16 %v3544, %v3543
      %3561 = vmatprep.subr.bf16.mxu0 0
      %3562 = vmatpush1.bf16.msra.mxu0 %v3545
      %3563 = vmatprep.subr.bf16.mxu0 0
      %3564 = vmatpush1.bf16.msra.mxu0 %v3546
      %3565 = vmatprep.subr.bf16.mxu0 0
      %3566 = vmatpush1.bf16.msra.mxu0 %v3547
      %3567 = vmatprep.subr.bf16.mxu0 0
      %3568 = vmatpush1.bf16.msra.mxu0 %v3548
      %3569 = vmatprep.subr.bf16.mxu0 0
      %3570 = vmatpush1.bf16.msra.mxu0 %v3549
      %3571 = vmatprep.subr.bf16.mxu0 0
      %3572 = vmatpush1.bf16.msra.mxu0 %v3550
      %3573 = vmatprep.subr.bf16.mxu0 0
      %3574 = vmatpush1.bf16.msra.mxu0 %v3551
      %3575 = vmatprep.subr.bf16.mxu0 0
      %3576 = vmatpush1.bf16.msra.mxu0 %v3552
      %3577 = vmatprep.subr.bf16.mxu0 0
      %3578 = vmatpush1.bf16.msra.mxu0 0
      %3579 = vmatprep.subr.bf16.mxu0 0
      %3580 = vmatpush1.bf16.msra.mxu0 0
      %3581 = vmatprep.subr.bf16.mxu0 0
      %3582 = vmatpush1.bf16.msra.mxu0 0
      %3583 = vmatprep.subr.bf16.mxu0 0
      %3584 = vmatpush1.bf16.msra.mxu0 0
      %3585 = vmatprep.subr.bf16.mxu0 0
      %3586 = vmatpush1.bf16.msra.mxu0 0
      %3587 = vmatprep.subr.bf16.mxu0 0
      %3588 = vmatpush1.bf16.msra.mxu0 0
      %3589 = vmatprep.subr.bf16.mxu0 0
      %3590 = vmatpush1.bf16.msra.mxu0 0
      %3591 = vmatprep.subr.bf16.mxu0 0
      %3592 = vmatpush1.bf16.msra.mxu0 0
      %3593 = vmatprep.mubr.bf16.mxu0 0
      %3594 = vmatmul.mubr.bf16.gmra.mrb[0].mxu0 %v3481
      %v3595 = vpop.f32.mrb[0].mxu0
      %v3596 = vadd.f32 %v3511, %v3595
      %v3597 = vpop.f32.mrb[0].mxu0
      %v3598 = vpop.f32.mrb[0].mxu0
      %v3599 = vadd.f32 %v3511, %v3598
      %v3600 = vpop.f32.mrb[0].mxu0
      %3601 = vmatprep.mubr.bf16.mxu0 0
      %3602 = vmatmul.mubr.bf16.gmra.mrb[0].mxu0 %v3482
      %v3603 = vpop.f32.mrb[0].mxu0
      %v3604 = vadd.f32 %v3511, %v3603
      %v3605 = vpop.f32.mrb[0].mxu0
      %v3606 = vpop.f32.mrb[0].mxu0
      %v3607 = vadd.f32 %v3511, %v3606
      %v3608 = vpop.f32.mrb[0].mxu0
      %3609 = vmatprep.mubr.bf16.mxu0 0
      %3610 = vmatmul.mubr.bf16.gmra.mrb[0].mxu0 %v3483
      %v3611 = vpop.f32.mrb[0].mxu0
      %v3612 = vadd.f32 %v3511, %v3611
      %v3613 = vpop.f32.mrb[0].mxu0
      %v3614 = vpop.f32.mrb[0].mxu0
      %v3615 = vadd.f32 %v3511, %v3614
      %v3616 = vpop.f32.mrb[0].mxu0
      %3617 = vmatprep.mubr.bf16.mxu0 0
      %3618 = vmatmul.mubr.bf16.gmra.mrb[0].mxu0 %v3484
      %v3619 = vpop.f32.mrb[0].mxu0
      %v3620 = vadd.f32 %v3511, %v3619
      %v3621 = vpop.f32.mrb[0].mxu0
      %v3622 = vpop.f32.mrb[0].mxu0
      %v3623 = vadd.f32 %v3511, %v3622
      %v3624 = vpop.f32.mrb[0].mxu0
      %3625 = vmatprep.mubr.bf16.mxu0 0
      %3626 = vmatmul.mubr.bf16.gmra.mrb[0].mxu0 %v3485
      %v3627 = vpop.f32.mrb[0].mxu0
      %v3628 = vadd.f32 %v3511, %v3627
      %v3629 = vpop.f32.mrb[0].mxu0
      %v3630 = vpop.f32.mrb[0].mxu0
      %v3631 = vadd.f32 %v3511, %v3630
      %v3632 = vpop.f32.mrb[0].mxu0
      %3633 = vmatprep.mubr.bf16.mxu0 0
      %3634 = vmatmul.mubr.bf16.gmra.mrb[0].mxu0 %v3486
      %v3635 = vpop.f32.mrb[0].mxu0
      %v3636 = vadd.f32 %v3511, %v3635
      %v3637 = vpop.f32.mrb[0].mxu0
      %v3638 = vpop.f32.mrb[0].mxu0
      %v3639 = vadd.f32 %v3511, %v3638
      %v3640 = vpop.f32.mrb[0].mxu0
      %3641 = vmatprep.mubr.bf16.mxu0 0
      %3642 = vmatmul.mubr.bf16.gmra.mrb[0].mxu0 %v3487
      %v3643 = vpop.f32.mrb[0].mxu0
      %v3644 = vadd.f32 %v3511, %v3643
      %v3645 = vpop.f32.mrb[0].mxu0
      %v3646 = vpop.f32.mrb[0].mxu0
      %v3647 = vadd.f32 %v3511, %v3646
      %v3648 = vpop.f32.mrb[0].mxu0
      %3649 = vmatprep.mubr.bf16.mxu0 0
      %3650 = vmatmul.mubr.bf16.gmra.mrb[0].mxu0 %v3488
      %v3651 = vpop.f32.mrb[0].mxu0
      %v3652 = vadd.f32 %v3511, %v3651
      %v3653 = vpop.f32.mrb[0].mxu0
      %v3654 = vpop.f32.mrb[0].mxu0
      %v3655 = vadd.f32 %v3511, %v3654
      %v3656 = vpop.f32.mrb[0].mxu0
      %3657 = vmatprep.mubr.bf16.mxu0 0
      %3658 = vmatmul.mubr.bf16.gmra.mrb[0].mxu0 %v3489
      %v3659 = vpop.f32.mrb[0].mxu0
      %v3660 = vadd.f32 %v3511, %v3659
      %v3661 = vpop.f32.mrb[0].mxu0
      %v3662 = vpop.f32.mrb[0].mxu0
      %v3663 = vadd.f32 %v3511, %v3662
      %v3664 = vpop.f32.mrb[0].mxu0
      %3665 = vdwg.mxu0
      %3666 = vst [vmem:[%s526] sm:$0xff] %v3596
      %3667 = vst [vmem:[%s526 + $0x8] sm:$0xff] %v3599
      %s3668 = scalar_lea.vmem %s526, 16
      %3669 = vst [vmem:[%s3668 - $0x2] sm:$0xfc] %v3604
      %3670 = vst [vmem:[%s3668 + $0x6] sm:$0xff] %v3607
      %3671 = vst [vmem:[%s3668 + $0xe] sm:$0x3] %v3612
      %s3672 = scalar_lea.vmem %s526, 32
      %3673 = vst [vmem:[%s3672 - $0x4] sm:$0xf0] %v3612
      %3674 = vst [vmem:[%s3672 + $0x4] sm:$0xff] %v3615
      %3675 = vst [vmem:[%s3672 + $0xc] sm:$0xf] %v3620
      %s3676 = scalar_lea.vmem %s526, 48
      %3677 = vst [vmem:[%s3676 - $0x6] sm:$0xc0] %v3620
      %3678 = vst [vmem:[%s3676 + $0x2] sm:$0xff] %v3623
      %3679 = vst [vmem:[%s3676 + $0xa] sm:$0x3f] %v3628
      %s3680 = scalar_lea.vmem %s526, 64
      %3681 = vst [vmem:[%s3680] sm:$0xff] %v3631
      %3682 = vst [vmem:[%s3680 + $0x8] sm:$0xff] %v3636
      %s3683 = scalar_lea.vmem %s526, 80
      %3684 = vst [vmem:[%s3683 - $0x2] sm:$0xfc] %v3639
      %3685 = vst [vmem:[%s3683 + $0x6] sm:$0xff] %v3644
      %3686 = vst [vmem:[%s3683 + $0xe] sm:$0x3] %v3647
      %s3687 = scalar_lea.vmem %s526, 96
      %3688 = vst [vmem:[%s3687 - $0x4] sm:$0xf0] %v3647
      %3689 = vst [vmem:[%s3687 + $0x4] sm:$0xff] %v3652
      %3690 = vst [vmem:[%s3687 + $0xc] sm:$0xf] %v3655
      %s3691 = scalar_lea.vmem %s526, 112
      %3692 = vst [vmem:[%s3691 - $0x6] sm:$0xc0] %v3655
      %3693 = vst [vmem:[%s3691 + $0x2] sm:$0xff] %v3660
      %3694 = vst [vmem:[%s3691 + $0xa] sm:$0x3f] %v3663
      %s3695 = smul.u32 8, %s26
      %p3696 = scmp.lt.s32.totalorder %s25, 1
      %s3697 = scalar_select %p3696, %s25, 1
      %p3698 = scmp.lt.s32.totalorder %s3695, 15
      %s3699 = scalar_select %p3698, %s3695, 15
      %s3700 = smul.addr %s3699, 2
      %s3701 = smul.addr %s3697, 32
      %s3702 = sadd.s32 %s3700, %s3701
      %s3703 = smul.addr %s3702, 8
      %s3704 = scalar_lea.vmem %s10, %s3703
      // Predicated region
      $region69: #{mean_teacher_forward_test.3} parent=59 // pred_check
        %p3705 = pneg %p300
      $region70: #{mean_teacher_forward_test.3} parent=59 // pred_check_branch
        %3707 = sbr.rel (%p3705) target = $region72
      $region71: #{mean_teacher_forward_test.3} parent=59 // pred_region
        %s3708 = smul.u32 8, %s26
      $region72: #{mean_teacher_forward_test.3} parent=59 // pred_fallthru
        _
    $region60: #{mean_teacher_forward_test.3} parent=5 // pred_fallthru
      _
    %p3709 = scmp.le.s32.totalorder 2, %s16
    // Predicated region
    $region73: #{mean_teacher_forward_test.3} parent=5 // pred_check
      %p3710 = pneg %p3709
    $region74: #{mean_teacher_forward_test.3} parent=5 // pred_check_branch
      %3712 = sbr.rel (%p3710) target = $region76
    $region75: #{mean_teacher_forward_test.3} parent=5 // pred_region
      %s3713 = ssub.s32 %s16, 2
      // Predicated region
      $region77: #{mean_teacher_forward_test.3} parent=75 // pred_check
        %p3714 = pneg %p306
      $region78: #{mean_teacher_forward_test.3} parent=75 // pred_check_branch
        %3716 = sbr.rel (%p3714) target = $region80
      $region79: #{mean_teacher_forward_test.3} parent=75 // pred_region
        %s3717 = smul.u32 8, %s28
        %p3718 = scmp.lt.s32.totalorder %s27, 1
        %s3719 = scalar_select %p3718, %s27, 1
        %p3720 = scmp.lt.s32.totalorder %s3717, 15
        %s3721 = scalar_select %p3720, %s3717, 15
        %s3722 = smul.addr %s3721, 2
        %s3723 = smul.addr %s3719, 32
        %s3724 = sadd.s32 %s3722, %s3723
        %s3725 = smul.addr %s3724, 8
        %s3726 = scalar_lea.vmem %s10, %s3725
      $region80: #{mean_teacher_forward_test.3} parent=75 // pred_fallthru
        _
    $region76: #{mean_teacher_forward_test.3} parent=5 // pred_fallthru
      _
  $region6: #{mean_teacher_forward_test.3} parent=0 // loop_footer
    %s20 = sadd.s32 1, %s16
  $region7: #{mean_teacher_forward_test.3} parent=0 // loop_footer_branch
    %15 = sbr.rel target = $region3
  $region8: #{mean_teacher_forward_test.3} parent=0 // loop_exit
    _

</llo_original>
